<compile_context>
chip_gen: v6e
topology: v6e:2x2x1
jax: 0.10.0
libtpu: 0.0.40
codegen_flags: <defaults>
</compile_context>

<pallas_src>
import jax
import jax.numpy as jnp
from jax.experimental import pallas as pl
from jax.experimental.pallas import tpu as pltpu


# ----------------------------------------------------------------------------
# Pallas kernel: one grid step == one (batch tile, time block).
# h/c carry lives in f32 VMEM scratch and persists across the time axis.
# ----------------------------------------------------------------------------
def _mlstm_kernel(x_ref, mask_ref, h0_ref, c0_ref,
                  wxcat_ref, wmh_ref, wh_ref, bh_ref,
                  hs_ref, hf_ref, cf_ref,
                  h_scr, c_scr):
    t_blk = pl.program_id(1)

    @pl.when(t_blk == 0)
    def _():
        h_scr[...] = h0_ref[...].astype(jnp.float32)
        c_scr[...] = c0_ref[...].astype(jnp.float32)

    hsize = h_scr.shape[-1]

    # Hoist all block loads out of the unrolled time loop.
    x_blk = x_ref[...]                          # (TB, TT, I)
    m_blk = mask_ref[...].astype(jnp.float32)   # (TB, TT, 1)
    wxcat = wxcat_ref[...]                      # (I, 5H) == [wmx | wx]
    wmh = wmh_ref[...]                          # (H, H)
    wh = wh_ref[...]                            # (H, 4H)
    bh = bh_ref[...].astype(jnp.float32)        # (1, 4H)
    cdt = wxcat.dtype                           # matmul operand dtype (f32/bf16)

    h = h_scr[...]                              # (TB, H) f32 carry
    c = c_scr[...]

    n_tt = x_blk.shape[1]
    for tt in range(n_tt):                      # static unroll over the block
        x_t = x_blk[:, tt, :].astype(cdt)       # (TB, I)
        seqmask = m_blk[:, tt, :]               # (TB, 1)

        # Fused x-side projection: one MXU matmul gives wmx(x) and wx(x).
        xz = jnp.dot(x_t, wxcat, preferred_element_type=jnp.float32)     # (TB, 5H)
        m = xz[:, :hsize] * jnp.dot(h.astype(cdt), wmh,
                                    preferred_element_type=jnp.float32)  # (TB, H)
        z = (xz[:, hsize:]
             + jnp.dot(m.astype(cdt), wh, preferred_element_type=jnp.float32)
             + bh)                                                        # (TB, 4H)

        # NOTE: for production sizes (H ~ 1900) pad H to a multiple of 128 so
        # these gate slices land on lane-tile boundaries (free views).
        i = jax.nn.sigmoid(z[:, 0 * hsize:1 * hsize])
        f = jax.nn.sigmoid(z[:, 1 * hsize:2 * hsize])
        o = jax.nn.sigmoid(z[:, 2 * hsize:3 * hsize])
        u = jnp.tanh(z[:, 3 * hsize:4 * hsize])

        c_new = f * c + i * u
        h_new = o * jnp.tanh(c_new)

        # Sequence mask: keep previous state where mask == 0 (single FMA blend).
        h = h + seqmask * (h_new - h)
        c = c + seqmask * (c_new - c)

        hs_ref[:, tt:tt + 1, :] = h.astype(hs_ref.dtype)[:, None, :]

    h_scr[...] = h
    c_scr[...] = c

    # Final state written only once, on the last time block.
    @pl.when(t_blk == pl.num_programs(1) - 1)
    def _():
        hf_ref[...] = h.astype(hf_ref.dtype)
        cf_ref[...] = c.astype(cf_ref.dtype)


# ----------------------------------------------------------------------------
# Wrapper: weight_norm reparameterization (torch.nn.utils.weight_norm, dim=0
# -> per-output-row norm), weight fusion, padding, and the pallas_call.
# ----------------------------------------------------------------------------
def _wn(v, g):
    # v: [out, in], g: [out]  ->  W = g * v / ||v||_row
    norm = jnp.sqrt(jnp.sum(v * v, axis=1, keepdims=True))
    return (g[:, None] * v) / norm


def mlstm_forward(inputs, params, state=None, mask=None, *,
                  time_block=16, batch_block=None,
                  compute_dtype=jnp.float32):
    """inputs: [B, T, I]. Returns (hs [B, T, H], (h_final, c_final))."""
    B, T, I = inputs.shape
    H = params["wmh_v"].shape[0]
    out_dtype = inputs.dtype

    TB = B if batch_block is None else int(batch_block)
    if B % TB != 0 or not (TB == B or TB % 8 == 0):
        raise ValueError("batch_block must divide B and be a multiple of 8 (or == B)")

    # Effective (weight-normed) weights, transposed to [in, out] for x @ W.
    # The two x-side projections are fused into a single [I, 5H] matrix.
    wmx = _wn(params["wmx_v"], params["wmx_g"]).T                       # [I, H]
    wx = _wn(params["wx_v"], params["wx_g"]).T                          # [I, 4H]
    wxcat = jnp.concatenate([wmx, wx], axis=1).astype(compute_dtype)    # [I, 5H]
    wmh = _wn(params["wmh_v"], params["wmh_g"]).T.astype(compute_dtype)  # [H, H]
    wh = _wn(params["wh_v"], params["wh_g"]).T.astype(compute_dtype)     # [H, 4H]
    bh = params["wh_b"].reshape(1, 4 * H).astype(jnp.float32)            # [1, 4H]

    if mask is None:
        mask = jnp.ones((B, T, 1), jnp.float32)
    elif mask.ndim == 2:
        mask = mask[:, :, None]
    mask = mask.astype(jnp.float32)

    if state is None:
        zeros = jnp.zeros((B, H), jnp.float32)
        state = (zeros, zeros)
    h0 = state[0].astype(jnp.float32)
    c0 = state[1].astype(jnp.float32)

    # Time blocking: TT timesteps per grid step (multiple of 8 for sublane
    # tiling); pad the sequence with mask == 0 steps (state passes through).
    TT = max(8, 8 * ((int(time_block) + 7) // 8))
    T_pad = TT * pl.cdiv(T, TT)
    x_in = inputs.astype(compute_dtype)
    if T_pad != T:
        pad = ((0, 0), (0, T_pad - T), (0, 0))
        x_in = jnp.pad(x_in, pad)
        mask = jnp.pad(mask, pad)

    nb, nt = B // TB, T_pad // TT

    # Rough VMEM budget (single-buffered weights + double-buffered I/O blocks)
    # used to raise the default scoped-VMEM limit when H is large.
    wdt = jnp.dtype(compute_dtype).itemsize
    odt = jnp.dtype(out_dtype).itemsize
    wbytes = (I * 5 * H + H * H + H * 4 * H) * wdt + 4 * H * 4
    blkbytes = TB * TT * (I * wdt + 4 + H * odt)
    statebytes = 8 * TB * H * 4
    vmem_limit = int(min(64 * 2 ** 20,
                         max(32 * 2 ** 20, 3 * (wbytes + 2 * blkbytes + statebytes))))

    cost = pl.CostEstimate(
        flops=2 * B * T_pad * (I * 5 * H + H * H + H * 4 * H) + 12 * B * T_pad * H,
        transcendentals=5 * B * T_pad * H,          # 3 sigmoid + 2 tanh / elem / step
        bytes_accessed=int(B * T_pad * (I * wdt + 4 + H * odt)
                           + wbytes + 4 * B * H * 4),
    )

    def call(single_buffer_consts):
        const_kw = {"pipeline_mode": pl.Buffered(1)} if single_buffer_consts else {}
        grid_spec = pltpu.PrefetchScalarGridSpec(
            num_scalar_prefetch=0,
            grid=(nb, nt),
            in_specs=[
                pl.BlockSpec((TB, TT, I), lambda b, t: (b, t, 0)),            # x block
                pl.BlockSpec((TB, TT, 1), lambda b, t: (b, t, 0)),            # mask block
                pl.BlockSpec((TB, H), lambda b, t: (b, 0)),                   # h0
                pl.BlockSpec((TB, H), lambda b, t: (b, 0)),                   # c0
                pl.BlockSpec((I, 5 * H), lambda b, t: (0, 0), **const_kw),    # [wmx|wx]
                pl.BlockSpec((H, H), lambda b, t: (0, 0), **const_kw),        # wmh
                pl.BlockSpec((H, 4 * H), lambda b, t: (0, 0), **const_kw),    # wh
                pl.BlockSpec((1, 4 * H), lambda b, t: (0, 0), **const_kw),    # bias
            ],
            out_specs=[
                pl.BlockSpec((TB, TT, H), lambda b, t: (b, t, 0)),            # hidden seq
                pl.BlockSpec((TB, H), lambda b, t: (b, 0)),                   # final h
                pl.BlockSpec((TB, H), lambda b, t: (b, 0)),                   # final c
            ],
            scratch_shapes=[
                pltpu.VMEM((TB, H), jnp.float32),                             # h carry
                pltpu.VMEM((TB, H), jnp.float32),                             # c carry
            ],
        )
        out = pl.pallas_call(
            _mlstm_kernel,
            out_shape=(jax.ShapeDtypeStruct((B, T_pad, H), out_dtype),
                       jax.ShapeDtypeStruct((B, H), out_dtype),
                       jax.ShapeDtypeStruct((B, H), out_dtype)),
            grid_spec=grid_spec,
            compiler_params=pltpu.CompilerParams(
                dimension_semantics=("parallel", "arbitrary"),  # batch || cores; time sequential
                vmem_limit_bytes=vmem_limit),
            cost_estimate=cost,
        )(x_in, mask, h0, c0, wxcat, wmh, wh, bh)
        return jax.block_until_ready(out)

    try:
        hs_pad, hf, cf = call(True)
    except Exception:
        # pl.Buffered(1) (single-buffered constant operands) not available on
        # this jax build -> fall back to default double buffering.
        hs_pad, hf, cf = call(False)

    hs = hs_pad[:, :T, :] if T_pad != T else hs_pad
    return hs, (hf, cf)


# ----------------------------------------------------------------------------
# Pure-JAX reference (mirrors the PyTorch forward) for correctness checking.
# ----------------------------------------------------------------------------
def mlstm_reference(inputs, params, state=None, mask=None):
    B, T, I = inputs.shape
    H = params["wmh_v"].shape[0]
    wmx = _wn(params["wmx_v"], params["wmx_g"])
    wmh = _wn(params["wmh_v"], params["wmh_g"])
    wx = _wn(params["wx_v"], params["wx_g"])
    wh = _wn(params["wh_v"], params["wh_g"])
    bh = params["wh_b"]
    if mask is None:
        mask = jnp.ones((B, T, 1), inputs.dtype)
    elif mask.ndim == 2:
        mask = mask[:, :, None]
    if state is None:
        zeros = jnp.zeros((B, H), inputs.dtype)
        state = (zeros, zeros)

    def step(carry, xs):
        h_prev, c_prev = carry
        x_t, m_t = xs
        m = (x_t @ wmx.T) * (h_prev @ wmh.T)
        z = x_t @ wx.T + m @ wh.T + bh
        i, f, o, u = jnp.split(z, 4, axis=1)
        i, f, o = jax.nn.sigmoid(i), jax.nn.sigmoid(f), jax.nn.sigmoid(o)
        u = jnp.tanh(u)
        c = f * c_prev + i * u
        h = o * jnp.tanh(c)
        h = m_t * h + (1 - m_t) * h_prev
        c = m_t * c + (1 - m_t) * c_prev
        return (h, c), h

    (hf, cf), hs = jax.lax.scan(
        step, state,
        (jnp.transpose(inputs, (1, 0, 2)), jnp.transpose(mask, (1, 0, 2))))
    return jnp.transpose(hs, (1, 0, 2)), (hf, cf)


if __name__ == "__main__":
    B, T, I, H = 2, 20, 32, 32   # T = 20 -> padded to 24 (3 time blocks of 8)
    key = jax.random.PRNGKey(0)
    ks = jax.random.split(key, 12)

    params = {
        "wmx_v": jax.random.normal(ks[0], (H, I), jnp.float32) * 0.1,
        "wmx_g": 1.0 + 0.1 * jax.random.normal(ks[1], (H,), jnp.float32),
        "wmh_v": jax.random.normal(ks[2], (H, H), jnp.float32) * 0.1,
        "wmh_g": 1.0 + 0.1 * jax.random.normal(ks[3], (H,), jnp.float32),
        "wx_v": jax.random.normal(ks[4], (4 * H, I), jnp.float32) * 0.1,
        "wx_g": 1.0 + 0.1 * jax.random.normal(ks[5], (4 * H,), jnp.float32),
        "wh_v": jax.random.normal(ks[6], (4 * H, H), jnp.float32) * 0.1,
        "wh_g": 1.0 + 0.1 * jax.random.normal(ks[7], (4 * H,), jnp.float32),
        "wh_b": 0.1 * jax.random.normal(ks[8], (4 * H,), jnp.float32),
    }

    inputs = jax.random.normal(ks[9], (B, T, I), jnp.float32)
    # mask with a few zeros to exercise the masking / padding path
    mask = (jax.random.uniform(ks[10], (B, T)) > 0.25).astype(jnp.float32)

    hs, (hf, cf) = mlstm_forward(inputs, params, mask=mask, time_block=8)
    hs, hf, cf = jax.block_until_ready((hs, hf, cf))

    hs_ref, (hf_ref, cf_ref) = mlstm_reference(inputs, params, mask=mask)
    assert hs.shape == (B, T, H) and hf.shape == (B, H) and cf.shape == (B, H)
    assert jnp.allclose(hs, hs_ref, atol=1e-4, rtol=1e-4), \
        float(jnp.max(jnp.abs(hs - hs_ref)))
    assert jnp.allclose(hf, hf_ref, atol=1e-4, rtol=1e-4)
    assert jnp.allclose(cf, cf_ref, atol=1e-4, rtol=1e-4)

    # bf16 matmul-operand path (2x MXU throughput on v5e/v6e/v7x); the h/c
    # carry, accumulation and gate math stay in f32 -> loose tolerance.
    hs16, (hf16, cf16) = mlstm_forward(inputs, params, mask=mask,
                                       time_block=8, compute_dtype=jnp.bfloat16)
    hs16 = jax.block_until_ready(hs16)
    assert hs16.shape == (B, T, H)
    assert float(jnp.max(jnp.abs(hs16 - hs_ref))) < 0.2

    print("KERNEL_OK")
</pallas_src>

<mosaic_0001>
module attributes {stable_mosaic.version = 11 : i64} {
  func.func @_mlstm_kernel(%arg0: i32, %arg1: i32, %arg2: memref<2x8x32xf32, #tpu.memory_space<vmem>>, %arg3: memref<2x8x1xf32, #tpu.memory_space<vmem>>, %arg4: memref<2x32xf32, #tpu.memory_space<vmem>>, %arg5: memref<2x32xf32, #tpu.memory_space<vmem>>, %arg6: memref<32x160xf32, #tpu.memory_space<vmem>>, %arg7: memref<32x32xf32, #tpu.memory_space<vmem>>, %arg8: memref<32x128xf32, #tpu.memory_space<vmem>>, %arg9: memref<1x128xf32, #tpu.memory_space<vmem>>, %arg10: memref<2x8x32xf32, #tpu.memory_space<vmem>>, %arg11: memref<2x32xf32, #tpu.memory_space<vmem>>, %arg12: memref<2x32xf32, #tpu.memory_space<vmem>>, %arg13: memref<2x32xf32, #tpu.memory_space<vmem>>, %arg14: memref<2x32xf32, #tpu.memory_space<vmem>>) attributes {dimension_semantics = [#tpu.dimension_semantics<parallel>, #tpu.dimension_semantics<arbitrary>], iteration_bounds = array<i64: 1, 3>, scalar_prefetch = 0 : i64, scratch_operands = 2 : i64, tpu.core_type = #tpu.core_type<tc>, window_params = [{transform_indices = @transform_0, window_bounds = array<i64: 2, 8, 32>}, {transform_indices = @transform_1, window_bounds = array<i64: 2, 8, 1>}, {transform_indices = @transform_2, window_bounds = array<i64: 2, 32>}, {transform_indices = @transform_3, window_bounds = array<i64: 2, 32>}, {pipeline_mode = #tpu.pipeline_mode<synchronous>, transform_indices = @transform_4, window_bounds = array<i64: 32, 160>}, {pipeline_mode = #tpu.pipeline_mode<synchronous>, transform_indices = @transform_5, window_bounds = array<i64: 32, 32>}, {pipeline_mode = #tpu.pipeline_mode<synchronous>, transform_indices = @transform_6, window_bounds = array<i64: 32, 128>}, {pipeline_mode = #tpu.pipeline_mode<synchronous>, transform_indices = @transform_7, window_bounds = array<i64: 1, 128>}, {transform_indices = @transform_8, window_bounds = array<i64: 2, 8, 32>}, {transform_indices = @transform_9, window_bounds = array<i64: 2, 32>}, {transform_indices = @transform_10, window_bounds = array<i64: 2, 32>}]} {
    %c0_i32 = arith.constant 0 : i32
    %0 = arith.cmpi eq, %arg1, %c0_i32 : i32
    %1 = arith.extui %0 : i1 to i32
    %c0_i32_0 = arith.constant 0 : i32
    %2 = arith.cmpi ne, %1, %c0_i32_0 : i32
    scf.if %2 {
      %c0_87 = arith.constant 0 : index
      %c0_88 = arith.constant 0 : index
      %400 = vector.load %arg4[%c0_87, %c0_88] : memref<2x32xf32, #tpu.memory_space<vmem>>, vector<2x32xf32>
      %c0_89 = arith.constant 0 : index
      %c0_90 = arith.constant 0 : index
      %401 = vector.load %arg13[%c0_89, %c0_90] : memref<2x32xf32, #tpu.memory_space<vmem>>, vector<2x32xf32>
      tpu.vector_store %arg13[%c0_89, %c0_90], %400 {strides = array<i32>} : memref<2x32xf32, #tpu.memory_space<vmem>>, vector<2x32xf32>,
      %c0_91 = arith.constant 0 : index
      %c0_92 = arith.constant 0 : index
      %402 = vector.load %arg5[%c0_91, %c0_92] : memref<2x32xf32, #tpu.memory_space<vmem>>, vector<2x32xf32>
      %c0_93 = arith.constant 0 : index
      %c0_94 = arith.constant 0 : index
      %403 = vector.load %arg14[%c0_93, %c0_94] : memref<2x32xf32, #tpu.memory_space<vmem>>, vector<2x32xf32>
      tpu.vector_store %arg14[%c0_93, %c0_94], %402 {strides = array<i32>} : memref<2x32xf32, #tpu.memory_space<vmem>>, vector<2x32xf32>,
    } else {
    }
    %c0 = arith.constant 0 : index
    %c0_1 = arith.constant 0 : index
    %c0_2 = arith.constant 0 : index
    %3 = vector.load %arg2[%c0, %c0_1, %c0_2] : memref<2x8x32xf32, #tpu.memory_space<vmem>>, vector<2x8x32xf32>
    %c0_3 = arith.constant 0 : index
    %c0_4 = arith.constant 0 : index
    %c0_5 = arith.constant 0 : index
    %4 = vector.load %arg3[%c0_3, %c0_4, %c0_5] : memref<2x8x1xf32, #tpu.memory_space<vmem>>, vector<2x8x1xf32>
    %c0_6 = arith.constant 0 : index
    %c0_7 = arith.constant 0 : index
    %5 = vector.load %arg6[%c0_6, %c0_7] : memref<32x160xf32, #tpu.memory_space<vmem>>, vector<32x160xf32>
    %c0_8 = arith.constant 0 : index
    %c0_9 = arith.constant 0 : index
    %6 = vector.load %arg7[%c0_8, %c0_9] : memref<32x32xf32, #tpu.memory_space<vmem>>, vector<32x32xf32>
    %c0_10 = arith.constant 0 : index
    %c0_11 = arith.constant 0 : index
    %7 = vector.load %arg8[%c0_10, %c0_11] : memref<32x128xf32, #tpu.memory_space<vmem>>, vector<32x128xf32>
    %c0_12 = arith.constant 0 : index
    %c0_13 = arith.constant 0 : index
    %8 = vector.load %arg9[%c0_12, %c0_13] : memref<1x128xf32, #tpu.memory_space<vmem>>, vector<1x128xf32>
    %c0_14 = arith.constant 0 : index
    %c0_15 = arith.constant 0 : index
    %9 = vector.load %arg13[%c0_14, %c0_15] : memref<2x32xf32, #tpu.memory_space<vmem>>, vector<2x32xf32>
    %c0_16 = arith.constant 0 : index
    %c0_17 = arith.constant 0 : index
    %10 = vector.load %arg14[%c0_16, %c0_17] : memref<2x32xf32, #tpu.memory_space<vmem>>, vector<2x32xf32>
    %11 = vector.extract_strided_slice %3 {offsets = [0, 0, 0], sizes = [2, 1, 32], strides = [1, 1, 1]} : vector<2x8x32xf32> to vector<2x1x32xf32>
    %12 = vector.shape_cast %11 : vector<2x1x32xf32> to vector<2x32xf32>
    %13 = vector.extract_strided_slice %4 {offsets = [0, 0, 0], sizes = [2, 1, 1], strides = [1, 1, 1]} : vector<2x8x1xf32> to vector<2x1x1xf32>
    %14 = vector.shape_cast %13 : vector<2x1x1xf32> to vector<2x1xf32>
    %cst = arith.constant dense<0.000000e+00> : vector<2x160xf32>
    %15 = tpu.matmul %12, %5, %cst {dimension_numbers = #tpu.dot_dimension_numbers<[1], [0], [0], [1], [0, 0, 1, 1], [], []>} : vector<2x32xf32>, vector<32x160xf32>, vector<2x160xf32> -> vector<2x160xf32>
    %16 = vector.extract_strided_slice %15 {offsets = [0, 0], sizes = [2, 32], strides = [1, 1]} : vector<2x160xf32> to vector<2x32xf32>
    %cst_18 = arith.constant dense<0.000000e+00> : vector<2x32xf32>
    %17 = tpu.matmul %9, %6, %cst_18 {dimension_numbers = #tpu.dot_dimension_numbers<[1], [0], [0], [1], [0, 0, 1, 1], [], []>} : vector<2x32xf32>, vector<32x32xf32>, vector<2x32xf32> -> vector<2x32xf32>
    %18 = arith.mulf %16, %17 : vector<2x32xf32>
    %19 = vector.extract_strided_slice %15 {offsets = [0, 32], sizes = [2, 128], strides = [1, 1]} : vector<2x160xf32> to vector<2x128xf32>
    %cst_19 = arith.constant dense<0.000000e+00> : vector<2x128xf32>
    %20 = tpu.matmul %18, %7, %cst_19 {dimension_numbers = #tpu.dot_dimension_numbers<[1], [0], [0], [1], [0, 0, 1, 1], [], []>} : vector<2x32xf32>, vector<32x128xf32>, vector<2x128xf32> -> vector<2x128xf32>
    %21 = arith.addf %19, %20 : vector<2x128xf32>
    %22 = vector.broadcast %8 : vector<1x128xf32> to vector<2x128xf32>
    %23 = arith.addf %21, %22 : vector<2x128xf32>
    %24 = vector.extract_strided_slice %23 {offsets = [0, 0], sizes = [2, 32], strides = [1, 1]} : vector<2x128xf32> to vector<2x32xf32>
    %25 = arith.negf %24 : vector<2x32xf32>
    %26 = math.exp %25 : vector<2x32xf32>
    %cst_20 = arith.constant 1.000000e+00 : f32
    %27 = vector.broadcast %cst_20 : f32 to vector<2x32xf32>
    %28 = arith.addf %27, %26 : vector<2x32xf32>
    %29 = arith.divf %27, %28 : vector<2x32xf32>
    %30 = vector.extract_strided_slice %23 {offsets = [0, 32], sizes = [2, 32], strides = [1, 1]} : vector<2x128xf32> to vector<2x32xf32>
    %31 = arith.negf %30 : vector<2x32xf32>
    %32 = math.exp %31 : vector<2x32xf32>
    %cst_21 = arith.constant 1.000000e+00 : f32
    %33 = vector.broadcast %cst_21 : f32 to vector<2x32xf32>
    %34 = arith.addf %33, %32 : vector<2x32xf32>
    %35 = arith.divf %33, %34 : vector<2x32xf32>
    %36 = vector.extract_strided_slice %23 {offsets = [0, 64], sizes = [2, 32], strides = [1, 1]} : vector<2x128xf32> to vector<2x32xf32>
    %37 = arith.negf %36 : vector<2x32xf32>
    %38 = math.exp %37 : vector<2x32xf32>
    %cst_22 = arith.constant 1.000000e+00 : f32
    %39 = vector.broadcast %cst_22 : f32 to vector<2x32xf32>
    %40 = arith.addf %39, %38 : vector<2x32xf32>
    %41 = arith.divf %39, %40 : vector<2x32xf32>
    %42 = vector.extract_strided_slice %23 {offsets = [0, 96], sizes = [2, 32], strides = [1, 1]} : vector<2x128xf32> to vector<2x32xf32>
    %43 = math.tanh %42 : vector<2x32xf32>
    %44 = arith.mulf %35, %10 : vector<2x32xf32>
    %45 = arith.mulf %29, %43 : vector<2x32xf32>
    %46 = arith.addf %44, %45 : vector<2x32xf32>
    %47 = math.tanh %46 : vector<2x32xf32>
    %48 = arith.mulf %41, %47 : vector<2x32xf32>
    %49 = arith.subf %48, %9 : vector<2x32xf32>
    %50 = vector.broadcast %14 : vector<2x1xf32> to vector<2x32xf32>
    %51 = arith.mulf %50, %49 : vector<2x32xf32>
    %52 = arith.addf %9, %51 : vector<2x32xf32>
    %53 = arith.subf %46, %10 : vector<2x32xf32>
    %54 = vector.broadcast %14 : vector<2x1xf32> to vector<2x32xf32>
    %55 = arith.mulf %54, %53 : vector<2x32xf32>
    %56 = arith.addf %10, %55 : vector<2x32xf32>
    %57 = vector.shape_cast %52 : vector<2x32xf32> to vector<2x1x32xf32>
    %c0_23 = arith.constant 0 : index
    %c0_24 = arith.constant 0 : index
    %c0_25 = arith.constant 0 : index
    %58 = vector.load %arg10[%c0_23, %c0_24, %c0_25] : memref<2x8x32xf32, #tpu.memory_space<vmem>>, vector<2x1x32xf32>
    tpu.vector_store %arg10[%c0_23, %c0_24, %c0_25], %57 {strides = array<i32>} : memref<2x8x32xf32, #tpu.memory_space<vmem>>, vector<2x1x32xf32>,
    %59 = vector.extract_strided_slice %3 {offsets = [0, 1, 0], sizes = [2, 1, 32], strides = [1, 1, 1]} : vector<2x8x32xf32> to vector<2x1x32xf32>
    %60 = vector.shape_cast %59 : vector<2x1x32xf32> to vector<2x32xf32>
    %61 = vector.extract_strided_slice %4 {offsets = [0, 1, 0], sizes = [2, 1, 1], strides = [1, 1, 1]} : vector<2x8x1xf32> to vector<2x1x1xf32>
    %62 = vector.shape_cast %61 : vector<2x1x1xf32> to vector<2x1xf32>
    %cst_26 = arith.constant dense<0.000000e+00> : vector<2x160xf32>
    %63 = tpu.matmul %60, %5, %cst_26 {dimension_numbers = #tpu.dot_dimension_numbers<[1], [0], [0], [1], [0, 0, 1, 1], [], []>} : vector<2x32xf32>, vector<32x160xf32>, vector<2x160xf32> -> vector<2x160xf32>
    %64 = vector.extract_strided_slice %63 {offsets = [0, 0], sizes = [2, 32], strides = [1, 1]} : vector<2x160xf32> to vector<2x32xf32>
    %cst_27 = arith.constant dense<0.000000e+00> : vector<2x32xf32>
    %65 = tpu.matmul %52, %6, %cst_27 {dimension_numbers = #tpu.dot_dimension_numbers<[1], [0], [0], [1], [0, 0, 1, 1], [], []>} : vector<2x32xf32>, vector<32x32xf32>, vector<2x32xf32> -> vector<2x32xf32>
    %66 = arith.mulf %64, %65 : vector<2x32xf32>
    %67 = vector.extract_strided_slice %63 {offsets = [0, 32], sizes = [2, 128], strides = [1, 1]} : vector<2x160xf32> to vector<2x128xf32>
    %cst_28 = arith.constant dense<0.000000e+00> : vector<2x128xf32>
    %68 = tpu.matmul %66, %7, %cst_28 {dimension_numbers = #tpu.dot_dimension_numbers<[1], [0], [0], [1], [0, 0, 1, 1], [], []>} : vector<2x32xf32>, vector<32x128xf32>, vector<2x128xf32> -> vector<2x128xf32>
    %69 = arith.addf %67, %68 : vector<2x128xf32>
    %70 = vector.broadcast %8 : vector<1x128xf32> to vector<2x128xf32>
    %71 = arith.addf %69, %70 : vector<2x128xf32>
    %72 = vector.extract_strided_slice %71 {offsets = [0, 0], sizes = [2, 32], strides = [1, 1]} : vector<2x128xf32> to vector<2x32xf32>
    %73 = arith.negf %72 : vector<2x32xf32>
    %74 = math.exp %73 : vector<2x32xf32>
    %cst_29 = arith.constant 1.000000e+00 : f32
    %75 = vector.broadcast %cst_29 : f32 to vector<2x32xf32>
    %76 = arith.addf %75, %74 : vector<2x32xf32>
    %77 = arith.divf %75, %76 : vector<2x32xf32>
    %78 = vector.extract_strided_slice %71 {offsets = [0, 32], sizes = [2, 32], strides = [1, 1]} : vector<2x128xf32> to vector<2x32xf32>
    %79 = arith.negf %78 : vector<2x32xf32>
    %80 = math.exp %79 : vector<2x32xf32>
    %cst_30 = arith.constant 1.000000e+00 : f32
    %81 = vector.broadcast %cst_30 : f32 to vector<2x32xf32>
    %82 = arith.addf %81, %80 : vector<2x32xf32>
    %83 = arith.divf %81, %82 : vector<2x32xf32>
    %84 = vector.extract_strided_slice %71 {offsets = [0, 64], sizes = [2, 32], strides = [1, 1]} : vector<2x128xf32> to vector<2x32xf32>
    %85 = arith.negf %84 : vector<2x32xf32>
    %86 = math.exp %85 : vector<2x32xf32>
    %cst_31 = arith.constant 1.000000e+00 : f32
    %87 = vector.broadcast %cst_31 : f32 to vector<2x32xf32>
    %88 = arith.addf %87, %86 : vector<2x32xf32>
    %89 = arith.divf %87, %88 : vector<2x32xf32>
    %90 = vector.extract_strided_slice %71 {offsets = [0, 96], sizes = [2, 32], strides = [1, 1]} : vector<2x128xf32> to vector<2x32xf32>
    %91 = math.tanh %90 : vector<2x32xf32>
    %92 = arith.mulf %83, %56 : vector<2x32xf32>
    %93 = arith.mulf %77, %91 : vector<2x32xf32>
    %94 = arith.addf %92, %93 : vector<2x32xf32>
    %95 = math.tanh %94 : vector<2x32xf32>
    %96 = arith.mulf %89, %95 : vector<2x32xf32>
    %97 = arith.subf %96, %52 : vector<2x32xf32>
    %98 = vector.broadcast %62 : vector<2x1xf32> to vector<2x32xf32>
    %99 = arith.mulf %98, %97 : vector<2x32xf32>
    %100 = arith.addf %52, %99 : vector<2x32xf32>
    %101 = arith.subf %94, %56 : vector<2x32xf32>
    %102 = vector.broadcast %62 : vector<2x1xf32> to vector<2x32xf32>
    %103 = arith.mulf %102, %101 : vector<2x32xf32>
    %104 = arith.addf %56, %103 : vector<2x32xf32>
    %105 = vector.shape_cast %100 : vector<2x32xf32> to vector<2x1x32xf32>
    %c0_32 = arith.constant 0 : index
    %c1 = arith.constant 1 : index
    %c0_33 = arith.constant 0 : index
    %106 = vector.load %arg10[%c0_32, %c1, %c0_33] : memref<2x8x32xf32, #tpu.memory_space<vmem>>, vector<2x1x32xf32>
    tpu.vector_store %arg10[%c0_32, %c1, %c0_33], %105 {strides = array<i32>} : memref<2x8x32xf32, #tpu.memory_space<vmem>>, vector<2x1x32xf32>,
    %107 = vector.extract_strided_slice %3 {offsets = [0, 2, 0], sizes = [2, 1, 32], strides = [1, 1, 1]} : vector<2x8x32xf32> to vector<2x1x32xf32>
    %108 = vector.shape_cast %107 : vector<2x1x32xf32> to vector<2x32xf32>
    %109 = vector.extract_strided_slice %4 {offsets = [0, 2, 0], sizes = [2, 1, 1], strides = [1, 1, 1]} : vector<2x8x1xf32> to vector<2x1x1xf32>
    %110 = vector.shape_cast %109 : vector<2x1x1xf32> to vector<2x1xf32>
    %cst_34 = arith.constant dense<0.000000e+00> : vector<2x160xf32>
    %111 = tpu.matmul %108, %5, %cst_34 {dimension_numbers = #tpu.dot_dimension_numbers<[1], [0], [0], [1], [0, 0, 1, 1], [], []>} : vector<2x32xf32>, vector<32x160xf32>, vector<2x160xf32> -> vector<2x160xf32>
    %112 = vector.extract_strided_slice %111 {offsets = [0, 0], sizes = [2, 32], strides = [1, 1]} : vector<2x160xf32> to vector<2x32xf32>
    %cst_35 = arith.constant dense<0.000000e+00> : vector<2x32xf32>
    %113 = tpu.matmul %100, %6, %cst_35 {dimension_numbers = #tpu.dot_dimension_numbers<[1], [0], [0], [1], [0, 0, 1, 1], [], []>} : vector<2x32xf32>, vector<32x32xf32>, vector<2x32xf32> -> vector<2x32xf32>
    %114 = arith.mulf %112, %113 : vector<2x32xf32>
    %115 = vector.extract_strided_slice %111 {offsets = [0, 32], sizes = [2, 128], strides = [1, 1]} : vector<2x160xf32> to vector<2x128xf32>
    %cst_36 = arith.constant dense<0.000000e+00> : vector<2x128xf32>
    %116 = tpu.matmul %114, %7, %cst_36 {dimension_numbers = #tpu.dot_dimension_numbers<[1], [0], [0], [1], [0, 0, 1, 1], [], []>} : vector<2x32xf32>, vector<32x128xf32>, vector<2x128xf32> -> vector<2x128xf32>
    %117 = arith.addf %115, %116 : vector<2x128xf32>
    %118 = vector.broadcast %8 : vector<1x128xf32> to vector<2x128xf32>
    %119 = arith.addf %117, %118 : vector<2x128xf32>
    %120 = vector.extract_strided_slice %119 {offsets = [0, 0], sizes = [2, 32], strides = [1, 1]} : vector<2x128xf32> to vector<2x32xf32>
    %121 = arith.negf %120 : vector<2x32xf32>
    %122 = math.exp %121 : vector<2x32xf32>
    %cst_37 = arith.constant 1.000000e+00 : f32
    %123 = vector.broadcast %cst_37 : f32 to vector<2x32xf32>
    %124 = arith.addf %123, %122 : vector<2x32xf32>
    %125 = arith.divf %123, %124 : vector<2x32xf32>
    %126 = vector.extract_strided_slice %119 {offsets = [0, 32], sizes = [2, 32], strides = [1, 1]} : vector<2x128xf32> to vector<2x32xf32>
    %127 = arith.negf %126 : vector<2x32xf32>
    %128 = math.exp %127 : vector<2x32xf32>
    %cst_38 = arith.constant 1.000000e+00 : f32
    %129 = vector.broadcast %cst_38 : f32 to vector<2x32xf32>
    %130 = arith.addf %129, %128 : vector<2x32xf32>
    %131 = arith.divf %129, %130 : vector<2x32xf32>
    %132 = vector.extract_strided_slice %119 {offsets = [0, 64], sizes = [2, 32], strides = [1, 1]} : vector<2x128xf32> to vector<2x32xf32>
    %133 = arith.negf %132 : vector<2x32xf32>
    %134 = math.exp %133 : vector<2x32xf32>
    %cst_39 = arith.constant 1.000000e+00 : f32
    %135 = vector.broadcast %cst_39 : f32 to vector<2x32xf32>
    %136 = arith.addf %135, %134 : vector<2x32xf32>
    %137 = arith.divf %135, %136 : vector<2x32xf32>
    %138 = vector.extract_strided_slice %119 {offsets = [0, 96], sizes = [2, 32], strides = [1, 1]} : vector<2x128xf32> to vector<2x32xf32>
    %139 = math.tanh %138 : vector<2x32xf32>
    %140 = arith.mulf %131, %104 : vector<2x32xf32>
    %141 = arith.mulf %125, %139 : vector<2x32xf32>
    %142 = arith.addf %140, %141 : vector<2x32xf32>
    %143 = math.tanh %142 : vector<2x32xf32>
    %144 = arith.mulf %137, %143 : vector<2x32xf32>
    %145 = arith.subf %144, %100 : vector<2x32xf32>
    %146 = vector.broadcast %110 : vector<2x1xf32> to vector<2x32xf32>
    %147 = arith.mulf %146, %145 : vector<2x32xf32>
    %148 = arith.addf %100, %147 : vector<2x32xf32>
    %149 = arith.subf %142, %104 : vector<2x32xf32>
    %150 = vector.broadcast %110 : vector<2x1xf32> to vector<2x32xf32>
    %151 = arith.mulf %150, %149 : vector<2x32xf32>
    %152 = arith.addf %104, %151 : vector<2x32xf32>
    %153 = vector.shape_cast %148 : vector<2x32xf32> to vector<2x1x32xf32>
    %c0_40 = arith.constant 0 : index
    %c2 = arith.constant 2 : index
    %c0_41 = arith.constant 0 : index
    %154 = vector.load %arg10[%c0_40, %c2, %c0_41] : memref<2x8x32xf32, #tpu.memory_space<vmem>>, vector<2x1x32xf32>
    tpu.vector_store %arg10[%c0_40, %c2, %c0_41], %153 {strides = array<i32>} : memref<2x8x32xf32, #tpu.memory_space<vmem>>, vector<2x1x32xf32>,
    %155 = vector.extract_strided_slice %3 {offsets = [0, 3, 0], sizes = [2, 1, 32], strides = [1, 1, 1]} : vector<2x8x32xf32> to vector<2x1x32xf32>
    %156 = vector.shape_cast %155 : vector<2x1x32xf32> to vector<2x32xf32>
    %157 = vector.extract_strided_slice %4 {offsets = [0, 3, 0], sizes = [2, 1, 1], strides = [1, 1, 1]} : vector<2x8x1xf32> to vector<2x1x1xf32>
    %158 = vector.shape_cast %157 : vector<2x1x1xf32> to vector<2x1xf32>
    %cst_42 = arith.constant dense<0.000000e+00> : vector<2x160xf32>
    %159 = tpu.matmul %156, %5, %cst_42 {dimension_numbers = #tpu.dot_dimension_numbers<[1], [0], [0], [1], [0, 0, 1, 1], [], []>} : vector<2x32xf32>, vector<32x160xf32>, vector<2x160xf32> -> vector<2x160xf32>
    %160 = vector.extract_strided_slice %159 {offsets = [0, 0], sizes = [2, 32], strides = [1, 1]} : vector<2x160xf32> to vector<2x32xf32>
    %cst_43 = arith.constant dense<0.000000e+00> : vector<2x32xf32>
    %161 = tpu.matmul %148, %6, %cst_43 {dimension_numbers = #tpu.dot_dimension_numbers<[1], [0], [0], [1], [0, 0, 1, 1], [], []>} : vector<2x32xf32>, vector<32x32xf32>, vector<2x32xf32> -> vector<2x32xf32>
    %162 = arith.mulf %160, %161 : vector<2x32xf32>
    %163 = vector.extract_strided_slice %159 {offsets = [0, 32], sizes = [2, 128], strides = [1, 1]} : vector<2x160xf32> to vector<2x128xf32>
    %cst_44 = arith.constant dense<0.000000e+00> : vector<2x128xf32>
    %164 = tpu.matmul %162, %7, %cst_44 {dimension_numbers = #tpu.dot_dimension_numbers<[1], [0], [0], [1], [0, 0, 1, 1], [], []>} : vector<2x32xf32>, vector<32x128xf32>, vector<2x128xf32> -> vector<2x128xf32>
    %165 = arith.addf %163, %164 : vector<2x128xf32>
    %166 = vector.broadcast %8 : vector<1x128xf32> to vector<2x128xf32>
    %167 = arith.addf %165, %166 : vector<2x128xf32>
    %168 = vector.extract_strided_slice %167 {offsets = [0, 0], sizes = [2, 32], strides = [1, 1]} : vector<2x128xf32> to vector<2x32xf32>
    %169 = arith.negf %168 : vector<2x32xf32>
    %170 = math.exp %169 : vector<2x32xf32>
    %cst_45 = arith.constant 1.000000e+00 : f32
    %171 = vector.broadcast %cst_45 : f32 to vector<2x32xf32>
    %172 = arith.addf %171, %170 : vector<2x32xf32>
    %173 = arith.divf %171, %172 : vector<2x32xf32>
    %174 = vector.extract_strided_slice %167 {offsets = [0, 32], sizes = [2, 32], strides = [1, 1]} : vector<2x128xf32> to vector<2x32xf32>
    %175 = arith.negf %174 : vector<2x32xf32>
    %176 = math.exp %175 : vector<2x32xf32>
    %cst_46 = arith.constant 1.000000e+00 : f32
    %177 = vector.broadcast %cst_46 : f32 to vector<2x32xf32>
    %178 = arith.addf %177, %176 : vector<2x32xf32>
    %179 = arith.divf %177, %178 : vector<2x32xf32>
    %180 = vector.extract_strided_slice %167 {offsets = [0, 64], sizes = [2, 32], strides = [1, 1]} : vector<2x128xf32> to vector<2x32xf32>
    %181 = arith.negf %180 : vector<2x32xf32>
    %182 = math.exp %181 : vector<2x32xf32>
    %cst_47 = arith.constant 1.000000e+00 : f32
    %183 = vector.broadcast %cst_47 : f32 to vector<2x32xf32>
    %184 = arith.addf %183, %182 : vector<2x32xf32>
    %185 = arith.divf %183, %184 : vector<2x32xf32>
    %186 = vector.extract_strided_slice %167 {offsets = [0, 96], sizes = [2, 32], strides = [1, 1]} : vector<2x128xf32> to vector<2x32xf32>
    %187 = math.tanh %186 : vector<2x32xf32>
    %188 = arith.mulf %179, %152 : vector<2x32xf32>
    %189 = arith.mulf %173, %187 : vector<2x32xf32>
    %190 = arith.addf %188, %189 : vector<2x32xf32>
    %191 = math.tanh %190 : vector<2x32xf32>
    %192 = arith.mulf %185, %191 : vector<2x32xf32>
    %193 = arith.subf %192, %148 : vector<2x32xf32>
    %194 = vector.broadcast %158 : vector<2x1xf32> to vector<2x32xf32>
    %195 = arith.mulf %194, %193 : vector<2x32xf32>
    %196 = arith.addf %148, %195 : vector<2x32xf32>
    %197 = arith.subf %190, %152 : vector<2x32xf32>
    %198 = vector.broadcast %158 : vector<2x1xf32> to vector<2x32xf32>
    %199 = arith.mulf %198, %197 : vector<2x32xf32>
    %200 = arith.addf %152, %199 : vector<2x32xf32>
    %201 = vector.shape_cast %196 : vector<2x32xf32> to vector<2x1x32xf32>
    %c0_48 = arith.constant 0 : index
    %c3 = arith.constant 3 : index
    %c0_49 = arith.constant 0 : index
    %202 = vector.load %arg10[%c0_48, %c3, %c0_49] : memref<2x8x32xf32, #tpu.memory_space<vmem>>, vector<2x1x32xf32>
    tpu.vector_store %arg10[%c0_48, %c3, %c0_49], %201 {strides = array<i32>} : memref<2x8x32xf32, #tpu.memory_space<vmem>>, vector<2x1x32xf32>,
    %203 = vector.extract_strided_slice %3 {offsets = [0, 4, 0], sizes = [2, 1, 32], strides = [1, 1, 1]} : vector<2x8x32xf32> to vector<2x1x32xf32>
    %204 = vector.shape_cast %203 : vector<2x1x32xf32> to vector<2x32xf32>
    %205 = vector.extract_strided_slice %4 {offsets = [0, 4, 0], sizes = [2, 1, 1], strides = [1, 1, 1]} : vector<2x8x1xf32> to vector<2x1x1xf32>
    %206 = vector.shape_cast %205 : vector<2x1x1xf32> to vector<2x1xf32>
    %cst_50 = arith.constant dense<0.000000e+00> : vector<2x160xf32>
    %207 = tpu.matmul %204, %5, %cst_50 {dimension_numbers = #tpu.dot_dimension_numbers<[1], [0], [0], [1], [0, 0, 1, 1], [], []>} : vector<2x32xf32>, vector<32x160xf32>, vector<2x160xf32> -> vector<2x160xf32>
    %208 = vector.extract_strided_slice %207 {offsets = [0, 0], sizes = [2, 32], strides = [1, 1]} : vector<2x160xf32> to vector<2x32xf32>
    %cst_51 = arith.constant dense<0.000000e+00> : vector<2x32xf32>
    %209 = tpu.matmul %196, %6, %cst_51 {dimension_numbers = #tpu.dot_dimension_numbers<[1], [0], [0], [1], [0, 0, 1, 1], [], []>} : vector<2x32xf32>, vector<32x32xf32>, vector<2x32xf32> -> vector<2x32xf32>
    %210 = arith.mulf %208, %209 : vector<2x32xf32>
    %211 = vector.extract_strided_slice %207 {offsets = [0, 32], sizes = [2, 128], strides = [1, 1]} : vector<2x160xf32> to vector<2x128xf32>
    %cst_52 = arith.constant dense<0.000000e+00> : vector<2x128xf32>
    %212 = tpu.matmul %210, %7, %cst_52 {dimension_numbers = #tpu.dot_dimension_numbers<[1], [0], [0], [1], [0, 0, 1, 1], [], []>} : vector<2x32xf32>, vector<32x128xf32>, vector<2x128xf32> -> vector<2x128xf32>
    %213 = arith.addf %211, %212 : vector<2x128xf32>
    %214 = vector.broadcast %8 : vector<1x128xf32> to vector<2x128xf32>
    %215 = arith.addf %213, %214 : vector<2x128xf32>
    %216 = vector.extract_strided_slice %215 {offsets = [0, 0], sizes = [2, 32], strides = [1, 1]} : vector<2x128xf32> to vector<2x32xf32>
    %217 = arith.negf %216 : vector<2x32xf32>
    %218 = math.exp %217 : vector<2x32xf32>
    %cst_53 = arith.constant 1.000000e+00 : f32
    %219 = vector.broadcast %cst_53 : f32 to vector<2x32xf32>
    %220 = arith.addf %219, %218 : vector<2x32xf32>
    %221 = arith.divf %219, %220 : vector<2x32xf32>
    %222 = vector.extract_strided_slice %215 {offsets = [0, 32], sizes = [2, 32], strides = [1, 1]} : vector<2x128xf32> to vector<2x32xf32>
    %223 = arith.negf %222 : vector<2x32xf32>
    %224 = math.exp %223 : vector<2x32xf32>
    %cst_54 = arith.constant 1.000000e+00 : f32
    %225 = vector.broadcast %cst_54 : f32 to vector<2x32xf32>
    %226 = arith.addf %225, %224 : vector<2x32xf32>
    %227 = arith.divf %225, %226 : vector<2x32xf32>
    %228 = vector.extract_strided_slice %215 {offsets = [0, 64], sizes = [2, 32], strides = [1, 1]} : vector<2x128xf32> to vector<2x32xf32>
    %229 = arith.negf %228 : vector<2x32xf32>
    %230 = math.exp %229 : vector<2x32xf32>
    %cst_55 = arith.constant 1.000000e+00 : f32
    %231 = vector.broadcast %cst_55 : f32 to vector<2x32xf32>
    %232 = arith.addf %231, %230 : vector<2x32xf32>
    %233 = arith.divf %231, %232 : vector<2x32xf32>
    %234 = vector.extract_strided_slice %215 {offsets = [0, 96], sizes = [2, 32], strides = [1, 1]} : vector<2x128xf32> to vector<2x32xf32>
    %235 = math.tanh %234 : vector<2x32xf32>
    %236 = arith.mulf %227, %200 : vector<2x32xf32>
    %237 = arith.mulf %221, %235 : vector<2x32xf32>
    %238 = arith.addf %236, %237 : vector<2x32xf32>
    %239 = math.tanh %238 : vector<2x32xf32>
    %240 = arith.mulf %233, %239 : vector<2x32xf32>
    %241 = arith.subf %240, %196 : vector<2x32xf32>
    %242 = vector.broadcast %206 : vector<2x1xf32> to vector<2x32xf32>
    %243 = arith.mulf %242, %241 : vector<2x32xf32>
    %244 = arith.addf %196, %243 : vector<2x32xf32>
    %245 = arith.subf %238, %200 : vector<2x32xf32>
    %246 = vector.broadcast %206 : vector<2x1xf32> to vector<2x32xf32>
    %247 = arith.mulf %246, %245 : vector<2x32xf32>
    %248 = arith.addf %200, %247 : vector<2x32xf32>
    %249 = vector.shape_cast %244 : vector<2x32xf32> to vector<2x1x32xf32>
    %c0_56 = arith.constant 0 : index
    %c4 = arith.constant 4 : index
    %c0_57 = arith.constant 0 : index
    %250 = vector.load %arg10[%c0_56, %c4, %c0_57] : memref<2x8x32xf32, #tpu.memory_space<vmem>>, vector<2x1x32xf32>
    tpu.vector_store %arg10[%c0_56, %c4, %c0_57], %249 {strides = array<i32>} : memref<2x8x32xf32, #tpu.memory_space<vmem>>, vector<2x1x32xf32>,
    %251 = vector.extract_strided_slice %3 {offsets = [0, 5, 0], sizes = [2, 1, 32], strides = [1, 1, 1]} : vector<2x8x32xf32> to vector<2x1x32xf32>
    %252 = vector.shape_cast %251 : vector<2x1x32xf32> to vector<2x32xf32>
    %253 = vector.extract_strided_slice %4 {offsets = [0, 5, 0], sizes = [2, 1, 1], strides = [1, 1, 1]} : vector<2x8x1xf32> to vector<2x1x1xf32>
    %254 = vector.shape_cast %253 : vector<2x1x1xf32> to vector<2x1xf32>
    %cst_58 = arith.constant dense<0.000000e+00> : vector<2x160xf32>
    %255 = tpu.matmul %252, %5, %cst_58 {dimension_numbers = #tpu.dot_dimension_numbers<[1], [0], [0], [1], [0, 0, 1, 1], [], []>} : vector<2x32xf32>, vector<32x160xf32>, vector<2x160xf32> -> vector<2x160xf32>
    %256 = vector.extract_strided_slice %255 {offsets = [0, 0], sizes = [2, 32], strides = [1, 1]} : vector<2x160xf32> to vector<2x32xf32>
    %cst_59 = arith.constant dense<0.000000e+00> : vector<2x32xf32>
    %257 = tpu.matmul %244, %6, %cst_59 {dimension_numbers = #tpu.dot_dimension_numbers<[1], [0], [0], [1], [0, 0, 1, 1], [], []>} : vector<2x32xf32>, vector<32x32xf32>, vector<2x32xf32> -> vector<2x32xf32>
    %258 = arith.mulf %256, %257 : vector<2x32xf32>
    %259 = vector.extract_strided_slice %255 {offsets = [0, 32], sizes = [2, 128], strides = [1, 1]} : vector<2x160xf32> to vector<2x128xf32>
    %cst_60 = arith.constant dense<0.000000e+00> : vector<2x128xf32>
    %260 = tpu.matmul %258, %7, %cst_60 {dimension_numbers = #tpu.dot_dimension_numbers<[1], [0], [0], [1], [0, 0, 1, 1], [], []>} : vector<2x32xf32>, vector<32x128xf32>, vector<2x128xf32> -> vector<2x128xf32>
    %261 = arith.addf %259, %260 : vector<2x128xf32>
    %262 = vector.broadcast %8 : vector<1x128xf32> to vector<2x128xf32>
    %263 = arith.addf %261, %262 : vector<2x128xf32>
    %264 = vector.extract_strided_slice %263 {offsets = [0, 0], sizes = [2, 32], strides = [1, 1]} : vector<2x128xf32> to vector<2x32xf32>
    %265 = arith.negf %264 : vector<2x32xf32>
    %266 = math.exp %265 : vector<2x32xf32>
    %cst_61 = arith.constant 1.000000e+00 : f32
    %267 = vector.broadcast %cst_61 : f32 to vector<2x32xf32>
    %268 = arith.addf %267, %266 : vector<2x32xf32>
    %269 = arith.divf %267, %268 : vector<2x32xf32>
    %270 = vector.extract_strided_slice %263 {offsets = [0, 32], sizes = [2, 32], strides = [1, 1]} : vector<2x128xf32> to vector<2x32xf32>
    %271 = arith.negf %270 : vector<2x32xf32>
    %272 = math.exp %271 : vector<2x32xf32>
    %cst_62 = arith.constant 1.000000e+00 : f32
    %273 = vector.broadcast %cst_62 : f32 to vector<2x32xf32>
    %274 = arith.addf %273, %272 : vector<2x32xf32>
    %275 = arith.divf %273, %274 : vector<2x32xf32>
    %276 = vector.extract_strided_slice %263 {offsets = [0, 64], sizes = [2, 32], strides = [1, 1]} : vector<2x128xf32> to vector<2x32xf32>
    %277 = arith.negf %276 : vector<2x32xf32>
    %278 = math.exp %277 : vector<2x32xf32>
    %cst_63 = arith.constant 1.000000e+00 : f32
    %279 = vector.broadcast %cst_63 : f32 to vector<2x32xf32>
    %280 = arith.addf %279, %278 : vector<2x32xf32>
    %281 = arith.divf %279, %280 : vector<2x32xf32>
    %282 = vector.extract_strided_slice %263 {offsets = [0, 96], sizes = [2, 32], strides = [1, 1]} : vector<2x128xf32> to vector<2x32xf32>
    %283 = math.tanh %282 : vector<2x32xf32>
    %284 = arith.mulf %275, %248 : vector<2x32xf32>
    %285 = arith.mulf %269, %283 : vector<2x32xf32>
    %286 = arith.addf %284, %285 : vector<2x32xf32>
    %287 = math.tanh %286 : vector<2x32xf32>
    %288 = arith.mulf %281, %287 : vector<2x32xf32>
    %289 = arith.subf %288, %244 : vector<2x32xf32>
    %290 = vector.broadcast %254 : vector<2x1xf32> to vector<2x32xf32>
    %291 = arith.mulf %290, %289 : vector<2x32xf32>
    %292 = arith.addf %244, %291 : vector<2x32xf32>
    %293 = arith.subf %286, %248 : vector<2x32xf32>
    %294 = vector.broadcast %254 : vector<2x1xf32> to vector<2x32xf32>
    %295 = arith.mulf %294, %293 : vector<2x32xf32>
    %296 = arith.addf %248, %295 : vector<2x32xf32>
    %297 = vector.shape_cast %292 : vector<2x32xf32> to vector<2x1x32xf32>
    %c0_64 = arith.constant 0 : index
    %c5 = arith.constant 5 : index
    %c0_65 = arith.constant 0 : index
    %298 = vector.load %arg10[%c0_64, %c5, %c0_65] : memref<2x8x32xf32, #tpu.memory_space<vmem>>, vector<2x1x32xf32>
    tpu.vector_store %arg10[%c0_64, %c5, %c0_65], %297 {strides = array<i32>} : memref<2x8x32xf32, #tpu.memory_space<vmem>>, vector<2x1x32xf32>,
    %299 = vector.extract_strided_slice %3 {offsets = [0, 6, 0], sizes = [2, 1, 32], strides = [1, 1, 1]} : vector<2x8x32xf32> to vector<2x1x32xf32>
    %300 = vector.shape_cast %299 : vector<2x1x32xf32> to vector<2x32xf32>
    %301 = vector.extract_strided_slice %4 {offsets = [0, 6, 0], sizes = [2, 1, 1], strides = [1, 1, 1]} : vector<2x8x1xf32> to vector<2x1x1xf32>
    %302 = vector.shape_cast %301 : vector<2x1x1xf32> to vector<2x1xf32>
    %cst_66 = arith.constant dense<0.000000e+00> : vector<2x160xf32>
    %303 = tpu.matmul %300, %5, %cst_66 {dimension_numbers = #tpu.dot_dimension_numbers<[1], [0], [0], [1], [0, 0, 1, 1], [], []>} : vector<2x32xf32>, vector<32x160xf32>, vector<2x160xf32> -> vector<2x160xf32>
    %304 = vector.extract_strided_slice %303 {offsets = [0, 0], sizes = [2, 32], strides = [1, 1]} : vector<2x160xf32> to vector<2x32xf32>
    %cst_67 = arith.constant dense<0.000000e+00> : vector<2x32xf32>
    %305 = tpu.matmul %292, %6, %cst_67 {dimension_numbers = #tpu.dot_dimension_numbers<[1], [0], [0], [1], [0, 0, 1, 1], [], []>} : vector<2x32xf32>, vector<32x32xf32>, vector<2x32xf32> -> vector<2x32xf32>
    %306 = arith.mulf %304, %305 : vector<2x32xf32>
    %307 = vector.extract_strided_slice %303 {offsets = [0, 32], sizes = [2, 128], strides = [1, 1]} : vector<2x160xf32> to vector<2x128xf32>
    %cst_68 = arith.constant dense<0.000000e+00> : vector<2x128xf32>
    %308 = tpu.matmul %306, %7, %cst_68 {dimension_numbers = #tpu.dot_dimension_numbers<[1], [0], [0], [1], [0, 0, 1, 1], [], []>} : vector<2x32xf32>, vector<32x128xf32>, vector<2x128xf32> -> vector<2x128xf32>
    %309 = arith.addf %307, %308 : vector<2x128xf32>
    %310 = vector.broadcast %8 : vector<1x128xf32> to vector<2x128xf32>
    %311 = arith.addf %309, %310 : vector<2x128xf32>
    %312 = vector.extract_strided_slice %311 {offsets = [0, 0], sizes = [2, 32], strides = [1, 1]} : vector<2x128xf32> to vector<2x32xf32>
    %313 = arith.negf %312 : vector<2x32xf32>
    %314 = math.exp %313 : vector<2x32xf32>
    %cst_69 = arith.constant 1.000000e+00 : f32
    %315 = vector.broadcast %cst_69 : f32 to vector<2x32xf32>
    %316 = arith.addf %315, %314 : vector<2x32xf32>
    %317 = arith.divf %315, %316 : vector<2x32xf32>
    %318 = vector.extract_strided_slice %311 {offsets = [0, 32], sizes = [2, 32], strides = [1, 1]} : vector<2x128xf32> to vector<2x32xf32>
    %319 = arith.negf %318 : vector<2x32xf32>
    %320 = math.exp %319 : vector<2x32xf32>
    %cst_70 = arith.constant 1.000000e+00 : f32
    %321 = vector.broadcast %cst_70 : f32 to vector<2x32xf32>
    %322 = arith.addf %321, %320 : vector<2x32xf32>
    %323 = arith.divf %321, %322 : vector<2x32xf32>
    %324 = vector.extract_strided_slice %311 {offsets = [0, 64], sizes = [2, 32], strides = [1, 1]} : vector<2x128xf32> to vector<2x32xf32>
    %325 = arith.negf %324 : vector<2x32xf32>
    %326 = math.exp %325 : vector<2x32xf32>
    %cst_71 = arith.constant 1.000000e+00 : f32
    %327 = vector.broadcast %cst_71 : f32 to vector<2x32xf32>
    %328 = arith.addf %327, %326 : vector<2x32xf32>
    %329 = arith.divf %327, %328 : vector<2x32xf32>
    %330 = vector.extract_strided_slice %311 {offsets = [0, 96], sizes = [2, 32], strides = [1, 1]} : vector<2x128xf32> to vector<2x32xf32>
    %331 = math.tanh %330 : vector<2x32xf32>
    %332 = arith.mulf %323, %296 : vector<2x32xf32>
    %333 = arith.mulf %317, %331 : vector<2x32xf32>
    %334 = arith.addf %332, %333 : vector<2x32xf32>
    %335 = math.tanh %334 : vector<2x32xf32>
    %336 = arith.mulf %329, %335 : vector<2x32xf32>
    %337 = arith.subf %336, %292 : vector<2x32xf32>
    %338 = vector.broadcast %302 : vector<2x1xf32> to vector<2x32xf32>
    %339 = arith.mulf %338, %337 : vector<2x32xf32>
    %340 = arith.addf %292, %339 : vector<2x32xf32>
    %341 = arith.subf %334, %296 : vector<2x32xf32>
    %342 = vector.broadcast %302 : vector<2x1xf32> to vector<2x32xf32>
    %343 = arith.mulf %342, %341 : vector<2x32xf32>
    %344 = arith.addf %296, %343 : vector<2x32xf32>
    %345 = vector.shape_cast %340 : vector<2x32xf32> to vector<2x1x32xf32>
    %c0_72 = arith.constant 0 : index
    %c6 = arith.constant 6 : index
    %c0_73 = arith.constant 0 : index
    %346 = vector.load %arg10[%c0_72, %c6, %c0_73] : memref<2x8x32xf32, #tpu.memory_space<vmem>>, vector<2x1x32xf32>
    tpu.vector_store %arg10[%c0_72, %c6, %c0_73], %345 {strides = array<i32>} : memref<2x8x32xf32, #tpu.memory_space<vmem>>, vector<2x1x32xf32>,
    %347 = vector.extract_strided_slice %3 {offsets = [0, 7, 0], sizes = [2, 1, 32], strides = [1, 1, 1]} : vector<2x8x32xf32> to vector<2x1x32xf32>
    %348 = vector.shape_cast %347 : vector<2x1x32xf32> to vector<2x32xf32>
    %349 = vector.extract_strided_slice %4 {offsets = [0, 7, 0], sizes = [2, 1, 1], strides = [1, 1, 1]} : vector<2x8x1xf32> to vector<2x1x1xf32>
    %350 = vector.shape_cast %349 : vector<2x1x1xf32> to vector<2x1xf32>
    %cst_74 = arith.constant dense<0.000000e+00> : vector<2x160xf32>
    %351 = tpu.matmul %348, %5, %cst_74 {dimension_numbers = #tpu.dot_dimension_numbers<[1], [0], [0], [1], [0, 0, 1, 1], [], []>} : vector<2x32xf32>, vector<32x160xf32>, vector<2x160xf32> -> vector<2x160xf32>
    %352 = vector.extract_strided_slice %351 {offsets = [0, 0], sizes = [2, 32], strides = [1, 1]} : vector<2x160xf32> to vector<2x32xf32>
    %cst_75 = arith.constant dense<0.000000e+00> : vector<2x32xf32>
    %353 = tpu.matmul %340, %6, %cst_75 {dimension_numbers = #tpu.dot_dimension_numbers<[1], [0], [0], [1], [0, 0, 1, 1], [], []>} : vector<2x32xf32>, vector<32x32xf32>, vector<2x32xf32> -> vector<2x32xf32>
    %354 = arith.mulf %352, %353 : vector<2x32xf32>
    %355 = vector.extract_strided_slice %351 {offsets = [0, 32], sizes = [2, 128], strides = [1, 1]} : vector<2x160xf32> to vector<2x128xf32>
    %cst_76 = arith.constant dense<0.000000e+00> : vector<2x128xf32>
    %356 = tpu.matmul %354, %7, %cst_76 {dimension_numbers = #tpu.dot_dimension_numbers<[1], [0], [0], [1], [0, 0, 1, 1], [], []>} : vector<2x32xf32>, vector<32x128xf32>, vector<2x128xf32> -> vector<2x128xf32>
    %357 = arith.addf %355, %356 : vector<2x128xf32>
    %358 = vector.broadcast %8 : vector<1x128xf32> to vector<2x128xf32>
    %359 = arith.addf %357, %358 : vector<2x128xf32>
    %360 = vector.extract_strided_slice %359 {offsets = [0, 0], sizes = [2, 32], strides = [1, 1]} : vector<2x128xf32> to vector<2x32xf32>
    %361 = arith.negf %360 : vector<2x32xf32>
    %362 = math.exp %361 : vector<2x32xf32>
    %cst_77 = arith.constant 1.000000e+00 : f32
    %363 = vector.broadcast %cst_77 : f32 to vector<2x32xf32>
    %364 = arith.addf %363, %362 : vector<2x32xf32>
    %365 = arith.divf %363, %364 : vector<2x32xf32>
    %366 = vector.extract_strided_slice %359 {offsets = [0, 32], sizes = [2, 32], strides = [1, 1]} : vector<2x128xf32> to vector<2x32xf32>
    %367 = arith.negf %366 : vector<2x32xf32>
    %368 = math.exp %367 : vector<2x32xf32>
    %cst_78 = arith.constant 1.000000e+00 : f32
    %369 = vector.broadcast %cst_78 : f32 to vector<2x32xf32>
    %370 = arith.addf %369, %368 : vector<2x32xf32>
    %371 = arith.divf %369, %370 : vector<2x32xf32>
    %372 = vector.extract_strided_slice %359 {offsets = [0, 64], sizes = [2, 32], strides = [1, 1]} : vector<2x128xf32> to vector<2x32xf32>
    %373 = arith.negf %372 : vector<2x32xf32>
    %374 = math.exp %373 : vector<2x32xf32>
    %cst_79 = arith.constant 1.000000e+00 : f32
    %375 = vector.broadcast %cst_79 : f32 to vector<2x32xf32>
    %376 = arith.addf %375, %374 : vector<2x32xf32>
    %377 = arith.divf %375, %376 : vector<2x32xf32>
    %378 = vector.extract_strided_slice %359 {offsets = [0, 96], sizes = [2, 32], strides = [1, 1]} : vector<2x128xf32> to vector<2x32xf32>
    %379 = math.tanh %378 : vector<2x32xf32>
    %380 = arith.mulf %371, %344 : vector<2x32xf32>
    %381 = arith.mulf %365, %379 : vector<2x32xf32>
    %382 = arith.addf %380, %381 : vector<2x32xf32>
    %383 = math.tanh %382 : vector<2x32xf32>
    %384 = arith.mulf %377, %383 : vector<2x32xf32>
    %385 = arith.subf %384, %340 : vector<2x32xf32>
    %386 = vector.broadcast %350 : vector<2x1xf32> to vector<2x32xf32>
    %387 = arith.mulf %386, %385 : vector<2x32xf32>
    %388 = arith.addf %340, %387 : vector<2x32xf32>
    %389 = arith.subf %382, %344 : vector<2x32xf32>
    %390 = vector.broadcast %350 : vector<2x1xf32> to vector<2x32xf32>
    %391 = arith.mulf %390, %389 : vector<2x32xf32>
    %392 = arith.addf %344, %391 : vector<2x32xf32>
    %393 = vector.shape_cast %388 : vector<2x32xf32> to vector<2x1x32xf32>
    %c0_80 = arith.constant 0 : index
    %c7 = arith.constant 7 : index
    %c0_81 = arith.constant 0 : index
    %394 = vector.load %arg10[%c0_80, %c7, %c0_81] : memref<2x8x32xf32, #tpu.memory_space<vmem>>, vector<2x1x32xf32>
    tpu.vector_store %arg10[%c0_80, %c7, %c0_81], %393 {strides = array<i32>} : memref<2x8x32xf32, #tpu.memory_space<vmem>>, vector<2x1x32xf32>,
    %c0_82 = arith.constant 0 : index
    %c0_83 = arith.constant 0 : index
    %395 = vector.load %arg13[%c0_82, %c0_83] : memref<2x32xf32, #tpu.memory_space<vmem>>, vector<2x32xf32>
    tpu.vector_store %arg13[%c0_82, %c0_83], %388 {strides = array<i32>} : memref<2x32xf32, #tpu.memory_space<vmem>>, vector<2x32xf32>,
    %c0_84 = arith.constant 0 : index
    %c0_85 = arith.constant 0 : index
    %396 = vector.load %arg14[%c0_84, %c0_85] : memref<2x32xf32, #tpu.memory_space<vmem>>, vector<2x32xf32>
    tpu.vector_store %arg14[%c0_84, %c0_85], %392 {strides = array<i32>} : memref<2x32xf32, #tpu.memory_space<vmem>>, vector<2x32xf32>,
    %c2_i32 = arith.constant 2 : i32
    %397 = arith.cmpi eq, %arg1, %c2_i32 : i32
    %398 = arith.extui %397 : i1 to i32
    %c0_i32_86 = arith.constant 0 : i32
    %399 = arith.cmpi ne, %398, %c0_i32_86 : i32
    scf.if %399 {
      %c0_87 = arith.constant 0 : index
      %c0_88 = arith.constant 0 : index
      %400 = vector.load %arg11[%c0_87, %c0_88] : memref<2x32xf32, #tpu.memory_space<vmem>>, vector<2x32xf32>
      tpu.vector_store %arg11[%c0_87, %c0_88], %388 {strides = array<i32>} : memref<2x32xf32, #tpu.memory_space<vmem>>, vector<2x32xf32>,
      %c0_89 = arith.constant 0 : index
      %c0_90 = arith.constant 0 : index
      %401 = vector.load %arg12[%c0_89, %c0_90] : memref<2x32xf32, #tpu.memory_space<vmem>>, vector<2x32xf32>
      tpu.vector_store %arg12[%c0_89, %c0_90], %392 {strides = array<i32>} : memref<2x32xf32, #tpu.memory_space<vmem>>, vector<2x32xf32>,
    } else {
    }
    return
  }
  func.func @transform_0(%arg0: i32, %arg1: i32) -> (i32, i32, i32) {
    %c0_i32 = arith.constant 0 : i32
    %c0_i32_0 = arith.constant 0 : i32
    return %arg0, %arg1, %c0_i32 : i32, i32, i32
  }
  func.func @transform_1(%arg0: i32, %arg1: i32) -> (i32, i32, i32) {
    %c0_i32 = arith.constant 0 : i32
    %c0_i32_0 = arith.constant 0 : i32
    return %arg0, %arg1, %c0_i32 : i32, i32, i32
  }
  func.func @transform_2(%arg0: i32, %arg1: i32) -> (i32, i32) {
    %c0_i32 = arith.constant 0 : i32
    %c0_i32_0 = arith.constant 0 : i32
    return %arg0, %c0_i32 : i32, i32
  }
  func.func @transform_3(%arg0: i32, %arg1: i32) -> (i32, i32) {
    %c0_i32 = arith.constant 0 : i32
    %c0_i32_0 = arith.constant 0 : i32
    return %arg0, %c0_i32 : i32, i32
  }
  func.func @transform_4(%arg0: i32, %arg1: i32) -> (i32, i32) {
    %c0_i32 = arith.constant 0 : i32
    %c0_i32_0 = arith.constant 0 : i32
    %c0_i32_1 = arith.constant 0 : i32
    return %c0_i32, %c0_i32_0 : i32, i32
  }
  func.func @transform_5(%arg0: i32, %arg1: i32) -> (i32, i32) {
    %c0_i32 = arith.constant 0 : i32
    %c0_i32_0 = arith.constant 0 : i32
    %c0_i32_1 = arith.constant 0 : i32
    return %c0_i32, %c0_i32_0 : i32, i32
  }
  func.func @transform_6(%arg0: i32, %arg1: i32) -> (i32, i32) {
    %c0_i32 = arith.constant 0 : i32
    %c0_i32_0 = arith.constant 0 : i32
    %c0_i32_1 = arith.constant 0 : i32
    return %c0_i32, %c0_i32_0 : i32, i32
  }
  func.func @transform_7(%arg0: i32, %arg1: i32) -> (i32, i32) {
    %c0_i32 = arith.constant 0 : i32
    %c0_i32_0 = arith.constant 0 : i32
    %c0_i32_1 = arith.constant 0 : i32
    return %c0_i32, %c0_i32_0 : i32, i32
  }
  func.func @transform_8(%arg0: i32, %arg1: i32) -> (i32, i32, i32) {
    %c0_i32 = arith.constant 0 : i32
    %c0_i32_0 = arith.constant 0 : i32
    return %arg0, %arg1, %c0_i32 : i32, i32, i32
  }
  func.func @transform_9(%arg0: i32, %arg1: i32) -> (i32, i32) {
    %c0_i32 = arith.constant 0 : i32
    %c0_i32_0 = arith.constant 0 : i32
    return %arg0, %c0_i32 : i32, i32
  }
  func.func @transform_10(%arg0: i32, %arg1: i32) -> (i32, i32) {
    %c0_i32 = arith.constant 0 : i32
    %c0_i32_0 = arith.constant 0 : i32
    return %arg0, %c0_i32 : i32, i32
  }
}

module attributes {stable_mosaic.version = 11 : i64} {
  func.func @_mlstm_kernel(%arg0: i32, %arg1: i32, %arg2: memref<2x8x32xf32, #tpu.memory_space<vmem>>, %arg3: memref<2x8x1xf32, #tpu.memory_space<vmem>>, %arg4: memref<2x32xf32, #tpu.memory_space<vmem>>, %arg5: memref<2x32xf32, #tpu.memory_space<vmem>>, %arg6: memref<32x160xf32, #tpu.memory_space<vmem>>, %arg7: memref<32x32xf32, #tpu.memory_space<vmem>>, %arg8: memref<32x128xf32, #tpu.memory_space<vmem>>, %arg9: memref<1x128xf32, #tpu.memory_space<vmem>>, %arg10: memref<2x8x32xf32, #tpu.memory_space<vmem>>, %arg11: memref<2x32xf32, #tpu.memory_space<vmem>>, %arg12: memref<2x32xf32, #tpu.memory_space<vmem>>, %arg13: memref<2x32xf32, #tpu.memory_space<vmem>>, %arg14: memref<2x32xf32, #tpu.memory_space<vmem>>) attributes {dimension_semantics = [#tpu.dimension_semantics<parallel>, #tpu.dimension_semantics<arbitrary>], iteration_bounds = array<i64: 1, 3>, scalar_prefetch = 0 : i64, scratch_operands = 2 : i64, tpu.core_type = #tpu.core_type<tc>, window_params = [{transform_indices = @transform_0, window_bounds = array<i64: 2, 8, 32>}, {transform_indices = @transform_1, window_bounds = array<i64: 2, 8, 1>}, {transform_indices = @transform_2, window_bounds = array<i64: 2, 32>}, {transform_indices = @transform_3, window_bounds = array<i64: 2, 32>}, {pipeline_mode = #tpu.pipeline_mode<synchronous>, transform_indices = @transform_4, window_bounds = array<i64: 32, 160>}, {pipeline_mode = #tpu.pipeline_mode<synchronous>, transform_indices = @transform_5, window_bounds = array<i64: 32, 32>}, {pipeline_mode = #tpu.pipeline_mode<synchronous>, transform_indices = @transform_6, window_bounds = array<i64: 32, 128>}, {pipeline_mode = #tpu.pipeline_mode<synchronous>, transform_indices = @transform_7, window_bounds = array<i64: 1, 128>}, {transform_indices = @transform_8, window_bounds = array<i64: 2, 8, 32>}, {transform_indices = @transform_9, window_bounds = array<i64: 2, 32>}, {transform_indices = @transform_10, window_bounds = array<i64: 2, 32>}]} {
    %c0_i32 = arith.constant 0 : i32
    %0 = arith.cmpi eq, %arg1, %c0_i32 : i32
    %1 = arith.extui %0 : i1 to i32
    %c0_i32_0 = arith.constant 0 : i32
    %2 = arith.cmpi ne, %1, %c0_i32_0 : i32
    scf.if %2 {
      %c0_87 = arith.constant 0 : index
      %c0_88 = arith.constant 0 : index
      %400 = vector.load %arg4[%c0_87, %c0_88] : memref<2x32xf32, #tpu.memory_space<vmem>>, vector<2x32xf32>
      %c0_89 = arith.constant 0 : index
      %c0_90 = arith.constant 0 : index
      %401 = vector.load %arg13[%c0_89, %c0_90] : memref<2x32xf32, #tpu.memory_space<vmem>>, vector<2x32xf32>
      tpu.vector_store %arg13[%c0_89, %c0_90], %400 {strides = array<i32>} : memref<2x32xf32, #tpu.memory_space<vmem>>, vector<2x32xf32>,
      %c0_91 = arith.constant 0 : index
      %c0_92 = arith.constant 0 : index
      %402 = vector.load %arg5[%c0_91, %c0_92] : memref<2x32xf32, #tpu.memory_space<vmem>>, vector<2x32xf32>
      %c0_93 = arith.constant 0 : index
      %c0_94 = arith.constant 0 : index
      %403 = vector.load %arg14[%c0_93, %c0_94] : memref<2x32xf32, #tpu.memory_space<vmem>>, vector<2x32xf32>
      tpu.vector_store %arg14[%c0_93, %c0_94], %402 {strides = array<i32>} : memref<2x32xf32, #tpu.memory_space<vmem>>, vector<2x32xf32>,
    } else {
    }
    %c0 = arith.constant 0 : index
    %c0_1 = arith.constant 0 : index
    %c0_2 = arith.constant 0 : index
    %3 = vector.load %arg2[%c0, %c0_1, %c0_2] : memref<2x8x32xf32, #tpu.memory_space<vmem>>, vector<2x8x32xf32>
    %c0_3 = arith.constant 0 : index
    %c0_4 = arith.constant 0 : index
    %c0_5 = arith.constant 0 : index
    %4 = vector.load %arg3[%c0_3, %c0_4, %c0_5] : memref<2x8x1xf32, #tpu.memory_space<vmem>>, vector<2x8x1xf32>
    %c0_6 = arith.constant 0 : index
    %c0_7 = arith.constant 0 : index
    %5 = vector.load %arg6[%c0_6, %c0_7] : memref<32x160xf32, #tpu.memory_space<vmem>>, vector<32x160xf32>
    %c0_8 = arith.constant 0 : index
    %c0_9 = arith.constant 0 : index
    %6 = vector.load %arg7[%c0_8, %c0_9] : memref<32x32xf32, #tpu.memory_space<vmem>>, vector<32x32xf32>
    %c0_10 = arith.constant 0 : index
    %c0_11 = arith.constant 0 : index
    %7 = vector.load %arg8[%c0_10, %c0_11] : memref<32x128xf32, #tpu.memory_space<vmem>>, vector<32x128xf32>
    %c0_12 = arith.constant 0 : index
    %c0_13 = arith.constant 0 : index
    %8 = vector.load %arg9[%c0_12, %c0_13] : memref<1x128xf32, #tpu.memory_space<vmem>>, vector<1x128xf32>
    %c0_14 = arith.constant 0 : index
    %c0_15 = arith.constant 0 : index
    %9 = vector.load %arg13[%c0_14, %c0_15] : memref<2x32xf32, #tpu.memory_space<vmem>>, vector<2x32xf32>
    %c0_16 = arith.constant 0 : index
    %c0_17 = arith.constant 0 : index
    %10 = vector.load %arg14[%c0_16, %c0_17] : memref<2x32xf32, #tpu.memory_space<vmem>>, vector<2x32xf32>
    %11 = vector.extract_strided_slice %3 {offsets = [0, 0, 0], sizes = [2, 1, 32], strides = [1, 1, 1]} : vector<2x8x32xf32> to vector<2x1x32xf32>
    %12 = vector.shape_cast %11 : vector<2x1x32xf32> to vector<2x32xf32>
    %13 = vector.extract_strided_slice %4 {offsets = [0, 0, 0], sizes = [2, 1, 1], strides = [1, 1, 1]} : vector<2x8x1xf32> to vector<2x1x1xf32>
    %14 = vector.shape_cast %13 : vector<2x1x1xf32> to vector<2x1xf32>
    %cst = arith.constant dense<0.000000e+00> : vector<2x160xf32>
    %15 = tpu.matmul %12, %5, %cst {dimension_numbers = #tpu.dot_dimension_numbers<[1], [0], [0], [1], [0, 0, 1, 1], [], []>} : vector<2x32xf32>, vector<32x160xf32>, vector<2x160xf32> -> vector<2x160xf32>
    %16 = vector.extract_strided_slice %15 {offsets = [0, 0], sizes = [2, 32], strides = [1, 1]} : vector<2x160xf32> to vector<2x32xf32>
    %cst_18 = arith.constant dense<0.000000e+00> : vector<2x32xf32>
    %17 = tpu.matmul %9, %6, %cst_18 {dimension_numbers = #tpu.dot_dimension_numbers<[1], [0], [0], [1], [0, 0, 1, 1], [], []>} : vector<2x32xf32>, vector<32x32xf32>, vector<2x32xf32> -> vector<2x32xf32>
    %18 = arith.mulf %16, %17 : vector<2x32xf32>
    %19 = vector.extract_strided_slice %15 {offsets = [0, 32], sizes = [2, 128], strides = [1, 1]} : vector<2x160xf32> to vector<2x128xf32>
    %cst_19 = arith.constant dense<0.000000e+00> : vector<2x128xf32>
    %20 = tpu.matmul %18, %7, %cst_19 {dimension_numbers = #tpu.dot_dimension_numbers<[1], [0], [0], [1], [0, 0, 1, 1], [], []>} : vector<2x32xf32>, vector<32x128xf32>, vector<2x128xf32> -> vector<2x128xf32>
    %21 = arith.addf %19, %20 : vector<2x128xf32>
    %22 = vector.broadcast %8 : vector<1x128xf32> to vector<2x128xf32>
    %23 = arith.addf %21, %22 : vector<2x128xf32>
    %24 = vector.extract_strided_slice %23 {offsets = [0, 0], sizes = [2, 32], strides = [1, 1]} : vector<2x128xf32> to vector<2x32xf32>
    %25 = arith.negf %24 : vector<2x32xf32>
    %26 = math.exp %25 : vector<2x32xf32>
    %cst_20 = arith.constant 1.000000e+00 : f32
    %27 = vector.broadcast %cst_20 : f32 to vector<2x32xf32>
    %28 = arith.addf %27, %26 : vector<2x32xf32>
    %29 = arith.divf %27, %28 : vector<2x32xf32>
    %30 = vector.extract_strided_slice %23 {offsets = [0, 32], sizes = [2, 32], strides = [1, 1]} : vector<2x128xf32> to vector<2x32xf32>
    %31 = arith.negf %30 : vector<2x32xf32>
    %32 = math.exp %31 : vector<2x32xf32>
    %cst_21 = arith.constant 1.000000e+00 : f32
    %33 = vector.broadcast %cst_21 : f32 to vector<2x32xf32>
    %34 = arith.addf %33, %32 : vector<2x32xf32>
    %35 = arith.divf %33, %34 : vector<2x32xf32>
    %36 = vector.extract_strided_slice %23 {offsets = [0, 64], sizes = [2, 32], strides = [1, 1]} : vector<2x128xf32> to vector<2x32xf32>
    %37 = arith.negf %36 : vector<2x32xf32>
    %38 = math.exp %37 : vector<2x32xf32>
    %cst_22 = arith.constant 1.000000e+00 : f32
    %39 = vector.broadcast %cst_22 : f32 to vector<2x32xf32>
    %40 = arith.addf %39, %38 : vector<2x32xf32>
    %41 = arith.divf %39, %40 : vector<2x32xf32>
    %42 = vector.extract_strided_slice %23 {offsets = [0, 96], sizes = [2, 32], strides = [1, 1]} : vector<2x128xf32> to vector<2x32xf32>
    %43 = math.tanh %42 : vector<2x32xf32>
    %44 = arith.mulf %35, %10 : vector<2x32xf32>
    %45 = arith.mulf %29, %43 : vector<2x32xf32>
    %46 = arith.addf %44, %45 : vector<2x32xf32>
    %47 = math.tanh %46 : vector<2x32xf32>
    %48 = arith.mulf %41, %47 : vector<2x32xf32>
    %49 = arith.subf %48, %9 : vector<2x32xf32>
    %50 = vector.broadcast %14 : vector<2x1xf32> to vector<2x32xf32>
    %51 = arith.mulf %50, %49 : vector<2x32xf32>
    %52 = arith.addf %9, %51 : vector<2x32xf32>
    %53 = arith.subf %46, %10 : vector<2x32xf32>
    %54 = vector.broadcast %14 : vector<2x1xf32> to vector<2x32xf32>
    %55 = arith.mulf %54, %53 : vector<2x32xf32>
    %56 = arith.addf %10, %55 : vector<2x32xf32>
    %57 = vector.shape_cast %52 : vector<2x32xf32> to vector<2x1x32xf32>
    %c0_23 = arith.constant 0 : index
    %c0_24 = arith.constant 0 : index
    %c0_25 = arith.constant 0 : index
    %58 = vector.load %arg10[%c0_23, %c0_24, %c0_25] : memref<2x8x32xf32, #tpu.memory_space<vmem>>, vector<2x1x32xf32>
    tpu.vector_store %arg10[%c0_23, %c0_24, %c0_25], %57 {strides = array<i32>} : memref<2x8x32xf32, #tpu.memory_space<vmem>>, vector<2x1x32xf32>,
    %59 = vector.extract_strided_slice %3 {offsets = [0, 1, 0], sizes = [2, 1, 32], strides = [1, 1, 1]} : vector<2x8x32xf32> to vector<2x1x32xf32>
    %60 = vector.shape_cast %59 : vector<2x1x32xf32> to vector<2x32xf32>
    %61 = vector.extract_strided_slice %4 {offsets = [0, 1, 0], sizes = [2, 1, 1], strides = [1, 1, 1]} : vector<2x8x1xf32> to vector<2x1x1xf32>
    %62 = vector.shape_cast %61 : vector<2x1x1xf32> to vector<2x1xf32>
    %cst_26 = arith.constant dense<0.000000e+00> : vector<2x160xf32>
    %63 = tpu.matmul %60, %5, %cst_26 {dimension_numbers = #tpu.dot_dimension_numbers<[1], [0], [0], [1], [0, 0, 1, 1], [], []>} : vector<2x32xf32>, vector<32x160xf32>, vector<2x160xf32> -> vector<2x160xf32>
    %64 = vector.extract_strided_slice %63 {offsets = [0, 0], sizes = [2, 32], strides = [1, 1]} : vector<2x160xf32> to vector<2x32xf32>
    %cst_27 = arith.constant dense<0.000000e+00> : vector<2x32xf32>
    %65 = tpu.matmul %52, %6, %cst_27 {dimension_numbers = #tpu.dot_dimension_numbers<[1], [0], [0], [1], [0, 0, 1, 1], [], []>} : vector<2x32xf32>, vector<32x32xf32>, vector<2x32xf32> -> vector<2x32xf32>
    %66 = arith.mulf %64, %65 : vector<2x32xf32>
    %67 = vector.extract_strided_slice %63 {offsets = [0, 32], sizes = [2, 128], strides = [1, 1]} : vector<2x160xf32> to vector<2x128xf32>
    %cst_28 = arith.constant dense<0.000000e+00> : vector<2x128xf32>
    %68 = tpu.matmul %66, %7, %cst_28 {dimension_numbers = #tpu.dot_dimension_numbers<[1], [0], [0], [1], [0, 0, 1, 1], [], []>} : vector<2x32xf32>, vector<32x128xf32>, vector<2x128xf32> -> vector<2x128xf32>
    %69 = arith.addf %67, %68 : vector<2x128xf32>
    %70 = vector.broadcast %8 : vector<1x128xf32> to vector<2x128xf32>
    %71 = arith.addf %69, %70 : vector<2x128xf32>
    %72 = vector.extract_strided_slice %71 {offsets = [0, 0], sizes = [2, 32], strides = [1, 1]} : vector<2x128xf32> to vector<2x32xf32>
    %73 = arith.negf %72 : vector<2x32xf32>
    %74 = math.exp %73 : vector<2x32xf32>
    %cst_29 = arith.constant 1.000000e+00 : f32
    %75 = vector.broadcast %cst_29 : f32 to vector<2x32xf32>
    %76 = arith.addf %75, %74 : vector<2x32xf32>
    %77 = arith.divf %75, %76 : vector<2x32xf32>
    %78 = vector.extract_strided_slice %71 {offsets = [0, 32], sizes = [2, 32], strides = [1, 1]} : vector<2x128xf32> to vector<2x32xf32>
    %79 = arith.negf %78 : vector<2x32xf32>
    %80 = math.exp %79 : vector<2x32xf32>
    %cst_30 = arith.constant 1.000000e+00 : f32
    %81 = vector.broadcast %cst_30 : f32 to vector<2x32xf32>
    %82 = arith.addf %81, %80 : vector<2x32xf32>
    %83 = arith.divf %81, %82 : vector<2x32xf32>
    %84 = vector.extract_strided_slice %71 {offsets = [0, 64], sizes = [2, 32], strides = [1, 1]} : vector<2x128xf32> to vector<2x32xf32>
    %85 = arith.negf %84 : vector<2x32xf32>
    %86 = math.exp %85 : vector<2x32xf32>
    %cst_31 = arith.constant 1.000000e+00 : f32
    %87 = vector.broadcast %cst_31 : f32 to vector<2x32xf32>
    %88 = arith.addf %87, %86 : vector<2x32xf32>
    %89 = arith.divf %87, %88 : vector<2x32xf32>
    %90 = vector.extract_strided_slice %71 {offsets = [0, 96], sizes = [2, 32], strides = [1, 1]} : vector<2x128xf32> to vector<2x32xf32>
    %91 = math.tanh %90 : vector<2x32xf32>
    %92 = arith.mulf %83, %56 : vector<2x32xf32>
    %93 = arith.mulf %77, %91 : vector<2x32xf32>
    %94 = arith.addf %92, %93 : vector<2x32xf32>
    %95 = math.tanh %94 : vector<2x32xf32>
    %96 = arith.mulf %89, %95 : vector<2x32xf32>
    %97 = arith.subf %96, %52 : vector<2x32xf32>
    %98 = vector.broadcast %62 : vector<2x1xf32> to vector<2x32xf32>
    %99 = arith.mulf %98, %97 : vector<2x32xf32>
    %100 = arith.addf %52, %99 : vector<2x32xf32>
    %101 = arith.subf %94, %56 : vector<2x32xf32>
    %102 = vector.broadcast %62 : vector<2x1xf32> to vector<2x32xf32>
    %103 = arith.mulf %102, %101 : vector<2x32xf32>
    %104 = arith.addf %56, %103 : vector<2x32xf32>
    %105 = vector.shape_cast %100 : vector<2x32xf32> to vector<2x1x32xf32>
    %c0_32 = arith.constant 0 : index
    %c1 = arith.constant 1 : index
    %c0_33 = arith.constant 0 : index
    %106 = vector.load %arg10[%c0_32, %c1, %c0_33] : memref<2x8x32xf32, #tpu.memory_space<vmem>>, vector<2x1x32xf32>
    tpu.vector_store %arg10[%c0_32, %c1, %c0_33], %105 {strides = array<i32>} : memref<2x8x32xf32, #tpu.memory_space<vmem>>, vector<2x1x32xf32>,
    %107 = vector.extract_strided_slice %3 {offsets = [0, 2, 0], sizes = [2, 1, 32], strides = [1, 1, 1]} : vector<2x8x32xf32> to vector<2x1x32xf32>
    %108 = vector.shape_cast %107 : vector<2x1x32xf32> to vector<2x32xf32>
    %109 = vector.extract_strided_slice %4 {offsets = [0, 2, 0], sizes = [2, 1, 1], strides = [1, 1, 1]} : vector<2x8x1xf32> to vector<2x1x1xf32>
    %110 = vector.shape_cast %109 : vector<2x1x1xf32> to vector<2x1xf32>
    %cst_34 = arith.constant dense<0.000000e+00> : vector<2x160xf32>
    %111 = tpu.matmul %108, %5, %cst_34 {dimension_numbers = #tpu.dot_dimension_numbers<[1], [0], [0], [1], [0, 0, 1, 1], [], []>} : vector<2x32xf32>, vector<32x160xf32>, vector<2x160xf32> -> vector<2x160xf32>
    %112 = vector.extract_strided_slice %111 {offsets = [0, 0], sizes = [2, 32], strides = [1, 1]} : vector<2x160xf32> to vector<2x32xf32>
    %cst_35 = arith.constant dense<0.000000e+00> : vector<2x32xf32>
    %113 = tpu.matmul %100, %6, %cst_35 {dimension_numbers = #tpu.dot_dimension_numbers<[1], [0], [0], [1], [0, 0, 1, 1], [], []>} : vector<2x32xf32>, vector<32x32xf32>, vector<2x32xf32> -> vector<2x32xf32>
    %114 = arith.mulf %112, %113 : vector<2x32xf32>
    %115 = vector.extract_strided_slice %111 {offsets = [0, 32], sizes = [2, 128], strides = [1, 1]} : vector<2x160xf32> to vector<2x128xf32>
    %cst_36 = arith.constant dense<0.000000e+00> : vector<2x128xf32>
    %116 = tpu.matmul %114, %7, %cst_36 {dimension_numbers = #tpu.dot_dimension_numbers<[1], [0], [0], [1], [0, 0, 1, 1], [], []>} : vector<2x32xf32>, vector<32x128xf32>, vector<2x128xf32> -> vector<2x128xf32>
    %117 = arith.addf %115, %116 : vector<2x128xf32>
    %118 = vector.broadcast %8 : vector<1x128xf32> to vector<2x128xf32>
    %119 = arith.addf %117, %118 : vector<2x128xf32>
    %120 = vector.extract_strided_slice %119 {offsets = [0, 0], sizes = [2, 32], strides = [1, 1]} : vector<2x128xf32> to vector<2x32xf32>
    %121 = arith.negf %120 : vector<2x32xf32>
    %122 = math.exp %121 : vector<2x32xf32>
    %cst_37 = arith.constant 1.000000e+00 : f32
    %123 = vector.broadcast %cst_37 : f32 to vector<2x32xf32>
    %124 = arith.addf %123, %122 : vector<2x32xf32>
    %125 = arith.divf %123, %124 : vector<2x32xf32>
    %126 = vector.extract_strided_slice %119 {offsets = [0, 32], sizes = [2, 32], strides = [1, 1]} : vector<2x128xf32> to vector<2x32xf32>
    %127 = arith.negf %126 : vector<2x32xf32>
    %128 = math.exp %127 : vector<2x32xf32>
    %cst_38 = arith.constant 1.000000e+00 : f32
    %129 = vector.broadcast %cst_38 : f32 to vector<2x32xf32>
    %130 = arith.addf %129, %128 : vector<2x32xf32>
    %131 = arith.divf %129, %130 : vector<2x32xf32>
    %132 = vector.extract_strided_slice %119 {offsets = [0, 64], sizes = [2, 32], strides = [1, 1]} : vector<2x128xf32> to vector<2x32xf32>
    %133 = arith.negf %132 : vector<2x32xf32>
    %134 = math.exp %133 : vector<2x32xf32>
    %cst_39 = arith.constant 1.000000e+00 : f32
    %135 = vector.broadcast %cst_39 : f32 to vector<2x32xf32>
    %136 = arith.addf %135, %134 : vector<2x32xf32>
    %137 = arith.divf %135, %136 : vector<2x32xf32>
    %138 = vector.extract_strided_slice %119 {offsets = [0, 96], sizes = [2, 32], strides = [1, 1]} : vector<2x128xf32> to vector<2x32xf32>
    %139 = math.tanh %138 : vector<2x32xf32>
    %140 = arith.mulf %131, %104 : vector<2x32xf32>
    %141 = arith.mulf %125, %139 : vector<2x32xf32>
    %142 = arith.addf %140, %141 : vector<2x32xf32>
    %143 = math.tanh %142 : vector<2x32xf32>
    %144 = arith.mulf %137, %143 : vector<2x32xf32>
    %145 = arith.subf %144, %100 : vector<2x32xf32>
    %146 = vector.broadcast %110 : vector<2x1xf32> to vector<2x32xf32>
    %147 = arith.mulf %146, %145 : vector<2x32xf32>
    %148 = arith.addf %100, %147 : vector<2x32xf32>
    %149 = arith.subf %142, %104 : vector<2x32xf32>
    %150 = vector.broadcast %110 : vector<2x1xf32> to vector<2x32xf32>
    %151 = arith.mulf %150, %149 : vector<2x32xf32>
    %152 = arith.addf %104, %151 : vector<2x32xf32>
    %153 = vector.shape_cast %148 : vector<2x32xf32> to vector<2x1x32xf32>
    %c0_40 = arith.constant 0 : index
    %c2 = arith.constant 2 : index
    %c0_41 = arith.constant 0 : index
    %154 = vector.load %arg10[%c0_40, %c2, %c0_41] : memref<2x8x32xf32, #tpu.memory_space<vmem>>, vector<2x1x32xf32>
    tpu.vector_store %arg10[%c0_40, %c2, %c0_41], %153 {strides = array<i32>} : memref<2x8x32xf32, #tpu.memory_space<vmem>>, vector<2x1x32xf32>,
    %155 = vector.extract_strided_slice %3 {offsets = [0, 3, 0], sizes = [2, 1, 32], strides = [1, 1, 1]} : vector<2x8x32xf32> to vector<2x1x32xf32>
    %156 = vector.shape_cast %155 : vector<2x1x32xf32> to vector<2x32xf32>
    %157 = vector.extract_strided_slice %4 {offsets = [0, 3, 0], sizes = [2, 1, 1], strides = [1, 1, 1]} : vector<2x8x1xf32> to vector<2x1x1xf32>
    %158 = vector.shape_cast %157 : vector<2x1x1xf32> to vector<2x1xf32>
    %cst_42 = arith.constant dense<0.000000e+00> : vector<2x160xf32>
    %159 = tpu.matmul %156, %5, %cst_42 {dimension_numbers = #tpu.dot_dimension_numbers<[1], [0], [0], [1], [0, 0, 1, 1], [], []>} : vector<2x32xf32>, vector<32x160xf32>, vector<2x160xf32> -> vector<2x160xf32>
    %160 = vector.extract_strided_slice %159 {offsets = [0, 0], sizes = [2, 32], strides = [1, 1]} : vector<2x160xf32> to vector<2x32xf32>
    %cst_43 = arith.constant dense<0.000000e+00> : vector<2x32xf32>
    %161 = tpu.matmul %148, %6, %cst_43 {dimension_numbers = #tpu.dot_dimension_numbers<[1], [0], [0], [1], [0, 0, 1, 1], [], []>} : vector<2x32xf32>, vector<32x32xf32>, vector<2x32xf32> -> vector<2x32xf32>
    %162 = arith.mulf %160, %161 : vector<2x32xf32>
    %163 = vector.extract_strided_slice %159 {offsets = [0, 32], sizes = [2, 128], strides = [1, 1]} : vector<2x160xf32> to vector<2x128xf32>
    %cst_44 = arith.constant dense<0.000000e+00> : vector<2x128xf32>
    %164 = tpu.matmul %162, %7, %cst_44 {dimension_numbers = #tpu.dot_dimension_numbers<[1], [0], [0], [1], [0, 0, 1, 1], [], []>} : vector<2x32xf32>, vector<32x128xf32>, vector<2x128xf32> -> vector<2x128xf32>
    %165 = arith.addf %163, %164 : vector<2x128xf32>
    %166 = vector.broadcast %8 : vector<1x128xf32> to vector<2x128xf32>
    %167 = arith.addf %165, %166 : vector<2x128xf32>
    %168 = vector.extract_strided_slice %167 {offsets = [0, 0], sizes = [2, 32], strides = [1, 1]} : vector<2x128xf32> to vector<2x32xf32>
    %169 = arith.negf %168 : vector<2x32xf32>
    %170 = math.exp %169 : vector<2x32xf32>
    %cst_45 = arith.constant 1.000000e+00 : f32
    %171 = vector.broadcast %cst_45 : f32 to vector<2x32xf32>
    %172 = arith.addf %171, %170 : vector<2x32xf32>
    %173 = arith.divf %171, %172 : vector<2x32xf32>
    %174 = vector.extract_strided_slice %167 {offsets = [0, 32], sizes = [2, 32], strides = [1, 1]} : vector<2x128xf32> to vector<2x32xf32>
    %175 = arith.negf %174 : vector<2x32xf32>
    %176 = math.exp %175 : vector<2x32xf32>
    %cst_46 = arith.constant 1.000000e+00 : f32
    %177 = vector.broadcast %cst_46 : f32 to vector<2x32xf32>
    %178 = arith.addf %177, %176 : vector<2x32xf32>
    %179 = arith.divf %177, %178 : vector<2x32xf32>
    %180 = vector.extract_strided_slice %167 {offsets = [0, 64], sizes = [2, 32], strides = [1, 1]} : vector<2x128xf32> to vector<2x32xf32>
    %181 = arith.negf %180 : vector<2x32xf32>
    %182 = math.exp %181 : vector<2x32xf32>
    %cst_47 = arith.constant 1.000000e+00 : f32
    %183 = vector.broadcast %cst_47 : f32 to vector<2x32xf32>
    %184 = arith.addf %183, %182 : vector<2x32xf32>
    %185 = arith.divf %183, %184 : vector<2x32xf32>
    %186 = vector.extract_strided_slice %167 {offsets = [0, 96], sizes = [2, 32], strides = [1, 1]} : vector<2x128xf32> to vector<2x32xf32>
    %187 = math.tanh %186 : vector<2x32xf32>
    %188 = arith.mulf %179, %152 : vector<2x32xf32>
    %189 = arith.mulf %173, %187 : vector<2x32xf32>
    %190 = arith.addf %188, %189 : vector<2x32xf32>
    %191 = math.tanh %190 : vector<2x32xf32>
    %192 = arith.mulf %185, %191 : vector<2x32xf32>
    %193 = arith.subf %192, %148 : vector<2x32xf32>
    %194 = vector.broadcast %158 : vector<2x1xf32> to vector<2x32xf32>
    %195 = arith.mulf %194, %193 : vector<2x32xf32>
    %196 = arith.addf %148, %195 : vector<2x32xf32>
    %197 = arith.subf %190, %152 : vector<2x32xf32>
    %198 = vector.broadcast %158 : vector<2x1xf32> to vector<2x32xf32>
    %199 = arith.mulf %198, %197 : vector<2x32xf32>
    %200 = arith.addf %152, %199 : vector<2x32xf32>
    %201 = vector.shape_cast %196 : vector<2x32xf32> to vector<2x1x32xf32>
    %c0_48 = arith.constant 0 : index
    %c3 = arith.constant 3 : index
    %c0_49 = arith.constant 0 : index
    %202 = vector.load %arg10[%c0_48, %c3, %c0_49] : memref<2x8x32xf32, #tpu.memory_space<vmem>>, vector<2x1x32xf32>
    tpu.vector_store %arg10[%c0_48, %c3, %c0_49], %201 {strides = array<i32>} : memref<2x8x32xf32, #tpu.memory_space<vmem>>, vector<2x1x32xf32>,
    %203 = vector.extract_strided_slice %3 {offsets = [0, 4, 0], sizes = [2, 1, 32], strides = [1, 1, 1]} : vector<2x8x32xf32> to vector<2x1x32xf32>
    %204 = vector.shape_cast %203 : vector<2x1x32xf32> to vector<2x32xf32>
    %205 = vector.extract_strided_slice %4 {offsets = [0, 4, 0], sizes = [2, 1, 1], strides = [1, 1, 1]} : vector<2x8x1xf32> to vector<2x1x1xf32>
    %206 = vector.shape_cast %205 : vector<2x1x1xf32> to vector<2x1xf32>
    %cst_50 = arith.constant dense<0.000000e+00> : vector<2x160xf32>
    %207 = tpu.matmul %204, %5, %cst_50 {dimension_numbers = #tpu.dot_dimension_numbers<[1], [0], [0], [1], [0, 0, 1, 1], [], []>} : vector<2x32xf32>, vector<32x160xf32>, vector<2x160xf32> -> vector<2x160xf32>
    %208 = vector.extract_strided_slice %207 {offsets = [0, 0], sizes = [2, 32], strides = [1, 1]} : vector<2x160xf32> to vector<2x32xf32>
    %cst_51 = arith.constant dense<0.000000e+00> : vector<2x32xf32>
    %209 = tpu.matmul %196, %6, %cst_51 {dimension_numbers = #tpu.dot_dimension_numbers<[1], [0], [0], [1], [0, 0, 1, 1], [], []>} : vector<2x32xf32>, vector<32x32xf32>, vector<2x32xf32> -> vector<2x32xf32>
    %210 = arith.mulf %208, %209 : vector<2x32xf32>
    %211 = vector.extract_strided_slice %207 {offsets = [0, 32], sizes = [2, 128], strides = [1, 1]} : vector<2x160xf32> to vector<2x128xf32>
    %cst_52 = arith.constant dense<0.000000e+00> : vector<2x128xf32>
    %212 = tpu.matmul %210, %7, %cst_52 {dimension_numbers = #tpu.dot_dimension_numbers<[1], [0], [0], [1], [0, 0, 1, 1], [], []>} : vector<2x32xf32>, vector<32x128xf32>, vector<2x128xf32> -> vector<2x128xf32>
    %213 = arith.addf %211, %212 : vector<2x128xf32>
    %214 = vector.broadcast %8 : vector<1x128xf32> to vector<2x128xf32>
    %215 = arith.addf %213, %214 : vector<2x128xf32>
    %216 = vector.extract_strided_slice %215 {offsets = [0, 0], sizes = [2, 32], strides = [1, 1]} : vector<2x128xf32> to vector<2x32xf32>
    %217 = arith.negf %216 : vector<2x32xf32>
    %218 = math.exp %217 : vector<2x32xf32>
    %cst_53 = arith.constant 1.000000e+00 : f32
    %219 = vector.broadcast %cst_53 : f32 to vector<2x32xf32>
    %220 = arith.addf %219, %218 : vector<2x32xf32>
    %221 = arith.divf %219, %220 : vector<2x32xf32>
    %222 = vector.extract_strided_slice %215 {offsets = [0, 32], sizes = [2, 32], strides = [1, 1]} : vector<2x128xf32> to vector<2x32xf32>
    %223 = arith.negf %222 : vector<2x32xf32>
    %224 = math.exp %223 : vector<2x32xf32>
    %cst_54 = arith.constant 1.000000e+00 : f32
    %225 = vector.broadcast %cst_54 : f32 to vector<2x32xf32>
    %226 = arith.addf %225, %224 : vector<2x32xf32>
    %227 = arith.divf %225, %226 : vector<2x32xf32>
    %228 = vector.extract_strided_slice %215 {offsets = [0, 64], sizes = [2, 32], strides = [1, 1]} : vector<2x128xf32> to vector<2x32xf32>
    %229 = arith.negf %228 : vector<2x32xf32>
    %230 = math.exp %229 : vector<2x32xf32>
    %cst_55 = arith.constant 1.000000e+00 : f32
    %231 = vector.broadcast %cst_55 : f32 to vector<2x32xf32>
    %232 = arith.addf %231, %230 : vector<2x32xf32>
    %233 = arith.divf %231, %232 : vector<2x32xf32>
    %234 = vector.extract_strided_slice %215 {offsets = [0, 96], sizes = [2, 32], strides = [1, 1]} : vector<2x128xf32> to vector<2x32xf32>
    %235 = math.tanh %234 : vector<2x32xf32>
    %236 = arith.mulf %227, %200 : vector<2x32xf32>
    %237 = arith.mulf %221, %235 : vector<2x32xf32>
    %238 = arith.addf %236, %237 : vector<2x32xf32>
    %239 = math.tanh %238 : vector<2x32xf32>
    %240 = arith.mulf %233, %239 : vector<2x32xf32>
    %241 = arith.subf %240, %196 : vector<2x32xf32>
    %242 = vector.broadcast %206 : vector<2x1xf32> to vector<2x32xf32>
    %243 = arith.mulf %242, %241 : vector<2x32xf32>
    %244 = arith.addf %196, %243 : vector<2x32xf32>
    %245 = arith.subf %238, %200 : vector<2x32xf32>
    %246 = vector.broadcast %206 : vector<2x1xf32> to vector<2x32xf32>
    %247 = arith.mulf %246, %245 : vector<2x32xf32>
    %248 = arith.addf %200, %247 : vector<2x32xf32>
    %249 = vector.shape_cast %244 : vector<2x32xf32> to vector<2x1x32xf32>
    %c0_56 = arith.constant 0 : index
    %c4 = arith.constant 4 : index
    %c0_57 = arith.constant 0 : index
    %250 = vector.load %arg10[%c0_56, %c4, %c0_57] : memref<2x8x32xf32, #tpu.memory_space<vmem>>, vector<2x1x32xf32>
    tpu.vector_store %arg10[%c0_56, %c4, %c0_57], %249 {strides = array<i32>} : memref<2x8x32xf32, #tpu.memory_space<vmem>>, vector<2x1x32xf32>,
    %251 = vector.extract_strided_slice %3 {offsets = [0, 5, 0], sizes = [2, 1, 32], strides = [1, 1, 1]} : vector<2x8x32xf32> to vector<2x1x32xf32>
    %252 = vector.shape_cast %251 : vector<2x1x32xf32> to vector<2x32xf32>
    %253 = vector.extract_strided_slice %4 {offsets = [0, 5, 0], sizes = [2, 1, 1], strides = [1, 1, 1]} : vector<2x8x1xf32> to vector<2x1x1xf32>
    %254 = vector.shape_cast %253 : vector<2x1x1xf32> to vector<2x1xf32>
    %cst_58 = arith.constant dense<0.000000e+00> : vector<2x160xf32>
    %255 = tpu.matmul %252, %5, %cst_58 {dimension_numbers = #tpu.dot_dimension_numbers<[1], [0], [0], [1], [0, 0, 1, 1], [], []>} : vector<2x32xf32>, vector<32x160xf32>, vector<2x160xf32> -> vector<2x160xf32>
    %256 = vector.extract_strided_slice %255 {offsets = [0, 0], sizes = [2, 32], strides = [1, 1]} : vector<2x160xf32> to vector<2x32xf32>
    %cst_59 = arith.constant dense<0.000000e+00> : vector<2x32xf32>
    %257 = tpu.matmul %244, %6, %cst_59 {dimension_numbers = #tpu.dot_dimension_numbers<[1], [0], [0], [1], [0, 0, 1, 1], [], []>} : vector<2x32xf32>, vector<32x32xf32>, vector<2x32xf32> -> vector<2x32xf32>
    %258 = arith.mulf %256, %257 : vector<2x32xf32>
    %259 = vector.extract_strided_slice %255 {offsets = [0, 32], sizes = [2, 128], strides = [1, 1]} : vector<2x160xf32> to vector<2x128xf32>
    %cst_60 = arith.constant dense<0.000000e+00> : vector<2x128xf32>
    %260 = tpu.matmul %258, %7, %cst_60 {dimension_numbers = #tpu.dot_dimension_numbers<[1], [0], [0], [1], [0, 0, 1, 1], [], []>} : vector<2x32xf32>, vector<32x128xf32>, vector<2x128xf32> -> vector<2x128xf32>
    %261 = arith.addf %259, %260 : vector<2x128xf32>
    %262 = vector.broadcast %8 : vector<1x128xf32> to vector<2x128xf32>
    %263 = arith.addf %261, %262 : vector<2x128xf32>
    %264 = vector.extract_strided_slice %263 {offsets = [0, 0], sizes = [2, 32], strides = [1, 1]} : vector<2x128xf32> to vector<2x32xf32>
    %265 = arith.negf %264 : vector<2x32xf32>
    %266 = math.exp %265 : vector<2x32xf32>
    %cst_61 = arith.constant 1.000000e+00 : f32
    %267 = vector.broadcast %cst_61 : f32 to vector<2x32xf32>
    %268 = arith.addf %267, %266 : vector<2x32xf32>
    %269 = arith.divf %267, %268 : vector<2x32xf32>
    %270 = vector.extract_strided_slice %263 {offsets = [0, 32], sizes = [2, 32], strides = [1, 1]} : vector<2x128xf32> to vector<2x32xf32>
    %271 = arith.negf %270 : vector<2x32xf32>
    %272 = math.exp %271 : vector<2x32xf32>
    %cst_62 = arith.constant 1.000000e+00 : f32
    %273 = vector.broadcast %cst_62 : f32 to vector<2x32xf32>
    %274 = arith.addf %273, %272 : vector<2x32xf32>
    %275 = arith.divf %273, %274 : vector<2x32xf32>
    %276 = vector.extract_strided_slice %263 {offsets = [0, 64], sizes = [2, 32], strides = [1, 1]} : vector<2x128xf32> to vector<2x32xf32>
    %277 = arith.negf %276 : vector<2x32xf32>
    %278 = math.exp %277 : vector<2x32xf32>
    %cst_63 = arith.constant 1.000000e+00 : f32
    %279 = vector.broadcast %cst_63 : f32 to vector<2x32xf32>
    %280 = arith.addf %279, %278 : vector<2x32xf32>
    %281 = arith.divf %279, %280 : vector<2x32xf32>
    %282 = vector.extract_strided_slice %263 {offsets = [0, 96], sizes = [2, 32], strides = [1, 1]} : vector<2x128xf32> to vector<2x32xf32>
    %283 = math.tanh %282 : vector<2x32xf32>
    %284 = arith.mulf %275, %248 : vector<2x32xf32>
    %285 = arith.mulf %269, %283 : vector<2x32xf32>
    %286 = arith.addf %284, %285 : vector<2x32xf32>
    %287 = math.tanh %286 : vector<2x32xf32>
    %288 = arith.mulf %281, %287 : vector<2x32xf32>
    %289 = arith.subf %288, %244 : vector<2x32xf32>
    %290 = vector.broadcast %254 : vector<2x1xf32> to vector<2x32xf32>
    %291 = arith.mulf %290, %289 : vector<2x32xf32>
    %292 = arith.addf %244, %291 : vector<2x32xf32>
    %293 = arith.subf %286, %248 : vector<2x32xf32>
    %294 = vector.broadcast %254 : vector<2x1xf32> to vector<2x32xf32>
    %295 = arith.mulf %294, %293 : vector<2x32xf32>
    %296 = arith.addf %248, %295 : vector<2x32xf32>
    %297 = vector.shape_cast %292 : vector<2x32xf32> to vector<2x1x32xf32>
    %c0_64 = arith.constant 0 : index
    %c5 = arith.constant 5 : index
    %c0_65 = arith.constant 0 : index
    %298 = vector.load %arg10[%c0_64, %c5, %c0_65] : memref<2x8x32xf32, #tpu.memory_space<vmem>>, vector<2x1x32xf32>
    tpu.vector_store %arg10[%c0_64, %c5, %c0_65], %297 {strides = array<i32>} : memref<2x8x32xf32, #tpu.memory_space<vmem>>, vector<2x1x32xf32>,
    %299 = vector.extract_strided_slice %3 {offsets = [0, 6, 0], sizes = [2, 1, 32], strides = [1, 1, 1]} : vector<2x8x32xf32> to vector<2x1x32xf32>
    %300 = vector.shape_cast %299 : vector<2x1x32xf32> to vector<2x32xf32>
    %301 = vector.extract_strided_slice %4 {offsets = [0, 6, 0], sizes = [2, 1, 1], strides = [1, 1, 1]} : vector<2x8x1xf32> to vector<2x1x1xf32>
    %302 = vector.shape_cast %301 : vector<2x1x1xf32> to vector<2x1xf32>
    %cst_66 = arith.constant dense<0.000000e+00> : vector<2x160xf32>
    %303 = tpu.matmul %300, %5, %cst_66 {dimension_numbers = #tpu.dot_dimension_numbers<[1], [0], [0], [1], [0, 0, 1, 1], [], []>} : vector<2x32xf32>, vector<32x160xf32>, vector<2x160xf32> -> vector<2x160xf32>
    %304 = vector.extract_strided_slice %303 {offsets = [0, 0], sizes = [2, 32], strides = [1, 1]} : vector<2x160xf32> to vector<2x32xf32>
    %cst_67 = arith.constant dense<0.000000e+00> : vector<2x32xf32>
    %305 = tpu.matmul %292, %6, %cst_67 {dimension_numbers = #tpu.dot_dimension_numbers<[1], [0], [0], [1], [0, 0, 1, 1], [], []>} : vector<2x32xf32>, vector<32x32xf32>, vector<2x32xf32> -> vector<2x32xf32>
    %306 = arith.mulf %304, %305 : vector<2x32xf32>
    %307 = vector.extract_strided_slice %303 {offsets = [0, 32], sizes = [2, 128], strides = [1, 1]} : vector<2x160xf32> to vector<2x128xf32>
    %cst_68 = arith.constant dense<0.000000e+00> : vector<2x128xf32>
    %308 = tpu.matmul %306, %7, %cst_68 {dimension_numbers = #tpu.dot_dimension_numbers<[1], [0], [0], [1], [0, 0, 1, 1], [], []>} : vector<2x32xf32>, vector<32x128xf32>, vector<2x128xf32> -> vector<2x128xf32>
    %309 = arith.addf %307, %308 : vector<2x128xf32>
    %310 = vector.broadcast %8 : vector<1x128xf32> to vector<2x128xf32>
    %311 = arith.addf %309, %310 : vector<2x128xf32>
    %312 = vector.extract_strided_slice %311 {offsets = [0, 0], sizes = [2, 32], strides = [1, 1]} : vector<2x128xf32> to vector<2x32xf32>
    %313 = arith.negf %312 : vector<2x32xf32>
    %314 = math.exp %313 : vector<2x32xf32>
    %cst_69 = arith.constant 1.000000e+00 : f32
    %315 = vector.broadcast %cst_69 : f32 to vector<2x32xf32>
    %316 = arith.addf %315, %314 : vector<2x32xf32>
    %317 = arith.divf %315, %316 : vector<2x32xf32>
    %318 = vector.extract_strided_slice %311 {offsets = [0, 32], sizes = [2, 32], strides = [1, 1]} : vector<2x128xf32> to vector<2x32xf32>
    %319 = arith.negf %318 : vector<2x32xf32>
    %320 = math.exp %319 : vector<2x32xf32>
    %cst_70 = arith.constant 1.000000e+00 : f32
    %321 = vector.broadcast %cst_70 : f32 to vector<2x32xf32>
    %322 = arith.addf %321, %320 : vector<2x32xf32>
    %323 = arith.divf %321, %322 : vector<2x32xf32>
    %324 = vector.extract_strided_slice %311 {offsets = [0, 64], sizes = [2, 32], strides = [1, 1]} : vector<2x128xf32> to vector<2x32xf32>
    %325 = arith.negf %324 : vector<2x32xf32>
    %326 = math.exp %325 : vector<2x32xf32>
    %cst_71 = arith.constant 1.000000e+00 : f32
    %327 = vector.broadcast %cst_71 : f32 to vector<2x32xf32>
    %328 = arith.addf %327, %326 : vector<2x32xf32>
    %329 = arith.divf %327, %328 : vector<2x32xf32>
    %330 = vector.extract_strided_slice %311 {offsets = [0, 96], sizes = [2, 32], strides = [1, 1]} : vector<2x128xf32> to vector<2x32xf32>
    %331 = math.tanh %330 : vector<2x32xf32>
    %332 = arith.mulf %323, %296 : vector<2x32xf32>
    %333 = arith.mulf %317, %331 : vector<2x32xf32>
    %334 = arith.addf %332, %333 : vector<2x32xf32>
    %335 = math.tanh %334 : vector<2x32xf32>
    %336 = arith.mulf %329, %335 : vector<2x32xf32>
    %337 = arith.subf %336, %292 : vector<2x32xf32>
    %338 = vector.broadcast %302 : vector<2x1xf32> to vector<2x32xf32>
    %339 = arith.mulf %338, %337 : vector<2x32xf32>
    %340 = arith.addf %292, %339 : vector<2x32xf32>
    %341 = arith.subf %334, %296 : vector<2x32xf32>
    %342 = vector.broadcast %302 : vector<2x1xf32> to vector<2x32xf32>
    %343 = arith.mulf %342, %341 : vector<2x32xf32>
    %344 = arith.addf %296, %343 : vector<2x32xf32>
    %345 = vector.shape_cast %340 : vector<2x32xf32> to vector<2x1x32xf32>
    %c0_72 = arith.constant 0 : index
    %c6 = arith.constant 6 : index
    %c0_73 = arith.constant 0 : index
    %346 = vector.load %arg10[%c0_72, %c6, %c0_73] : memref<2x8x32xf32, #tpu.memory_space<vmem>>, vector<2x1x32xf32>
    tpu.vector_store %arg10[%c0_72, %c6, %c0_73], %345 {strides = array<i32>} : memref<2x8x32xf32, #tpu.memory_space<vmem>>, vector<2x1x32xf32>,
    %347 = vector.extract_strided_slice %3 {offsets = [0, 7, 0], sizes = [2, 1, 32], strides = [1, 1, 1]} : vector<2x8x32xf32> to vector<2x1x32xf32>
    %348 = vector.shape_cast %347 : vector<2x1x32xf32> to vector<2x32xf32>
    %349 = vector.extract_strided_slice %4 {offsets = [0, 7, 0], sizes = [2, 1, 1], strides = [1, 1, 1]} : vector<2x8x1xf32> to vector<2x1x1xf32>
    %350 = vector.shape_cast %349 : vector<2x1x1xf32> to vector<2x1xf32>
    %cst_74 = arith.constant dense<0.000000e+00> : vector<2x160xf32>
    %351 = tpu.matmul %348, %5, %cst_74 {dimension_numbers = #tpu.dot_dimension_numbers<[1], [0], [0], [1], [0, 0, 1, 1], [], []>} : vector<2x32xf32>, vector<32x160xf32>, vector<2x160xf32> -> vector<2x160xf32>
    %352 = vector.extract_strided_slice %351 {offsets = [0, 0], sizes = [2, 32], strides = [1, 1]} : vector<2x160xf32> to vector<2x32xf32>
    %cst_75 = arith.constant dense<0.000000e+00> : vector<2x32xf32>
    %353 = tpu.matmul %340, %6, %cst_75 {dimension_numbers = #tpu.dot_dimension_numbers<[1], [0], [0], [1], [0, 0, 1, 1], [], []>} : vector<2x32xf32>, vector<32x32xf32>, vector<2x32xf32> -> vector<2x32xf32>
    %354 = arith.mulf %352, %353 : vector<2x32xf32>
    %355 = vector.extract_strided_slice %351 {offsets = [0, 32], sizes = [2, 128], strides = [1, 1]} : vector<2x160xf32> to vector<2x128xf32>
    %cst_76 = arith.constant dense<0.000000e+00> : vector<2x128xf32>
    %356 = tpu.matmul %354, %7, %cst_76 {dimension_numbers = #tpu.dot_dimension_numbers<[1], [0], [0], [1], [0, 0, 1, 1], [], []>} : vector<2x32xf32>, vector<32x128xf32>, vector<2x128xf32> -> vector<2x128xf32>
    %357 = arith.addf %355, %356 : vector<2x128xf32>
    %358 = vector.broadcast %8 : vector<1x128xf32> to vector<2x128xf32>
    %359 = arith.addf %357, %358 : vector<2x128xf32>
    %360 = vector.extract_strided_slice %359 {offsets = [0, 0], sizes = [2, 32], strides = [1, 1]} : vector<2x128xf32> to vector<2x32xf32>
    %361 = arith.negf %360 : vector<2x32xf32>
    %362 = math.exp %361 : vector<2x32xf32>
    %cst_77 = arith.constant 1.000000e+00 : f32
    %363 = vector.broadcast %cst_77 : f32 to vector<2x32xf32>
    %364 = arith.addf %363, %362 : vector<2x32xf32>
    %365 = arith.divf %363, %364 : vector<2x32xf32>
    %366 = vector.extract_strided_slice %359 {offsets = [0, 32], sizes = [2, 32], strides = [1, 1]} : vector<2x128xf32> to vector<2x32xf32>
    %367 = arith.negf %366 : vector<2x32xf32>
    %368 = math.exp %367 : vector<2x32xf32>
    %cst_78 = arith.constant 1.000000e+00 : f32
    %369 = vector.broadcast %cst_78 : f32 to vector<2x32xf32>
    %370 = arith.addf %369, %368 : vector<2x32xf32>
    %371 = arith.divf %369, %370 : vector<2x32xf32>
    %372 = vector.extract_strided_slice %359 {offsets = [0, 64], sizes = [2, 32], strides = [1, 1]} : vector<2x128xf32> to vector<2x32xf32>
    %373 = arith.negf %372 : vector<2x32xf32>
    %374 = math.exp %373 : vector<2x32xf32>
    %cst_79 = arith.constant 1.000000e+00 : f32
    %375 = vector.broadcast %cst_79 : f32 to vector<2x32xf32>
    %376 = arith.addf %375, %374 : vector<2x32xf32>
    %377 = arith.divf %375, %376 : vector<2x32xf32>
    %378 = vector.extract_strided_slice %359 {offsets = [0, 96], sizes = [2, 32], strides = [1, 1]} : vector<2x128xf32> to vector<2x32xf32>
    %379 = math.tanh %378 : vector<2x32xf32>
    %380 = arith.mulf %371, %344 : vector<2x32xf32>
    %381 = arith.mulf %365, %379 : vector<2x32xf32>
    %382 = arith.addf %380, %381 : vector<2x32xf32>
    %383 = math.tanh %382 : vector<2x32xf32>
    %384 = arith.mulf %377, %383 : vector<2x32xf32>
    %385 = arith.subf %384, %340 : vector<2x32xf32>
    %386 = vector.broadcast %350 : vector<2x1xf32> to vector<2x32xf32>
    %387 = arith.mulf %386, %385 : vector<2x32xf32>
    %388 = arith.addf %340, %387 : vector<2x32xf32>
    %389 = arith.subf %382, %344 : vector<2x32xf32>
    %390 = vector.broadcast %350 : vector<2x1xf32> to vector<2x32xf32>
    %391 = arith.mulf %390, %389 : vector<2x32xf32>
    %392 = arith.addf %344, %391 : vector<2x32xf32>
    %393 = vector.shape_cast %388 : vector<2x32xf32> to vector<2x1x32xf32>
    %c0_80 = arith.constant 0 : index
    %c7 = arith.constant 7 : index
    %c0_81 = arith.constant 0 : index
    %394 = vector.load %arg10[%c0_80, %c7, %c0_81] : memref<2x8x32xf32, #tpu.memory_space<vmem>>, vector<2x1x32xf32>
    tpu.vector_store %arg10[%c0_80, %c7, %c0_81], %393 {strides = array<i32>} : memref<2x8x32xf32, #tpu.memory_space<vmem>>, vector<2x1x32xf32>,
    %c0_82 = arith.constant 0 : index
    %c0_83 = arith.constant 0 : index
    %395 = vector.load %arg13[%c0_82, %c0_83] : memref<2x32xf32, #tpu.memory_space<vmem>>, vector<2x32xf32>
    tpu.vector_store %arg13[%c0_82, %c0_83], %388 {strides = array<i32>} : memref<2x32xf32, #tpu.memory_space<vmem>>, vector<2x32xf32>,
    %c0_84 = arith.constant 0 : index
    %c0_85 = arith.constant 0 : index
    %396 = vector.load %arg14[%c0_84, %c0_85] : memref<2x32xf32, #tpu.memory_space<vmem>>, vector<2x32xf32>
    tpu.vector_store %arg14[%c0_84, %c0_85], %392 {strides = array<i32>} : memref<2x32xf32, #tpu.memory_space<vmem>>, vector<2x32xf32>,
    %c2_i32 = arith.constant 2 : i32
    %397 = arith.cmpi eq, %arg1, %c2_i32 : i32
    %398 = arith.extui %397 : i1 to i32
    %c0_i32_86 = arith.constant 0 : i32
    %399 = arith.cmpi ne, %398, %c0_i32_86 : i32
    scf.if %399 {
      %c0_87 = arith.constant 0 : index
      %c0_88 = arith.constant 0 : index
      %400 = vector.load %arg11[%c0_87, %c0_88] : memref<2x32xf32, #tpu.memory_space<vmem>>, vector<2x32xf32>
      tpu.vector_store %arg11[%c0_87, %c0_88], %388 {strides = array<i32>} : memref<2x32xf32, #tpu.memory_space<vmem>>, vector<2x32xf32>,
      %c0_89 = arith.constant 0 : index
      %c0_90 = arith.constant 0 : index
      %401 = vector.load %arg12[%c0_89, %c0_90] : memref<2x32xf32, #tpu.memory_space<vmem>>, vector<2x32xf32>
      tpu.vector_store %arg12[%c0_89, %c0_90], %392 {strides = array<i32>} : memref<2x32xf32, #tpu.memory_space<vmem>>, vector<2x32xf32>,
    } else {
    }
    return
  }
  func.func @transform_0(%arg0: i32, %arg1: i32) -> (i32, i32, i32) {
    %c0_i32 = arith.constant 0 : i32
    %c0_i32_0 = arith.constant 0 : i32
    return %arg0, %arg1, %c0_i32 : i32, i32, i32
  }
  func.func @transform_1(%arg0: i32, %arg1: i32) -> (i32, i32, i32) {
    %c0_i32 = arith.constant 0 : i32
    %c0_i32_0 = arith.constant 0 : i32
    return %arg0, %arg1, %c0_i32 : i32, i32, i32
  }
  func.func @transform_2(%arg0: i32, %arg1: i32) -> (i32, i32) {
    %c0_i32 = arith.constant 0 : i32
    %c0_i32_0 = arith.constant 0 : i32
    return %arg0, %c0_i32 : i32, i32
  }
  func.func @transform_3(%arg0: i32, %arg1: i32) -> (i32, i32) {
    %c0_i32 = arith.constant 0 : i32
    %c0_i32_0 = arith.constant 0 : i32
    return %arg0, %c0_i32 : i32, i32
  }
  func.func @transform_4(%arg0: i32, %arg1: i32) -> (i32, i32) {
    %c0_i32 = arith.constant 0 : i32
    %c0_i32_0 = arith.constant 0 : i32
    %c0_i32_1 = arith.constant 0 : i32
    return %c0_i32, %c0_i32_0 : i32, i32
  }
  func.func @transform_5(%arg0: i32, %arg1: i32) -> (i32, i32) {
    %c0_i32 = arith.constant 0 : i32
    %c0_i32_0 = arith.constant 0 : i32
    %c0_i32_1 = arith.constant 0 : i32
    return %c0_i32, %c0_i32_0 : i32, i32
  }
  func.func @transform_6(%arg0: i32, %arg1: i32) -> (i32, i32) {
    %c0_i32 = arith.constant 0 : i32
    %c0_i32_0 = arith.constant 0 : i32
    %c0_i32_1 = arith.constant 0 : i32
    return %c0_i32, %c0_i32_0 : i32, i32
  }
  func.func @transform_7(%arg0: i32, %arg1: i32) -> (i32, i32) {
    %c0_i32 = arith.constant 0 : i32
    %c0_i32_0 = arith.constant 0 : i32
    %c0_i32_1 = arith.constant 0 : i32
    return %c0_i32, %c0_i32_0 : i32, i32
  }
  func.func @transform_8(%arg0: i32, %arg1: i32) -> (i32, i32, i32) {
    %c0_i32 = arith.constant 0 : i32
    %c0_i32_0 = arith.constant 0 : i32
    return %arg0, %arg1, %c0_i32 : i32, i32, i32
  }
  func.func @transform_9(%arg0: i32, %arg1: i32) -> (i32, i32) {
    %c0_i32 = arith.constant 0 : i32
    %c0_i32_0 = arith.constant 0 : i32
    return %arg0, %c0_i32 : i32, i32
  }
  func.func @transform_10(%arg0: i32, %arg1: i32) -> (i32, i32) {
    %c0_i32 = arith.constant 0 : i32
    %c0_i32_0 = arith.constant 0 : i32
    return %arg0, %c0_i32 : i32, i32
  }
}

</mosaic_0001>

<llo_original>
// kernel: tpu_custom_call.1
$region0: #{tpu_custom_call.1}
  #allocation0 [shape = 'u32[]', space=smem, size = 0x4, offset = 0x4, fixed_abs, tag = 'smem constant byte address 0x4 - core index']
  #allocation1 [shape = 'u32[144,128]{1,0:T(1,128)}', space=vmem, size = 0x12000, scoped, tag = 'internal scratch']
  #allocation2 [shape = 'f32[2,32]{1,0:T(2,128)}', space=vmem, size = 0x400, scoped, tag = 'scratch operand']
  #allocation3 [shape = 'f32[2,32]{1,0:T(2,128)}', space=vmem, size = 0x400, scoped, tag = 'scratch operand']
  %s0 = inlined_call_operand.vmem [shape: f32[2,24,32], index: 0, kind: input, shape index: {}]
  %s1 = inlined_call_operand.vmem [shape: f32[2,24,1], index: 1, kind: input, shape index: {}]
  %s2 = inlined_call_operand.vmem [shape: f32[2,32], index: 2, kind: input, shape index: {}]
  %s3 = inlined_call_operand.vmem [shape: f32[2,32], index: 3, kind: input, shape index: {}]
  %s4 = inlined_call_operand.hbm [shape: f32[32,160], index: 4, kind: input, shape index: {}]
  %s5 = inlined_call_operand.hbm [shape: f32[32,32], index: 5, kind: input, shape index: {}]
  %s6 = inlined_call_operand.hbm [shape: f32[32,128], index: 6, kind: input, shape index: {}]
  %s7 = inlined_call_operand.vmem [shape: f32[1,128], index: 7, kind: input, shape index: {}]
  %s8 = inlined_call_operand.hbm [shape: f32[2,24,32], index: 8, kind: output, shape index: {0}]
  %s9 = inlined_call_operand.hbm [shape: f32[2,32], index: 9, kind: output, shape index: {1}]
  %s10 = inlined_call_operand.hbm [shape: f32[2,32], index: 10, kind: output, shape index: {2}]
  %11 = xla_tuple %s8, %s9, %s10
  %s12 = sld [smem:[#allocation0]]
  $region177: #{tpu_custom_call.1} parent=0
    _
  %s14 = ssub.s32 1, %s12
  %s15 = scalar_select 0, %s14, %s12
  $region1: #{tpu_custom_call.1} parent=0
    #allocation4 [shape = 'u8[16384]{0}', space=vmem, size = 0x4000, scoped, tag = 'input window, operand 0']
    #allocation5 [shape = 'u8[16384]{0}', space=vmem, size = 0x4000, scoped, tag = 'input window, operand 1']
    #allocation6 [shape = 'u8[32768]{0}', space=vmem, size = 0x8000, scoped, tag = 'input window, operand 4, single buffered']
    #allocation7 [shape = 's32[2]{0}', space=sflag, size = 0x8, scoped, tag = 'scoped memory for tpu_custom_call.1']
    #allocation8 [shape = 's32[2]{0}', space=sflag, size = 0x8, scoped, tag = 'scoped memory for tpu_custom_call.1']
    #allocation9 [shape = 'u8[16384]{0}', space=vmem, size = 0x4000, scoped, tag = 'input window, operand 5, single buffered']
    #allocation10 [shape = 's32[1]{0}', space=sflag, size = 0x4, scoped, tag = 'scoped memory for tpu_custom_call.1']
    #allocation11 [shape = 'u8[16384]{0}', space=vmem, size = 0x4000, scoped, tag = 'input window, operand 6, single buffered']
    #allocation12 [shape = 'u8[16384]{0}', space=vmem, size = 0x4000, scoped, tag = 'output window, operand 0']
    #allocation13 [shape = 'u8[1024]{0}', space=vmem, size = 0x400, scoped, tag = 'output window, operand 1, single buffered']
    #allocation14 [shape = 's32[1]{0}', space=sflag, size = 0x4, scoped, tag = 'scoped memory for tpu_custom_call.1']
    #allocation15 [shape = 'u8[1024]{0}', space=vmem, size = 0x400, scoped, tag = 'output window, operand 2, single buffered']
    %16 = vsyncpa [#allocation7], 0
    %17 = vsyncpa [#allocation10], 0
    %18 = vsyncpa [#allocation8], 0
    %s19 = scalar_lea.sflag [#allocation8], 1
    %20 = vsyncpa %s19, 0
    %21 = vsyncpa [#allocation14], 0
    loop: start=0, step=1, limit=5
    $region2: #{tpu_custom_call.1} parent=1 // loop_pre_header
      _
    $region3: #{tpu_custom_call.1} parent=1 // loop_header
      %s23 = sphi 0, %s27
      %p24 = scmp.ge.s32.totalorder %s23, 5
      %s30 = sphi 0, %s42
      %s31 = sphi 0, %s38
      %s32 = sphi 0, %s30
      %s33 = sphi 0, %s31
      %s34 = sphi 0, %s32
      %s35 = sphi 0, %s33
      %s47 = sphi 0, %s49
      %s50 = sphi 0, %s47
      %s51 = sphi 0, %s50
      %s67 = sphi 0, %s51
      %s75 = sphi 0, %s77
      %s78 = sphi 0, %s75
      %s79 = sphi 0, %s78
      %s95 = sphi 0, %s79
      %s101 = sphi 0, %s103
      %s104 = sphi 0, %s101
      %s105 = sphi 0, %s104
      %s121 = sphi 0, %s105
      %s127 = sphi 0, %s129
      %s130 = sphi 0, %s127
      %s131 = sphi 0, %s130
      %s147 = sphi 0, %s131
      %s151 = sphi 0, %s151
      %s153 = sphi 0, %s151
      %s154 = sphi 0, %s153
      %s168 = sphi 0, %s154
      %s172 = sphi 0, %s172
      %s174 = sphi 0, %s172
      %s175 = sphi 0, %s174
      %s189 = sphi 0, %s175
      %s193 = sphi 0, %s193
      %s195 = sphi 0, %s193
      %s196 = sphi 0, %s195
      %s210 = sphi 0, %s196
      %s214 = sphi 0, %s214
      %s216 = sphi 0, %s214
      %s217 = sphi 0, %s216
      %s231 = sphi 0, %s217
      %s239 = sphi 0, %s241
      %s242 = sphi 0, %s239
      %s243 = sphi 0, %s242
      %s259 = sphi 0, %s243
      %s265 = sphi 0, %s267
      %s268 = sphi 0, %s265
      %s269 = sphi 0, %s268
      %s285 = sphi 0, %s269
      %s291 = sphi 0, %s293
      %s294 = sphi 0, %s291
      %s295 = sphi 0, %s294
      %s311 = sphi 0, %s295
    $region4: #{tpu_custom_call.1} parent=1 // loop_header_branch
      %26 = sbr.rel (%p24) target = $region8
    $region5: #{tpu_custom_call.1} parent=1 // loop_body
      %s28 = ssub.s32 %s23, 1
      %s29 = ssub.s32 %s23, 2
      %s36 = sadd.s32 1, %s31
      %p37 = scmp.ge.s32.totalorder %s36, 3
      %s38 = scalar_select %p37, 0, %s36
      %s39 = sadd.s32 1, %s30
      %s40 = scalar_select %p37, %s39, %s30
      %p41 = scmp.ge.s32.totalorder %s40, 1
      %s42 = scalar_select %p41, 0, %s40
      %s43 = ssub.s32 %s30, %s42
      %s44 = ssub.s32 %s31, %s38
      %s45 = sor.u32 %s43, %s44
      %p46 = scmp.eq.s32.totalorder %s45, 0
      %s48 = sadd.s32 %s47, 1
      %s49 = scalar_select %p46, %s47, %s48
      %p52 = pneg %p46
      %p53 = scmp.eq.s32.totalorder %s23, 2
      %p54 = por %p52, %p53
      %p55 = scmp.ne.s32.totalorder %s47, %s50
      %p56 = scmp.eq.s32.totalorder %s23, 0
      %p57 = por %p55, %p56
      %p58 = scmp.ne.s32.totalorder %s47, %s50
      %p59 = scmp.eq.s32.totalorder %s28, 2
      %p60 = por %p58, %p59
      %p61 = scmp.ne.s32.totalorder %s50, %s51
      %p62 = scmp.eq.s32.totalorder %s28, 0
      %p63 = por %p61, %p62
      %p64 = scmp.ne.s32.totalorder %s50, %s51
      %p65 = scmp.eq.s32.totalorder %s29, 2
      %p66 = por %p64, %p65
      %p68 = scmp.ne.s32.totalorder %s51, %s67
      %p69 = scmp.eq.s32.totalorder %s29, 0
      %p70 = por %p68, %p69
      %s71 = ssub.s32 %s30, %s42
      %s72 = ssub.s32 %s31, %s38
      %s73 = sor.u32 %s71, %s72
      %p74 = scmp.eq.s32.totalorder %s73, 0
      %s76 = sadd.s32 %s75, 1
      %s77 = scalar_select %p74, %s75, %s76
      %p80 = pneg %p74
      %p81 = scmp.eq.s32.totalorder %s23, 2
      %p82 = por %p80, %p81
      %p83 = scmp.ne.s32.totalorder %s75, %s78
      %p84 = scmp.eq.s32.totalorder %s23, 0
      %p85 = por %p83, %p84
      %p86 = scmp.ne.s32.totalorder %s75, %s78
      %p87 = scmp.eq.s32.totalorder %s28, 2
      %p88 = por %p86, %p87
      %p89 = scmp.ne.s32.totalorder %s78, %s79
      %p90 = scmp.eq.s32.totalorder %s28, 0
      %p91 = por %p89, %p90
      %p92 = scmp.ne.s32.totalorder %s78, %s79
      %p93 = scmp.eq.s32.totalorder %s29, 2
      %p94 = por %p92, %p93
      %p96 = scmp.ne.s32.totalorder %s79, %s95
      %p97 = scmp.eq.s32.totalorder %s29, 0
      %p98 = por %p96, %p97
      %s99 = ssub.s32 %s30, %s42
      %p100 = scmp.eq.s32.totalorder %s99, 0
      %s102 = sadd.s32 %s101, 1
      %s103 = scalar_select %p100, %s101, %s102
      %p106 = pneg %p100
      %p107 = scmp.eq.s32.totalorder %s23, 2
      %p108 = por %p106, %p107
      %p109 = scmp.ne.s32.totalorder %s101, %s104
      %p110 = scmp.eq.s32.totalorder %s23, 0
      %p111 = por %p109, %p110
      %p112 = scmp.ne.s32.totalorder %s101, %s104
      %p113 = scmp.eq.s32.totalorder %s28, 2
      %p114 = por %p112, %p113
      %p115 = scmp.ne.s32.totalorder %s104, %s105
      %p116 = scmp.eq.s32.totalorder %s28, 0
      %p117 = por %p115, %p116
      %p118 = scmp.ne.s32.totalorder %s104, %s105
      %p119 = scmp.eq.s32.totalorder %s29, 2
      %p120 = por %p118, %p119
      %p122 = scmp.ne.s32.totalorder %s105, %s121
      %p123 = scmp.eq.s32.totalorder %s29, 0
      %p124 = por %p122, %p123
      %s125 = ssub.s32 %s30, %s42
      %p126 = scmp.eq.s32.totalorder %s125, 0
      %s128 = sadd.s32 %s127, 1
      %s129 = scalar_select %p126, %s127, %s128
      %p132 = pneg %p126
      %p133 = scmp.eq.s32.totalorder %s23, 2
      %p134 = por %p132, %p133
      %p135 = scmp.ne.s32.totalorder %s127, %s130
      %p136 = scmp.eq.s32.totalorder %s23, 0
      %p137 = por %p135, %p136
      %p138 = scmp.ne.s32.totalorder %s127, %s130
      %p139 = scmp.eq.s32.totalorder %s28, 2
      %p140 = por %p138, %p139
      %p141 = scmp.ne.s32.totalorder %s130, %s131
      %p142 = scmp.eq.s32.totalorder %s28, 0
      %p143 = por %p141, %p142
      %p144 = scmp.ne.s32.totalorder %s130, %s131
      %p145 = scmp.eq.s32.totalorder %s29, 2
      %p146 = por %p144, %p145
      %p148 = scmp.ne.s32.totalorder %s131, %s147
      %p149 = scmp.eq.s32.totalorder %s29, 0
      %p150 = por %p148, %p149
      %s152 = sadd.s32 %s151, 1
      %p155 = scmp.eq.s32.totalorder %s23, 2
      %p156 = scmp.ne.s32.totalorder %s151, %s153
      %p157 = scmp.eq.s32.totalorder %s23, 0
      %p158 = por %p156, %p157
      %p159 = scmp.ne.s32.totalorder %s151, %s153
      %p160 = scmp.eq.s32.totalorder %s28, 2
      %p161 = por %p159, %p160
      %p162 = scmp.ne.s32.totalorder %s153, %s154
      %p163 = scmp.eq.s32.totalorder %s28, 0
      %p164 = por %p162, %p163
      %p165 = scmp.ne.s32.totalorder %s153, %s154
      %p166 = scmp.eq.s32.totalorder %s29, 2
      %p167 = por %p165, %p166
      %p169 = scmp.ne.s32.totalorder %s154, %s168
      %p170 = scmp.eq.s32.totalorder %s29, 0
      %p171 = por %p169, %p170
      %s173 = sadd.s32 %s172, 1
      %p176 = scmp.eq.s32.totalorder %s23, 2
      %p177 = scmp.ne.s32.totalorder %s172, %s174
      %p178 = scmp.eq.s32.totalorder %s23, 0
      %p179 = por %p177, %p178
      %p180 = scmp.ne.s32.totalorder %s172, %s174
      %p181 = scmp.eq.s32.totalorder %s28, 2
      %p182 = por %p180, %p181
      %p183 = scmp.ne.s32.totalorder %s174, %s175
      %p184 = scmp.eq.s32.totalorder %s28, 0
      %p185 = por %p183, %p184
      %p186 = scmp.ne.s32.totalorder %s174, %s175
      %p187 = scmp.eq.s32.totalorder %s29, 2
      %p188 = por %p186, %p187
      %p190 = scmp.ne.s32.totalorder %s175, %s189
      %p191 = scmp.eq.s32.totalorder %s29, 0
      %p192 = por %p190, %p191
      %s194 = sadd.s32 %s193, 1
      %p197 = scmp.eq.s32.totalorder %s23, 2
      %p198 = scmp.ne.s32.totalorder %s193, %s195
      %p199 = scmp.eq.s32.totalorder %s23, 0
      %p200 = por %p198, %p199
      %p201 = scmp.ne.s32.totalorder %s193, %s195
      %p202 = scmp.eq.s32.totalorder %s28, 2
      %p203 = por %p201, %p202
      %p204 = scmp.ne.s32.totalorder %s195, %s196
      %p205 = scmp.eq.s32.totalorder %s28, 0
      %p206 = por %p204, %p205
      %p207 = scmp.ne.s32.totalorder %s195, %s196
      %p208 = scmp.eq.s32.totalorder %s29, 2
      %p209 = por %p207, %p208
      %p211 = scmp.ne.s32.totalorder %s196, %s210
      %p212 = scmp.eq.s32.totalorder %s29, 0
      %p213 = por %p211, %p212
      %s215 = sadd.s32 %s214, 1
      %p218 = scmp.eq.s32.totalorder %s23, 2
      %p219 = scmp.ne.s32.totalorder %s214, %s216
      %p220 = scmp.eq.s32.totalorder %s23, 0
      %p221 = por %p219, %p220
      %p222 = scmp.ne.s32.totalorder %s214, %s216
      %p223 = scmp.eq.s32.totalorder %s28, 2
      %p224 = por %p222, %p223
      %p225 = scmp.ne.s32.totalorder %s216, %s217
      %p226 = scmp.eq.s32.totalorder %s28, 0
      %p227 = por %p225, %p226
      %p228 = scmp.ne.s32.totalorder %s216, %s217
      %p229 = scmp.eq.s32.totalorder %s29, 2
      %p230 = por %p228, %p229
      %p232 = scmp.ne.s32.totalorder %s217, %s231
      %p233 = scmp.eq.s32.totalorder %s29, 0
      %p234 = por %p232, %p233
      %s235 = ssub.s32 %s30, %s42
      %s236 = ssub.s32 %s31, %s38
      %s237 = sor.u32 %s235, %s236
      %p238 = scmp.eq.s32.totalorder %s237, 0
      %s240 = sadd.s32 %s239, 1
      %s241 = scalar_select %p238, %s239, %s240
      %p244 = pneg %p238
      %p245 = scmp.eq.s32.totalorder %s23, 2
      %p246 = por %p244, %p245
      %p247 = scmp.ne.s32.totalorder %s239, %s242
      %p248 = scmp.eq.s32.totalorder %s23, 0
      %p249 = por %p247, %p248
      %p250 = scmp.ne.s32.totalorder %s239, %s242
      %p251 = scmp.eq.s32.totalorder %s28, 2
      %p252 = por %p250, %p251
      %p253 = scmp.ne.s32.totalorder %s242, %s243
      %p254 = scmp.eq.s32.totalorder %s28, 0
      %p255 = por %p253, %p254
      %p256 = scmp.ne.s32.totalorder %s242, %s243
      %p257 = scmp.eq.s32.totalorder %s29, 2
      %p258 = por %p256, %p257
      %p260 = scmp.ne.s32.totalorder %s243, %s259
      %p261 = scmp.eq.s32.totalorder %s29, 0
      %p262 = por %p260, %p261
      %s263 = ssub.s32 %s30, %s42
      %p264 = scmp.eq.s32.totalorder %s263, 0
      %s266 = sadd.s32 %s265, 1
      %s267 = scalar_select %p264, %s265, %s266
      %p270 = pneg %p264
      %p271 = scmp.eq.s32.totalorder %s23, 2
      %p272 = por %p270, %p271
      %p273 = scmp.ne.s32.totalorder %s265, %s268
      %p274 = scmp.eq.s32.totalorder %s23, 0
      %p275 = por %p273, %p274
      %p276 = scmp.ne.s32.totalorder %s265, %s268
      %p277 = scmp.eq.s32.totalorder %s28, 2
      %p278 = por %p276, %p277
      %p279 = scmp.ne.s32.totalorder %s268, %s269
      %p280 = scmp.eq.s32.totalorder %s28, 0
      %p281 = por %p279, %p280
      %p282 = scmp.ne.s32.totalorder %s268, %s269
      %p283 = scmp.eq.s32.totalorder %s29, 2
      %p284 = por %p282, %p283
      %p286 = scmp.ne.s32.totalorder %s269, %s285
      %p287 = scmp.eq.s32.totalorder %s29, 0
      %p288 = por %p286, %p287
      %s289 = ssub.s32 %s30, %s42
      %p290 = scmp.eq.s32.totalorder %s289, 0
      %s292 = sadd.s32 %s291, 1
      %s293 = scalar_select %p290, %s291, %s292
      %p296 = pneg %p290
      %p297 = scmp.eq.s32.totalorder %s23, 2
      %p298 = por %p296, %p297
      %p299 = scmp.ne.s32.totalorder %s291, %s294
      %p300 = scmp.eq.s32.totalorder %s23, 0
      %p301 = por %p299, %p300
      %p302 = scmp.ne.s32.totalorder %s291, %s294
      %p303 = scmp.eq.s32.totalorder %s28, 2
      %p304 = por %p302, %p303
      %p305 = scmp.ne.s32.totalorder %s294, %s295
      %p306 = scmp.eq.s32.totalorder %s28, 0
      %p307 = por %p305, %p306
      %p308 = scmp.ne.s32.totalorder %s294, %s295
      %p309 = scmp.eq.s32.totalorder %s29, 2
      %p310 = por %p308, %p309
      %p312 = scmp.ne.s32.totalorder %s295, %s311
      %p313 = scmp.eq.s32.totalorder %s29, 0
      %p314 = por %p312, %p313
      %p315 = scmp.le.s32.totalorder 1, %s23
      %p316 = scmp.lt.s32.totalorder %s23, 4
      %p317 = pnand %p315, %p316
      %p318 = pneg %p317
      // Predicated region
      $region9: #{tpu_custom_call.1} parent=5 // pred_check
        _
      $region10: #{tpu_custom_call.1} parent=5 // pred_check_branch
        %320 = sbr.rel (%p317) target = $region12
      $region11: #{tpu_custom_call.1} parent=5 // pred_region
        %s321 = ssub.s32 %s23, 1
        // Predicated region
        $region13: #{tpu_custom_call.1} parent=11 // pred_check
          %p322 = pneg %p117
        $region14: #{tpu_custom_call.1} parent=11 // pred_check_branch
          %324 = sbr.rel (%p322) target = $region16
        $region15: #{tpu_custom_call.1} parent=11 // pred_region
          %p325 = scmp.lt.s32.totalorder %s32, 0
          %s326 = scalar_select %p325, %s32, 0
          %s327 = smul.addr %s326, 2
          %s328 = scalar_lea.vmem %s2, %s327
        $region16: #{tpu_custom_call.1} parent=11 // pred_fallthru
          _
        // Predicated region
        $region17: #{tpu_custom_call.1} parent=11 // pred_check
          %p329 = pneg %p143
        $region18: #{tpu_custom_call.1} parent=11 // pred_check_branch
          %331 = sbr.rel (%p329) target = $region20
        $region19: #{tpu_custom_call.1} parent=11 // pred_region
          %p332 = scmp.lt.s32.totalorder %s32, 0
          %s333 = scalar_select %p332, %s32, 0
          %s334 = smul.addr %s333, 2
          %s335 = scalar_lea.vmem %s3, %s334
        $region20: #{tpu_custom_call.1} parent=11 // pred_fallthru
          _
        // Predicated region
        $region21: #{tpu_custom_call.1} parent=11 // pred_check
          %p336 = pneg %p164
        $region22: #{tpu_custom_call.1} parent=11 // pred_check_branch
          %338 = sbr.rel (%p336) target = $region24
        $region23: #{tpu_custom_call.1} parent=11 // pred_region
          %s340 = ssub.s32 1024, 1024
          %341 = vsyncadd [#allocation7], %s340
          %s342 = sshll.u32 [#allocation6], 4
          %s343 = int_to_ptr.vmem [resolvable:$true] %s342
          %348 = dma.hbm_to_vmem [thread:$0]  %s4, 1024, %s343, [#allocation7], 256, 256, 16
        $region24: #{tpu_custom_call.1} parent=11 // pred_fallthru
          _
        // Predicated region
        $region25: #{tpu_custom_call.1} parent=11 // pred_check
          %p349 = pneg %p185
        $region26: #{tpu_custom_call.1} parent=11 // pred_check_branch
          %351 = sbr.rel (%p349) target = $region28
        $region27: #{tpu_custom_call.1} parent=11 // pred_region
          %s353 = ssub.s32 512, 512
          %354 = vsyncadd [#allocation10], %s353
          %s355 = sshll.u32 [#allocation9], 4
          %s356 = int_to_ptr.vmem [resolvable:$true] %s355
          %361 = dma.hbm_to_vmem [thread:$0]  %s5, 512, %s356, [#allocation10], 128, 128, 8
        $region28: #{tpu_custom_call.1} parent=11 // pred_fallthru
          _
        // Predicated region
        $region29: #{tpu_custom_call.1} parent=11 // pred_check
          %p362 = pneg %p206
        $region30: #{tpu_custom_call.1} parent=11 // pred_check_branch
          %364 = sbr.rel (%p362) target = $region32
        $region31: #{tpu_custom_call.1} parent=11 // pred_region
          %s366 = ssub.s32 512, 512
          %367 = vsyncadd [#allocation10], %s366
          %s368 = sshll.u32 [#allocation11], 4
          %s369 = int_to_ptr.vmem [resolvable:$true] %s368
          %374 = dma.hbm_to_vmem [thread:$0]  %s6, 512, %s369, [#allocation10], 128, 128, 8
        $region32: #{tpu_custom_call.1} parent=11 // pred_fallthru
          _
        // Predicated region
        $region33: #{tpu_custom_call.1} parent=11 // pred_check
          %p375 = pneg %p227
        $region34: #{tpu_custom_call.1} parent=11 // pred_check_branch
          %377 = sbr.rel (%p375) target = $region36
        $region35: #{tpu_custom_call.1} parent=11 // pred_region
          _
        $region36: #{tpu_custom_call.1} parent=11 // pred_fallthru
          _
      $region12: #{tpu_custom_call.1} parent=5 // pred_fallthru
        _
      %p378 = scmp.lt.s32.totalorder %s23, 3
      // Predicated region
      $region37: #{tpu_custom_call.1} parent=5 // pred_check
        %p379 = pneg %p378
      $region38: #{tpu_custom_call.1} parent=5 // pred_check_branch
        %381 = sbr.rel (%p379) target = $region40
      $region39: #{tpu_custom_call.1} parent=5 // pred_region
        // Predicated region
        $region41: #{tpu_custom_call.1} parent=39 // pred_check
          %p382 = pneg %p57
        $region42: #{tpu_custom_call.1} parent=39 // pred_check_branch
          %384 = sbr.rel (%p382) target = $region44
        $region43: #{tpu_custom_call.1} parent=39 // pred_region
          %s385 = sand.u32 %s47, 1
          %s386 = sand.u32 %s47, 1
          %s387 = smul.addr %s386, 16
          %s388 = scalar_lea.vmem [#allocation4], %s387
          %s389 = smul.u32 2, %s30
          %s390 = smul.addr %s389, 3
          %s391 = sadd.s32 %s31, %s390
          %s392 = smul.addr %s391, 8
          %s393 = scalar_lea.vmem %s0, %s392
          // Predicated region
          $region45: #{tpu_custom_call.1} parent=43 // pred_check
            _
          $region46: #{tpu_custom_call.1} parent=43 // pred_check_branch
            %395 = sbr.rel (0) target = $region48
          $region47: #{tpu_custom_call.1} parent=43 // pred_region
            // Predicated region
            $region49: #{tpu_custom_call.1} parent=47 // pred_check
              _
            $region50: #{tpu_custom_call.1} parent=47 // pred_check_branch
              %397 = sbr.rel (0) target = $region52
            $region51: #{tpu_custom_call.1} parent=47 // pred_region
              // Predicated region
              $region64: #{tpu_custom_call.1} parent=51 // pred_check
                _
              $region65: #{tpu_custom_call.1} parent=51 // pred_check_branch
                %415 = sbr.rel (0) target = $region67
              $region66: #{tpu_custom_call.1} parent=51 // pred_region
                loop: start=0, step=1, limit=1
                $region68: #{tpu_custom_call.1} parent=66 // loop_pre_header
                  _
                $region69: #{tpu_custom_call.1} parent=66 // loop_header
                  %s417 = sphi 0, %s421
                  %p418 = scmp.ge.s32.totalorder %s417, 1
                  %s422 = sphi %s393, %s393
                  %s423 = sphi %s388, %s388
                $region70: #{tpu_custom_call.1} parent=66 // loop_header_branch
                  %420 = sbr.rel (%p418) target = $region74
                $region71: #{tpu_custom_call.1} parent=66 // loop_body
                  %v424 = vld [vmem:[%s422] sm:$0xff]
                  %425 = vst [vmem:[%s423] sm:$0xff] %v424
                  %v426 = vld [vmem:[%s422 + $0x18] sm:$0xff]
                  %427 = vst [vmem:[%s423 + $0x8] sm:$0xff] %v426
                $region72: #{tpu_custom_call.1} parent=66 // loop_footer
                  %s421 = sadd.s32 1, %s417
                $region73: #{tpu_custom_call.1} parent=66 // loop_footer_branch
                  %416 = sbr.rel target = $region69
                $region74: #{tpu_custom_call.1} parent=66 // loop_exit
                  _
              $region67: #{tpu_custom_call.1} parent=51 // pred_fallthru
                _
              // Predicated region
              $region75: #{tpu_custom_call.1} parent=51 // pred_check
                _
              $region76: #{tpu_custom_call.1} parent=51 // pred_check_branch
                %429 = sbr.rel target = $region78
              $region77: #{tpu_custom_call.1} parent=51 // pred_region
                _
              $region78: #{tpu_custom_call.1} parent=51 // pred_fallthru
                _
            $region52: #{tpu_custom_call.1} parent=47 // pred_fallthru
              _
            // Predicated region
            $region53: #{tpu_custom_call.1} parent=47 // pred_check
              _
            $region54: #{tpu_custom_call.1} parent=47 // pred_check_branch
              %399 = sbr.rel target = $region56
            $region55: #{tpu_custom_call.1} parent=47 // pred_region
              %s401 = ssub.s32 256, 1
              loop: start=0, step=1, limit=1
              $region57: #{tpu_custom_call.1} parent=55 // loop_pre_header
                _
              $region58: #{tpu_custom_call.1} parent=55 // loop_header
                %s403 = sphi 0, %s407
                %p404 = scmp.ge.s32.totalorder %s403, 1
                %s408 = sphi %s393, %s393
                %s409 = sphi %s388, %s388
              $region59: #{tpu_custom_call.1} parent=55 // loop_header_branch
                %406 = sbr.rel (%p404) target = $region63
              $region60: #{tpu_custom_call.1} parent=55 // loop_body
                %v410 = vld [vmem:[%s408] sm:%s401]
                %411 = vst [vmem:[%s409] sm:%s401] %v410
                %v412 = vld [vmem:[%s408 + $0x18] sm:%s401]
                %413 = vst [vmem:[%s409 + $0x8] sm:%s401] %v412
              $region61: #{tpu_custom_call.1} parent=55 // loop_footer
                %s407 = sadd.s32 1, %s403
              $region62: #{tpu_custom_call.1} parent=55 // loop_footer_branch
                %402 = sbr.rel target = $region58
              $region63: #{tpu_custom_call.1} parent=55 // loop_exit
                _
            $region56: #{tpu_custom_call.1} parent=47 // pred_fallthru
              _
          $region48: #{tpu_custom_call.1} parent=43 // pred_fallthru
            _
          %430 = vnop
        $region44: #{tpu_custom_call.1} parent=39 // pred_fallthru
          _
        // Predicated region
        $region79: #{tpu_custom_call.1} parent=39 // pred_check
          %p431 = pneg %p85
        $region80: #{tpu_custom_call.1} parent=39 // pred_check_branch
          %433 = sbr.rel (%p431) target = $region82
        $region81: #{tpu_custom_call.1} parent=39 // pred_region
          %s434 = sand.u32 %s75, 1
          %s435 = sand.u32 %s75, 1
          %s436 = smul.addr %s435, 16
          %s437 = scalar_lea.vmem [#allocation5], %s436
          %s438 = smul.u32 2, %s30
          %s439 = smul.addr %s438, 3
          %s440 = sadd.s32 %s31, %s439
          %s441 = smul.addr %s440, 8
          %s442 = scalar_lea.vmem %s1, %s441
          // Predicated region
          $region83: #{tpu_custom_call.1} parent=81 // pred_check
            _
          $region84: #{tpu_custom_call.1} parent=81 // pred_check_branch
            %444 = sbr.rel (0) target = $region86
          $region85: #{tpu_custom_call.1} parent=81 // pred_region
            // Predicated region
            $region87: #{tpu_custom_call.1} parent=85 // pred_check
              _
            $region88: #{tpu_custom_call.1} parent=85 // pred_check_branch
              %446 = sbr.rel (0) target = $region90
            $region89: #{tpu_custom_call.1} parent=85 // pred_region
              // Predicated region
              $region102: #{tpu_custom_call.1} parent=89 // pred_check
                _
              $region103: #{tpu_custom_call.1} parent=89 // pred_check_branch
                %464 = sbr.rel (0) target = $region105
              $region104: #{tpu_custom_call.1} parent=89 // pred_region
                loop: start=0, step=1, limit=1
                $region106: #{tpu_custom_call.1} parent=104 // loop_pre_header
                  _
                $region107: #{tpu_custom_call.1} parent=104 // loop_header
                  %s466 = sphi 0, %s470
                  %p467 = scmp.ge.s32.totalorder %s466, 1
                  %s471 = sphi %s442, %s442
                  %s472 = sphi %s437, %s437
                $region108: #{tpu_custom_call.1} parent=104 // loop_header_branch
                  %469 = sbr.rel (%p467) target = $region112
                $region109: #{tpu_custom_call.1} parent=104 // loop_body
                  %v473 = vld [vmem:[%s471] sm:$0xff]
                  %474 = vst [vmem:[%s472] sm:$0xff] %v473
                  %v475 = vld [vmem:[%s471 + $0x18] sm:$0xff]
                  %476 = vst [vmem:[%s472 + $0x8] sm:$0xff] %v475
                $region110: #{tpu_custom_call.1} parent=104 // loop_footer
                  %s470 = sadd.s32 1, %s466
                $region111: #{tpu_custom_call.1} parent=104 // loop_footer_branch
                  %465 = sbr.rel target = $region107
                $region112: #{tpu_custom_call.1} parent=104 // loop_exit
                  _
              $region105: #{tpu_custom_call.1} parent=89 // pred_fallthru
                _
              // Predicated region
              $region113: #{tpu_custom_call.1} parent=89 // pred_check
                _
              $region114: #{tpu_custom_call.1} parent=89 // pred_check_branch
                %478 = sbr.rel target = $region116
              $region115: #{tpu_custom_call.1} parent=89 // pred_region
                _
              $region116: #{tpu_custom_call.1} parent=89 // pred_fallthru
                _
            $region90: #{tpu_custom_call.1} parent=85 // pred_fallthru
              _
            // Predicated region
            $region91: #{tpu_custom_call.1} parent=85 // pred_check
              _
            $region92: #{tpu_custom_call.1} parent=85 // pred_check_branch
              %448 = sbr.rel target = $region94
            $region93: #{tpu_custom_call.1} parent=85 // pred_region
              %s450 = ssub.s32 256, 1
              loop: start=0, step=1, limit=1
              $region95: #{tpu_custom_call.1} parent=93 // loop_pre_header
                _
              $region96: #{tpu_custom_call.1} parent=93 // loop_header
                %s452 = sphi 0, %s456
                %p453 = scmp.ge.s32.totalorder %s452, 1
                %s457 = sphi %s442, %s442
                %s458 = sphi %s437, %s437
              $region97: #{tpu_custom_call.1} parent=93 // loop_header_branch
                %455 = sbr.rel (%p453) target = $region101
              $region98: #{tpu_custom_call.1} parent=93 // loop_body
                %v459 = vld [vmem:[%s457] sm:%s450]
                %460 = vst [vmem:[%s458] sm:%s450] %v459
                %v461 = vld [vmem:[%s457 + $0x18] sm:%s450]
                %462 = vst [vmem:[%s458 + $0x8] sm:%s450] %v461
              $region99: #{tpu_custom_call.1} parent=93 // loop_footer
                %s456 = sadd.s32 1, %s452
              $region100: #{tpu_custom_call.1} parent=93 // loop_footer_branch
                %451 = sbr.rel target = $region96
              $region101: #{tpu_custom_call.1} parent=93 // loop_exit
                _
            $region94: #{tpu_custom_call.1} parent=85 // pred_fallthru
              _
          $region86: #{tpu_custom_call.1} parent=81 // pred_fallthru
            _
          %479 = vnop
        $region82: #{tpu_custom_call.1} parent=39 // pred_fallthru
          _
      $region40: #{tpu_custom_call.1} parent=5 // pred_fallthru
        _
      %p480 = scmp.le.s32.totalorder 1, %s23
      %p481 = scmp.lt.s32.totalorder %s23, 4
      %p482 = pnand %p480, %p481
      %p483 = pneg %p482
      // Predicated region
      $region117: #{tpu_custom_call.1} parent=5 // pred_check
        _
      $region118: #{tpu_custom_call.1} parent=5 // pred_check_branch
        %485 = sbr.rel (%p482) target = $region120
      $region119: #{tpu_custom_call.1} parent=5 // pred_region
        %s486 = ssub.s32 %s23, 1
        %s487 = sand.u32 %s50, 1
        %s488 = sand.u32 %s50, 1
        %s489 = smul.addr %s488, 16
        %s490 = scalar_lea.vmem [#allocation4], %s489
        // Predicated region
        $region121: #{tpu_custom_call.1} parent=119 // pred_check
          %p491 = pneg %p63
        $region122: #{tpu_custom_call.1} parent=119 // pred_check_branch
          %493 = sbr.rel (%p491) target = $region124
        $region123: #{tpu_custom_call.1} parent=119 // pred_region
          _
        $region124: #{tpu_custom_call.1} parent=119 // pred_fallthru
          _
        %s494 = sand.u32 %s78, 1
        %s495 = sand.u32 %s78, 1
        %s496 = smul.addr %s495, 16
        %s497 = scalar_lea.vmem [#allocation5], %s496
        // Predicated region
        $region125: #{tpu_custom_call.1} parent=119 // pred_check
          %p498 = pneg %p91
        $region126: #{tpu_custom_call.1} parent=119 // pred_check_branch
          %500 = sbr.rel (%p498) target = $region128
        $region127: #{tpu_custom_call.1} parent=119 // pred_region
          _
        $region128: #{tpu_custom_call.1} parent=119 // pred_fallthru
          _
        // Predicated region
        $region129: #{tpu_custom_call.1} parent=119 // pred_check
          %p501 = pneg %p164
        $region130: #{tpu_custom_call.1} parent=119 // pred_check_branch
          %503 = sbr.rel (%p501) target = $region132
        $region131: #{tpu_custom_call.1} parent=119 // pred_region
          %504 = dma.done [#allocation7], 1024
        $region132: #{tpu_custom_call.1} parent=119 // pred_fallthru
          _
        // Predicated region
        $region133: #{tpu_custom_call.1} parent=119 // pred_check
          %p505 = pneg %p185
        $region134: #{tpu_custom_call.1} parent=119 // pred_check_branch
          %507 = sbr.rel (%p505) target = $region136
        $region135: #{tpu_custom_call.1} parent=119 // pred_region
          %508 = dma.done [#allocation10], 512
        $region136: #{tpu_custom_call.1} parent=119 // pred_fallthru
          _
        // Predicated region
        $region137: #{tpu_custom_call.1} parent=119 // pred_check
          %p509 = pneg %p206
        $region138: #{tpu_custom_call.1} parent=119 // pred_check_branch
          %511 = sbr.rel (%p509) target = $region140
        $region139: #{tpu_custom_call.1} parent=119 // pred_region
          %512 = dma.done [#allocation10], 512
        $region140: #{tpu_custom_call.1} parent=119 // pred_fallthru
          _
        %s513 = sand.u32 %s50, 1
        %s514 = sand.u32 %s50, 1
        %s515 = smul.addr %s514, 16
        %s516 = scalar_lea.vmem [#allocation4], %s515
        %p517 = pneg %p63
        %p518 = pneg %p60
        %s519 = sand.u32 %s78, 1
        %s520 = sand.u32 %s78, 1
        %s521 = smul.addr %s520, 16
        %s522 = scalar_lea.vmem [#allocation5], %s521
        %p523 = pneg %p91
        %p524 = pneg %p88
        %p525 = scmp.lt.s32.totalorder %s32, 0
        %s526 = scalar_select %p525, %s32, 0
        %s527 = smul.addr %s526, 2
        %s528 = scalar_lea.vmem %s2, %s527
        %p529 = pneg %p117
        %p530 = pneg %p114
        %p531 = scmp.lt.s32.totalorder %s32, 0
        %s532 = scalar_select %p531, %s32, 0
        %s533 = smul.addr %s532, 2
        %s534 = scalar_lea.vmem %s3, %s533
        %p535 = pneg %p143
        %p536 = pneg %p140
        %p537 = pneg %p164
        %p538 = pneg %p161
        %p539 = pneg %p185
        %p540 = pneg %p182
        %p541 = pneg %p206
        %p542 = pneg %p203
        %p543 = pneg %p227
        %p544 = pneg %p224
        %p545 = pneg %p255
        %p546 = pneg %p252
        %s547 = sand.u32 %s242, 1
        %s548 = scalar_lea.sflag [#allocation8], %s547
        %s549 = sand.u32 %s242, 1
        %s550 = smul.addr %s549, 16
        %s551 = scalar_lea.vmem [#allocation12], %s550
        %p552 = pneg %p281
        %p553 = pneg %p278
        %p554 = pneg %p307
        %p555 = pneg %p304
        %s556 = smul.u32 2, %s32
        %s557 = smul.u32 2, %s32
        %p558 = scmp.lt.s32.totalorder %s32, 0
        %s559 = scalar_select %p558, %s32, 0
        %s560 = smul.addr %s559, 2
        %s561 = scalar_lea.vmem %s2, %s560
        %p562 = scmp.lt.s32.totalorder %s32, 0
        %s563 = scalar_select %p562, %s32, 0
        %s564 = smul.addr %s563, 2
        %s565 = scalar_lea.vmem %s3, %s564
        %s566 = smul.u32 2, %s32
        %p567 = scmp.eq.s32.totalorder %s33, 0
        // Predicated region
        $region141: #{tpu_custom_call.1} parent=119 // pred_check
          %p568 = pneg %p567
        $region142: #{tpu_custom_call.1} parent=119 // pred_check_branch
          %570 = sbr.rel (%p568) target = $region144
        $region143: #{tpu_custom_call.1} parent=119 // pred_region
          %v571 = vld [vmem:[%s561] sm:$0x3]
          %vm572 = vcmask 254976
          %573 = vst.msk [vmem:[#allocation2] sm:$0x3] %vm572, %v571
          %v574 = vld [vmem:[%s565] sm:$0x3]
          %575 = vst.msk [vmem:[#allocation3] sm:$0x3] %vm572, %v574
        $region144: #{tpu_custom_call.1} parent=119 // pred_fallthru
          _
        %v576 = vld [vmem:[%s490] sm:$0xff]
        %v577 = vld [vmem:[%s490 + $0x8] sm:$0xff]
        %v578 = vld [vmem:[%s497] sm:$0xff]
        %v579 = vld [vmem:[%s497 + $0x8] sm:$0xff]
        %v580 = vld [vmem:[#allocation6] sm:$0xff]
        %v581 = vld [vmem:[#allocation6 + $0x8] sm:$0xff]
        %v582 = vld [vmem:[#allocation6 + $0x10] sm:$0xff]
        %v583 = vld [vmem:[#allocation6 + $0x18] sm:$0xff]
        %v584 = vld [vmem:[#allocation6 + $0x20] sm:$0xff]
        %v585 = vld [vmem:[#allocation6 + $0x28] sm:$0xff]
        %v586 = vld [vmem:[#allocation6 + $0x30] sm:$0xff]
        %v587 = vld [vmem:[#allocation6 + $0x38] sm:$0xff]
        %v588 = vld [vmem:[#allocation9] sm:$0xff]
        %v589 = vld [vmem:[#allocation9 + $0x8] sm:$0xff]
        %v590 = vld [vmem:[#allocation9 + $0x10] sm:$0xff]
        %v591 = vld [vmem:[#allocation9 + $0x18] sm:$0xff]
        %v592 = vld [vmem:[#allocation11] sm:$0xff]
        %v593 = vld [vmem:[#allocation11 + $0x8] sm:$0xff]
        %v594 = vld [vmem:[#allocation11 + $0x10] sm:$0xff]
        %v595 = vld [vmem:[#allocation11 + $0x18] sm:$0xff]
        %v596 = vld [vmem:[%s7] sm:$0x1]
        %v597 = vld [vmem:[#allocation2] sm:$0x3]
        %v598 = vld [vmem:[#allocation3] sm:$0x3]
        %v601 = vrot.slane %v577, 7
        %vm602 = vcmask 1041409
        %v603 = vsel %vm602, %v601, %v576
        %vm604 = vcmask 261120
        %v605 = vsel %vm604, %v603, 0
        %607 = vmatprep.subr.mxu0 0.0
        %608 = vmatpush1.msra.mxu0 0.0
        %609 = vmatprep.subr.mxu0 0.0
        %610 = vmatpush1.msra.mxu0 0.0
        %611 = vmatprep.subr.mxu0 0.0
        %612 = vmatpush1.msra.mxu0 0.0
        %613 = vmatprep.subr.mxu0 0.0
        %614 = vmatpush1.msra.mxu0 0.0
        %615 = vmatprep.subr.mxu0 0.0
        %616 = vmatpush1.msra.mxu0 0.0
        %617 = vmatprep.subr.mxu0 0.0
        %618 = vmatpush1.msra.mxu0 0.0
        %619 = vmatprep.subr.mxu0 0.0
        %620 = vmatpush1.msra.mxu0 0.0
        %621 = vmatprep.subr.mxu0 0.0
        %622 = vmatpush1.msra.mxu0 0.0
        %623 = vmatprep.subr.mxu0 0.0
        %624 = vmatpush1.msra.mxu0 0.0
        %625 = vmatprep.subr.mxu0 0.0
        %626 = vmatpush1.msra.mxu0 0.0
        %627 = vmatprep.subr.mxu0 0.0
        %628 = vmatpush1.msra.mxu0 0.0
        %629 = vmatprep.subr.mxu0 0.0
        %630 = vmatpush1.msra.mxu0 0.0
        %631 = vmatprep.subr.mxu0 %v587
        %632 = vmatpush1.msra.mxu0 %v586
        %633 = vmatprep.subr.mxu0 %v585
        %634 = vmatpush1.msra.mxu0 %v584
        %635 = vmatprep.subr.mxu0 %v583
        %636 = vmatpush1.msra.mxu0 %v582
        %637 = vmatprep.subr.mxu0 %v581
        %638 = vmatpush1.msra.mxu0 %v580
        %639 = vmatprep.subr.mxu0 0.0
        %640 = vmatpush2.msra.mxu0 0.0
        %641 = vmatprep.subr.mxu0 0.0
        %642 = vmatpush2.msra.mxu0 0.0
        %643 = vmatprep.subr.mxu0 0.0
        %644 = vmatpush2.msra.mxu0 0.0
        %645 = vmatprep.subr.mxu0 0.0
        %646 = vmatpush2.msra.mxu0 0.0
        %647 = vmatprep.subr.mxu0 0.0
        %648 = vmatpush2.msra.mxu0 0.0
        %649 = vmatprep.subr.mxu0 0.0
        %650 = vmatpush2.msra.mxu0 0.0
        %651 = vmatprep.subr.mxu0 0.0
        %652 = vmatpush2.msra.mxu0 0.0
        %653 = vmatprep.subr.mxu0 0.0
        %654 = vmatpush2.msra.mxu0 0.0
        %655 = vmatprep.subr.mxu0 0.0
        %656 = vmatpush2.msra.mxu0 0.0
        %657 = vmatprep.subr.mxu0 0.0
        %658 = vmatpush2.msra.mxu0 0.0
        %659 = vmatprep.subr.mxu0 0.0
        %660 = vmatpush2.msra.mxu0 0.0
        %661 = vmatprep.subr.mxu0 0.0
        %662 = vmatpush2.msra.mxu0 0.0
        %663 = vmatprep.subr.mxu0 0.0
        %664 = vmatpush2.msra.mxu0 0.0
        %665 = vmatprep.subr.mxu0 0.0
        %666 = vmatpush2.msra.mxu0 0.0
        %667 = vmatprep.subr.mxu0 0.0
        %668 = vmatpush2.msra.mxu0 0.0
        %669 = vmatprep.subr.mxu0 0.0
        %670 = vmatpush2.msra.mxu0 0.0
        %671 = vmatprep.mubr.f32.mxu0 0.0
        %672 = vmatmul.mubr.f32.gmra.mxu0 %v605
        %v673 = vpop.f32.mrf.mxu0
        %v674 = vadd.f32 0.0, %v673
        %v675 = vpop.f32.mrf.mxu0
        %v676 = vadd.f32 0.0, %v675
        %677 = vdwg.mxu0
        %v679 = vsel %vm604, %v597, 0
        %681 = vmatprep.subr.mxu0 0.0
        %682 = vmatpush1.msra.mxu0 0.0
        %683 = vmatprep.subr.mxu0 0.0
        %684 = vmatpush1.msra.mxu0 0.0
        %685 = vmatprep.subr.mxu0 0.0
        %686 = vmatpush1.msra.mxu0 0.0
        %687 = vmatprep.subr.mxu0 0.0
        %688 = vmatpush1.msra.mxu0 0.0
        %689 = vmatprep.subr.mxu0 0.0
        %690 = vmatpush1.msra.mxu0 0.0
        %691 = vmatprep.subr.mxu0 0.0
        %692 = vmatpush1.msra.mxu0 0.0
        %693 = vmatprep.subr.mxu0 0.0
        %694 = vmatpush1.msra.mxu0 0.0
        %695 = vmatprep.subr.mxu0 0.0
        %696 = vmatpush1.msra.mxu0 0.0
        %697 = vmatprep.subr.mxu0 0.0
        %698 = vmatpush1.msra.mxu0 0.0
        %699 = vmatprep.subr.mxu0 0.0
        %700 = vmatpush1.msra.mxu0 0.0
        %701 = vmatprep.subr.mxu0 0.0
        %702 = vmatpush1.msra.mxu0 0.0
        %703 = vmatprep.subr.mxu0 0.0
        %704 = vmatpush1.msra.mxu0 0.0
        %705 = vmatprep.subr.mxu0 0.0
        %706 = vmatpush1.msra.mxu0 %v591
        %707 = vmatprep.subr.mxu0 0.0
        %708 = vmatpush1.msra.mxu0 %v590
        %709 = vmatprep.subr.mxu0 0.0
        %710 = vmatpush1.msra.mxu0 %v589
        %711 = vmatprep.subr.mxu0 0.0
        %712 = vmatpush1.msra.mxu0 %v588
        %713 = vmatprep.subr.mxu0 0.0
        %714 = vmatpush2.msra.mxu0 0.0
        %715 = vmatprep.subr.mxu0 0.0
        %716 = vmatpush2.msra.mxu0 0.0
        %717 = vmatprep.subr.mxu0 0.0
        %718 = vmatpush2.msra.mxu0 0.0
        %719 = vmatprep.subr.mxu0 0.0
        %720 = vmatpush2.msra.mxu0 0.0
        %721 = vmatprep.subr.mxu0 0.0
        %722 = vmatpush2.msra.mxu0 0.0
        %723 = vmatprep.subr.mxu0 0.0
        %724 = vmatpush2.msra.mxu0 0.0
        %725 = vmatprep.subr.mxu0 0.0
        %726 = vmatpush2.msra.mxu0 0.0
        %727 = vmatprep.subr.mxu0 0.0
        %728 = vmatpush2.msra.mxu0 0.0
        %729 = vmatprep.subr.mxu0 0.0
        %730 = vmatpush2.msra.mxu0 0.0
        %731 = vmatprep.subr.mxu0 0.0
        %732 = vmatpush2.msra.mxu0 0.0
        %733 = vmatprep.subr.mxu0 0.0
        %734 = vmatpush2.msra.mxu0 0.0
        %735 = vmatprep.subr.mxu0 0.0
        %736 = vmatpush2.msra.mxu0 0.0
        %737 = vmatprep.subr.mxu0 0.0
        %738 = vmatpush2.msra.mxu0 0.0
        %739 = vmatprep.subr.mxu0 0.0
        %740 = vmatpush2.msra.mxu0 0.0
        %741 = vmatprep.subr.mxu0 0.0
        %742 = vmatpush2.msra.mxu0 0.0
        %743 = vmatprep.subr.mxu0 0.0
        %744 = vmatpush2.msra.mxu0 0.0
        %745 = vmatprep.mubr.f32.mxu0 0.0
        %746 = vmatmul.mubr.f32.gmra.mxu0 %v679
        %v747 = vpop.f32.mrf.mxu0
        %v748 = vadd.f32 0.0, %v747
        %v749 = vpop.f32.mrf.mxu0
        %750 = vdwg.mxu0
        %v751 = vmul.f32 %v674, %v748
        %v753 = vsel %vm604, %v751, 0
        %755 = vmatprep.subr.mxu0 0.0
        %756 = vmatpush1.msra.mxu0 0.0
        %757 = vmatprep.subr.mxu0 0.0
        %758 = vmatpush1.msra.mxu0 0.0
        %759 = vmatprep.subr.mxu0 0.0
        %760 = vmatpush1.msra.mxu0 0.0
        %761 = vmatprep.subr.mxu0 0.0
        %762 = vmatpush1.msra.mxu0 0.0
        %763 = vmatprep.subr.mxu0 0.0
        %764 = vmatpush1.msra.mxu0 0.0
        %765 = vmatprep.subr.mxu0 0.0
        %766 = vmatpush1.msra.mxu0 0.0
        %767 = vmatprep.subr.mxu0 0.0
        %768 = vmatpush1.msra.mxu0 0.0
        %769 = vmatprep.subr.mxu0 0.0
        %770 = vmatpush1.msra.mxu0 0.0
        %771 = vmatprep.subr.mxu0 0.0
        %772 = vmatpush1.msra.mxu0 0.0
        %773 = vmatprep.subr.mxu0 0.0
        %774 = vmatpush1.msra.mxu0 0.0
        %775 = vmatprep.subr.mxu0 0.0
        %776 = vmatpush1.msra.mxu0 0.0
        %777 = vmatprep.subr.mxu0 0.0
        %778 = vmatpush1.msra.mxu0 0.0
        %779 = vmatprep.subr.mxu0 0.0
        %780 = vmatpush1.msra.mxu0 %v595
        %781 = vmatprep.subr.mxu0 0.0
        %782 = vmatpush1.msra.mxu0 %v594
        %783 = vmatprep.subr.mxu0 0.0
        %784 = vmatpush1.msra.mxu0 %v593
        %785 = vmatprep.subr.mxu0 0.0
        %786 = vmatpush1.msra.mxu0 %v592
        %787 = vmatprep.subr.mxu0 0.0
        %788 = vmatpush2.msra.mxu0 0.0
        %789 = vmatprep.subr.mxu0 0.0
        %790 = vmatpush2.msra.mxu0 0.0
        %791 = vmatprep.subr.mxu0 0.0
        %792 = vmatpush2.msra.mxu0 0.0
        %793 = vmatprep.subr.mxu0 0.0
        %794 = vmatpush2.msra.mxu0 0.0
        %795 = vmatprep.subr.mxu0 0.0
        %796 = vmatpush2.msra.mxu0 0.0
        %797 = vmatprep.subr.mxu0 0.0
        %798 = vmatpush2.msra.mxu0 0.0
        %799 = vmatprep.subr.mxu0 0.0
        %800 = vmatpush2.msra.mxu0 0.0
        %801 = vmatprep.subr.mxu0 0.0
        %802 = vmatpush2.msra.mxu0 0.0
        %803 = vmatprep.subr.mxu0 0.0
        %804 = vmatpush2.msra.mxu0 0.0
        %805 = vmatprep.subr.mxu0 0.0
        %806 = vmatpush2.msra.mxu0 0.0
        %807 = vmatprep.subr.mxu0 0.0
        %808 = vmatpush2.msra.mxu0 0.0
        %809 = vmatprep.subr.mxu0 0.0
        %810 = vmatpush2.msra.mxu0 0.0
        %811 = vmatprep.subr.mxu0 0.0
        %812 = vmatpush2.msra.mxu0 0.0
        %813 = vmatprep.subr.mxu0 0.0
        %814 = vmatpush2.msra.mxu0 0.0
        %815 = vmatprep.subr.mxu0 0.0
        %816 = vmatpush2.msra.mxu0 0.0
        %817 = vmatprep.subr.mxu0 0.0
        %818 = vmatpush2.msra.mxu0 0.0
        %819 = vmatprep.mubr.f32.mxu0 0.0
        %820 = vmatmul.mubr.f32.gmra.mxu0 %v753
        %v821 = vpop.f32.mrf.mxu0
        %v822 = vadd.f32 0.0, %v821
        %v823 = vpop.f32.mrf.mxu0
        %824 = vdwg.mxu0
        %826 = vrot.lane.b32.xlu0 %v822, 32
        %v827 = vpop.permute.xlu0 %826
        %v829 = vadd.f32 %v674, %v827
        %v830 = vadd.f32 %v676, %v827
        %v832 = vlaneseq
        %v833 = vshrl.u32 %v832, 7
        %v834 = vsub.s32 0, %v833
        %v835 = vrot.slane %v596, %v834
        %836 = vrot.lane.b32.xlu0 %v835, 32
        %v837 = vpop.permute.xlu0 %836
        %v839 = vadd.f32 %v829, %v837
        %v840 = vadd.f32 %v830, %v837
        %v841 = vxor.u32 %v839, 2147483648
        %v842 = vmul.f32 %v841, 1.442695
        %v843 = vpow.pop %v842
        %v844 = vadd.f32 %v843, 1.0
        %v845 = vrcp.pop %v844
        %v846 = vmul.f32 1.0, %v845
        %v847 = vtanh.pop %v840
        %849 = vrot.lane.b32.xlu0 %v598, 64
        %v850 = vpop.permute.xlu0 %849
        %v852 = vmul.f32 %v846, %v850
        %854 = vrot.lane.b32.xlu0 %v847, 32
        %v855 = vpop.permute.xlu0 %854
        %v857 = vmul.f32 %v846, %v855
        %859 = vrot.lane.b32.xlu0 %v857, 32
        %v860 = vpop.permute.xlu0 %859
        %v862 = vadd.f32 %v852, %v860
        %v863 = vtanh.pop %v862
        %865 = vrot.lane.b32.xlu0 %v863, 32
        %v866 = vpop.permute.xlu0 %865
        %v868 = vmul.f32 %v846, %v866
        %869 = vrot.lane.b32.xlu0 %v597, 96
        %v870 = vpop.permute.xlu0 %869
        %v872 = vsub.f32 %v868, %v870
        %874 = vset.pattern.permute.xlu0 0
        %875 = vperm.xlu0 %874, %v578
        %v876 = vpop.permute.xlu0 %875
        %879 = vset.pattern.permute.xlu0 0
        %880 = vperm.xlu0 %879, %v579
        %v881 = vpop.permute.xlu0 %880
        %v884 = vrot.slane %v872, 1
        %885 = vrot.lane.b32.xlu0 %v872, 32
        %v886 = vpop.permute.xlu0 %885
        %887 = vrot.lane.b32.xlu0 %v884, 32
        %v888 = vpop.permute.xlu0 %887
        %v891 = vmul.f32 %v876, %v886
        %v892 = vmul.f32 %v881, %v888
        %v895 = vrot.slane %v892, 7
        %v896 = vsel %vm602, %v895, %v891
        %v898 = vadd.f32 %v597, %v896
        %v899 = vsub.f32 %v862, %v850
        %v901 = vrot.slane %v899, 1
        %902 = vrot.lane.b32.xlu0 %v899, 64
        %v903 = vpop.permute.xlu0 %902
        %904 = vrot.lane.b32.xlu0 %v901, 64
        %v905 = vpop.permute.xlu0 %904
        %v908 = vmul.f32 %v876, %v903
        %v909 = vmul.f32 %v881, %v905
        %v912 = vrot.slane %v909, 7
        %v913 = vsel %vm602, %v912, %v908
        %v915 = vadd.f32 %v598, %v913
        %v918 = vunpack.c.l.s4 1966171168
        %v919 = vunpack.c.0.s8 %v918
        %v920 = vlaneseq
        %v921 = vshrl.u32 %v920, 7
        %v922 = vsub.s32 %v919, %v921
        %v923 = vrot.slane %v898, %v922
        %v924 = vcombine.high %v923, %v923
        %v926 = vunpack.c.l.s4 1966171168
        %v927 = vunpack.c.0.s8 %v926
        %v928 = vlaneseq
        %v929 = vshrl.u32 %v928, 7
        %v930 = vsub.s32 %v927, %v929
        %v931 = vrot.slane %v923, %v930
        %v933 = vunpack.c.l.s4 1966171168
        %v934 = vunpack.c.0.s8 %v933
        %v935 = vlaneseq
        %v936 = vshrl.u32 %v935, 7
        %v937 = vsub.s32 %v934, %v936
        %v938 = vrot.slane %v924, %v937
        %vm941 = vcmask 253952
        %942 = vst.msk [vmem:[%s551] sm:$0x1] %vm941, %v931
        %943 = vst.msk [vmem:[%s551 + $0x8] sm:$0x1] %vm941, %v938
        %v944 = vrot.slane %v576, 1
        %v945 = vsel %vm602, %v577, %v944
        %v946 = vsel %vm604, %v945, 0
        %948 = vmatprep.subr.mxu0 0.0
        %949 = vmatpush1.msra.mxu0 0.0
        %950 = vmatprep.subr.mxu0 0.0
        %951 = vmatpush1.msra.mxu0 0.0
        %952 = vmatprep.subr.mxu0 0.0
        %953 = vmatpush1.msra.mxu0 0.0
        %954 = vmatprep.subr.mxu0 0.0
        %955 = vmatpush1.msra.mxu0 0.0
        %956 = vmatprep.subr.mxu0 0.0
        %957 = vmatpush1.msra.mxu0 0.0
        %958 = vmatprep.subr.mxu0 0.0
        %959 = vmatpush1.msra.mxu0 0.0
        %960 = vmatprep.subr.mxu0 0.0
        %961 = vmatpush1.msra.mxu0 0.0
        %962 = vmatprep.subr.mxu0 0.0
        %963 = vmatpush1.msra.mxu0 0.0
        %964 = vmatprep.subr.mxu0 0.0
        %965 = vmatpush1.msra.mxu0 0.0
        %966 = vmatprep.subr.mxu0 0.0
        %967 = vmatpush1.msra.mxu0 0.0
        %968 = vmatprep.subr.mxu0 0.0
        %969 = vmatpush1.msra.mxu0 0.0
        %970 = vmatprep.subr.mxu0 0.0
        %971 = vmatpush1.msra.mxu0 0.0
        %972 = vmatprep.subr.mxu0 %v587
        %973 = vmatpush1.msra.mxu0 %v586
        %974 = vmatprep.subr.mxu0 %v585
        %975 = vmatpush1.msra.mxu0 %v584
        %976 = vmatprep.subr.mxu0 %v583
        %977 = vmatpush1.msra.mxu0 %v582
        %978 = vmatprep.subr.mxu0 %v581
        %979 = vmatpush1.msra.mxu0 %v580
        %980 = vmatprep.subr.mxu0 0.0
        %981 = vmatpush2.msra.mxu0 0.0
        %982 = vmatprep.subr.mxu0 0.0
        %983 = vmatpush2.msra.mxu0 0.0
        %984 = vmatprep.subr.mxu0 0.0
        %985 = vmatpush2.msra.mxu0 0.0
        %986 = vmatprep.subr.mxu0 0.0
        %987 = vmatpush2.msra.mxu0 0.0
        %988 = vmatprep.subr.mxu0 0.0
        %989 = vmatpush2.msra.mxu0 0.0
        %990 = vmatprep.subr.mxu0 0.0
        %991 = vmatpush2.msra.mxu0 0.0
        %992 = vmatprep.subr.mxu0 0.0
        %993 = vmatpush2.msra.mxu0 0.0
        %994 = vmatprep.subr.mxu0 0.0
        %995 = vmatpush2.msra.mxu0 0.0
        %996 = vmatprep.subr.mxu0 0.0
        %997 = vmatpush2.msra.mxu0 0.0
        %998 = vmatprep.subr.mxu0 0.0
        %999 = vmatpush2.msra.mxu0 0.0
        %1000 = vmatprep.subr.mxu0 0.0
        %1001 = vmatpush2.msra.mxu0 0.0
        %1002 = vmatprep.subr.mxu0 0.0
        %1003 = vmatpush2.msra.mxu0 0.0
        %1004 = vmatprep.subr.mxu0 0.0
        %1005 = vmatpush2.msra.mxu0 0.0
        %1006 = vmatprep.subr.mxu0 0.0
        %1007 = vmatpush2.msra.mxu0 0.0
        %1008 = vmatprep.subr.mxu0 0.0
        %1009 = vmatpush2.msra.mxu0 0.0
        %1010 = vmatprep.subr.mxu0 0.0
        %1011 = vmatpush2.msra.mxu0 0.0
        %1012 = vmatprep.mubr.f32.mxu0 0.0
        %1013 = vmatmul.mubr.f32.gmra.mxu0 %v946
        %v1014 = vpop.f32.mrf.mxu0
        %v1015 = vadd.f32 0.0, %v1014
        %v1016 = vpop.f32.mrf.mxu0
        %v1017 = vadd.f32 0.0, %v1016
        %1018 = vdwg.mxu0
        %v1019 = vsel %vm604, %v898, 0
        %1021 = vmatprep.subr.mxu0 0.0
        %1022 = vmatpush1.msra.mxu0 0.0
        %1023 = vmatprep.subr.mxu0 0.0
        %1024 = vmatpush1.msra.mxu0 0.0
        %1025 = vmatprep.subr.mxu0 0.0
        %1026 = vmatpush1.msra.mxu0 0.0
        %1027 = vmatprep.subr.mxu0 0.0
        %1028 = vmatpush1.msra.mxu0 0.0
        %1029 = vmatprep.subr.mxu0 0.0
        %1030 = vmatpush1.msra.mxu0 0.0
        %1031 = vmatprep.subr.mxu0 0.0
        %1032 = vmatpush1.msra.mxu0 0.0
        %1033 = vmatprep.subr.mxu0 0.0
        %1034 = vmatpush1.msra.mxu0 0.0
        %1035 = vmatprep.subr.mxu0 0.0
        %1036 = vmatpush1.msra.mxu0 0.0
        %1037 = vmatprep.subr.mxu0 0.0
        %1038 = vmatpush1.msra.mxu0 0.0
        %1039 = vmatprep.subr.mxu0 0.0
        %1040 = vmatpush1.msra.mxu0 0.0
        %1041 = vmatprep.subr.mxu0 0.0
        %1042 = vmatpush1.msra.mxu0 0.0
        %1043 = vmatprep.subr.mxu0 0.0
        %1044 = vmatpush1.msra.mxu0 0.0
        %1045 = vmatprep.subr.mxu0 0.0
        %1046 = vmatpush1.msra.mxu0 %v591
        %1047 = vmatprep.subr.mxu0 0.0
        %1048 = vmatpush1.msra.mxu0 %v590
        %1049 = vmatprep.subr.mxu0 0.0
        %1050 = vmatpush1.msra.mxu0 %v589
        %1051 = vmatprep.subr.mxu0 0.0
        %1052 = vmatpush1.msra.mxu0 %v588
        %1053 = vmatprep.subr.mxu0 0.0
        %1054 = vmatpush2.msra.mxu0 0.0
        %1055 = vmatprep.subr.mxu0 0.0
        %1056 = vmatpush2.msra.mxu0 0.0
        %1057 = vmatprep.subr.mxu0 0.0
        %1058 = vmatpush2.msra.mxu0 0.0
        %1059 = vmatprep.subr.mxu0 0.0
        %1060 = vmatpush2.msra.mxu0 0.0
        %1061 = vmatprep.subr.mxu0 0.0
        %1062 = vmatpush2.msra.mxu0 0.0
        %1063 = vmatprep.subr.mxu0 0.0
        %1064 = vmatpush2.msra.mxu0 0.0
        %1065 = vmatprep.subr.mxu0 0.0
        %1066 = vmatpush2.msra.mxu0 0.0
        %1067 = vmatprep.subr.mxu0 0.0
        %1068 = vmatpush2.msra.mxu0 0.0
        %1069 = vmatprep.subr.mxu0 0.0
        %1070 = vmatpush2.msra.mxu0 0.0
        %1071 = vmatprep.subr.mxu0 0.0
        %1072 = vmatpush2.msra.mxu0 0.0
        %1073 = vmatprep.subr.mxu0 0.0
        %1074 = vmatpush2.msra.mxu0 0.0
        %1075 = vmatprep.subr.mxu0 0.0
        %1076 = vmatpush2.msra.mxu0 0.0
        %1077 = vmatprep.subr.mxu0 0.0
        %1078 = vmatpush2.msra.mxu0 0.0
        %1079 = vmatprep.subr.mxu0 0.0
        %1080 = vmatpush2.msra.mxu0 0.0
        %1081 = vmatprep.subr.mxu0 0.0
        %1082 = vmatpush2.msra.mxu0 0.0
        %1083 = vmatprep.subr.mxu0 0.0
        %1084 = vmatpush2.msra.mxu0 0.0
        %1085 = vmatprep.mubr.f32.mxu0 0.0
        %1086 = vmatmul.mubr.f32.gmra.mxu0 %v1019
        %v1087 = vpop.f32.mrf.mxu0
        %v1088 = vadd.f32 0.0, %v1087
        %v1089 = vpop.f32.mrf.mxu0
        %1090 = vdwg.mxu0
        %v1091 = vmul.f32 %v1015, %v1088
        %v1093 = vsel %vm604, %v1091, 0
        %1095 = vmatprep.subr.mxu0 0.0
        %1096 = vmatpush1.msra.mxu0 0.0
        %1097 = vmatprep.subr.mxu0 0.0
        %1098 = vmatpush1.msra.mxu0 0.0
        %1099 = vmatprep.subr.mxu0 0.0
        %1100 = vmatpush1.msra.mxu0 0.0
        %1101 = vmatprep.subr.mxu0 0.0
        %1102 = vmatpush1.msra.mxu0 0.0
        %1103 = vmatprep.subr.mxu0 0.0
        %1104 = vmatpush1.msra.mxu0 0.0
        %1105 = vmatprep.subr.mxu0 0.0
        %1106 = vmatpush1.msra.mxu0 0.0
        %1107 = vmatprep.subr.mxu0 0.0
        %1108 = vmatpush1.msra.mxu0 0.0
        %1109 = vmatprep.subr.mxu0 0.0
        %1110 = vmatpush1.msra.mxu0 0.0
        %1111 = vmatprep.subr.mxu0 0.0
        %1112 = vmatpush1.msra.mxu0 0.0
        %1113 = vmatprep.subr.mxu0 0.0
        %1114 = vmatpush1.msra.mxu0 0.0
        %1115 = vmatprep.subr.mxu0 0.0
        %1116 = vmatpush1.msra.mxu0 0.0
        %1117 = vmatprep.subr.mxu0 0.0
        %1118 = vmatpush1.msra.mxu0 0.0
        %1119 = vmatprep.subr.mxu0 0.0
        %1120 = vmatpush1.msra.mxu0 %v595
        %1121 = vmatprep.subr.mxu0 0.0
        %1122 = vmatpush1.msra.mxu0 %v594
        %1123 = vmatprep.subr.mxu0 0.0
        %1124 = vmatpush1.msra.mxu0 %v593
        %1125 = vmatprep.subr.mxu0 0.0
        %1126 = vmatpush1.msra.mxu0 %v592
        %1127 = vmatprep.subr.mxu0 0.0
        %1128 = vmatpush2.msra.mxu0 0.0
        %1129 = vmatprep.subr.mxu0 0.0
        %1130 = vmatpush2.msra.mxu0 0.0
        %1131 = vmatprep.subr.mxu0 0.0
        %1132 = vmatpush2.msra.mxu0 0.0
        %1133 = vmatprep.subr.mxu0 0.0
        %1134 = vmatpush2.msra.mxu0 0.0
        %1135 = vmatprep.subr.mxu0 0.0
        %1136 = vmatpush2.msra.mxu0 0.0
        %1137 = vmatprep.subr.mxu0 0.0
        %1138 = vmatpush2.msra.mxu0 0.0
        %1139 = vmatprep.subr.mxu0 0.0
        %1140 = vmatpush2.msra.mxu0 0.0
        %1141 = vmatprep.subr.mxu0 0.0
        %1142 = vmatpush2.msra.mxu0 0.0
        %1143 = vmatprep.subr.mxu0 0.0
        %1144 = vmatpush2.msra.mxu0 0.0
        %1145 = vmatprep.subr.mxu0 0.0
        %1146 = vmatpush2.msra.mxu0 0.0
        %1147 = vmatprep.subr.mxu0 0.0
        %1148 = vmatpush2.msra.mxu0 0.0
        %1149 = vmatprep.subr.mxu0 0.0
        %1150 = vmatpush2.msra.mxu0 0.0
        %1151 = vmatprep.subr.mxu0 0.0
        %1152 = vmatpush2.msra.mxu0 0.0
        %1153 = vmatprep.subr.mxu0 0.0
        %1154 = vmatpush2.msra.mxu0 0.0
        %1155 = vmatprep.subr.mxu0 0.0
        %1156 = vmatpush2.msra.mxu0 0.0
        %1157 = vmatprep.subr.mxu0 0.0
        %1158 = vmatpush2.msra.mxu0 0.0
        %1159 = vmatprep.mubr.f32.mxu0 0.0
        %1160 = vmatmul.mubr.f32.gmra.mxu0 %v1093
        %v1161 = vpop.f32.mrf.mxu0
        %v1162 = vadd.f32 0.0, %v1161
        %v1163 = vpop.f32.mrf.mxu0
        %1164 = vdwg.mxu0
        %1166 = vrot.lane.b32.xlu0 %v1162, 32
        %v1167 = vpop.permute.xlu0 %1166
        %v1169 = vadd.f32 %v1015, %v1167
        %v1170 = vadd.f32 %v1017, %v1167
        %v1171 = vadd.f32 %v1169, %v837
        %v1172 = vadd.f32 %v1170, %v837
        %v1173 = vxor.u32 %v1171, 2147483648
        %v1174 = vmul.f32 %v1173, 1.442695
        %v1175 = vpow.pop %v1174
        %v1176 = vadd.f32 %v1175, 1.0
        %v1177 = vrcp.pop %v1176
        %v1178 = vmul.f32 1.0, %v1177
        %v1179 = vtanh.pop %v1172
        %1181 = vrot.lane.b32.xlu0 %v915, 64
        %v1182 = vpop.permute.xlu0 %1181
        %v1184 = vmul.f32 %v1178, %v1182
        %1186 = vrot.lane.b32.xlu0 %v1179, 32
        %v1187 = vpop.permute.xlu0 %1186
        %v1189 = vmul.f32 %v1178, %v1187
        %1191 = vrot.lane.b32.xlu0 %v1189, 32
        %v1192 = vpop.permute.xlu0 %1191
        %v1194 = vadd.f32 %v1184, %v1192
        %v1195 = vtanh.pop %v1194
        %1197 = vrot.lane.b32.xlu0 %v1195, 32
        %v1198 = vpop.permute.xlu0 %1197
        %v1200 = vmul.f32 %v1178, %v1198
        %1201 = vrot.lane.b32.xlu0 %v898, 96
        %v1202 = vpop.permute.xlu0 %1201
        %v1204 = vsub.f32 %v1200, %v1202
        %v1206 = vrot.slane %v1204, 7
        %1207 = vrot.lane.b32.xlu0 %v1206, 32
        %v1208 = vpop.permute.xlu0 %1207
        %1209 = vrot.lane.b32.xlu0 %v1204, 32
        %v1210 = vpop.permute.xlu0 %1209
        %v1213 = vmul.f32 %v876, %v1208
        %v1214 = vmul.f32 %v881, %v1210
        %v1217 = vrot.slane %v1213, 1
        %v1218 = vsel %vm602, %v1214, %v1217
        %v1220 = vadd.f32 %v898, %v1218
        %v1221 = vsub.f32 %v1194, %v1182
        %v1223 = vrot.slane %v1221, 7
        %1224 = vrot.lane.b32.xlu0 %v1223, 64
        %v1225 = vpop.permute.xlu0 %1224
        %1226 = vrot.lane.b32.xlu0 %v1221, 64
        %v1227 = vpop.permute.xlu0 %1226
        %v1230 = vmul.f32 %v876, %v1225
        %v1231 = vmul.f32 %v881, %v1227
        %v1234 = vrot.slane %v1230, 1
        %v1235 = vsel %vm602, %v1231, %v1234
        %v1237 = vadd.f32 %v915, %v1235
        %v1240 = vunpack.c.l.s4 1966171168
        %v1241 = vunpack.c.0.s8 %v1240
        %v1242 = vlaneseq
        %v1243 = vshrl.u32 %v1242, 7
        %v1244 = vsub.s32 %v1241, %v1243
        %v1245 = vrot.slane %v1220, %v1244
        %v1246 = vcombine.high %v1245, %v1245
        %v1248 = vunpack.c.l.s4 1966171168
        %v1249 = vunpack.c.0.s8 %v1248
        %v1250 = vlaneseq
        %v1251 = vshrl.u32 %v1250, 7
        %v1252 = vsub.s32 %v1249, %v1251
        %v1253 = vrot.slane %v1245, %v1252
        %v1255 = vunpack.c.l.s4 1966171168
        %v1256 = vunpack.c.0.s8 %v1255
        %v1257 = vlaneseq
        %v1258 = vshrl.u32 %v1257, 7
        %v1259 = vsub.s32 %v1256, %v1258
        %v1260 = vrot.slane %v1246, %v1259
        %1263 = vst.msk [vmem:[%s551 + $0x1] sm:$0x1] %vm941, %v1253
        %1264 = vst.msk [vmem:[%s551 + $0x9] sm:$0x1] %vm941, %v1260
        %v1265 = vrot.slane %v576, 2
        %v1266 = vrot.slane %v577, 1
        %v1267 = vsel %vm602, %v1266, %v1265
        %v1268 = vsel %vm604, %v1267, 0
        %1270 = vmatprep.subr.mxu0 0.0
        %1271 = vmatpush1.msra.mxu0 0.0
        %1272 = vmatprep.subr.mxu0 0.0
        %1273 = vmatpush1.msra.mxu0 0.0
        %1274 = vmatprep.subr.mxu0 0.0
        %1275 = vmatpush1.msra.mxu0 0.0
        %1276 = vmatprep.subr.mxu0 0.0
        %1277 = vmatpush1.msra.mxu0 0.0
        %1278 = vmatprep.subr.mxu0 0.0
        %1279 = vmatpush1.msra.mxu0 0.0
        %1280 = vmatprep.subr.mxu0 0.0
        %1281 = vmatpush1.msra.mxu0 0.0
        %1282 = vmatprep.subr.mxu0 0.0
        %1283 = vmatpush1.msra.mxu0 0.0
        %1284 = vmatprep.subr.mxu0 0.0
        %1285 = vmatpush1.msra.mxu0 0.0
        %1286 = vmatprep.subr.mxu0 0.0
        %1287 = vmatpush1.msra.mxu0 0.0
        %1288 = vmatprep.subr.mxu0 0.0
        %1289 = vmatpush1.msra.mxu0 0.0
        %1290 = vmatprep.subr.mxu0 0.0
        %1291 = vmatpush1.msra.mxu0 0.0
        %1292 = vmatprep.subr.mxu0 0.0
        %1293 = vmatpush1.msra.mxu0 0.0
        %1294 = vmatprep.subr.mxu0 %v587
        %1295 = vmatpush1.msra.mxu0 %v586
        %1296 = vmatprep.subr.mxu0 %v585
        %1297 = vmatpush1.msra.mxu0 %v584
        %1298 = vmatprep.subr.mxu0 %v583
        %1299 = vmatpush1.msra.mxu0 %v582
        %1300 = vmatprep.subr.mxu0 %v581
        %1301 = vmatpush1.msra.mxu0 %v580
        %1302 = vmatprep.subr.mxu0 0.0
        %1303 = vmatpush2.msra.mxu0 0.0
        %1304 = vmatprep.subr.mxu0 0.0
        %1305 = vmatpush2.msra.mxu0 0.0
        %1306 = vmatprep.subr.mxu0 0.0
        %1307 = vmatpush2.msra.mxu0 0.0
        %1308 = vmatprep.subr.mxu0 0.0
        %1309 = vmatpush2.msra.mxu0 0.0
        %1310 = vmatprep.subr.mxu0 0.0
        %1311 = vmatpush2.msra.mxu0 0.0
        %1312 = vmatprep.subr.mxu0 0.0
        %1313 = vmatpush2.msra.mxu0 0.0
        %1314 = vmatprep.subr.mxu0 0.0
        %1315 = vmatpush2.msra.mxu0 0.0
        %1316 = vmatprep.subr.mxu0 0.0
        %1317 = vmatpush2.msra.mxu0 0.0
        %1318 = vmatprep.subr.mxu0 0.0
        %1319 = vmatpush2.msra.mxu0 0.0
        %1320 = vmatprep.subr.mxu0 0.0
        %1321 = vmatpush2.msra.mxu0 0.0
        %1322 = vmatprep.subr.mxu0 0.0
        %1323 = vmatpush2.msra.mxu0 0.0
        %1324 = vmatprep.subr.mxu0 0.0
        %1325 = vmatpush2.msra.mxu0 0.0
        %1326 = vmatprep.subr.mxu0 0.0
        %1327 = vmatpush2.msra.mxu0 0.0
        %1328 = vmatprep.subr.mxu0 0.0
        %1329 = vmatpush2.msra.mxu0 0.0
        %1330 = vmatprep.subr.mxu0 0.0
        %1331 = vmatpush2.msra.mxu0 0.0
        %1332 = vmatprep.subr.mxu0 0.0
        %1333 = vmatpush2.msra.mxu0 0.0
        %1334 = vmatprep.mubr.f32.mxu0 0.0
        %1335 = vmatmul.mubr.f32.gmra.mxu0 %v1268
        %v1336 = vpop.f32.mrf.mxu0
        %v1337 = vadd.f32 0.0, %v1336
        %v1338 = vpop.f32.mrf.mxu0
        %v1339 = vadd.f32 0.0, %v1338
        %1340 = vdwg.mxu0
        %v1341 = vsel %vm604, %v1220, 0
        %1343 = vmatprep.subr.mxu0 0.0
        %1344 = vmatpush1.msra.mxu0 0.0
        %1345 = vmatprep.subr.mxu0 0.0
        %1346 = vmatpush1.msra.mxu0 0.0
        %1347 = vmatprep.subr.mxu0 0.0
        %1348 = vmatpush1.msra.mxu0 0.0
        %1349 = vmatprep.subr.mxu0 0.0
        %1350 = vmatpush1.msra.mxu0 0.0
        %1351 = vmatprep.subr.mxu0 0.0
        %1352 = vmatpush1.msra.mxu0 0.0
        %1353 = vmatprep.subr.mxu0 0.0
        %1354 = vmatpush1.msra.mxu0 0.0
        %1355 = vmatprep.subr.mxu0 0.0
        %1356 = vmatpush1.msra.mxu0 0.0
        %1357 = vmatprep.subr.mxu0 0.0
        %1358 = vmatpush1.msra.mxu0 0.0
        %1359 = vmatprep.subr.mxu0 0.0
        %1360 = vmatpush1.msra.mxu0 0.0
        %1361 = vmatprep.subr.mxu0 0.0
        %1362 = vmatpush1.msra.mxu0 0.0
        %1363 = vmatprep.subr.mxu0 0.0
        %1364 = vmatpush1.msra.mxu0 0.0
        %1365 = vmatprep.subr.mxu0 0.0
        %1366 = vmatpush1.msra.mxu0 0.0
        %1367 = vmatprep.subr.mxu0 0.0
        %1368 = vmatpush1.msra.mxu0 %v591
        %1369 = vmatprep.subr.mxu0 0.0
        %1370 = vmatpush1.msra.mxu0 %v590
        %1371 = vmatprep.subr.mxu0 0.0
        %1372 = vmatpush1.msra.mxu0 %v589
        %1373 = vmatprep.subr.mxu0 0.0
        %1374 = vmatpush1.msra.mxu0 %v588
        %1375 = vmatprep.subr.mxu0 0.0
        %1376 = vmatpush2.msra.mxu0 0.0
        %1377 = vmatprep.subr.mxu0 0.0
        %1378 = vmatpush2.msra.mxu0 0.0
        %1379 = vmatprep.subr.mxu0 0.0
        %1380 = vmatpush2.msra.mxu0 0.0
        %1381 = vmatprep.subr.mxu0 0.0
        %1382 = vmatpush2.msra.mxu0 0.0
        %1383 = vmatprep.subr.mxu0 0.0
        %1384 = vmatpush2.msra.mxu0 0.0
        %1385 = vmatprep.subr.mxu0 0.0
        %1386 = vmatpush2.msra.mxu0 0.0
        %1387 = vmatprep.subr.mxu0 0.0
        %1388 = vmatpush2.msra.mxu0 0.0
        %1389 = vmatprep.subr.mxu0 0.0
        %1390 = vmatpush2.msra.mxu0 0.0
        %1391 = vmatprep.subr.mxu0 0.0
        %1392 = vmatpush2.msra.mxu0 0.0
        %1393 = vmatprep.subr.mxu0 0.0
        %1394 = vmatpush2.msra.mxu0 0.0
        %1395 = vmatprep.subr.mxu0 0.0
        %1396 = vmatpush2.msra.mxu0 0.0
        %1397 = vmatprep.subr.mxu0 0.0
        %1398 = vmatpush2.msra.mxu0 0.0
        %1399 = vmatprep.subr.mxu0 0.0
        %1400 = vmatpush2.msra.mxu0 0.0
        %1401 = vmatprep.subr.mxu0 0.0
        %1402 = vmatpush2.msra.mxu0 0.0
        %1403 = vmatprep.subr.mxu0 0.0
        %1404 = vmatpush2.msra.mxu0 0.0
        %1405 = vmatprep.subr.mxu0 0.0
        %1406 = vmatpush2.msra.mxu0 0.0
        %1407 = vmatprep.mubr.f32.mxu0 0.0
        %1408 = vmatmul.mubr.f32.gmra.mxu0 %v1341
        %v1409 = vpop.f32.mrf.mxu0
        %v1410 = vadd.f32 0.0, %v1409
        %v1411 = vpop.f32.mrf.mxu0
        %1412 = vdwg.mxu0
        %v1413 = vmul.f32 %v1337, %v1410
        %v1415 = vsel %vm604, %v1413, 0
        %1417 = vmatprep.subr.mxu0 0.0
        %1418 = vmatpush1.msra.mxu0 0.0
        %1419 = vmatprep.subr.mxu0 0.0
        %1420 = vmatpush1.msra.mxu0 0.0
        %1421 = vmatprep.subr.mxu0 0.0
        %1422 = vmatpush1.msra.mxu0 0.0
        %1423 = vmatprep.subr.mxu0 0.0
        %1424 = vmatpush1.msra.mxu0 0.0
        %1425 = vmatprep.subr.mxu0 0.0
        %1426 = vmatpush1.msra.mxu0 0.0
        %1427 = vmatprep.subr.mxu0 0.0
        %1428 = vmatpush1.msra.mxu0 0.0
        %1429 = vmatprep.subr.mxu0 0.0
        %1430 = vmatpush1.msra.mxu0 0.0
        %1431 = vmatprep.subr.mxu0 0.0
        %1432 = vmatpush1.msra.mxu0 0.0
        %1433 = vmatprep.subr.mxu0 0.0
        %1434 = vmatpush1.msra.mxu0 0.0
        %1435 = vmatprep.subr.mxu0 0.0
        %1436 = vmatpush1.msra.mxu0 0.0
        %1437 = vmatprep.subr.mxu0 0.0
        %1438 = vmatpush1.msra.mxu0 0.0
        %1439 = vmatprep.subr.mxu0 0.0
        %1440 = vmatpush1.msra.mxu0 0.0
        %1441 = vmatprep.subr.mxu0 0.0
        %1442 = vmatpush1.msra.mxu0 %v595
        %1443 = vmatprep.subr.mxu0 0.0
        %1444 = vmatpush1.msra.mxu0 %v594
        %1445 = vmatprep.subr.mxu0 0.0
        %1446 = vmatpush1.msra.mxu0 %v593
        %1447 = vmatprep.subr.mxu0 0.0
        %1448 = vmatpush1.msra.mxu0 %v592
        %1449 = vmatprep.subr.mxu0 0.0
        %1450 = vmatpush2.msra.mxu0 0.0
        %1451 = vmatprep.subr.mxu0 0.0
        %1452 = vmatpush2.msra.mxu0 0.0
        %1453 = vmatprep.subr.mxu0 0.0
        %1454 = vmatpush2.msra.mxu0 0.0
        %1455 = vmatprep.subr.mxu0 0.0
        %1456 = vmatpush2.msra.mxu0 0.0
        %1457 = vmatprep.subr.mxu0 0.0
        %1458 = vmatpush2.msra.mxu0 0.0
        %1459 = vmatprep.subr.mxu0 0.0
        %1460 = vmatpush2.msra.mxu0 0.0
        %1461 = vmatprep.subr.mxu0 0.0
        %1462 = vmatpush2.msra.mxu0 0.0
        %1463 = vmatprep.subr.mxu0 0.0
        %1464 = vmatpush2.msra.mxu0 0.0
        %1465 = vmatprep.subr.mxu0 0.0
        %1466 = vmatpush2.msra.mxu0 0.0
        %1467 = vmatprep.subr.mxu0 0.0
        %1468 = vmatpush2.msra.mxu0 0.0
        %1469 = vmatprep.subr.mxu0 0.0
        %1470 = vmatpush2.msra.mxu0 0.0
        %1471 = vmatprep.subr.mxu0 0.0
        %1472 = vmatpush2.msra.mxu0 0.0
        %1473 = vmatprep.subr.mxu0 0.0
        %1474 = vmatpush2.msra.mxu0 0.0
        %1475 = vmatprep.subr.mxu0 0.0
        %1476 = vmatpush2.msra.mxu0 0.0
        %1477 = vmatprep.subr.mxu0 0.0
        %1478 = vmatpush2.msra.mxu0 0.0
        %1479 = vmatprep.subr.mxu0 0.0
        %1480 = vmatpush2.msra.mxu0 0.0
        %1481 = vmatprep.mubr.f32.mxu0 0.0
        %1482 = vmatmul.mubr.f32.gmra.mxu0 %v1415
        %v1483 = vpop.f32.mrf.mxu0
        %v1484 = vadd.f32 0.0, %v1483
        %v1485 = vpop.f32.mrf.mxu0
        %1486 = vdwg.mxu0
        %1488 = vrot.lane.b32.xlu0 %v1484, 32
        %v1489 = vpop.permute.xlu0 %1488
        %v1491 = vadd.f32 %v1337, %v1489
        %v1492 = vadd.f32 %v1339, %v1489
        %v1493 = vadd.f32 %v1491, %v837
        %v1494 = vadd.f32 %v1492, %v837
        %v1495 = vxor.u32 %v1493, 2147483648
        %v1496 = vmul.f32 %v1495, 1.442695
        %v1497 = vpow.pop %v1496
        %v1498 = vadd.f32 %v1497, 1.0
        %v1499 = vrcp.pop %v1498
        %v1500 = vmul.f32 1.0, %v1499
        %v1501 = vtanh.pop %v1494
        %1503 = vrot.lane.b32.xlu0 %v1237, 64
        %v1504 = vpop.permute.xlu0 %1503
        %v1506 = vmul.f32 %v1500, %v1504
        %1508 = vrot.lane.b32.xlu0 %v1501, 32
        %v1509 = vpop.permute.xlu0 %1508
        %v1511 = vmul.f32 %v1500, %v1509
        %1513 = vrot.lane.b32.xlu0 %v1511, 32
        %v1514 = vpop.permute.xlu0 %1513
        %v1516 = vadd.f32 %v1506, %v1514
        %v1517 = vtanh.pop %v1516
        %1519 = vrot.lane.b32.xlu0 %v1517, 32
        %v1520 = vpop.permute.xlu0 %1519
        %v1522 = vmul.f32 %v1500, %v1520
        %1523 = vrot.lane.b32.xlu0 %v1220, 96
        %v1524 = vpop.permute.xlu0 %1523
        %v1526 = vsub.f32 %v1522, %v1524
        %v1528 = vrot.slane %v1526, 6
        %v1529 = vrot.slane %v1526, 7
        %1530 = vrot.lane.b32.xlu0 %v1528, 32
        %v1531 = vpop.permute.xlu0 %1530
        %1532 = vrot.lane.b32.xlu0 %v1529, 32
        %v1533 = vpop.permute.xlu0 %1532
        %v1536 = vmul.f32 %v876, %v1531
        %v1537 = vmul.f32 %v881, %v1533
        %v1540 = vrot.slane %v1536, 2
        %v1541 = vrot.slane %v1537, 1
        %v1542 = vsel %vm602, %v1541, %v1540
        %v1544 = vadd.f32 %v1220, %v1542
        %v1545 = vsub.f32 %v1516, %v1504
        %v1547 = vrot.slane %v1545, 6
        %v1548 = vrot.slane %v1545, 7
        %1549 = vrot.lane.b32.xlu0 %v1547, 64
        %v1550 = vpop.permute.xlu0 %1549
        %1551 = vrot.lane.b32.xlu0 %v1548, 64
        %v1552 = vpop.permute.xlu0 %1551
        %v1555 = vmul.f32 %v876, %v1550
        %v1556 = vmul.f32 %v881, %v1552
        %v1559 = vrot.slane %v1555, 2
        %v1560 = vrot.slane %v1556, 1
        %v1561 = vsel %vm602, %v1560, %v1559
        %v1563 = vadd.f32 %v1237, %v1561
        %v1566 = vunpack.c.l.s4 1966171168
        %v1567 = vunpack.c.0.s8 %v1566
        %v1568 = vlaneseq
        %v1569 = vshrl.u32 %v1568, 7
        %v1570 = vsub.s32 %v1567, %v1569
        %v1571 = vrot.slane %v1544, %v1570
        %v1572 = vcombine.high %v1571, %v1571
        %v1574 = vunpack.c.l.s4 1966171168
        %v1575 = vunpack.c.0.s8 %v1574
        %v1576 = vlaneseq
        %v1577 = vshrl.u32 %v1576, 7
        %v1578 = vsub.s32 %v1575, %v1577
        %v1579 = vrot.slane %v1571, %v1578
        %v1581 = vunpack.c.l.s4 1966171168
        %v1582 = vunpack.c.0.s8 %v1581
        %v1583 = vlaneseq
        %v1584 = vshrl.u32 %v1583, 7
        %v1585 = vsub.s32 %v1582, %v1584
        %v1586 = vrot.slane %v1572, %v1585
        %1589 = vst.msk [vmem:[%s551 + $0x2] sm:$0x1] %vm941, %v1579
        %1590 = vst.msk [vmem:[%s551 + $0xa] sm:$0x1] %vm941, %v1586
        %v1591 = vrot.slane %v576, 3
        %v1592 = vrot.slane %v577, 2
        %v1593 = vsel %vm602, %v1592, %v1591
        %v1594 = vsel %vm604, %v1593, 0
        %1596 = vmatprep.subr.mxu0 0.0
        %1597 = vmatpush1.msra.mxu0 0.0
        %1598 = vmatprep.subr.mxu0 0.0
        %1599 = vmatpush1.msra.mxu0 0.0
        %1600 = vmatprep.subr.mxu0 0.0
        %1601 = vmatpush1.msra.mxu0 0.0
        %1602 = vmatprep.subr.mxu0 0.0
        %1603 = vmatpush1.msra.mxu0 0.0
        %1604 = vmatprep.subr.mxu0 0.0
        %1605 = vmatpush1.msra.mxu0 0.0
        %1606 = vmatprep.subr.mxu0 0.0
        %1607 = vmatpush1.msra.mxu0 0.0
        %1608 = vmatprep.subr.mxu0 0.0
        %1609 = vmatpush1.msra.mxu0 0.0
        %1610 = vmatprep.subr.mxu0 0.0
        %1611 = vmatpush1.msra.mxu0 0.0
        %1612 = vmatprep.subr.mxu0 0.0
        %1613 = vmatpush1.msra.mxu0 0.0
        %1614 = vmatprep.subr.mxu0 0.0
        %1615 = vmatpush1.msra.mxu0 0.0
        %1616 = vmatprep.subr.mxu0 0.0
        %1617 = vmatpush1.msra.mxu0 0.0
        %1618 = vmatprep.subr.mxu0 0.0
        %1619 = vmatpush1.msra.mxu0 0.0
        %1620 = vmatprep.subr.mxu0 %v587
        %1621 = vmatpush1.msra.mxu0 %v586
        %1622 = vmatprep.subr.mxu0 %v585
        %1623 = vmatpush1.msra.mxu0 %v584
        %1624 = vmatprep.subr.mxu0 %v583
        %1625 = vmatpush1.msra.mxu0 %v582
        %1626 = vmatprep.subr.mxu0 %v581
        %1627 = vmatpush1.msra.mxu0 %v580
        %1628 = vmatprep.subr.mxu0 0.0
        %1629 = vmatpush2.msra.mxu0 0.0
        %1630 = vmatprep.subr.mxu0 0.0
        %1631 = vmatpush2.msra.mxu0 0.0
        %1632 = vmatprep.subr.mxu0 0.0
        %1633 = vmatpush2.msra.mxu0 0.0
        %1634 = vmatprep.subr.mxu0 0.0
        %1635 = vmatpush2.msra.mxu0 0.0
        %1636 = vmatprep.subr.mxu0 0.0
        %1637 = vmatpush2.msra.mxu0 0.0
        %1638 = vmatprep.subr.mxu0 0.0
        %1639 = vmatpush2.msra.mxu0 0.0
        %1640 = vmatprep.subr.mxu0 0.0
        %1641 = vmatpush2.msra.mxu0 0.0
        %1642 = vmatprep.subr.mxu0 0.0
        %1643 = vmatpush2.msra.mxu0 0.0
        %1644 = vmatprep.subr.mxu0 0.0
        %1645 = vmatpush2.msra.mxu0 0.0
        %1646 = vmatprep.subr.mxu0 0.0
        %1647 = vmatpush2.msra.mxu0 0.0
        %1648 = vmatprep.subr.mxu0 0.0
        %1649 = vmatpush2.msra.mxu0 0.0
        %1650 = vmatprep.subr.mxu0 0.0
        %1651 = vmatpush2.msra.mxu0 0.0
        %1652 = vmatprep.subr.mxu0 0.0
        %1653 = vmatpush2.msra.mxu0 0.0
        %1654 = vmatprep.subr.mxu0 0.0
        %1655 = vmatpush2.msra.mxu0 0.0
        %1656 = vmatprep.subr.mxu0 0.0
        %1657 = vmatpush2.msra.mxu0 0.0
        %1658 = vmatprep.subr.mxu0 0.0
        %1659 = vmatpush2.msra.mxu0 0.0
        %1660 = vmatprep.mubr.f32.mxu0 0.0
        %1661 = vmatmul.mubr.f32.gmra.mxu0 %v1594
        %v1662 = vpop.f32.mrf.mxu0
        %v1663 = vadd.f32 0.0, %v1662
        %v1664 = vpop.f32.mrf.mxu0
        %v1665 = vadd.f32 0.0, %v1664
        %1666 = vdwg.mxu0
        %v1667 = vsel %vm604, %v1544, 0
        %1669 = vmatprep.subr.mxu0 0.0
        %1670 = vmatpush1.msra.mxu0 0.0
        %1671 = vmatprep.subr.mxu0 0.0
        %1672 = vmatpush1.msra.mxu0 0.0
        %1673 = vmatprep.subr.mxu0 0.0
        %1674 = vmatpush1.msra.mxu0 0.0
        %1675 = vmatprep.subr.mxu0 0.0
        %1676 = vmatpush1.msra.mxu0 0.0
        %1677 = vmatprep.subr.mxu0 0.0
        %1678 = vmatpush1.msra.mxu0 0.0
        %1679 = vmatprep.subr.mxu0 0.0
        %1680 = vmatpush1.msra.mxu0 0.0
        %1681 = vmatprep.subr.mxu0 0.0
        %1682 = vmatpush1.msra.mxu0 0.0
        %1683 = vmatprep.subr.mxu0 0.0
        %1684 = vmatpush1.msra.mxu0 0.0
        %1685 = vmatprep.subr.mxu0 0.0
        %1686 = vmatpush1.msra.mxu0 0.0
        %1687 = vmatprep.subr.mxu0 0.0
        %1688 = vmatpush1.msra.mxu0 0.0
        %1689 = vmatprep.subr.mxu0 0.0
        %1690 = vmatpush1.msra.mxu0 0.0
        %1691 = vmatprep.subr.mxu0 0.0
        %1692 = vmatpush1.msra.mxu0 0.0
        %1693 = vmatprep.subr.mxu0 0.0
        %1694 = vmatpush1.msra.mxu0 %v591
        %1695 = vmatprep.subr.mxu0 0.0
        %1696 = vmatpush1.msra.mxu0 %v590
        %1697 = vmatprep.subr.mxu0 0.0
        %1698 = vmatpush1.msra.mxu0 %v589
        %1699 = vmatprep.subr.mxu0 0.0
        %1700 = vmatpush1.msra.mxu0 %v588
        %1701 = vmatprep.subr.mxu0 0.0
        %1702 = vmatpush2.msra.mxu0 0.0
        %1703 = vmatprep.subr.mxu0 0.0
        %1704 = vmatpush2.msra.mxu0 0.0
        %1705 = vmatprep.subr.mxu0 0.0
        %1706 = vmatpush2.msra.mxu0 0.0
        %1707 = vmatprep.subr.mxu0 0.0
        %1708 = vmatpush2.msra.mxu0 0.0
        %1709 = vmatprep.subr.mxu0 0.0
        %1710 = vmatpush2.msra.mxu0 0.0
        %1711 = vmatprep.subr.mxu0 0.0
        %1712 = vmatpush2.msra.mxu0 0.0
        %1713 = vmatprep.subr.mxu0 0.0
        %1714 = vmatpush2.msra.mxu0 0.0
        %1715 = vmatprep.subr.mxu0 0.0
        %1716 = vmatpush2.msra.mxu0 0.0
        %1717 = vmatprep.subr.mxu0 0.0
        %1718 = vmatpush2.msra.mxu0 0.0
        %1719 = vmatprep.subr.mxu0 0.0
        %1720 = vmatpush2.msra.mxu0 0.0
        %1721 = vmatprep.subr.mxu0 0.0
        %1722 = vmatpush2.msra.mxu0 0.0
        %1723 = vmatprep.subr.mxu0 0.0
        %1724 = vmatpush2.msra.mxu0 0.0
        %1725 = vmatprep.subr.mxu0 0.0
        %1726 = vmatpush2.msra.mxu0 0.0
        %1727 = vmatprep.subr.mxu0 0.0
        %1728 = vmatpush2.msra.mxu0 0.0
        %1729 = vmatprep.subr.mxu0 0.0
        %1730 = vmatpush2.msra.mxu0 0.0
        %1731 = vmatprep.subr.mxu0 0.0
        %1732 = vmatpush2.msra.mxu0 0.0
        %1733 = vmatprep.mubr.f32.mxu0 0.0
        %1734 = vmatmul.mubr.f32.gmra.mxu0 %v1667
        %v1735 = vpop.f32.mrf.mxu0
        %v1736 = vadd.f32 0.0, %v1735
        %v1737 = vpop.f32.mrf.mxu0
        %1738 = vdwg.mxu0
        %v1739 = vmul.f32 %v1663, %v1736
        %v1741 = vsel %vm604, %v1739, 0
        %1743 = vmatprep.subr.mxu0 0.0
        %1744 = vmatpush1.msra.mxu0 0.0
        %1745 = vmatprep.subr.mxu0 0.0
        %1746 = vmatpush1.msra.mxu0 0.0
        %1747 = vmatprep.subr.mxu0 0.0
        %1748 = vmatpush1.msra.mxu0 0.0
        %1749 = vmatprep.subr.mxu0 0.0
        %1750 = vmatpush1.msra.mxu0 0.0
        %1751 = vmatprep.subr.mxu0 0.0
        %1752 = vmatpush1.msra.mxu0 0.0
        %1753 = vmatprep.subr.mxu0 0.0
        %1754 = vmatpush1.msra.mxu0 0.0
        %1755 = vmatprep.subr.mxu0 0.0
        %1756 = vmatpush1.msra.mxu0 0.0
        %1757 = vmatprep.subr.mxu0 0.0
        %1758 = vmatpush1.msra.mxu0 0.0
        %1759 = vmatprep.subr.mxu0 0.0
        %1760 = vmatpush1.msra.mxu0 0.0
        %1761 = vmatprep.subr.mxu0 0.0
        %1762 = vmatpush1.msra.mxu0 0.0
        %1763 = vmatprep.subr.mxu0 0.0
        %1764 = vmatpush1.msra.mxu0 0.0
        %1765 = vmatprep.subr.mxu0 0.0
        %1766 = vmatpush1.msra.mxu0 0.0
        %1767 = vmatprep.subr.mxu0 0.0
        %1768 = vmatpush1.msra.mxu0 %v595
        %1769 = vmatprep.subr.mxu0 0.0
        %1770 = vmatpush1.msra.mxu0 %v594
        %1771 = vmatprep.subr.mxu0 0.0
        %1772 = vmatpush1.msra.mxu0 %v593
        %1773 = vmatprep.subr.mxu0 0.0
        %1774 = vmatpush1.msra.mxu0 %v592
        %1775 = vmatprep.subr.mxu0 0.0
        %1776 = vmatpush2.msra.mxu0 0.0
        %1777 = vmatprep.subr.mxu0 0.0
        %1778 = vmatpush2.msra.mxu0 0.0
        %1779 = vmatprep.subr.mxu0 0.0
        %1780 = vmatpush2.msra.mxu0 0.0
        %1781 = vmatprep.subr.mxu0 0.0
        %1782 = vmatpush2.msra.mxu0 0.0
        %1783 = vmatprep.subr.mxu0 0.0
        %1784 = vmatpush2.msra.mxu0 0.0
        %1785 = vmatprep.subr.mxu0 0.0
        %1786 = vmatpush2.msra.mxu0 0.0
        %1787 = vmatprep.subr.mxu0 0.0
        %1788 = vmatpush2.msra.mxu0 0.0
        %1789 = vmatprep.subr.mxu0 0.0
        %1790 = vmatpush2.msra.mxu0 0.0
        %1791 = vmatprep.subr.mxu0 0.0
        %1792 = vmatpush2.msra.mxu0 0.0
        %1793 = vmatprep.subr.mxu0 0.0
        %1794 = vmatpush2.msra.mxu0 0.0
        %1795 = vmatprep.subr.mxu0 0.0
        %1796 = vmatpush2.msra.mxu0 0.0
        %1797 = vmatprep.subr.mxu0 0.0
        %1798 = vmatpush2.msra.mxu0 0.0
        %1799 = vmatprep.subr.mxu0 0.0
        %1800 = vmatpush2.msra.mxu0 0.0
        %1801 = vmatprep.subr.mxu0 0.0
        %1802 = vmatpush2.msra.mxu0 0.0
        %1803 = vmatprep.subr.mxu0 0.0
        %1804 = vmatpush2.msra.mxu0 0.0
        %1805 = vmatprep.subr.mxu0 0.0
        %1806 = vmatpush2.msra.mxu0 0.0
        %1807 = vmatprep.mubr.f32.mxu0 0.0
        %1808 = vmatmul.mubr.f32.gmra.mxu0 %v1741
        %v1809 = vpop.f32.mrf.mxu0
        %v1810 = vadd.f32 0.0, %v1809
        %v1811 = vpop.f32.mrf.mxu0
        %1812 = vdwg.mxu0
        %1814 = vrot.lane.b32.xlu0 %v1810, 32
        %v1815 = vpop.permute.xlu0 %1814
        %v1817 = vadd.f32 %v1663, %v1815
        %v1818 = vadd.f32 %v1665, %v1815
        %v1819 = vadd.f32 %v1817, %v837
        %v1820 = vadd.f32 %v1818, %v837
        %v1821 = vxor.u32 %v1819, 2147483648
        %v1822 = vmul.f32 %v1821, 1.442695
        %v1823 = vpow.pop %v1822
        %v1824 = vadd.f32 %v1823, 1.0
        %v1825 = vrcp.pop %v1824
        %v1826 = vmul.f32 1.0, %v1825
        %v1827 = vtanh.pop %v1820
        %1829 = vrot.lane.b32.xlu0 %v1563, 64
        %v1830 = vpop.permute.xlu0 %1829
        %v1832 = vmul.f32 %v1826, %v1830
        %1834 = vrot.lane.b32.xlu0 %v1827, 32
        %v1835 = vpop.permute.xlu0 %1834
        %v1837 = vmul.f32 %v1826, %v1835
        %1839 = vrot.lane.b32.xlu0 %v1837, 32
        %v1840 = vpop.permute.xlu0 %1839
        %v1842 = vadd.f32 %v1832, %v1840
        %v1843 = vtanh.pop %v1842
        %1845 = vrot.lane.b32.xlu0 %v1843, 32
        %v1846 = vpop.permute.xlu0 %1845
        %v1848 = vmul.f32 %v1826, %v1846
        %1849 = vrot.lane.b32.xlu0 %v1544, 96
        %v1850 = vpop.permute.xlu0 %1849
        %v1852 = vsub.f32 %v1848, %v1850
        %v1854 = vrot.slane %v1852, 5
        %v1855 = vrot.slane %v1852, 6
        %1856 = vrot.lane.b32.xlu0 %v1854, 32
        %v1857 = vpop.permute.xlu0 %1856
        %1858 = vrot.lane.b32.xlu0 %v1855, 32
        %v1859 = vpop.permute.xlu0 %1858
        %v1862 = vmul.f32 %v876, %v1857
        %v1863 = vmul.f32 %v881, %v1859
        %v1866 = vrot.slane %v1862, 3
        %v1867 = vrot.slane %v1863, 2
        %v1868 = vsel %vm602, %v1867, %v1866
        %v1870 = vadd.f32 %v1544, %v1868
        %v1871 = vsub.f32 %v1842, %v1830
        %v1873 = vrot.slane %v1871, 5
        %v1874 = vrot.slane %v1871, 6
        %1875 = vrot.lane.b32.xlu0 %v1873, 64
        %v1876 = vpop.permute.xlu0 %1875
        %1877 = vrot.lane.b32.xlu0 %v1874, 64
        %v1878 = vpop.permute.xlu0 %1877
        %v1881 = vmul.f32 %v876, %v1876
        %v1882 = vmul.f32 %v881, %v1878
        %v1885 = vrot.slane %v1881, 3
        %v1886 = vrot.slane %v1882, 2
        %v1887 = vsel %vm602, %v1886, %v1885
        %v1889 = vadd.f32 %v1563, %v1887
        %v1892 = vunpack.c.l.s4 1966171168
        %v1893 = vunpack.c.0.s8 %v1892
        %v1894 = vlaneseq
        %v1895 = vshrl.u32 %v1894, 7
        %v1896 = vsub.s32 %v1893, %v1895
        %v1897 = vrot.slane %v1870, %v1896
        %v1898 = vcombine.high %v1897, %v1897
        %v1900 = vunpack.c.l.s4 1966171168
        %v1901 = vunpack.c.0.s8 %v1900
        %v1902 = vlaneseq
        %v1903 = vshrl.u32 %v1902, 7
        %v1904 = vsub.s32 %v1901, %v1903
        %v1905 = vrot.slane %v1897, %v1904
        %v1907 = vunpack.c.l.s4 1966171168
        %v1908 = vunpack.c.0.s8 %v1907
        %v1909 = vlaneseq
        %v1910 = vshrl.u32 %v1909, 7
        %v1911 = vsub.s32 %v1908, %v1910
        %v1912 = vrot.slane %v1898, %v1911
        %1915 = vst.msk [vmem:[%s551 + $0x3] sm:$0x1] %vm941, %v1905
        %1916 = vst.msk [vmem:[%s551 + $0xb] sm:$0x1] %vm941, %v1912
        %v1917 = vrot.slane %v576, 4
        %v1918 = vrot.slane %v577, 3
        %v1919 = vsel %vm602, %v1918, %v1917
        %v1920 = vsel %vm604, %v1919, 0
        %1922 = vmatprep.subr.mxu0 0.0
        %1923 = vmatpush1.msra.mxu0 0.0
        %1924 = vmatprep.subr.mxu0 0.0
        %1925 = vmatpush1.msra.mxu0 0.0
        %1926 = vmatprep.subr.mxu0 0.0
        %1927 = vmatpush1.msra.mxu0 0.0
        %1928 = vmatprep.subr.mxu0 0.0
        %1929 = vmatpush1.msra.mxu0 0.0
        %1930 = vmatprep.subr.mxu0 0.0
        %1931 = vmatpush1.msra.mxu0 0.0
        %1932 = vmatprep.subr.mxu0 0.0
        %1933 = vmatpush1.msra.mxu0 0.0
        %1934 = vmatprep.subr.mxu0 0.0
        %1935 = vmatpush1.msra.mxu0 0.0
        %1936 = vmatprep.subr.mxu0 0.0
        %1937 = vmatpush1.msra.mxu0 0.0
        %1938 = vmatprep.subr.mxu0 0.0
        %1939 = vmatpush1.msra.mxu0 0.0
        %1940 = vmatprep.subr.mxu0 0.0
        %1941 = vmatpush1.msra.mxu0 0.0
        %1942 = vmatprep.subr.mxu0 0.0
        %1943 = vmatpush1.msra.mxu0 0.0
        %1944 = vmatprep.subr.mxu0 0.0
        %1945 = vmatpush1.msra.mxu0 0.0
        %1946 = vmatprep.subr.mxu0 %v587
        %1947 = vmatpush1.msra.mxu0 %v586
        %1948 = vmatprep.subr.mxu0 %v585
        %1949 = vmatpush1.msra.mxu0 %v584
        %1950 = vmatprep.subr.mxu0 %v583
        %1951 = vmatpush1.msra.mxu0 %v582
        %1952 = vmatprep.subr.mxu0 %v581
        %1953 = vmatpush1.msra.mxu0 %v580
        %1954 = vmatprep.subr.mxu0 0.0
        %1955 = vmatpush2.msra.mxu0 0.0
        %1956 = vmatprep.subr.mxu0 0.0
        %1957 = vmatpush2.msra.mxu0 0.0
        %1958 = vmatprep.subr.mxu0 0.0
        %1959 = vmatpush2.msra.mxu0 0.0
        %1960 = vmatprep.subr.mxu0 0.0
        %1961 = vmatpush2.msra.mxu0 0.0
        %1962 = vmatprep.subr.mxu0 0.0
        %1963 = vmatpush2.msra.mxu0 0.0
        %1964 = vmatprep.subr.mxu0 0.0
        %1965 = vmatpush2.msra.mxu0 0.0
        %1966 = vmatprep.subr.mxu0 0.0
        %1967 = vmatpush2.msra.mxu0 0.0
        %1968 = vmatprep.subr.mxu0 0.0
        %1969 = vmatpush2.msra.mxu0 0.0
        %1970 = vmatprep.subr.mxu0 0.0
        %1971 = vmatpush2.msra.mxu0 0.0
        %1972 = vmatprep.subr.mxu0 0.0
        %1973 = vmatpush2.msra.mxu0 0.0
        %1974 = vmatprep.subr.mxu0 0.0
        %1975 = vmatpush2.msra.mxu0 0.0
        %1976 = vmatprep.subr.mxu0 0.0
        %1977 = vmatpush2.msra.mxu0 0.0
        %1978 = vmatprep.subr.mxu0 0.0
        %1979 = vmatpush2.msra.mxu0 0.0
        %1980 = vmatprep.subr.mxu0 0.0
        %1981 = vmatpush2.msra.mxu0 0.0
        %1982 = vmatprep.subr.mxu0 0.0
        %1983 = vmatpush2.msra.mxu0 0.0
        %1984 = vmatprep.subr.mxu0 0.0
        %1985 = vmatpush2.msra.mxu0 0.0
        %1986 = vmatprep.mubr.f32.mxu0 0.0
        %1987 = vmatmul.mubr.f32.gmra.mxu0 %v1920
        %v1988 = vpop.f32.mrf.mxu0
        %v1989 = vadd.f32 0.0, %v1988
        %v1990 = vpop.f32.mrf.mxu0
        %v1991 = vadd.f32 0.0, %v1990
        %1992 = vdwg.mxu0
        %v1993 = vsel %vm604, %v1870, 0
        %1995 = vmatprep.subr.mxu0 0.0
        %1996 = vmatpush1.msra.mxu0 0.0
        %1997 = vmatprep.subr.mxu0 0.0
        %1998 = vmatpush1.msra.mxu0 0.0
        %1999 = vmatprep.subr.mxu0 0.0
        %2000 = vmatpush1.msra.mxu0 0.0
        %2001 = vmatprep.subr.mxu0 0.0
        %2002 = vmatpush1.msra.mxu0 0.0
        %2003 = vmatprep.subr.mxu0 0.0
        %2004 = vmatpush1.msra.mxu0 0.0
        %2005 = vmatprep.subr.mxu0 0.0
        %2006 = vmatpush1.msra.mxu0 0.0
        %2007 = vmatprep.subr.mxu0 0.0
        %2008 = vmatpush1.msra.mxu0 0.0
        %2009 = vmatprep.subr.mxu0 0.0
        %2010 = vmatpush1.msra.mxu0 0.0
        %2011 = vmatprep.subr.mxu0 0.0
        %2012 = vmatpush1.msra.mxu0 0.0
        %2013 = vmatprep.subr.mxu0 0.0
        %2014 = vmatpush1.msra.mxu0 0.0
        %2015 = vmatprep.subr.mxu0 0.0
        %2016 = vmatpush1.msra.mxu0 0.0
        %2017 = vmatprep.subr.mxu0 0.0
        %2018 = vmatpush1.msra.mxu0 0.0
        %2019 = vmatprep.subr.mxu0 0.0
        %2020 = vmatpush1.msra.mxu0 %v591
        %2021 = vmatprep.subr.mxu0 0.0
        %2022 = vmatpush1.msra.mxu0 %v590
        %2023 = vmatprep.subr.mxu0 0.0
        %2024 = vmatpush1.msra.mxu0 %v589
        %2025 = vmatprep.subr.mxu0 0.0
        %2026 = vmatpush1.msra.mxu0 %v588
        %2027 = vmatprep.subr.mxu0 0.0
        %2028 = vmatpush2.msra.mxu0 0.0
        %2029 = vmatprep.subr.mxu0 0.0
        %2030 = vmatpush2.msra.mxu0 0.0
        %2031 = vmatprep.subr.mxu0 0.0
        %2032 = vmatpush2.msra.mxu0 0.0
        %2033 = vmatprep.subr.mxu0 0.0
        %2034 = vmatpush2.msra.mxu0 0.0
        %2035 = vmatprep.subr.mxu0 0.0
        %2036 = vmatpush2.msra.mxu0 0.0
        %2037 = vmatprep.subr.mxu0 0.0
        %2038 = vmatpush2.msra.mxu0 0.0
        %2039 = vmatprep.subr.mxu0 0.0
        %2040 = vmatpush2.msra.mxu0 0.0
        %2041 = vmatprep.subr.mxu0 0.0
        %2042 = vmatpush2.msra.mxu0 0.0
        %2043 = vmatprep.subr.mxu0 0.0
        %2044 = vmatpush2.msra.mxu0 0.0
        %2045 = vmatprep.subr.mxu0 0.0
        %2046 = vmatpush2.msra.mxu0 0.0
        %2047 = vmatprep.subr.mxu0 0.0
        %2048 = vmatpush2.msra.mxu0 0.0
        %2049 = vmatprep.subr.mxu0 0.0
        %2050 = vmatpush2.msra.mxu0 0.0
        %2051 = vmatprep.subr.mxu0 0.0
        %2052 = vmatpush2.msra.mxu0 0.0
        %2053 = vmatprep.subr.mxu0 0.0
        %2054 = vmatpush2.msra.mxu0 0.0
        %2055 = vmatprep.subr.mxu0 0.0
        %2056 = vmatpush2.msra.mxu0 0.0
        %2057 = vmatprep.subr.mxu0 0.0
        %2058 = vmatpush2.msra.mxu0 0.0
        %2059 = vmatprep.mubr.f32.mxu0 0.0
        %2060 = vmatmul.mubr.f32.gmra.mxu0 %v1993
        %v2061 = vpop.f32.mrf.mxu0
        %v2062 = vadd.f32 0.0, %v2061
        %v2063 = vpop.f32.mrf.mxu0
        %2064 = vdwg.mxu0
        %v2065 = vmul.f32 %v1989, %v2062
        %v2067 = vsel %vm604, %v2065, 0
        %2069 = vmatprep.subr.mxu0 0.0
        %2070 = vmatpush1.msra.mxu0 0.0
        %2071 = vmatprep.subr.mxu0 0.0
        %2072 = vmatpush1.msra.mxu0 0.0
        %2073 = vmatprep.subr.mxu0 0.0
        %2074 = vmatpush1.msra.mxu0 0.0
        %2075 = vmatprep.subr.mxu0 0.0
        %2076 = vmatpush1.msra.mxu0 0.0
        %2077 = vmatprep.subr.mxu0 0.0
        %2078 = vmatpush1.msra.mxu0 0.0
        %2079 = vmatprep.subr.mxu0 0.0
        %2080 = vmatpush1.msra.mxu0 0.0
        %2081 = vmatprep.subr.mxu0 0.0
        %2082 = vmatpush1.msra.mxu0 0.0
        %2083 = vmatprep.subr.mxu0 0.0
        %2084 = vmatpush1.msra.mxu0 0.0
        %2085 = vmatprep.subr.mxu0 0.0
        %2086 = vmatpush1.msra.mxu0 0.0
        %2087 = vmatprep.subr.mxu0 0.0
        %2088 = vmatpush1.msra.mxu0 0.0
        %2089 = vmatprep.subr.mxu0 0.0
        %2090 = vmatpush1.msra.mxu0 0.0
        %2091 = vmatprep.subr.mxu0 0.0
        %2092 = vmatpush1.msra.mxu0 0.0
        %2093 = vmatprep.subr.mxu0 0.0
        %2094 = vmatpush1.msra.mxu0 %v595
        %2095 = vmatprep.subr.mxu0 0.0
        %2096 = vmatpush1.msra.mxu0 %v594
        %2097 = vmatprep.subr.mxu0 0.0
        %2098 = vmatpush1.msra.mxu0 %v593
        %2099 = vmatprep.subr.mxu0 0.0
        %2100 = vmatpush1.msra.mxu0 %v592
        %2101 = vmatprep.subr.mxu0 0.0
        %2102 = vmatpush2.msra.mxu0 0.0
        %2103 = vmatprep.subr.mxu0 0.0
        %2104 = vmatpush2.msra.mxu0 0.0
        %2105 = vmatprep.subr.mxu0 0.0
        %2106 = vmatpush2.msra.mxu0 0.0
        %2107 = vmatprep.subr.mxu0 0.0
        %2108 = vmatpush2.msra.mxu0 0.0
        %2109 = vmatprep.subr.mxu0 0.0
        %2110 = vmatpush2.msra.mxu0 0.0
        %2111 = vmatprep.subr.mxu0 0.0
        %2112 = vmatpush2.msra.mxu0 0.0
        %2113 = vmatprep.subr.mxu0 0.0
        %2114 = vmatpush2.msra.mxu0 0.0
        %2115 = vmatprep.subr.mxu0 0.0
        %2116 = vmatpush2.msra.mxu0 0.0
        %2117 = vmatprep.subr.mxu0 0.0
        %2118 = vmatpush2.msra.mxu0 0.0
        %2119 = vmatprep.subr.mxu0 0.0
        %2120 = vmatpush2.msra.mxu0 0.0
        %2121 = vmatprep.subr.mxu0 0.0
        %2122 = vmatpush2.msra.mxu0 0.0
        %2123 = vmatprep.subr.mxu0 0.0
        %2124 = vmatpush2.msra.mxu0 0.0
        %2125 = vmatprep.subr.mxu0 0.0
        %2126 = vmatpush2.msra.mxu0 0.0
        %2127 = vmatprep.subr.mxu0 0.0
        %2128 = vmatpush2.msra.mxu0 0.0
        %2129 = vmatprep.subr.mxu0 0.0
        %2130 = vmatpush2.msra.mxu0 0.0
        %2131 = vmatprep.subr.mxu0 0.0
        %2132 = vmatpush2.msra.mxu0 0.0
        %2133 = vmatprep.mubr.f32.mxu0 0.0
        %2134 = vmatmul.mubr.f32.gmra.mxu0 %v2067
        %v2135 = vpop.f32.mrf.mxu0
        %v2136 = vadd.f32 0.0, %v2135
        %v2137 = vpop.f32.mrf.mxu0
        %2138 = vdwg.mxu0
        %2140 = vrot.lane.b32.xlu0 %v2136, 32
        %v2141 = vpop.permute.xlu0 %2140
        %v2143 = vadd.f32 %v1989, %v2141
        %v2144 = vadd.f32 %v1991, %v2141
        %v2145 = vadd.f32 %v2143, %v837
        %v2146 = vadd.f32 %v2144, %v837
        %v2147 = vxor.u32 %v2145, 2147483648
        %v2148 = vmul.f32 %v2147, 1.442695
        %v2149 = vpow.pop %v2148
        %v2150 = vadd.f32 %v2149, 1.0
        %v2151 = vrcp.pop %v2150
        %v2152 = vmul.f32 1.0, %v2151
        %v2153 = vtanh.pop %v2146
        %2155 = vrot.lane.b32.xlu0 %v1889, 64
        %v2156 = vpop.permute.xlu0 %2155
        %v2158 = vmul.f32 %v2152, %v2156
        %2160 = vrot.lane.b32.xlu0 %v2153, 32
        %v2161 = vpop.permute.xlu0 %2160
        %v2163 = vmul.f32 %v2152, %v2161
        %2165 = vrot.lane.b32.xlu0 %v2163, 32
        %v2166 = vpop.permute.xlu0 %2165
        %v2168 = vadd.f32 %v2158, %v2166
        %v2169 = vtanh.pop %v2168
        %2171 = vrot.lane.b32.xlu0 %v2169, 32
        %v2172 = vpop.permute.xlu0 %2171
        %v2174 = vmul.f32 %v2152, %v2172
        %2175 = vrot.lane.b32.xlu0 %v1870, 96
        %v2176 = vpop.permute.xlu0 %2175
        %v2178 = vsub.f32 %v2174, %v2176
        %v2180 = vrot.slane %v2178, 4
        %v2181 = vrot.slane %v2178, 5
        %2182 = vrot.lane.b32.xlu0 %v2180, 32
        %v2183 = vpop.permute.xlu0 %2182
        %2184 = vrot.lane.b32.xlu0 %v2181, 32
        %v2185 = vpop.permute.xlu0 %2184
        %v2188 = vmul.f32 %v876, %v2183
        %v2189 = vmul.f32 %v881, %v2185
        %v2192 = vrot.slane %v2188, 4
        %v2193 = vrot.slane %v2189, 3
        %v2194 = vsel %vm602, %v2193, %v2192
        %v2196 = vadd.f32 %v1870, %v2194
        %v2197 = vsub.f32 %v2168, %v2156
        %v2199 = vrot.slane %v2197, 4
        %v2200 = vrot.slane %v2197, 5
        %2201 = vrot.lane.b32.xlu0 %v2199, 64
        %v2202 = vpop.permute.xlu0 %2201
        %2203 = vrot.lane.b32.xlu0 %v2200, 64
        %v2204 = vpop.permute.xlu0 %2203
        %v2207 = vmul.f32 %v876, %v2202
        %v2208 = vmul.f32 %v881, %v2204
        %v2211 = vrot.slane %v2207, 4
        %v2212 = vrot.slane %v2208, 3
        %v2213 = vsel %vm602, %v2212, %v2211
        %v2215 = vadd.f32 %v1889, %v2213
        %v2218 = vunpack.c.l.s4 1966171168
        %v2219 = vunpack.c.0.s8 %v2218
        %v2220 = vlaneseq
        %v2221 = vshrl.u32 %v2220, 7
        %v2222 = vsub.s32 %v2219, %v2221
        %v2223 = vrot.slane %v2196, %v2222
        %v2224 = vcombine.high %v2223, %v2223
        %v2226 = vunpack.c.l.s4 1966171168
        %v2227 = vunpack.c.0.s8 %v2226
        %v2228 = vlaneseq
        %v2229 = vshrl.u32 %v2228, 7
        %v2230 = vsub.s32 %v2227, %v2229
        %v2231 = vrot.slane %v2223, %v2230
        %v2233 = vunpack.c.l.s4 1966171168
        %v2234 = vunpack.c.0.s8 %v2233
        %v2235 = vlaneseq
        %v2236 = vshrl.u32 %v2235, 7
        %v2237 = vsub.s32 %v2234, %v2236
        %v2238 = vrot.slane %v2224, %v2237
        %2241 = vst.msk [vmem:[%s551 + $0x4] sm:$0x1] %vm941, %v2231
        %2242 = vst.msk [vmem:[%s551 + $0xc] sm:$0x1] %vm941, %v2238
        %v2243 = vrot.slane %v576, 5
        %v2244 = vrot.slane %v577, 4
        %v2245 = vsel %vm602, %v2244, %v2243
        %v2246 = vsel %vm604, %v2245, 0
        %2248 = vmatprep.subr.mxu0 0.0
        %2249 = vmatpush1.msra.mxu0 0.0
        %2250 = vmatprep.subr.mxu0 0.0
        %2251 = vmatpush1.msra.mxu0 0.0
        %2252 = vmatprep.subr.mxu0 0.0
        %2253 = vmatpush1.msra.mxu0 0.0
        %2254 = vmatprep.subr.mxu0 0.0
        %2255 = vmatpush1.msra.mxu0 0.0
        %2256 = vmatprep.subr.mxu0 0.0
        %2257 = vmatpush1.msra.mxu0 0.0
        %2258 = vmatprep.subr.mxu0 0.0
        %2259 = vmatpush1.msra.mxu0 0.0
        %2260 = vmatprep.subr.mxu0 0.0
        %2261 = vmatpush1.msra.mxu0 0.0
        %2262 = vmatprep.subr.mxu0 0.0
        %2263 = vmatpush1.msra.mxu0 0.0
        %2264 = vmatprep.subr.mxu0 0.0
        %2265 = vmatpush1.msra.mxu0 0.0
        %2266 = vmatprep.subr.mxu0 0.0
        %2267 = vmatpush1.msra.mxu0 0.0
        %2268 = vmatprep.subr.mxu0 0.0
        %2269 = vmatpush1.msra.mxu0 0.0
        %2270 = vmatprep.subr.mxu0 0.0
        %2271 = vmatpush1.msra.mxu0 0.0
        %2272 = vmatprep.subr.mxu0 %v587
        %2273 = vmatpush1.msra.mxu0 %v586
        %2274 = vmatprep.subr.mxu0 %v585
        %2275 = vmatpush1.msra.mxu0 %v584
        %2276 = vmatprep.subr.mxu0 %v583
        %2277 = vmatpush1.msra.mxu0 %v582
        %2278 = vmatprep.subr.mxu0 %v581
        %2279 = vmatpush1.msra.mxu0 %v580
        %2280 = vmatprep.subr.mxu0 0.0
        %2281 = vmatpush2.msra.mxu0 0.0
        %2282 = vmatprep.subr.mxu0 0.0
        %2283 = vmatpush2.msra.mxu0 0.0
        %2284 = vmatprep.subr.mxu0 0.0
        %2285 = vmatpush2.msra.mxu0 0.0
        %2286 = vmatprep.subr.mxu0 0.0
        %2287 = vmatpush2.msra.mxu0 0.0
        %2288 = vmatprep.subr.mxu0 0.0
        %2289 = vmatpush2.msra.mxu0 0.0
        %2290 = vmatprep.subr.mxu0 0.0
        %2291 = vmatpush2.msra.mxu0 0.0
        %2292 = vmatprep.subr.mxu0 0.0
        %2293 = vmatpush2.msra.mxu0 0.0
        %2294 = vmatprep.subr.mxu0 0.0
        %2295 = vmatpush2.msra.mxu0 0.0
        %2296 = vmatprep.subr.mxu0 0.0
        %2297 = vmatpush2.msra.mxu0 0.0
        %2298 = vmatprep.subr.mxu0 0.0
        %2299 = vmatpush2.msra.mxu0 0.0
        %2300 = vmatprep.subr.mxu0 0.0
        %2301 = vmatpush2.msra.mxu0 0.0
        %2302 = vmatprep.subr.mxu0 0.0
        %2303 = vmatpush2.msra.mxu0 0.0
        %2304 = vmatprep.subr.mxu0 0.0
        %2305 = vmatpush2.msra.mxu0 0.0
        %2306 = vmatprep.subr.mxu0 0.0
        %2307 = vmatpush2.msra.mxu0 0.0
        %2308 = vmatprep.subr.mxu0 0.0
        %2309 = vmatpush2.msra.mxu0 0.0
        %2310 = vmatprep.subr.mxu0 0.0
        %2311 = vmatpush2.msra.mxu0 0.0
        %2312 = vmatprep.mubr.f32.mxu0 0.0
        %2313 = vmatmul.mubr.f32.gmra.mxu0 %v2246
        %v2314 = vpop.f32.mrf.mxu0
        %v2315 = vadd.f32 0.0, %v2314
        %v2316 = vpop.f32.mrf.mxu0
        %v2317 = vadd.f32 0.0, %v2316
        %2318 = vdwg.mxu0
        %v2319 = vsel %vm604, %v2196, 0
        %2321 = vmatprep.subr.mxu0 0.0
        %2322 = vmatpush1.msra.mxu0 0.0
        %2323 = vmatprep.subr.mxu0 0.0
        %2324 = vmatpush1.msra.mxu0 0.0
        %2325 = vmatprep.subr.mxu0 0.0
        %2326 = vmatpush1.msra.mxu0 0.0
        %2327 = vmatprep.subr.mxu0 0.0
        %2328 = vmatpush1.msra.mxu0 0.0
        %2329 = vmatprep.subr.mxu0 0.0
        %2330 = vmatpush1.msra.mxu0 0.0
        %2331 = vmatprep.subr.mxu0 0.0
        %2332 = vmatpush1.msra.mxu0 0.0
        %2333 = vmatprep.subr.mxu0 0.0
        %2334 = vmatpush1.msra.mxu0 0.0
        %2335 = vmatprep.subr.mxu0 0.0
        %2336 = vmatpush1.msra.mxu0 0.0
        %2337 = vmatprep.subr.mxu0 0.0
        %2338 = vmatpush1.msra.mxu0 0.0
        %2339 = vmatprep.subr.mxu0 0.0
        %2340 = vmatpush1.msra.mxu0 0.0
        %2341 = vmatprep.subr.mxu0 0.0
        %2342 = vmatpush1.msra.mxu0 0.0
        %2343 = vmatprep.subr.mxu0 0.0
        %2344 = vmatpush1.msra.mxu0 0.0
        %2345 = vmatprep.subr.mxu0 0.0
        %2346 = vmatpush1.msra.mxu0 %v591
        %2347 = vmatprep.subr.mxu0 0.0
        %2348 = vmatpush1.msra.mxu0 %v590
        %2349 = vmatprep.subr.mxu0 0.0
        %2350 = vmatpush1.msra.mxu0 %v589
        %2351 = vmatprep.subr.mxu0 0.0
        %2352 = vmatpush1.msra.mxu0 %v588
        %2353 = vmatprep.subr.mxu0 0.0
        %2354 = vmatpush2.msra.mxu0 0.0
        %2355 = vmatprep.subr.mxu0 0.0
        %2356 = vmatpush2.msra.mxu0 0.0
        %2357 = vmatprep.subr.mxu0 0.0
        %2358 = vmatpush2.msra.mxu0 0.0
        %2359 = vmatprep.subr.mxu0 0.0
        %2360 = vmatpush2.msra.mxu0 0.0
        %2361 = vmatprep.subr.mxu0 0.0
        %2362 = vmatpush2.msra.mxu0 0.0
        %2363 = vmatprep.subr.mxu0 0.0
        %2364 = vmatpush2.msra.mxu0 0.0
        %2365 = vmatprep.subr.mxu0 0.0
        %2366 = vmatpush2.msra.mxu0 0.0
        %2367 = vmatprep.subr.mxu0 0.0
        %2368 = vmatpush2.msra.mxu0 0.0
        %2369 = vmatprep.subr.mxu0 0.0
        %2370 = vmatpush2.msra.mxu0 0.0
        %2371 = vmatprep.subr.mxu0 0.0
        %2372 = vmatpush2.msra.mxu0 0.0
        %2373 = vmatprep.subr.mxu0 0.0
        %2374 = vmatpush2.msra.mxu0 0.0
        %2375 = vmatprep.subr.mxu0 0.0
        %2376 = vmatpush2.msra.mxu0 0.0
        %2377 = vmatprep.subr.mxu0 0.0
        %2378 = vmatpush2.msra.mxu0 0.0
        %2379 = vmatprep.subr.mxu0 0.0
        %2380 = vmatpush2.msra.mxu0 0.0
        %2381 = vmatprep.subr.mxu0 0.0
        %2382 = vmatpush2.msra.mxu0 0.0
        %2383 = vmatprep.subr.mxu0 0.0
        %2384 = vmatpush2.msra.mxu0 0.0
        %2385 = vmatprep.mubr.f32.mxu0 0.0
        %2386 = vmatmul.mubr.f32.gmra.mxu0 %v2319
        %v2387 = vpop.f32.mrf.mxu0
        %v2388 = vadd.f32 0.0, %v2387
        %v2389 = vpop.f32.mrf.mxu0
        %2390 = vdwg.mxu0
        %v2391 = vmul.f32 %v2315, %v2388
        %v2393 = vsel %vm604, %v2391, 0
        %2395 = vmatprep.subr.mxu0 0.0
        %2396 = vmatpush1.msra.mxu0 0.0
        %2397 = vmatprep.subr.mxu0 0.0
        %2398 = vmatpush1.msra.mxu0 0.0
        %2399 = vmatprep.subr.mxu0 0.0
        %2400 = vmatpush1.msra.mxu0 0.0
        %2401 = vmatprep.subr.mxu0 0.0
        %2402 = vmatpush1.msra.mxu0 0.0
        %2403 = vmatprep.subr.mxu0 0.0
        %2404 = vmatpush1.msra.mxu0 0.0
        %2405 = vmatprep.subr.mxu0 0.0
        %2406 = vmatpush1.msra.mxu0 0.0
        %2407 = vmatprep.subr.mxu0 0.0
        %2408 = vmatpush1.msra.mxu0 0.0
        %2409 = vmatprep.subr.mxu0 0.0
        %2410 = vmatpush1.msra.mxu0 0.0
        %2411 = vmatprep.subr.mxu0 0.0
        %2412 = vmatpush1.msra.mxu0 0.0
        %2413 = vmatprep.subr.mxu0 0.0
        %2414 = vmatpush1.msra.mxu0 0.0
        %2415 = vmatprep.subr.mxu0 0.0
        %2416 = vmatpush1.msra.mxu0 0.0
        %2417 = vmatprep.subr.mxu0 0.0
        %2418 = vmatpush1.msra.mxu0 0.0
        %2419 = vmatprep.subr.mxu0 0.0
        %2420 = vmatpush1.msra.mxu0 %v595
        %2421 = vmatprep.subr.mxu0 0.0
        %2422 = vmatpush1.msra.mxu0 %v594
        %2423 = vmatprep.subr.mxu0 0.0
        %2424 = vmatpush1.msra.mxu0 %v593
        %2425 = vmatprep.subr.mxu0 0.0
        %2426 = vmatpush1.msra.mxu0 %v592
        %2427 = vmatprep.subr.mxu0 0.0
        %2428 = vmatpush2.msra.mxu0 0.0
        %2429 = vmatprep.subr.mxu0 0.0
        %2430 = vmatpush2.msra.mxu0 0.0
        %2431 = vmatprep.subr.mxu0 0.0
        %2432 = vmatpush2.msra.mxu0 0.0
        %2433 = vmatprep.subr.mxu0 0.0
        %2434 = vmatpush2.msra.mxu0 0.0
        %2435 = vmatprep.subr.mxu0 0.0
        %2436 = vmatpush2.msra.mxu0 0.0
        %2437 = vmatprep.subr.mxu0 0.0
        %2438 = vmatpush2.msra.mxu0 0.0
        %2439 = vmatprep.subr.mxu0 0.0
        %2440 = vmatpush2.msra.mxu0 0.0
        %2441 = vmatprep.subr.mxu0 0.0
        %2442 = vmatpush2.msra.mxu0 0.0
        %2443 = vmatprep.subr.mxu0 0.0
        %2444 = vmatpush2.msra.mxu0 0.0
        %2445 = vmatprep.subr.mxu0 0.0
        %2446 = vmatpush2.msra.mxu0 0.0
        %2447 = vmatprep.subr.mxu0 0.0
        %2448 = vmatpush2.msra.mxu0 0.0
        %2449 = vmatprep.subr.mxu0 0.0
        %2450 = vmatpush2.msra.mxu0 0.0
        %2451 = vmatprep.subr.mxu0 0.0
        %2452 = vmatpush2.msra.mxu0 0.0
        %2453 = vmatprep.subr.mxu0 0.0
        %2454 = vmatpush2.msra.mxu0 0.0
        %2455 = vmatprep.subr.mxu0 0.0
        %2456 = vmatpush2.msra.mxu0 0.0
        %2457 = vmatprep.subr.mxu0 0.0
        %2458 = vmatpush2.msra.mxu0 0.0
        %2459 = vmatprep.mubr.f32.mxu0 0.0
        %2460 = vmatmul.mubr.f32.gmra.mxu0 %v2393
        %v2461 = vpop.f32.mrf.mxu0
        %v2462 = vadd.f32 0.0, %v2461
        %v2463 = vpop.f32.mrf.mxu0
        %2464 = vdwg.mxu0
        %2466 = vrot.lane.b32.xlu0 %v2462, 32
        %v2467 = vpop.permute.xlu0 %2466
        %v2469 = vadd.f32 %v2315, %v2467
        %v2470 = vadd.f32 %v2317, %v2467
        %v2471 = vadd.f32 %v2469, %v837
        %v2472 = vadd.f32 %v2470, %v837
        %v2473 = vxor.u32 %v2471, 2147483648
        %v2474 = vmul.f32 %v2473, 1.442695
        %v2475 = vpow.pop %v2474
        %v2476 = vadd.f32 %v2475, 1.0
        %v2477 = vrcp.pop %v2476
        %v2478 = vmul.f32 1.0, %v2477
        %v2479 = vtanh.pop %v2472
        %2481 = vrot.lane.b32.xlu0 %v2215, 64
        %v2482 = vpop.permute.xlu0 %2481
        %v2484 = vmul.f32 %v2478, %v2482
        %2486 = vrot.lane.b32.xlu0 %v2479, 32
        %v2487 = vpop.permute.xlu0 %2486
        %v2489 = vmul.f32 %v2478, %v2487
        %2491 = vrot.lane.b32.xlu0 %v2489, 32
        %v2492 = vpop.permute.xlu0 %2491
        %v2494 = vadd.f32 %v2484, %v2492
        %v2495 = vtanh.pop %v2494
        %2497 = vrot.lane.b32.xlu0 %v2495, 32
        %v2498 = vpop.permute.xlu0 %2497
        %v2500 = vmul.f32 %v2478, %v2498
        %2501 = vrot.lane.b32.xlu0 %v2196, 96
        %v2502 = vpop.permute.xlu0 %2501
        %v2504 = vsub.f32 %v2500, %v2502
        %v2506 = vrot.slane %v2504, 3
        %v2507 = vrot.slane %v2504, 4
        %2508 = vrot.lane.b32.xlu0 %v2506, 32
        %v2509 = vpop.permute.xlu0 %2508
        %2510 = vrot.lane.b32.xlu0 %v2507, 32
        %v2511 = vpop.permute.xlu0 %2510
        %v2514 = vmul.f32 %v876, %v2509
        %v2515 = vmul.f32 %v881, %v2511
        %v2518 = vrot.slane %v2514, 5
        %v2519 = vrot.slane %v2515, 4
        %v2520 = vsel %vm602, %v2519, %v2518
        %v2522 = vadd.f32 %v2196, %v2520
        %v2523 = vsub.f32 %v2494, %v2482
        %v2525 = vrot.slane %v2523, 3
        %v2526 = vrot.slane %v2523, 4
        %2527 = vrot.lane.b32.xlu0 %v2525, 64
        %v2528 = vpop.permute.xlu0 %2527
        %2529 = vrot.lane.b32.xlu0 %v2526, 64
        %v2530 = vpop.permute.xlu0 %2529
        %v2533 = vmul.f32 %v876, %v2528
        %v2534 = vmul.f32 %v881, %v2530
        %v2537 = vrot.slane %v2533, 5
        %v2538 = vrot.slane %v2534, 4
        %v2539 = vsel %vm602, %v2538, %v2537
        %v2541 = vadd.f32 %v2215, %v2539
        %v2544 = vunpack.c.l.s4 1966171168
        %v2545 = vunpack.c.0.s8 %v2544
        %v2546 = vlaneseq
        %v2547 = vshrl.u32 %v2546, 7
        %v2548 = vsub.s32 %v2545, %v2547
        %v2549 = vrot.slane %v2522, %v2548
        %v2550 = vcombine.high %v2549, %v2549
        %v2552 = vunpack.c.l.s4 1966171168
        %v2553 = vunpack.c.0.s8 %v2552
        %v2554 = vlaneseq
        %v2555 = vshrl.u32 %v2554, 7
        %v2556 = vsub.s32 %v2553, %v2555
        %v2557 = vrot.slane %v2549, %v2556
        %v2559 = vunpack.c.l.s4 1966171168
        %v2560 = vunpack.c.0.s8 %v2559
        %v2561 = vlaneseq
        %v2562 = vshrl.u32 %v2561, 7
        %v2563 = vsub.s32 %v2560, %v2562
        %v2564 = vrot.slane %v2550, %v2563
        %2567 = vst.msk [vmem:[%s551 + $0x5] sm:$0x1] %vm941, %v2557
        %2568 = vst.msk [vmem:[%s551 + $0xd] sm:$0x1] %vm941, %v2564
        %v2569 = vrot.slane %v576, 6
        %v2570 = vrot.slane %v577, 5
        %v2571 = vsel %vm602, %v2570, %v2569
        %v2572 = vsel %vm604, %v2571, 0
        %2574 = vmatprep.subr.mxu0 0.0
        %2575 = vmatpush1.msra.mxu0 0.0
        %2576 = vmatprep.subr.mxu0 0.0
        %2577 = vmatpush1.msra.mxu0 0.0
        %2578 = vmatprep.subr.mxu0 0.0
        %2579 = vmatpush1.msra.mxu0 0.0
        %2580 = vmatprep.subr.mxu0 0.0
        %2581 = vmatpush1.msra.mxu0 0.0
        %2582 = vmatprep.subr.mxu0 0.0
        %2583 = vmatpush1.msra.mxu0 0.0
        %2584 = vmatprep.subr.mxu0 0.0
        %2585 = vmatpush1.msra.mxu0 0.0
        %2586 = vmatprep.subr.mxu0 0.0
        %2587 = vmatpush1.msra.mxu0 0.0
        %2588 = vmatprep.subr.mxu0 0.0
        %2589 = vmatpush1.msra.mxu0 0.0
        %2590 = vmatprep.subr.mxu0 0.0
        %2591 = vmatpush1.msra.mxu0 0.0
        %2592 = vmatprep.subr.mxu0 0.0
        %2593 = vmatpush1.msra.mxu0 0.0
        %2594 = vmatprep.subr.mxu0 0.0
        %2595 = vmatpush1.msra.mxu0 0.0
        %2596 = vmatprep.subr.mxu0 0.0
        %2597 = vmatpush1.msra.mxu0 0.0
        %2598 = vmatprep.subr.mxu0 %v587
        %2599 = vmatpush1.msra.mxu0 %v586
        %2600 = vmatprep.subr.mxu0 %v585
        %2601 = vmatpush1.msra.mxu0 %v584
        %2602 = vmatprep.subr.mxu0 %v583
        %2603 = vmatpush1.msra.mxu0 %v582
        %2604 = vmatprep.subr.mxu0 %v581
        %2605 = vmatpush1.msra.mxu0 %v580
        %2606 = vmatprep.subr.mxu0 0.0
        %2607 = vmatpush2.msra.mxu0 0.0
        %2608 = vmatprep.subr.mxu0 0.0
        %2609 = vmatpush2.msra.mxu0 0.0
        %2610 = vmatprep.subr.mxu0 0.0
        %2611 = vmatpush2.msra.mxu0 0.0
        %2612 = vmatprep.subr.mxu0 0.0
        %2613 = vmatpush2.msra.mxu0 0.0
        %2614 = vmatprep.subr.mxu0 0.0
        %2615 = vmatpush2.msra.mxu0 0.0
        %2616 = vmatprep.subr.mxu0 0.0
        %2617 = vmatpush2.msra.mxu0 0.0
        %2618 = vmatprep.subr.mxu0 0.0
        %2619 = vmatpush2.msra.mxu0 0.0
        %2620 = vmatprep.subr.mxu0 0.0
        %2621 = vmatpush2.msra.mxu0 0.0
        %2622 = vmatprep.subr.mxu0 0.0
        %2623 = vmatpush2.msra.mxu0 0.0
        %2624 = vmatprep.subr.mxu0 0.0
        %2625 = vmatpush2.msra.mxu0 0.0
        %2626 = vmatprep.subr.mxu0 0.0
        %2627 = vmatpush2.msra.mxu0 0.0
        %2628 = vmatprep.subr.mxu0 0.0
        %2629 = vmatpush2.msra.mxu0 0.0
        %2630 = vmatprep.subr.mxu0 0.0
        %2631 = vmatpush2.msra.mxu0 0.0
        %2632 = vmatprep.subr.mxu0 0.0
        %2633 = vmatpush2.msra.mxu0 0.0
        %2634 = vmatprep.subr.mxu0 0.0
        %2635 = vmatpush2.msra.mxu0 0.0
        %2636 = vmatprep.subr.mxu0 0.0
        %2637 = vmatpush2.msra.mxu0 0.0
        %2638 = vmatprep.mubr.f32.mxu0 0.0
        %2639 = vmatmul.mubr.f32.gmra.mxu0 %v2572
        %v2640 = vpop.f32.mrf.mxu0
        %v2641 = vadd.f32 0.0, %v2640
        %v2642 = vpop.f32.mrf.mxu0
        %v2643 = vadd.f32 0.0, %v2642
        %2644 = vdwg.mxu0
        %v2645 = vsel %vm604, %v2522, 0
        %2647 = vmatprep.subr.mxu0 0.0
        %2648 = vmatpush1.msra.mxu0 0.0
        %2649 = vmatprep.subr.mxu0 0.0
        %2650 = vmatpush1.msra.mxu0 0.0
        %2651 = vmatprep.subr.mxu0 0.0
        %2652 = vmatpush1.msra.mxu0 0.0
        %2653 = vmatprep.subr.mxu0 0.0
        %2654 = vmatpush1.msra.mxu0 0.0
        %2655 = vmatprep.subr.mxu0 0.0
        %2656 = vmatpush1.msra.mxu0 0.0
        %2657 = vmatprep.subr.mxu0 0.0
        %2658 = vmatpush1.msra.mxu0 0.0
        %2659 = vmatprep.subr.mxu0 0.0
        %2660 = vmatpush1.msra.mxu0 0.0
        %2661 = vmatprep.subr.mxu0 0.0
        %2662 = vmatpush1.msra.mxu0 0.0
        %2663 = vmatprep.subr.mxu0 0.0
        %2664 = vmatpush1.msra.mxu0 0.0
        %2665 = vmatprep.subr.mxu0 0.0
        %2666 = vmatpush1.msra.mxu0 0.0
        %2667 = vmatprep.subr.mxu0 0.0
        %2668 = vmatpush1.msra.mxu0 0.0
        %2669 = vmatprep.subr.mxu0 0.0
        %2670 = vmatpush1.msra.mxu0 0.0
        %2671 = vmatprep.subr.mxu0 0.0
        %2672 = vmatpush1.msra.mxu0 %v591
        %2673 = vmatprep.subr.mxu0 0.0
        %2674 = vmatpush1.msra.mxu0 %v590
        %2675 = vmatprep.subr.mxu0 0.0
        %2676 = vmatpush1.msra.mxu0 %v589
        %2677 = vmatprep.subr.mxu0 0.0
        %2678 = vmatpush1.msra.mxu0 %v588
        %2679 = vmatprep.subr.mxu0 0.0
        %2680 = vmatpush2.msra.mxu0 0.0
        %2681 = vmatprep.subr.mxu0 0.0
        %2682 = vmatpush2.msra.mxu0 0.0
        %2683 = vmatprep.subr.mxu0 0.0
        %2684 = vmatpush2.msra.mxu0 0.0
        %2685 = vmatprep.subr.mxu0 0.0
        %2686 = vmatpush2.msra.mxu0 0.0
        %2687 = vmatprep.subr.mxu0 0.0
        %2688 = vmatpush2.msra.mxu0 0.0
        %2689 = vmatprep.subr.mxu0 0.0
        %2690 = vmatpush2.msra.mxu0 0.0
        %2691 = vmatprep.subr.mxu0 0.0
        %2692 = vmatpush2.msra.mxu0 0.0
        %2693 = vmatprep.subr.mxu0 0.0
        %2694 = vmatpush2.msra.mxu0 0.0
        %2695 = vmatprep.subr.mxu0 0.0
        %2696 = vmatpush2.msra.mxu0 0.0
        %2697 = vmatprep.subr.mxu0 0.0
        %2698 = vmatpush2.msra.mxu0 0.0
        %2699 = vmatprep.subr.mxu0 0.0
        %2700 = vmatpush2.msra.mxu0 0.0
        %2701 = vmatprep.subr.mxu0 0.0
        %2702 = vmatpush2.msra.mxu0 0.0
        %2703 = vmatprep.subr.mxu0 0.0
        %2704 = vmatpush2.msra.mxu0 0.0
        %2705 = vmatprep.subr.mxu0 0.0
        %2706 = vmatpush2.msra.mxu0 0.0
        %2707 = vmatprep.subr.mxu0 0.0
        %2708 = vmatpush2.msra.mxu0 0.0
        %2709 = vmatprep.subr.mxu0 0.0
        %2710 = vmatpush2.msra.mxu0 0.0
        %2711 = vmatprep.mubr.f32.mxu0 0.0
        %2712 = vmatmul.mubr.f32.gmra.mxu0 %v2645
        %v2713 = vpop.f32.mrf.mxu0
        %v2714 = vadd.f32 0.0, %v2713
        %v2715 = vpop.f32.mrf.mxu0
        %2716 = vdwg.mxu0
        %v2717 = vmul.f32 %v2641, %v2714
        %v2719 = vsel %vm604, %v2717, 0
        %2721 = vmatprep.subr.mxu0 0.0
        %2722 = vmatpush1.msra.mxu0 0.0
        %2723 = vmatprep.subr.mxu0 0.0
        %2724 = vmatpush1.msra.mxu0 0.0
        %2725 = vmatprep.subr.mxu0 0.0
        %2726 = vmatpush1.msra.mxu0 0.0
        %2727 = vmatprep.subr.mxu0 0.0
        %2728 = vmatpush1.msra.mxu0 0.0
        %2729 = vmatprep.subr.mxu0 0.0
        %2730 = vmatpush1.msra.mxu0 0.0
        %2731 = vmatprep.subr.mxu0 0.0
        %2732 = vmatpush1.msra.mxu0 0.0
        %2733 = vmatprep.subr.mxu0 0.0
        %2734 = vmatpush1.msra.mxu0 0.0
        %2735 = vmatprep.subr.mxu0 0.0
        %2736 = vmatpush1.msra.mxu0 0.0
        %2737 = vmatprep.subr.mxu0 0.0
        %2738 = vmatpush1.msra.mxu0 0.0
        %2739 = vmatprep.subr.mxu0 0.0
        %2740 = vmatpush1.msra.mxu0 0.0
        %2741 = vmatprep.subr.mxu0 0.0
        %2742 = vmatpush1.msra.mxu0 0.0
        %2743 = vmatprep.subr.mxu0 0.0
        %2744 = vmatpush1.msra.mxu0 0.0
        %2745 = vmatprep.subr.mxu0 0.0
        %2746 = vmatpush1.msra.mxu0 %v595
        %2747 = vmatprep.subr.mxu0 0.0
        %2748 = vmatpush1.msra.mxu0 %v594
        %2749 = vmatprep.subr.mxu0 0.0
        %2750 = vmatpush1.msra.mxu0 %v593
        %2751 = vmatprep.subr.mxu0 0.0
        %2752 = vmatpush1.msra.mxu0 %v592
        %2753 = vmatprep.subr.mxu0 0.0
        %2754 = vmatpush2.msra.mxu0 0.0
        %2755 = vmatprep.subr.mxu0 0.0
        %2756 = vmatpush2.msra.mxu0 0.0
        %2757 = vmatprep.subr.mxu0 0.0
        %2758 = vmatpush2.msra.mxu0 0.0
        %2759 = vmatprep.subr.mxu0 0.0
        %2760 = vmatpush2.msra.mxu0 0.0
        %2761 = vmatprep.subr.mxu0 0.0
        %2762 = vmatpush2.msra.mxu0 0.0
        %2763 = vmatprep.subr.mxu0 0.0
        %2764 = vmatpush2.msra.mxu0 0.0
        %2765 = vmatprep.subr.mxu0 0.0
        %2766 = vmatpush2.msra.mxu0 0.0
        %2767 = vmatprep.subr.mxu0 0.0
        %2768 = vmatpush2.msra.mxu0 0.0
        %2769 = vmatprep.subr.mxu0 0.0
        %2770 = vmatpush2.msra.mxu0 0.0
        %2771 = vmatprep.subr.mxu0 0.0
        %2772 = vmatpush2.msra.mxu0 0.0
        %2773 = vmatprep.subr.mxu0 0.0
        %2774 = vmatpush2.msra.mxu0 0.0
        %2775 = vmatprep.subr.mxu0 0.0
        %2776 = vmatpush2.msra.mxu0 0.0
        %2777 = vmatprep.subr.mxu0 0.0
        %2778 = vmatpush2.msra.mxu0 0.0
        %2779 = vmatprep.subr.mxu0 0.0
        %2780 = vmatpush2.msra.mxu0 0.0
        %2781 = vmatprep.subr.mxu0 0.0
        %2782 = vmatpush2.msra.mxu0 0.0
        %2783 = vmatprep.subr.mxu0 0.0
        %2784 = vmatpush2.msra.mxu0 0.0
        %2785 = vmatprep.mubr.f32.mxu0 0.0
        %2786 = vmatmul.mubr.f32.gmra.mxu0 %v2719
        %v2787 = vpop.f32.mrf.mxu0
        %v2788 = vadd.f32 0.0, %v2787
        %v2789 = vpop.f32.mrf.mxu0
        %2790 = vdwg.mxu0
        %2792 = vrot.lane.b32.xlu0 %v2788, 32
        %v2793 = vpop.permute.xlu0 %2792
        %v2795 = vadd.f32 %v2641, %v2793
        %v2796 = vadd.f32 %v2643, %v2793
        %v2797 = vadd.f32 %v2795, %v837
        %v2798 = vadd.f32 %v2796, %v837
        %v2799 = vxor.u32 %v2797, 2147483648
        %v2800 = vmul.f32 %v2799, 1.442695
        %v2801 = vpow.pop %v2800
        %v2802 = vadd.f32 %v2801, 1.0
        %v2803 = vrcp.pop %v2802
        %v2804 = vmul.f32 1.0, %v2803
        %v2805 = vtanh.pop %v2798
        %2807 = vrot.lane.b32.xlu0 %v2541, 64
        %v2808 = vpop.permute.xlu0 %2807
        %v2810 = vmul.f32 %v2804, %v2808
        %2812 = vrot.lane.b32.xlu0 %v2805, 32
        %v2813 = vpop.permute.xlu0 %2812
        %v2815 = vmul.f32 %v2804, %v2813
        %2817 = vrot.lane.b32.xlu0 %v2815, 32
        %v2818 = vpop.permute.xlu0 %2817
        %v2820 = vadd.f32 %v2810, %v2818
        %v2821 = vtanh.pop %v2820
        %2823 = vrot.lane.b32.xlu0 %v2821, 32
        %v2824 = vpop.permute.xlu0 %2823
        %v2826 = vmul.f32 %v2804, %v2824
        %2827 = vrot.lane.b32.xlu0 %v2522, 96
        %v2828 = vpop.permute.xlu0 %2827
        %v2830 = vsub.f32 %v2826, %v2828
        %v2832 = vrot.slane %v2830, 2
        %v2833 = vrot.slane %v2830, 3
        %2834 = vrot.lane.b32.xlu0 %v2832, 32
        %v2835 = vpop.permute.xlu0 %2834
        %2836 = vrot.lane.b32.xlu0 %v2833, 32
        %v2837 = vpop.permute.xlu0 %2836
        %v2840 = vmul.f32 %v876, %v2835
        %v2841 = vmul.f32 %v881, %v2837
        %v2844 = vrot.slane %v2840, 6
        %v2845 = vrot.slane %v2841, 5
        %v2846 = vsel %vm602, %v2845, %v2844
        %v2848 = vadd.f32 %v2522, %v2846
        %v2849 = vsub.f32 %v2820, %v2808
        %v2851 = vrot.slane %v2849, 2
        %v2852 = vrot.slane %v2849, 3
        %2853 = vrot.lane.b32.xlu0 %v2851, 64
        %v2854 = vpop.permute.xlu0 %2853
        %2855 = vrot.lane.b32.xlu0 %v2852, 64
        %v2856 = vpop.permute.xlu0 %2855
        %v2859 = vmul.f32 %v876, %v2854
        %v2860 = vmul.f32 %v881, %v2856
        %v2863 = vrot.slane %v2859, 6
        %v2864 = vrot.slane %v2860, 5
        %v2865 = vsel %vm602, %v2864, %v2863
        %v2867 = vadd.f32 %v2541, %v2865
        %v2870 = vunpack.c.l.s4 1966171168
        %v2871 = vunpack.c.0.s8 %v2870
        %v2872 = vlaneseq
        %v2873 = vshrl.u32 %v2872, 7
        %v2874 = vsub.s32 %v2871, %v2873
        %v2875 = vrot.slane %v2848, %v2874
        %v2876 = vcombine.high %v2875, %v2875
        %v2878 = vunpack.c.l.s4 1966171168
        %v2879 = vunpack.c.0.s8 %v2878
        %v2880 = vlaneseq
        %v2881 = vshrl.u32 %v2880, 7
        %v2882 = vsub.s32 %v2879, %v2881
        %v2883 = vrot.slane %v2875, %v2882
        %v2885 = vunpack.c.l.s4 1966171168
        %v2886 = vunpack.c.0.s8 %v2885
        %v2887 = vlaneseq
        %v2888 = vshrl.u32 %v2887, 7
        %v2889 = vsub.s32 %v2886, %v2888
        %v2890 = vrot.slane %v2876, %v2889
        %2893 = vst.msk [vmem:[%s551 + $0x6] sm:$0x1] %vm941, %v2883
        %2894 = vst.msk [vmem:[%s551 + $0xe] sm:$0x1] %vm941, %v2890
        %v2895 = vrot.slane %v576, 7
        %v2896 = vrot.slane %v577, 6
        %v2897 = vsel %vm602, %v2896, %v2895
        %v2898 = vsel %vm604, %v2897, 0
        %2900 = vmatprep.subr.mxu0 0.0
        %2901 = vmatpush1.msra.mxu0 0.0
        %2902 = vmatprep.subr.mxu0 0.0
        %2903 = vmatpush1.msra.mxu0 0.0
        %2904 = vmatprep.subr.mxu0 0.0
        %2905 = vmatpush1.msra.mxu0 0.0
        %2906 = vmatprep.subr.mxu0 0.0
        %2907 = vmatpush1.msra.mxu0 0.0
        %2908 = vmatprep.subr.mxu0 0.0
        %2909 = vmatpush1.msra.mxu0 0.0
        %2910 = vmatprep.subr.mxu0 0.0
        %2911 = vmatpush1.msra.mxu0 0.0
        %2912 = vmatprep.subr.mxu0 0.0
        %2913 = vmatpush1.msra.mxu0 0.0
        %2914 = vmatprep.subr.mxu0 0.0
        %2915 = vmatpush1.msra.mxu0 0.0
        %2916 = vmatprep.subr.mxu0 0.0
        %2917 = vmatpush1.msra.mxu0 0.0
        %2918 = vmatprep.subr.mxu0 0.0
        %2919 = vmatpush1.msra.mxu0 0.0
        %2920 = vmatprep.subr.mxu0 0.0
        %2921 = vmatpush1.msra.mxu0 0.0
        %2922 = vmatprep.subr.mxu0 0.0
        %2923 = vmatpush1.msra.mxu0 0.0
        %2924 = vmatprep.subr.mxu0 %v587
        %2925 = vmatpush1.msra.mxu0 %v586
        %2926 = vmatprep.subr.mxu0 %v585
        %2927 = vmatpush1.msra.mxu0 %v584
        %2928 = vmatprep.subr.mxu0 %v583
        %2929 = vmatpush1.msra.mxu0 %v582
        %2930 = vmatprep.subr.mxu0 %v581
        %2931 = vmatpush1.msra.mxu0 %v580
        %2932 = vmatprep.subr.mxu0 0.0
        %2933 = vmatpush2.msra.mxu0 0.0
        %2934 = vmatprep.subr.mxu0 0.0
        %2935 = vmatpush2.msra.mxu0 0.0
        %2936 = vmatprep.subr.mxu0 0.0
        %2937 = vmatpush2.msra.mxu0 0.0
        %2938 = vmatprep.subr.mxu0 0.0
        %2939 = vmatpush2.msra.mxu0 0.0
        %2940 = vmatprep.subr.mxu0 0.0
        %2941 = vmatpush2.msra.mxu0 0.0
        %2942 = vmatprep.subr.mxu0 0.0
        %2943 = vmatpush2.msra.mxu0 0.0
        %2944 = vmatprep.subr.mxu0 0.0
        %2945 = vmatpush2.msra.mxu0 0.0
        %2946 = vmatprep.subr.mxu0 0.0
        %2947 = vmatpush2.msra.mxu0 0.0
        %2948 = vmatprep.subr.mxu0 0.0
        %2949 = vmatpush2.msra.mxu0 0.0
        %2950 = vmatprep.subr.mxu0 0.0
        %2951 = vmatpush2.msra.mxu0 0.0
        %2952 = vmatprep.subr.mxu0 0.0
        %2953 = vmatpush2.msra.mxu0 0.0
        %2954 = vmatprep.subr.mxu0 0.0
        %2955 = vmatpush2.msra.mxu0 0.0
        %2956 = vmatprep.subr.mxu0 0.0
        %2957 = vmatpush2.msra.mxu0 0.0
        %2958 = vmatprep.subr.mxu0 0.0
        %2959 = vmatpush2.msra.mxu0 0.0
        %2960 = vmatprep.subr.mxu0 0.0
        %2961 = vmatpush2.msra.mxu0 0.0
        %2962 = vmatprep.subr.mxu0 0.0
        %2963 = vmatpush2.msra.mxu0 0.0
        %2964 = vmatprep.mubr.f32.mxu0 0.0
        %2965 = vmatmul.mubr.f32.gmra.mxu0 %v2898
        %v2966 = vpop.f32.mrf.mxu0
        %v2967 = vadd.f32 0.0, %v2966
        %v2968 = vpop.f32.mrf.mxu0
        %v2969 = vadd.f32 0.0, %v2968
        %2970 = vdwg.mxu0
        %v2971 = vsel %vm604, %v2848, 0
        %2973 = vmatprep.subr.mxu0 0.0
        %2974 = vmatpush1.msra.mxu0 0.0
        %2975 = vmatprep.subr.mxu0 0.0
        %2976 = vmatpush1.msra.mxu0 0.0
        %2977 = vmatprep.subr.mxu0 0.0
        %2978 = vmatpush1.msra.mxu0 0.0
        %2979 = vmatprep.subr.mxu0 0.0
        %2980 = vmatpush1.msra.mxu0 0.0
        %2981 = vmatprep.subr.mxu0 0.0
        %2982 = vmatpush1.msra.mxu0 0.0
        %2983 = vmatprep.subr.mxu0 0.0
        %2984 = vmatpush1.msra.mxu0 0.0
        %2985 = vmatprep.subr.mxu0 0.0
        %2986 = vmatpush1.msra.mxu0 0.0
        %2987 = vmatprep.subr.mxu0 0.0
        %2988 = vmatpush1.msra.mxu0 0.0
        %2989 = vmatprep.subr.mxu0 0.0
        %2990 = vmatpush1.msra.mxu0 0.0
        %2991 = vmatprep.subr.mxu0 0.0
        %2992 = vmatpush1.msra.mxu0 0.0
        %2993 = vmatprep.subr.mxu0 0.0
        %2994 = vmatpush1.msra.mxu0 0.0
        %2995 = vmatprep.subr.mxu0 0.0
        %2996 = vmatpush1.msra.mxu0 0.0
        %2997 = vmatprep.subr.mxu0 0.0
        %2998 = vmatpush1.msra.mxu0 %v591
        %2999 = vmatprep.subr.mxu0 0.0
        %3000 = vmatpush1.msra.mxu0 %v590
        %3001 = vmatprep.subr.mxu0 0.0
        %3002 = vmatpush1.msra.mxu0 %v589
        %3003 = vmatprep.subr.mxu0 0.0
        %3004 = vmatpush1.msra.mxu0 %v588
        %3005 = vmatprep.subr.mxu0 0.0
        %3006 = vmatpush2.msra.mxu0 0.0
        %3007 = vmatprep.subr.mxu0 0.0
        %3008 = vmatpush2.msra.mxu0 0.0
        %3009 = vmatprep.subr.mxu0 0.0
        %3010 = vmatpush2.msra.mxu0 0.0
        %3011 = vmatprep.subr.mxu0 0.0
        %3012 = vmatpush2.msra.mxu0 0.0
        %3013 = vmatprep.subr.mxu0 0.0
        %3014 = vmatpush2.msra.mxu0 0.0
        %3015 = vmatprep.subr.mxu0 0.0
        %3016 = vmatpush2.msra.mxu0 0.0
        %3017 = vmatprep.subr.mxu0 0.0
        %3018 = vmatpush2.msra.mxu0 0.0
        %3019 = vmatprep.subr.mxu0 0.0
        %3020 = vmatpush2.msra.mxu0 0.0
        %3021 = vmatprep.subr.mxu0 0.0
        %3022 = vmatpush2.msra.mxu0 0.0
        %3023 = vmatprep.subr.mxu0 0.0
        %3024 = vmatpush2.msra.mxu0 0.0
        %3025 = vmatprep.subr.mxu0 0.0
        %3026 = vmatpush2.msra.mxu0 0.0
        %3027 = vmatprep.subr.mxu0 0.0
        %3028 = vmatpush2.msra.mxu0 0.0
        %3029 = vmatprep.subr.mxu0 0.0
        %3030 = vmatpush2.msra.mxu0 0.0
        %3031 = vmatprep.subr.mxu0 0.0
        %3032 = vmatpush2.msra.mxu0 0.0
        %3033 = vmatprep.subr.mxu0 0.0
        %3034 = vmatpush2.msra.mxu0 0.0
        %3035 = vmatprep.subr.mxu0 0.0
        %3036 = vmatpush2.msra.mxu0 0.0
        %3037 = vmatprep.mubr.f32.mxu0 0.0
        %3038 = vmatmul.mubr.f32.gmra.mxu0 %v2971
        %v3039 = vpop.f32.mrf.mxu0
        %v3040 = vadd.f32 0.0, %v3039
        %v3041 = vpop.f32.mrf.mxu0
        %3042 = vdwg.mxu0
        %v3043 = vmul.f32 %v2967, %v3040
        %v3045 = vsel %vm604, %v3043, 0
        %3047 = vmatprep.subr.mxu0 0.0
        %3048 = vmatpush1.msra.mxu0 0.0
        %3049 = vmatprep.subr.mxu0 0.0
        %3050 = vmatpush1.msra.mxu0 0.0
        %3051 = vmatprep.subr.mxu0 0.0
        %3052 = vmatpush1.msra.mxu0 0.0
        %3053 = vmatprep.subr.mxu0 0.0
        %3054 = vmatpush1.msra.mxu0 0.0
        %3055 = vmatprep.subr.mxu0 0.0
        %3056 = vmatpush1.msra.mxu0 0.0
        %3057 = vmatprep.subr.mxu0 0.0
        %3058 = vmatpush1.msra.mxu0 0.0
        %3059 = vmatprep.subr.mxu0 0.0
        %3060 = vmatpush1.msra.mxu0 0.0
        %3061 = vmatprep.subr.mxu0 0.0
        %3062 = vmatpush1.msra.mxu0 0.0
        %3063 = vmatprep.subr.mxu0 0.0
        %3064 = vmatpush1.msra.mxu0 0.0
        %3065 = vmatprep.subr.mxu0 0.0
        %3066 = vmatpush1.msra.mxu0 0.0
        %3067 = vmatprep.subr.mxu0 0.0
        %3068 = vmatpush1.msra.mxu0 0.0
        %3069 = vmatprep.subr.mxu0 0.0
        %3070 = vmatpush1.msra.mxu0 0.0
        %3071 = vmatprep.subr.mxu0 0.0
        %3072 = vmatpush1.msra.mxu0 %v595
        %3073 = vmatprep.subr.mxu0 0.0
        %3074 = vmatpush1.msra.mxu0 %v594
        %3075 = vmatprep.subr.mxu0 0.0
        %3076 = vmatpush1.msra.mxu0 %v593
        %3077 = vmatprep.subr.mxu0 0.0
        %3078 = vmatpush1.msra.mxu0 %v592
        %3079 = vmatprep.subr.mxu0 0.0
        %3080 = vmatpush2.msra.mxu0 0.0
        %3081 = vmatprep.subr.mxu0 0.0
        %3082 = vmatpush2.msra.mxu0 0.0
        %3083 = vmatprep.subr.mxu0 0.0
        %3084 = vmatpush2.msra.mxu0 0.0
        %3085 = vmatprep.subr.mxu0 0.0
        %3086 = vmatpush2.msra.mxu0 0.0
        %3087 = vmatprep.subr.mxu0 0.0
        %3088 = vmatpush2.msra.mxu0 0.0
        %3089 = vmatprep.subr.mxu0 0.0
        %3090 = vmatpush2.msra.mxu0 0.0
        %3091 = vmatprep.subr.mxu0 0.0
        %3092 = vmatpush2.msra.mxu0 0.0
        %3093 = vmatprep.subr.mxu0 0.0
        %3094 = vmatpush2.msra.mxu0 0.0
        %3095 = vmatprep.subr.mxu0 0.0
        %3096 = vmatpush2.msra.mxu0 0.0
        %3097 = vmatprep.subr.mxu0 0.0
        %3098 = vmatpush2.msra.mxu0 0.0
        %3099 = vmatprep.subr.mxu0 0.0
        %3100 = vmatpush2.msra.mxu0 0.0
        %3101 = vmatprep.subr.mxu0 0.0
        %3102 = vmatpush2.msra.mxu0 0.0
        %3103 = vmatprep.subr.mxu0 0.0
        %3104 = vmatpush2.msra.mxu0 0.0
        %3105 = vmatprep.subr.mxu0 0.0
        %3106 = vmatpush2.msra.mxu0 0.0
        %3107 = vmatprep.subr.mxu0 0.0
        %3108 = vmatpush2.msra.mxu0 0.0
        %3109 = vmatprep.subr.mxu0 0.0
        %3110 = vmatpush2.msra.mxu0 0.0
        %3111 = vmatprep.mubr.f32.mxu0 0.0
        %3112 = vmatmul.mubr.f32.gmra.mxu0 %v3045
        %v3113 = vpop.f32.mrf.mxu0
        %v3114 = vadd.f32 0.0, %v3113
        %v3115 = vpop.f32.mrf.mxu0
        %3116 = vdwg.mxu0
        %3118 = vrot.lane.b32.xlu0 %v3114, 32
        %v3119 = vpop.permute.xlu0 %3118
        %v3121 = vadd.f32 %v2967, %v3119
        %v3122 = vadd.f32 %v2969, %v3119
        %v3123 = vadd.f32 %v3121, %v837
        %v3124 = vadd.f32 %v3122, %v837
        %v3125 = vxor.u32 %v3123, 2147483648
        %v3126 = vmul.f32 %v3125, 1.442695
        %v3127 = vpow.pop %v3126
        %v3128 = vadd.f32 %v3127, 1.0
        %v3129 = vrcp.pop %v3128
        %v3130 = vmul.f32 1.0, %v3129
        %v3131 = vtanh.pop %v3124
        %3133 = vrot.lane.b32.xlu0 %v2867, 64
        %v3134 = vpop.permute.xlu0 %3133
        %v3136 = vmul.f32 %v3130, %v3134
        %3138 = vrot.lane.b32.xlu0 %v3131, 32
        %v3139 = vpop.permute.xlu0 %3138
        %v3141 = vmul.f32 %v3130, %v3139
        %3143 = vrot.lane.b32.xlu0 %v3141, 32
        %v3144 = vpop.permute.xlu0 %3143
        %v3146 = vadd.f32 %v3136, %v3144
        %v3147 = vtanh.pop %v3146
        %3149 = vrot.lane.b32.xlu0 %v3147, 32
        %v3150 = vpop.permute.xlu0 %3149
        %v3152 = vmul.f32 %v3130, %v3150
        %3153 = vrot.lane.b32.xlu0 %v2848, 96
        %v3154 = vpop.permute.xlu0 %3153
        %v3156 = vsub.f32 %v3152, %v3154
        %v3158 = vrot.slane %v3156, 1
        %v3159 = vrot.slane %v3156, 2
        %3160 = vrot.lane.b32.xlu0 %v3158, 32
        %v3161 = vpop.permute.xlu0 %3160
        %3162 = vrot.lane.b32.xlu0 %v3159, 32
        %v3163 = vpop.permute.xlu0 %3162
        %v3166 = vmul.f32 %v876, %v3161
        %v3167 = vmul.f32 %v881, %v3163
        %v3170 = vrot.slane %v3166, 7
        %v3171 = vrot.slane %v3167, 6
        %v3172 = vsel %vm602, %v3171, %v3170
        %v3174 = vadd.f32 %v2848, %v3172
        %v3175 = vsub.f32 %v3146, %v3134
        %v3177 = vrot.slane %v3175, 1
        %v3178 = vrot.slane %v3175, 2
        %3179 = vrot.lane.b32.xlu0 %v3177, 64
        %v3180 = vpop.permute.xlu0 %3179
        %3181 = vrot.lane.b32.xlu0 %v3178, 64
        %v3182 = vpop.permute.xlu0 %3181
        %v3185 = vmul.f32 %v876, %v3180
        %v3186 = vmul.f32 %v881, %v3182
        %v3189 = vrot.slane %v3185, 7
        %v3190 = vrot.slane %v3186, 6
        %v3191 = vsel %vm602, %v3190, %v3189
        %v3193 = vadd.f32 %v2867, %v3191
        %v3196 = vunpack.c.l.s4 1966171168
        %v3197 = vunpack.c.0.s8 %v3196
        %v3198 = vlaneseq
        %v3199 = vshrl.u32 %v3198, 7
        %v3200 = vsub.s32 %v3197, %v3199
        %v3201 = vrot.slane %v3174, %v3200
        %v3202 = vcombine.high %v3201, %v3201
        %v3204 = vunpack.c.l.s4 1966171168
        %v3205 = vunpack.c.0.s8 %v3204
        %v3206 = vlaneseq
        %v3207 = vshrl.u32 %v3206, 7
        %v3208 = vsub.s32 %v3205, %v3207
        %v3209 = vrot.slane %v3201, %v3208
        %v3211 = vunpack.c.l.s4 1966171168
        %v3212 = vunpack.c.0.s8 %v3211
        %v3213 = vlaneseq
        %v3214 = vshrl.u32 %v3213, 7
        %v3215 = vsub.s32 %v3212, %v3214
        %v3216 = vrot.slane %v3202, %v3215
        %3219 = vst.msk [vmem:[%s551 + $0x7] sm:$0x1] %vm941, %v3209
        %3220 = vst.msk [vmem:[%s551 + $0xf] sm:$0x1] %vm941, %v3216
        %vm3221 = vcmask 254976
        %3222 = vst.msk [vmem:[#allocation2] sm:$0x3] %vm3221, %v3174
        %3223 = vst.msk [vmem:[#allocation3] sm:$0x3] %vm3221, %v3193
        %p3224 = scmp.eq.s32.totalorder %s33, 2
        // Predicated region
        $region145: #{tpu_custom_call.1} parent=119 // pred_check
          %p3225 = pneg %p3224
        $region146: #{tpu_custom_call.1} parent=119 // pred_check_branch
          %3227 = sbr.rel (%p3225) target = $region148
        $region147: #{tpu_custom_call.1} parent=119 // pred_region
          %3228 = vst.msk [vmem:[#allocation13] sm:$0x3] %vm3221, %v3174
          %3229 = vst.msk [vmem:[#allocation15] sm:$0x3] %vm3221, %v3193
        $region148: #{tpu_custom_call.1} parent=119 // pred_fallthru
          _
        %s3230 = sand.u32 %s242, 1
        %s3231 = scalar_lea.sflag [#allocation8], %s3230
        %s3232 = sand.u32 %s242, 1
        %s3233 = smul.addr %s3232, 16
        %s3234 = scalar_lea.vmem [#allocation12], %s3233
        // Predicated region
        $region149: #{tpu_custom_call.1} parent=119 // pred_check
          %p3235 = pneg %p252
        $region150: #{tpu_custom_call.1} parent=119 // pred_check_branch
          %3237 = sbr.rel (%p3235) target = $region152
        $region151: #{tpu_custom_call.1} parent=119 // pred_region
          %s3238 = smul.u32 2, %s32
          %s3240 = ssub.s32 256, 256
          %3241 = vsyncadd %s3231, %s3240
          %s3242 = smul.addr %s3238, 3
          %s3243 = sadd.s32 %s33, %s3242
          %s3244 = smul.addr %s3243, 128
          %s3245 = scalar_lea.hbm %s8, %s3244
          %s3246 = sshll.u32 %s3234, 4
          %s3247 = int_to_ptr.vmem [resolvable:$true] %s3246
          %3252 = dma.vmem_to_hbm [thread:$0]  %s3247, 256, %s3245, %s3231, 128, 384, 8
        $region152: #{tpu_custom_call.1} parent=119 // pred_fallthru
          _
        // Predicated region
        $region153: #{tpu_custom_call.1} parent=119 // pred_check
          %p3253 = pneg %p278
        $region154: #{tpu_custom_call.1} parent=119 // pred_check_branch
          %3255 = sbr.rel (%p3253) target = $region156
        $region155: #{tpu_custom_call.1} parent=119 // pred_region
          %s3257 = ssub.s32 32, 32
          %3258 = vsyncadd [#allocation14], %s3257
          %s3259 = smul.addr %s32, 32
          %s3260 = scalar_lea.hbm %s9, %s3259
          %s3262 = sshll.u32 [#allocation13], 4
          %s3263 = int_to_ptr.vmem [resolvable:$true] %s3262
          %3265 = dma.vmem_to_hbm [thread:$0]  %s3263, 32, %s3260, [#allocation14]
        $region156: #{tpu_custom_call.1} parent=119 // pred_fallthru
          _
        // Predicated region
        $region157: #{tpu_custom_call.1} parent=119 // pred_check
          %p3266 = pneg %p304
        $region158: #{tpu_custom_call.1} parent=119 // pred_check_branch
          %3268 = sbr.rel (%p3266) target = $region160
        $region159: #{tpu_custom_call.1} parent=119 // pred_region
          %s3270 = ssub.s32 32, 32
          %3271 = vsyncadd [#allocation14], %s3270
          %s3272 = smul.addr %s32, 32
          %s3273 = scalar_lea.hbm %s10, %s3272
          %s3275 = sshll.u32 [#allocation15], 4
          %s3276 = int_to_ptr.vmem [resolvable:$true] %s3275
          %3278 = dma.vmem_to_hbm [thread:$0]  %s3276, 32, %s3273, [#allocation14]
        $region160: #{tpu_custom_call.1} parent=119 // pred_fallthru
          _
        // Predicated region
        $region161: #{tpu_custom_call.1} parent=119 // pred_check
          %p3279 = pneg %p278
        $region162: #{tpu_custom_call.1} parent=119 // pred_check_branch
          %3281 = sbr.rel (%p3279) target = $region164
        $region163: #{tpu_custom_call.1} parent=119 // pred_region
          %3282 = dma.done [#allocation14], 32
        $region164: #{tpu_custom_call.1} parent=119 // pred_fallthru
          _
        // Predicated region
        $region165: #{tpu_custom_call.1} parent=119 // pred_check
          %p3283 = pneg %p304
        $region166: #{tpu_custom_call.1} parent=119 // pred_check_branch
          %3285 = sbr.rel (%p3283) target = $region168
        $region167: #{tpu_custom_call.1} parent=119 // pred_region
          %3286 = dma.done [#allocation14], 32
        $region168: #{tpu_custom_call.1} parent=119 // pred_fallthru
          _
      $region120: #{tpu_custom_call.1} parent=5 // pred_fallthru
        _
      %p3287 = scmp.le.s32.totalorder 2, %s23
      // Predicated region
      $region169: #{tpu_custom_call.1} parent=5 // pred_check
        %p3288 = pneg %p3287
      $region170: #{tpu_custom_call.1} parent=5 // pred_check_branch
        %3290 = sbr.rel (%p3288) target = $region172
      $region171: #{tpu_custom_call.1} parent=5 // pred_region
        %s3291 = ssub.s32 %s23, 2
        // Predicated region
        $region173: #{tpu_custom_call.1} parent=171 // pred_check
          %p3292 = pneg %p258
        $region174: #{tpu_custom_call.1} parent=171 // pred_check_branch
          %3294 = sbr.rel (%p3292) target = $region176
        $region175: #{tpu_custom_call.1} parent=171 // pred_region
          %s3295 = sand.u32 %s243, 1
          %s3296 = scalar_lea.sflag [#allocation8], %s3295
          %s3297 = sand.u32 %s243, 1
          %s3298 = smul.addr %s3297, 16
          %s3299 = scalar_lea.vmem [#allocation12], %s3298
          %3300 = dma.done %s3296, 256
        $region176: #{tpu_custom_call.1} parent=171 // pred_fallthru
          _
      $region172: #{tpu_custom_call.1} parent=5 // pred_fallthru
        _
    $region6: #{tpu_custom_call.1} parent=1 // loop_footer
      %s27 = sadd.s32 1, %s23
    $region7: #{tpu_custom_call.1} parent=1 // loop_footer_branch
      %22 = sbr.rel target = $region3
    $region8: #{tpu_custom_call.1} parent=1 // loop_exit
      _
    %3301 = vsyncpa [#allocation7], 1
    %s3302 = scalar_lea.sflag [#allocation7], 1
    %3303 = vsyncpa %s3302, 1
    %3304 = vsyncpa [#allocation10], 1
    %3305 = vsyncpa [#allocation8], 1
    %s3306 = scalar_lea.sflag [#allocation8], 1
    %3307 = vsyncpa %s3306, 1
    %3308 = vsyncpa [#allocation14], 1

// kernel: tpu_custom_call.1
$region0: #{tpu_custom_call.1}
  #allocation0 [shape = 'u32[]', space=smem, size = 0x4, offset = 0x4, fixed_abs, tag = 'smem constant byte address 0x4 - core index']
  #allocation1 [shape = 'u32[144,128]{1,0:T(1,128)}', space=vmem, size = 0x12000, scoped, tag = 'internal scratch']
  #allocation2 [shape = 'f32[2,32]{1,0:T(2,128)}', space=vmem, size = 0x400, scoped, tag = 'scratch operand']
  #allocation3 [shape = 'f32[2,32]{1,0:T(2,128)}', space=vmem, size = 0x400, scoped, tag = 'scratch operand']
  %s0 = inlined_call_operand.vmem [shape: f32[2,24,32], index: 0, kind: input, shape index: {}]
  %s1 = inlined_call_operand.vmem [shape: f32[2,24,1], index: 1, kind: input, shape index: {}]
  %s2 = inlined_call_operand.vmem [shape: f32[2,32], index: 2, kind: input, shape index: {}]
  %s3 = inlined_call_operand.vmem [shape: f32[2,32], index: 3, kind: input, shape index: {}]
  %s4 = inlined_call_operand.hbm [shape: f32[32,160], index: 4, kind: input, shape index: {}]
  %s5 = inlined_call_operand.hbm [shape: f32[32,32], index: 5, kind: input, shape index: {}]
  %s6 = inlined_call_operand.hbm [shape: f32[32,128], index: 6, kind: input, shape index: {}]
  %s7 = inlined_call_operand.vmem [shape: f32[1,128], index: 7, kind: input, shape index: {}]
  %s8 = inlined_call_operand.hbm [shape: f32[2,24,32], index: 8, kind: output, shape index: {0}]
  %s9 = inlined_call_operand.hbm [shape: f32[2,32], index: 9, kind: output, shape index: {1}]
  %s10 = inlined_call_operand.hbm [shape: f32[2,32], index: 10, kind: output, shape index: {2}]
  %11 = xla_tuple %s8, %s9, %s10
  %s12 = sld [smem:[#allocation0]]
  $region177: #{tpu_custom_call.1} parent=0
    _
  %s14 = ssub.s32 1, %s12
  %s15 = scalar_select 0, %s14, %s12
  $region1: #{tpu_custom_call.1} parent=0
    #allocation4 [shape = 'u8[16384]{0}', space=vmem, size = 0x4000, scoped, tag = 'input window, operand 0']
    #allocation5 [shape = 'u8[16384]{0}', space=vmem, size = 0x4000, scoped, tag = 'input window, operand 1']
    #allocation6 [shape = 'u8[32768]{0}', space=vmem, size = 0x8000, scoped, tag = 'input window, operand 4, single buffered']
    #allocation7 [shape = 's32[2]{0}', space=sflag, size = 0x8, scoped, tag = 'scoped memory for tpu_custom_call.1']
    #allocation8 [shape = 's32[2]{0}', space=sflag, size = 0x8, scoped, tag = 'scoped memory for tpu_custom_call.1']
    #allocation9 [shape = 'u8[16384]{0}', space=vmem, size = 0x4000, scoped, tag = 'input window, operand 5, single buffered']
    #allocation10 [shape = 's32[1]{0}', space=sflag, size = 0x4, scoped, tag = 'scoped memory for tpu_custom_call.1']
    #allocation11 [shape = 'u8[16384]{0}', space=vmem, size = 0x4000, scoped, tag = 'input window, operand 6, single buffered']
    #allocation12 [shape = 'u8[16384]{0}', space=vmem, size = 0x4000, scoped, tag = 'output window, operand 0']
    #allocation13 [shape = 'u8[1024]{0}', space=vmem, size = 0x400, scoped, tag = 'output window, operand 1, single buffered']
    #allocation14 [shape = 's32[1]{0}', space=sflag, size = 0x4, scoped, tag = 'scoped memory for tpu_custom_call.1']
    #allocation15 [shape = 'u8[1024]{0}', space=vmem, size = 0x400, scoped, tag = 'output window, operand 2, single buffered']
    %16 = vsyncpa [#allocation7], 0
    %17 = vsyncpa [#allocation10], 0
    %18 = vsyncpa [#allocation8], 0
    %s19 = scalar_lea.sflag [#allocation8], 1
    %20 = vsyncpa %s19, 0
    %21 = vsyncpa [#allocation14], 0
    loop: start=0, step=1, limit=5
    $region2: #{tpu_custom_call.1} parent=1 // loop_pre_header
      _
    $region3: #{tpu_custom_call.1} parent=1 // loop_header
      %s23 = sphi 0, %s27
      %p24 = scmp.ge.s32.totalorder %s23, 5
      %s30 = sphi 0, %s42
      %s31 = sphi 0, %s38
      %s32 = sphi 0, %s30
      %s33 = sphi 0, %s31
      %s34 = sphi 0, %s32
      %s35 = sphi 0, %s33
      %s47 = sphi 0, %s49
      %s50 = sphi 0, %s47
      %s51 = sphi 0, %s50
      %s67 = sphi 0, %s51
      %s75 = sphi 0, %s77
      %s78 = sphi 0, %s75
      %s79 = sphi 0, %s78
      %s95 = sphi 0, %s79
      %s101 = sphi 0, %s103
      %s104 = sphi 0, %s101
      %s105 = sphi 0, %s104
      %s121 = sphi 0, %s105
      %s127 = sphi 0, %s129
      %s130 = sphi 0, %s127
      %s131 = sphi 0, %s130
      %s147 = sphi 0, %s131
      %s151 = sphi 0, %s151
      %s153 = sphi 0, %s151
      %s154 = sphi 0, %s153
      %s168 = sphi 0, %s154
      %s172 = sphi 0, %s172
      %s174 = sphi 0, %s172
      %s175 = sphi 0, %s174
      %s189 = sphi 0, %s175
      %s193 = sphi 0, %s193
      %s195 = sphi 0, %s193
      %s196 = sphi 0, %s195
      %s210 = sphi 0, %s196
      %s214 = sphi 0, %s214
      %s216 = sphi 0, %s214
      %s217 = sphi 0, %s216
      %s231 = sphi 0, %s217
      %s239 = sphi 0, %s241
      %s242 = sphi 0, %s239
      %s243 = sphi 0, %s242
      %s259 = sphi 0, %s243
      %s265 = sphi 0, %s267
      %s268 = sphi 0, %s265
      %s269 = sphi 0, %s268
      %s285 = sphi 0, %s269
      %s291 = sphi 0, %s293
      %s294 = sphi 0, %s291
      %s295 = sphi 0, %s294
      %s311 = sphi 0, %s295
    $region4: #{tpu_custom_call.1} parent=1 // loop_header_branch
      %26 = sbr.rel (%p24) target = $region8
    $region5: #{tpu_custom_call.1} parent=1 // loop_body
      %s28 = ssub.s32 %s23, 1
      %s29 = ssub.s32 %s23, 2
      %s36 = sadd.s32 1, %s31
      %p37 = scmp.ge.s32.totalorder %s36, 3
      %s38 = scalar_select %p37, 0, %s36
      %s39 = sadd.s32 1, %s30
      %s40 = scalar_select %p37, %s39, %s30
      %p41 = scmp.ge.s32.totalorder %s40, 1
      %s42 = scalar_select %p41, 0, %s40
      %s43 = ssub.s32 %s30, %s42
      %s44 = ssub.s32 %s31, %s38
      %s45 = sor.u32 %s43, %s44
      %p46 = scmp.eq.s32.totalorder %s45, 0
      %s48 = sadd.s32 %s47, 1
      %s49 = scalar_select %p46, %s47, %s48
      %p52 = pneg %p46
      %p53 = scmp.eq.s32.totalorder %s23, 2
      %p54 = por %p52, %p53
      %p55 = scmp.ne.s32.totalorder %s47, %s50
      %p56 = scmp.eq.s32.totalorder %s23, 0
      %p57 = por %p55, %p56
      %p58 = scmp.ne.s32.totalorder %s47, %s50
      %p59 = scmp.eq.s32.totalorder %s28, 2
      %p60 = por %p58, %p59
      %p61 = scmp.ne.s32.totalorder %s50, %s51
      %p62 = scmp.eq.s32.totalorder %s28, 0
      %p63 = por %p61, %p62
      %p64 = scmp.ne.s32.totalorder %s50, %s51
      %p65 = scmp.eq.s32.totalorder %s29, 2
      %p66 = por %p64, %p65
      %p68 = scmp.ne.s32.totalorder %s51, %s67
      %p69 = scmp.eq.s32.totalorder %s29, 0
      %p70 = por %p68, %p69
      %s71 = ssub.s32 %s30, %s42
      %s72 = ssub.s32 %s31, %s38
      %s73 = sor.u32 %s71, %s72
      %p74 = scmp.eq.s32.totalorder %s73, 0
      %s76 = sadd.s32 %s75, 1
      %s77 = scalar_select %p74, %s75, %s76
      %p80 = pneg %p74
      %p81 = scmp.eq.s32.totalorder %s23, 2
      %p82 = por %p80, %p81
      %p83 = scmp.ne.s32.totalorder %s75, %s78
      %p84 = scmp.eq.s32.totalorder %s23, 0
      %p85 = por %p83, %p84
      %p86 = scmp.ne.s32.totalorder %s75, %s78
      %p87 = scmp.eq.s32.totalorder %s28, 2
      %p88 = por %p86, %p87
      %p89 = scmp.ne.s32.totalorder %s78, %s79
      %p90 = scmp.eq.s32.totalorder %s28, 0
      %p91 = por %p89, %p90
      %p92 = scmp.ne.s32.totalorder %s78, %s79
      %p93 = scmp.eq.s32.totalorder %s29, 2
      %p94 = por %p92, %p93
      %p96 = scmp.ne.s32.totalorder %s79, %s95
      %p97 = scmp.eq.s32.totalorder %s29, 0
      %p98 = por %p96, %p97
      %s99 = ssub.s32 %s30, %s42
      %p100 = scmp.eq.s32.totalorder %s99, 0
      %s102 = sadd.s32 %s101, 1
      %s103 = scalar_select %p100, %s101, %s102
      %p106 = pneg %p100
      %p107 = scmp.eq.s32.totalorder %s23, 2
      %p108 = por %p106, %p107
      %p109 = scmp.ne.s32.totalorder %s101, %s104
      %p110 = scmp.eq.s32.totalorder %s23, 0
      %p111 = por %p109, %p110
      %p112 = scmp.ne.s32.totalorder %s101, %s104
      %p113 = scmp.eq.s32.totalorder %s28, 2
      %p114 = por %p112, %p113
      %p115 = scmp.ne.s32.totalorder %s104, %s105
      %p116 = scmp.eq.s32.totalorder %s28, 0
      %p117 = por %p115, %p116
      %p118 = scmp.ne.s32.totalorder %s104, %s105
      %p119 = scmp.eq.s32.totalorder %s29, 2
      %p120 = por %p118, %p119
      %p122 = scmp.ne.s32.totalorder %s105, %s121
      %p123 = scmp.eq.s32.totalorder %s29, 0
      %p124 = por %p122, %p123
      %s125 = ssub.s32 %s30, %s42
      %p126 = scmp.eq.s32.totalorder %s125, 0
      %s128 = sadd.s32 %s127, 1
      %s129 = scalar_select %p126, %s127, %s128
      %p132 = pneg %p126
      %p133 = scmp.eq.s32.totalorder %s23, 2
      %p134 = por %p132, %p133
      %p135 = scmp.ne.s32.totalorder %s127, %s130
      %p136 = scmp.eq.s32.totalorder %s23, 0
      %p137 = por %p135, %p136
      %p138 = scmp.ne.s32.totalorder %s127, %s130
      %p139 = scmp.eq.s32.totalorder %s28, 2
      %p140 = por %p138, %p139
      %p141 = scmp.ne.s32.totalorder %s130, %s131
      %p142 = scmp.eq.s32.totalorder %s28, 0
      %p143 = por %p141, %p142
      %p144 = scmp.ne.s32.totalorder %s130, %s131
      %p145 = scmp.eq.s32.totalorder %s29, 2
      %p146 = por %p144, %p145
      %p148 = scmp.ne.s32.totalorder %s131, %s147
      %p149 = scmp.eq.s32.totalorder %s29, 0
      %p150 = por %p148, %p149
      %s152 = sadd.s32 %s151, 1
      %p155 = scmp.eq.s32.totalorder %s23, 2
      %p156 = scmp.ne.s32.totalorder %s151, %s153
      %p157 = scmp.eq.s32.totalorder %s23, 0
      %p158 = por %p156, %p157
      %p159 = scmp.ne.s32.totalorder %s151, %s153
      %p160 = scmp.eq.s32.totalorder %s28, 2
      %p161 = por %p159, %p160
      %p162 = scmp.ne.s32.totalorder %s153, %s154
      %p163 = scmp.eq.s32.totalorder %s28, 0
      %p164 = por %p162, %p163
      %p165 = scmp.ne.s32.totalorder %s153, %s154
      %p166 = scmp.eq.s32.totalorder %s29, 2
      %p167 = por %p165, %p166
      %p169 = scmp.ne.s32.totalorder %s154, %s168
      %p170 = scmp.eq.s32.totalorder %s29, 0
      %p171 = por %p169, %p170
      %s173 = sadd.s32 %s172, 1
      %p176 = scmp.eq.s32.totalorder %s23, 2
      %p177 = scmp.ne.s32.totalorder %s172, %s174
      %p178 = scmp.eq.s32.totalorder %s23, 0
      %p179 = por %p177, %p178
      %p180 = scmp.ne.s32.totalorder %s172, %s174
      %p181 = scmp.eq.s32.totalorder %s28, 2
      %p182 = por %p180, %p181
      %p183 = scmp.ne.s32.totalorder %s174, %s175
      %p184 = scmp.eq.s32.totalorder %s28, 0
      %p185 = por %p183, %p184
      %p186 = scmp.ne.s32.totalorder %s174, %s175
      %p187 = scmp.eq.s32.totalorder %s29, 2
      %p188 = por %p186, %p187
      %p190 = scmp.ne.s32.totalorder %s175, %s189
      %p191 = scmp.eq.s32.totalorder %s29, 0
      %p192 = por %p190, %p191
      %s194 = sadd.s32 %s193, 1
      %p197 = scmp.eq.s32.totalorder %s23, 2
      %p198 = scmp.ne.s32.totalorder %s193, %s195
      %p199 = scmp.eq.s32.totalorder %s23, 0
      %p200 = por %p198, %p199
      %p201 = scmp.ne.s32.totalorder %s193, %s195
      %p202 = scmp.eq.s32.totalorder %s28, 2
      %p203 = por %p201, %p202
      %p204 = scmp.ne.s32.totalorder %s195, %s196
      %p205 = scmp.eq.s32.totalorder %s28, 0
      %p206 = por %p204, %p205
      %p207 = scmp.ne.s32.totalorder %s195, %s196
      %p208 = scmp.eq.s32.totalorder %s29, 2
      %p209 = por %p207, %p208
      %p211 = scmp.ne.s32.totalorder %s196, %s210
      %p212 = scmp.eq.s32.totalorder %s29, 0
      %p213 = por %p211, %p212
      %s215 = sadd.s32 %s214, 1
      %p218 = scmp.eq.s32.totalorder %s23, 2
      %p219 = scmp.ne.s32.totalorder %s214, %s216
      %p220 = scmp.eq.s32.totalorder %s23, 0
      %p221 = por %p219, %p220
      %p222 = scmp.ne.s32.totalorder %s214, %s216
      %p223 = scmp.eq.s32.totalorder %s28, 2
      %p224 = por %p222, %p223
      %p225 = scmp.ne.s32.totalorder %s216, %s217
      %p226 = scmp.eq.s32.totalorder %s28, 0
      %p227 = por %p225, %p226
      %p228 = scmp.ne.s32.totalorder %s216, %s217
      %p229 = scmp.eq.s32.totalorder %s29, 2
      %p230 = por %p228, %p229
      %p232 = scmp.ne.s32.totalorder %s217, %s231
      %p233 = scmp.eq.s32.totalorder %s29, 0
      %p234 = por %p232, %p233
      %s235 = ssub.s32 %s30, %s42
      %s236 = ssub.s32 %s31, %s38
      %s237 = sor.u32 %s235, %s236
      %p238 = scmp.eq.s32.totalorder %s237, 0
      %s240 = sadd.s32 %s239, 1
      %s241 = scalar_select %p238, %s239, %s240
      %p244 = pneg %p238
      %p245 = scmp.eq.s32.totalorder %s23, 2
      %p246 = por %p244, %p245
      %p247 = scmp.ne.s32.totalorder %s239, %s242
      %p248 = scmp.eq.s32.totalorder %s23, 0
      %p249 = por %p247, %p248
      %p250 = scmp.ne.s32.totalorder %s239, %s242
      %p251 = scmp.eq.s32.totalorder %s28, 2
      %p252 = por %p250, %p251
      %p253 = scmp.ne.s32.totalorder %s242, %s243
      %p254 = scmp.eq.s32.totalorder %s28, 0
      %p255 = por %p253, %p254
      %p256 = scmp.ne.s32.totalorder %s242, %s243
      %p257 = scmp.eq.s32.totalorder %s29, 2
      %p258 = por %p256, %p257
      %p260 = scmp.ne.s32.totalorder %s243, %s259
      %p261 = scmp.eq.s32.totalorder %s29, 0
      %p262 = por %p260, %p261
      %s263 = ssub.s32 %s30, %s42
      %p264 = scmp.eq.s32.totalorder %s263, 0
      %s266 = sadd.s32 %s265, 1
      %s267 = scalar_select %p264, %s265, %s266
      %p270 = pneg %p264
      %p271 = scmp.eq.s32.totalorder %s23, 2
      %p272 = por %p270, %p271
      %p273 = scmp.ne.s32.totalorder %s265, %s268
      %p274 = scmp.eq.s32.totalorder %s23, 0
      %p275 = por %p273, %p274
      %p276 = scmp.ne.s32.totalorder %s265, %s268
      %p277 = scmp.eq.s32.totalorder %s28, 2
      %p278 = por %p276, %p277
      %p279 = scmp.ne.s32.totalorder %s268, %s269
      %p280 = scmp.eq.s32.totalorder %s28, 0
      %p281 = por %p279, %p280
      %p282 = scmp.ne.s32.totalorder %s268, %s269
      %p283 = scmp.eq.s32.totalorder %s29, 2
      %p284 = por %p282, %p283
      %p286 = scmp.ne.s32.totalorder %s269, %s285
      %p287 = scmp.eq.s32.totalorder %s29, 0
      %p288 = por %p286, %p287
      %s289 = ssub.s32 %s30, %s42
      %p290 = scmp.eq.s32.totalorder %s289, 0
      %s292 = sadd.s32 %s291, 1
      %s293 = scalar_select %p290, %s291, %s292
      %p296 = pneg %p290
      %p297 = scmp.eq.s32.totalorder %s23, 2
      %p298 = por %p296, %p297
      %p299 = scmp.ne.s32.totalorder %s291, %s294
      %p300 = scmp.eq.s32.totalorder %s23, 0
      %p301 = por %p299, %p300
      %p302 = scmp.ne.s32.totalorder %s291, %s294
      %p303 = scmp.eq.s32.totalorder %s28, 2
      %p304 = por %p302, %p303
      %p305 = scmp.ne.s32.totalorder %s294, %s295
      %p306 = scmp.eq.s32.totalorder %s28, 0
      %p307 = por %p305, %p306
      %p308 = scmp.ne.s32.totalorder %s294, %s295
      %p309 = scmp.eq.s32.totalorder %s29, 2
      %p310 = por %p308, %p309
      %p312 = scmp.ne.s32.totalorder %s295, %s311
      %p313 = scmp.eq.s32.totalorder %s29, 0
      %p314 = por %p312, %p313
      %p315 = scmp.le.s32.totalorder 1, %s23
      %p316 = scmp.lt.s32.totalorder %s23, 4
      %p317 = pnand %p315, %p316
      %p318 = pneg %p317
      // Predicated region
      $region9: #{tpu_custom_call.1} parent=5 // pred_check
        _
      $region10: #{tpu_custom_call.1} parent=5 // pred_check_branch
        %320 = sbr.rel (%p317) target = $region12
      $region11: #{tpu_custom_call.1} parent=5 // pred_region
        %s321 = ssub.s32 %s23, 1
        // Predicated region
        $region13: #{tpu_custom_call.1} parent=11 // pred_check
          %p322 = pneg %p117
        $region14: #{tpu_custom_call.1} parent=11 // pred_check_branch
          %324 = sbr.rel (%p322) target = $region16
        $region15: #{tpu_custom_call.1} parent=11 // pred_region
          %p325 = scmp.lt.s32.totalorder %s32, 0
          %s326 = scalar_select %p325, %s32, 0
          %s327 = smul.addr %s326, 2
          %s328 = scalar_lea.vmem %s2, %s327
        $region16: #{tpu_custom_call.1} parent=11 // pred_fallthru
          _
        // Predicated region
        $region17: #{tpu_custom_call.1} parent=11 // pred_check
          %p329 = pneg %p143
        $region18: #{tpu_custom_call.1} parent=11 // pred_check_branch
          %331 = sbr.rel (%p329) target = $region20
        $region19: #{tpu_custom_call.1} parent=11 // pred_region
          %p332 = scmp.lt.s32.totalorder %s32, 0
          %s333 = scalar_select %p332, %s32, 0
          %s334 = smul.addr %s333, 2
          %s335 = scalar_lea.vmem %s3, %s334
        $region20: #{tpu_custom_call.1} parent=11 // pred_fallthru
          _
        // Predicated region
        $region21: #{tpu_custom_call.1} parent=11 // pred_check
          %p336 = pneg %p164
        $region22: #{tpu_custom_call.1} parent=11 // pred_check_branch
          %338 = sbr.rel (%p336) target = $region24
        $region23: #{tpu_custom_call.1} parent=11 // pred_region
          %s340 = ssub.s32 1024, 1024
          %341 = vsyncadd [#allocation7], %s340
          %s342 = sshll.u32 [#allocation6], 4
          %s343 = int_to_ptr.vmem [resolvable:$true] %s342
          %348 = dma.hbm_to_vmem [thread:$0]  %s4, 1024, %s343, [#allocation7], 256, 256, 16
        $region24: #{tpu_custom_call.1} parent=11 // pred_fallthru
          _
        // Predicated region
        $region25: #{tpu_custom_call.1} parent=11 // pred_check
          %p349 = pneg %p185
        $region26: #{tpu_custom_call.1} parent=11 // pred_check_branch
          %351 = sbr.rel (%p349) target = $region28
        $region27: #{tpu_custom_call.1} parent=11 // pred_region
          %s353 = ssub.s32 512, 512
          %354 = vsyncadd [#allocation10], %s353
          %s355 = sshll.u32 [#allocation9], 4
          %s356 = int_to_ptr.vmem [resolvable:$true] %s355
          %361 = dma.hbm_to_vmem [thread:$0]  %s5, 512, %s356, [#allocation10], 128, 128, 8
        $region28: #{tpu_custom_call.1} parent=11 // pred_fallthru
          _
        // Predicated region
        $region29: #{tpu_custom_call.1} parent=11 // pred_check
          %p362 = pneg %p206
        $region30: #{tpu_custom_call.1} parent=11 // pred_check_branch
          %364 = sbr.rel (%p362) target = $region32
        $region31: #{tpu_custom_call.1} parent=11 // pred_region
          %s366 = ssub.s32 512, 512
          %367 = vsyncadd [#allocation10], %s366
          %s368 = sshll.u32 [#allocation11], 4
          %s369 = int_to_ptr.vmem [resolvable:$true] %s368
          %374 = dma.hbm_to_vmem [thread:$0]  %s6, 512, %s369, [#allocation10], 128, 128, 8
        $region32: #{tpu_custom_call.1} parent=11 // pred_fallthru
          _
        // Predicated region
        $region33: #{tpu_custom_call.1} parent=11 // pred_check
          %p375 = pneg %p227
        $region34: #{tpu_custom_call.1} parent=11 // pred_check_branch
          %377 = sbr.rel (%p375) target = $region36
        $region35: #{tpu_custom_call.1} parent=11 // pred_region
          _
        $region36: #{tpu_custom_call.1} parent=11 // pred_fallthru
          _
      $region12: #{tpu_custom_call.1} parent=5 // pred_fallthru
        _
      %p378 = scmp.lt.s32.totalorder %s23, 3
      // Predicated region
      $region37: #{tpu_custom_call.1} parent=5 // pred_check
        %p379 = pneg %p378
      $region38: #{tpu_custom_call.1} parent=5 // pred_check_branch
        %381 = sbr.rel (%p379) target = $region40
      $region39: #{tpu_custom_call.1} parent=5 // pred_region
        // Predicated region
        $region41: #{tpu_custom_call.1} parent=39 // pred_check
          %p382 = pneg %p57
        $region42: #{tpu_custom_call.1} parent=39 // pred_check_branch
          %384 = sbr.rel (%p382) target = $region44
        $region43: #{tpu_custom_call.1} parent=39 // pred_region
          %s385 = sand.u32 %s47, 1
          %s386 = sand.u32 %s47, 1
          %s387 = smul.addr %s386, 16
          %s388 = scalar_lea.vmem [#allocation4], %s387
          %s389 = smul.u32 2, %s30
          %s390 = smul.addr %s389, 3
          %s391 = sadd.s32 %s31, %s390
          %s392 = smul.addr %s391, 8
          %s393 = scalar_lea.vmem %s0, %s392
          // Predicated region
          $region45: #{tpu_custom_call.1} parent=43 // pred_check
            _
          $region46: #{tpu_custom_call.1} parent=43 // pred_check_branch
            %395 = sbr.rel (0) target = $region48
          $region47: #{tpu_custom_call.1} parent=43 // pred_region
            // Predicated region
            $region49: #{tpu_custom_call.1} parent=47 // pred_check
              _
            $region50: #{tpu_custom_call.1} parent=47 // pred_check_branch
              %397 = sbr.rel (0) target = $region52
            $region51: #{tpu_custom_call.1} parent=47 // pred_region
              // Predicated region
              $region64: #{tpu_custom_call.1} parent=51 // pred_check
                _
              $region65: #{tpu_custom_call.1} parent=51 // pred_check_branch
                %415 = sbr.rel (0) target = $region67
              $region66: #{tpu_custom_call.1} parent=51 // pred_region
                loop: start=0, step=1, limit=1
                $region68: #{tpu_custom_call.1} parent=66 // loop_pre_header
                  _
                $region69: #{tpu_custom_call.1} parent=66 // loop_header
                  %s417 = sphi 0, %s421
                  %p418 = scmp.ge.s32.totalorder %s417, 1
                  %s422 = sphi %s393, %s393
                  %s423 = sphi %s388, %s388
                $region70: #{tpu_custom_call.1} parent=66 // loop_header_branch
                  %420 = sbr.rel (%p418) target = $region74
                $region71: #{tpu_custom_call.1} parent=66 // loop_body
                  %v424 = vld [vmem:[%s422] sm:$0xff]
                  %425 = vst [vmem:[%s423] sm:$0xff] %v424
                  %v426 = vld [vmem:[%s422 + $0x18] sm:$0xff]
                  %427 = vst [vmem:[%s423 + $0x8] sm:$0xff] %v426
                $region72: #{tpu_custom_call.1} parent=66 // loop_footer
                  %s421 = sadd.s32 1, %s417
                $region73: #{tpu_custom_call.1} parent=66 // loop_footer_branch
                  %416 = sbr.rel target = $region69
                $region74: #{tpu_custom_call.1} parent=66 // loop_exit
                  _
              $region67: #{tpu_custom_call.1} parent=51 // pred_fallthru
                _
              // Predicated region
              $region75: #{tpu_custom_call.1} parent=51 // pred_check
                _
              $region76: #{tpu_custom_call.1} parent=51 // pred_check_branch
                %429 = sbr.rel target = $region78
              $region77: #{tpu_custom_call.1} parent=51 // pred_region
                _
              $region78: #{tpu_custom_call.1} parent=51 // pred_fallthru
                _
            $region52: #{tpu_custom_call.1} parent=47 // pred_fallthru
              _
            // Predicated region
            $region53: #{tpu_custom_call.1} parent=47 // pred_check
              _
            $region54: #{tpu_custom_call.1} parent=47 // pred_check_branch
              %399 = sbr.rel target = $region56
            $region55: #{tpu_custom_call.1} parent=47 // pred_region
              %s401 = ssub.s32 256, 1
              loop: start=0, step=1, limit=1
              $region57: #{tpu_custom_call.1} parent=55 // loop_pre_header
                _
              $region58: #{tpu_custom_call.1} parent=55 // loop_header
                %s403 = sphi 0, %s407
                %p404 = scmp.ge.s32.totalorder %s403, 1
                %s408 = sphi %s393, %s393
                %s409 = sphi %s388, %s388
              $region59: #{tpu_custom_call.1} parent=55 // loop_header_branch
                %406 = sbr.rel (%p404) target = $region63
              $region60: #{tpu_custom_call.1} parent=55 // loop_body
                %v410 = vld [vmem:[%s408] sm:%s401]
                %411 = vst [vmem:[%s409] sm:%s401] %v410
                %v412 = vld [vmem:[%s408 + $0x18] sm:%s401]
                %413 = vst [vmem:[%s409 + $0x8] sm:%s401] %v412
              $region61: #{tpu_custom_call.1} parent=55 // loop_footer
                %s407 = sadd.s32 1, %s403
              $region62: #{tpu_custom_call.1} parent=55 // loop_footer_branch
                %402 = sbr.rel target = $region58
              $region63: #{tpu_custom_call.1} parent=55 // loop_exit
                _
            $region56: #{tpu_custom_call.1} parent=47 // pred_fallthru
              _
          $region48: #{tpu_custom_call.1} parent=43 // pred_fallthru
            _
          %430 = vnop
        $region44: #{tpu_custom_call.1} parent=39 // pred_fallthru
          _
        // Predicated region
        $region79: #{tpu_custom_call.1} parent=39 // pred_check
          %p431 = pneg %p85
        $region80: #{tpu_custom_call.1} parent=39 // pred_check_branch
          %433 = sbr.rel (%p431) target = $region82
        $region81: #{tpu_custom_call.1} parent=39 // pred_region
          %s434 = sand.u32 %s75, 1
          %s435 = sand.u32 %s75, 1
          %s436 = smul.addr %s435, 16
          %s437 = scalar_lea.vmem [#allocation5], %s436
          %s438 = smul.u32 2, %s30
          %s439 = smul.addr %s438, 3
          %s440 = sadd.s32 %s31, %s439
          %s441 = smul.addr %s440, 8
          %s442 = scalar_lea.vmem %s1, %s441
          // Predicated region
          $region83: #{tpu_custom_call.1} parent=81 // pred_check
            _
          $region84: #{tpu_custom_call.1} parent=81 // pred_check_branch
            %444 = sbr.rel (0) target = $region86
          $region85: #{tpu_custom_call.1} parent=81 // pred_region
            // Predicated region
            $region87: #{tpu_custom_call.1} parent=85 // pred_check
              _
            $region88: #{tpu_custom_call.1} parent=85 // pred_check_branch
              %446 = sbr.rel (0) target = $region90
            $region89: #{tpu_custom_call.1} parent=85 // pred_region
              // Predicated region
              $region102: #{tpu_custom_call.1} parent=89 // pred_check
                _
              $region103: #{tpu_custom_call.1} parent=89 // pred_check_branch
                %464 = sbr.rel (0) target = $region105
              $region104: #{tpu_custom_call.1} parent=89 // pred_region
                loop: start=0, step=1, limit=1
                $region106: #{tpu_custom_call.1} parent=104 // loop_pre_header
                  _
                $region107: #{tpu_custom_call.1} parent=104 // loop_header
                  %s466 = sphi 0, %s470
                  %p467 = scmp.ge.s32.totalorder %s466, 1
                  %s471 = sphi %s442, %s442
                  %s472 = sphi %s437, %s437
                $region108: #{tpu_custom_call.1} parent=104 // loop_header_branch
                  %469 = sbr.rel (%p467) target = $region112
                $region109: #{tpu_custom_call.1} parent=104 // loop_body
                  %v473 = vld [vmem:[%s471] sm:$0xff]
                  %474 = vst [vmem:[%s472] sm:$0xff] %v473
                  %v475 = vld [vmem:[%s471 + $0x18] sm:$0xff]
                  %476 = vst [vmem:[%s472 + $0x8] sm:$0xff] %v475
                $region110: #{tpu_custom_call.1} parent=104 // loop_footer
                  %s470 = sadd.s32 1, %s466
                $region111: #{tpu_custom_call.1} parent=104 // loop_footer_branch
                  %465 = sbr.rel target = $region107
                $region112: #{tpu_custom_call.1} parent=104 // loop_exit
                  _
              $region105: #{tpu_custom_call.1} parent=89 // pred_fallthru
                _
              // Predicated region
              $region113: #{tpu_custom_call.1} parent=89 // pred_check
                _
              $region114: #{tpu_custom_call.1} parent=89 // pred_check_branch
                %478 = sbr.rel target = $region116
              $region115: #{tpu_custom_call.1} parent=89 // pred_region
                _
              $region116: #{tpu_custom_call.1} parent=89 // pred_fallthru
                _
            $region90: #{tpu_custom_call.1} parent=85 // pred_fallthru
              _
            // Predicated region
            $region91: #{tpu_custom_call.1} parent=85 // pred_check
              _
            $region92: #{tpu_custom_call.1} parent=85 // pred_check_branch
              %448 = sbr.rel target = $region94
            $region93: #{tpu_custom_call.1} parent=85 // pred_region
              %s450 = ssub.s32 256, 1
              loop: start=0, step=1, limit=1
              $region95: #{tpu_custom_call.1} parent=93 // loop_pre_header
                _
              $region96: #{tpu_custom_call.1} parent=93 // loop_header
                %s452 = sphi 0, %s456
                %p453 = scmp.ge.s32.totalorder %s452, 1
                %s457 = sphi %s442, %s442
                %s458 = sphi %s437, %s437
              $region97: #{tpu_custom_call.1} parent=93 // loop_header_branch
                %455 = sbr.rel (%p453) target = $region101
              $region98: #{tpu_custom_call.1} parent=93 // loop_body
                %v459 = vld [vmem:[%s457] sm:%s450]
                %460 = vst [vmem:[%s458] sm:%s450] %v459
                %v461 = vld [vmem:[%s457 + $0x18] sm:%s450]
                %462 = vst [vmem:[%s458 + $0x8] sm:%s450] %v461
              $region99: #{tpu_custom_call.1} parent=93 // loop_footer
                %s456 = sadd.s32 1, %s452
              $region100: #{tpu_custom_call.1} parent=93 // loop_footer_branch
                %451 = sbr.rel target = $region96
              $region101: #{tpu_custom_call.1} parent=93 // loop_exit
                _
            $region94: #{tpu_custom_call.1} parent=85 // pred_fallthru
              _
          $region86: #{tpu_custom_call.1} parent=81 // pred_fallthru
            _
          %479 = vnop
        $region82: #{tpu_custom_call.1} parent=39 // pred_fallthru
          _
      $region40: #{tpu_custom_call.1} parent=5 // pred_fallthru
        _
      %p480 = scmp.le.s32.totalorder 1, %s23
      %p481 = scmp.lt.s32.totalorder %s23, 4
      %p482 = pnand %p480, %p481
      %p483 = pneg %p482
      // Predicated region
      $region117: #{tpu_custom_call.1} parent=5 // pred_check
        _
      $region118: #{tpu_custom_call.1} parent=5 // pred_check_branch
        %485 = sbr.rel (%p482) target = $region120
      $region119: #{tpu_custom_call.1} parent=5 // pred_region
        %s486 = ssub.s32 %s23, 1
        %s487 = sand.u32 %s50, 1
        %s488 = sand.u32 %s50, 1
        %s489 = smul.addr %s488, 16
        %s490 = scalar_lea.vmem [#allocation4], %s489
        // Predicated region
        $region121: #{tpu_custom_call.1} parent=119 // pred_check
          %p491 = pneg %p63
        $region122: #{tpu_custom_call.1} parent=119 // pred_check_branch
          %493 = sbr.rel (%p491) target = $region124
        $region123: #{tpu_custom_call.1} parent=119 // pred_region
          _
        $region124: #{tpu_custom_call.1} parent=119 // pred_fallthru
          _
        %s494 = sand.u32 %s78, 1
        %s495 = sand.u32 %s78, 1
        %s496 = smul.addr %s495, 16
        %s497 = scalar_lea.vmem [#allocation5], %s496
        // Predicated region
        $region125: #{tpu_custom_call.1} parent=119 // pred_check
          %p498 = pneg %p91
        $region126: #{tpu_custom_call.1} parent=119 // pred_check_branch
          %500 = sbr.rel (%p498) target = $region128
        $region127: #{tpu_custom_call.1} parent=119 // pred_region
          _
        $region128: #{tpu_custom_call.1} parent=119 // pred_fallthru
          _
        // Predicated region
        $region129: #{tpu_custom_call.1} parent=119 // pred_check
          %p501 = pneg %p164
        $region130: #{tpu_custom_call.1} parent=119 // pred_check_branch
          %503 = sbr.rel (%p501) target = $region132
        $region131: #{tpu_custom_call.1} parent=119 // pred_region
          %504 = dma.done [#allocation7], 1024
        $region132: #{tpu_custom_call.1} parent=119 // pred_fallthru
          _
        // Predicated region
        $region133: #{tpu_custom_call.1} parent=119 // pred_check
          %p505 = pneg %p185
        $region134: #{tpu_custom_call.1} parent=119 // pred_check_branch
          %507 = sbr.rel (%p505) target = $region136
        $region135: #{tpu_custom_call.1} parent=119 // pred_region
          %508 = dma.done [#allocation10], 512
        $region136: #{tpu_custom_call.1} parent=119 // pred_fallthru
          _
        // Predicated region
        $region137: #{tpu_custom_call.1} parent=119 // pred_check
          %p509 = pneg %p206
        $region138: #{tpu_custom_call.1} parent=119 // pred_check_branch
          %511 = sbr.rel (%p509) target = $region140
        $region139: #{tpu_custom_call.1} parent=119 // pred_region
          %512 = dma.done [#allocation10], 512
        $region140: #{tpu_custom_call.1} parent=119 // pred_fallthru
          _
        %s513 = sand.u32 %s50, 1
        %s514 = sand.u32 %s50, 1
        %s515 = smul.addr %s514, 16
        %s516 = scalar_lea.vmem [#allocation4], %s515
        %p517 = pneg %p63
        %p518 = pneg %p60
        %s519 = sand.u32 %s78, 1
        %s520 = sand.u32 %s78, 1
        %s521 = smul.addr %s520, 16
        %s522 = scalar_lea.vmem [#allocation5], %s521
        %p523 = pneg %p91
        %p524 = pneg %p88
        %p525 = scmp.lt.s32.totalorder %s32, 0
        %s526 = scalar_select %p525, %s32, 0
        %s527 = smul.addr %s526, 2
        %s528 = scalar_lea.vmem %s2, %s527
        %p529 = pneg %p117
        %p530 = pneg %p114
        %p531 = scmp.lt.s32.totalorder %s32, 0
        %s532 = scalar_select %p531, %s32, 0
        %s533 = smul.addr %s532, 2
        %s534 = scalar_lea.vmem %s3, %s533
        %p535 = pneg %p143
        %p536 = pneg %p140
        %p537 = pneg %p164
        %p538 = pneg %p161
        %p539 = pneg %p185
        %p540 = pneg %p182
        %p541 = pneg %p206
        %p542 = pneg %p203
        %p543 = pneg %p227
        %p544 = pneg %p224
        %p545 = pneg %p255
        %p546 = pneg %p252
        %s547 = sand.u32 %s242, 1
        %s548 = scalar_lea.sflag [#allocation8], %s547
        %s549 = sand.u32 %s242, 1
        %s550 = smul.addr %s549, 16
        %s551 = scalar_lea.vmem [#allocation12], %s550
        %p552 = pneg %p281
        %p553 = pneg %p278
        %p554 = pneg %p307
        %p555 = pneg %p304
        %s556 = smul.u32 2, %s32
        %s557 = smul.u32 2, %s32
        %p558 = scmp.lt.s32.totalorder %s32, 0
        %s559 = scalar_select %p558, %s32, 0
        %s560 = smul.addr %s559, 2
        %s561 = scalar_lea.vmem %s2, %s560
        %p562 = scmp.lt.s32.totalorder %s32, 0
        %s563 = scalar_select %p562, %s32, 0
        %s564 = smul.addr %s563, 2
        %s565 = scalar_lea.vmem %s3, %s564
        %s566 = smul.u32 2, %s32
        %p567 = scmp.eq.s32.totalorder %s33, 0
        // Predicated region
        $region141: #{tpu_custom_call.1} parent=119 // pred_check
          %p568 = pneg %p567
        $region142: #{tpu_custom_call.1} parent=119 // pred_check_branch
          %570 = sbr.rel (%p568) target = $region144
        $region143: #{tpu_custom_call.1} parent=119 // pred_region
          %v571 = vld [vmem:[%s561] sm:$0x3]
          %vm572 = vcmask 254976
          %573 = vst.msk [vmem:[#allocation2] sm:$0x3] %vm572, %v571
          %v574 = vld [vmem:[%s565] sm:$0x3]
          %575 = vst.msk [vmem:[#allocation3] sm:$0x3] %vm572, %v574
        $region144: #{tpu_custom_call.1} parent=119 // pred_fallthru
          _
        %v576 = vld [vmem:[%s490] sm:$0xff]
        %v577 = vld [vmem:[%s490 + $0x8] sm:$0xff]
        %v578 = vld [vmem:[%s497] sm:$0xff]
        %v579 = vld [vmem:[%s497 + $0x8] sm:$0xff]
        %v580 = vld [vmem:[#allocation6] sm:$0xff]
        %v581 = vld [vmem:[#allocation6 + $0x8] sm:$0xff]
        %v582 = vld [vmem:[#allocation6 + $0x10] sm:$0xff]
        %v583 = vld [vmem:[#allocation6 + $0x18] sm:$0xff]
        %v584 = vld [vmem:[#allocation6 + $0x20] sm:$0xff]
        %v585 = vld [vmem:[#allocation6 + $0x28] sm:$0xff]
        %v586 = vld [vmem:[#allocation6 + $0x30] sm:$0xff]
        %v587 = vld [vmem:[#allocation6 + $0x38] sm:$0xff]
        %v588 = vld [vmem:[#allocation9] sm:$0xff]
        %v589 = vld [vmem:[#allocation9 + $0x8] sm:$0xff]
        %v590 = vld [vmem:[#allocation9 + $0x10] sm:$0xff]
        %v591 = vld [vmem:[#allocation9 + $0x18] sm:$0xff]
        %v592 = vld [vmem:[#allocation11] sm:$0xff]
        %v593 = vld [vmem:[#allocation11 + $0x8] sm:$0xff]
        %v594 = vld [vmem:[#allocation11 + $0x10] sm:$0xff]
        %v595 = vld [vmem:[#allocation11 + $0x18] sm:$0xff]
        %v596 = vld [vmem:[%s7] sm:$0x1]
        %v597 = vld [vmem:[#allocation2] sm:$0x3]
        %v598 = vld [vmem:[#allocation3] sm:$0x3]
        %v601 = vrot.slane %v577, 7
        %vm602 = vcmask 1041409
        %v603 = vsel %vm602, %v601, %v576
        %vm604 = vcmask 261120
        %v605 = vsel %vm604, %v603, 0
        %607 = vmatprep.subr.mxu0 0.0
        %608 = vmatpush1.msra.mxu0 0.0
        %609 = vmatprep.subr.mxu0 0.0
        %610 = vmatpush1.msra.mxu0 0.0
        %611 = vmatprep.subr.mxu0 0.0
        %612 = vmatpush1.msra.mxu0 0.0
        %613 = vmatprep.subr.mxu0 0.0
        %614 = vmatpush1.msra.mxu0 0.0
        %615 = vmatprep.subr.mxu0 0.0
        %616 = vmatpush1.msra.mxu0 0.0
        %617 = vmatprep.subr.mxu0 0.0
        %618 = vmatpush1.msra.mxu0 0.0
        %619 = vmatprep.subr.mxu0 0.0
        %620 = vmatpush1.msra.mxu0 0.0
        %621 = vmatprep.subr.mxu0 0.0
        %622 = vmatpush1.msra.mxu0 0.0
        %623 = vmatprep.subr.mxu0 0.0
        %624 = vmatpush1.msra.mxu0 0.0
        %625 = vmatprep.subr.mxu0 0.0
        %626 = vmatpush1.msra.mxu0 0.0
        %627 = vmatprep.subr.mxu0 0.0
        %628 = vmatpush1.msra.mxu0 0.0
        %629 = vmatprep.subr.mxu0 0.0
        %630 = vmatpush1.msra.mxu0 0.0
        %631 = vmatprep.subr.mxu0 %v587
        %632 = vmatpush1.msra.mxu0 %v586
        %633 = vmatprep.subr.mxu0 %v585
        %634 = vmatpush1.msra.mxu0 %v584
        %635 = vmatprep.subr.mxu0 %v583
        %636 = vmatpush1.msra.mxu0 %v582
        %637 = vmatprep.subr.mxu0 %v581
        %638 = vmatpush1.msra.mxu0 %v580
        %639 = vmatprep.subr.mxu0 0.0
        %640 = vmatpush2.msra.mxu0 0.0
        %641 = vmatprep.subr.mxu0 0.0
        %642 = vmatpush2.msra.mxu0 0.0
        %643 = vmatprep.subr.mxu0 0.0
        %644 = vmatpush2.msra.mxu0 0.0
        %645 = vmatprep.subr.mxu0 0.0
        %646 = vmatpush2.msra.mxu0 0.0
        %647 = vmatprep.subr.mxu0 0.0
        %648 = vmatpush2.msra.mxu0 0.0
        %649 = vmatprep.subr.mxu0 0.0
        %650 = vmatpush2.msra.mxu0 0.0
        %651 = vmatprep.subr.mxu0 0.0
        %652 = vmatpush2.msra.mxu0 0.0
        %653 = vmatprep.subr.mxu0 0.0
        %654 = vmatpush2.msra.mxu0 0.0
        %655 = vmatprep.subr.mxu0 0.0
        %656 = vmatpush2.msra.mxu0 0.0
        %657 = vmatprep.subr.mxu0 0.0
        %658 = vmatpush2.msra.mxu0 0.0
        %659 = vmatprep.subr.mxu0 0.0
        %660 = vmatpush2.msra.mxu0 0.0
        %661 = vmatprep.subr.mxu0 0.0
        %662 = vmatpush2.msra.mxu0 0.0
        %663 = vmatprep.subr.mxu0 0.0
        %664 = vmatpush2.msra.mxu0 0.0
        %665 = vmatprep.subr.mxu0 0.0
        %666 = vmatpush2.msra.mxu0 0.0
        %667 = vmatprep.subr.mxu0 0.0
        %668 = vmatpush2.msra.mxu0 0.0
        %669 = vmatprep.subr.mxu0 0.0
        %670 = vmatpush2.msra.mxu0 0.0
        %671 = vmatprep.mubr.f32.mxu0 0.0
        %672 = vmatmul.mubr.f32.gmra.mxu0 %v605
        %v673 = vpop.f32.mrf.mxu0
        %v674 = vadd.f32 0.0, %v673
        %v675 = vpop.f32.mrf.mxu0
        %v676 = vadd.f32 0.0, %v675
        %677 = vdwg.mxu0
        %v679 = vsel %vm604, %v597, 0
        %681 = vmatprep.subr.mxu0 0.0
        %682 = vmatpush1.msra.mxu0 0.0
        %683 = vmatprep.subr.mxu0 0.0
        %684 = vmatpush1.msra.mxu0 0.0
        %685 = vmatprep.subr.mxu0 0.0
        %686 = vmatpush1.msra.mxu0 0.0
        %687 = vmatprep.subr.mxu0 0.0
        %688 = vmatpush1.msra.mxu0 0.0
        %689 = vmatprep.subr.mxu0 0.0
        %690 = vmatpush1.msra.mxu0 0.0
        %691 = vmatprep.subr.mxu0 0.0
        %692 = vmatpush1.msra.mxu0 0.0
        %693 = vmatprep.subr.mxu0 0.0
        %694 = vmatpush1.msra.mxu0 0.0
        %695 = vmatprep.subr.mxu0 0.0
        %696 = vmatpush1.msra.mxu0 0.0
        %697 = vmatprep.subr.mxu0 0.0
        %698 = vmatpush1.msra.mxu0 0.0
        %699 = vmatprep.subr.mxu0 0.0
        %700 = vmatpush1.msra.mxu0 0.0
        %701 = vmatprep.subr.mxu0 0.0
        %702 = vmatpush1.msra.mxu0 0.0
        %703 = vmatprep.subr.mxu0 0.0
        %704 = vmatpush1.msra.mxu0 0.0
        %705 = vmatprep.subr.mxu0 0.0
        %706 = vmatpush1.msra.mxu0 %v591
        %707 = vmatprep.subr.mxu0 0.0
        %708 = vmatpush1.msra.mxu0 %v590
        %709 = vmatprep.subr.mxu0 0.0
        %710 = vmatpush1.msra.mxu0 %v589
        %711 = vmatprep.subr.mxu0 0.0
        %712 = vmatpush1.msra.mxu0 %v588
        %713 = vmatprep.subr.mxu0 0.0
        %714 = vmatpush2.msra.mxu0 0.0
        %715 = vmatprep.subr.mxu0 0.0
        %716 = vmatpush2.msra.mxu0 0.0
        %717 = vmatprep.subr.mxu0 0.0
        %718 = vmatpush2.msra.mxu0 0.0
        %719 = vmatprep.subr.mxu0 0.0
        %720 = vmatpush2.msra.mxu0 0.0
        %721 = vmatprep.subr.mxu0 0.0
        %722 = vmatpush2.msra.mxu0 0.0
        %723 = vmatprep.subr.mxu0 0.0
        %724 = vmatpush2.msra.mxu0 0.0
        %725 = vmatprep.subr.mxu0 0.0
        %726 = vmatpush2.msra.mxu0 0.0
        %727 = vmatprep.subr.mxu0 0.0
        %728 = vmatpush2.msra.mxu0 0.0
        %729 = vmatprep.subr.mxu0 0.0
        %730 = vmatpush2.msra.mxu0 0.0
        %731 = vmatprep.subr.mxu0 0.0
        %732 = vmatpush2.msra.mxu0 0.0
        %733 = vmatprep.subr.mxu0 0.0
        %734 = vmatpush2.msra.mxu0 0.0
        %735 = vmatprep.subr.mxu0 0.0
        %736 = vmatpush2.msra.mxu0 0.0
        %737 = vmatprep.subr.mxu0 0.0
        %738 = vmatpush2.msra.mxu0 0.0
        %739 = vmatprep.subr.mxu0 0.0
        %740 = vmatpush2.msra.mxu0 0.0
        %741 = vmatprep.subr.mxu0 0.0
        %742 = vmatpush2.msra.mxu0 0.0
        %743 = vmatprep.subr.mxu0 0.0
        %744 = vmatpush2.msra.mxu0 0.0
        %745 = vmatprep.mubr.f32.mxu0 0.0
        %746 = vmatmul.mubr.f32.gmra.mxu0 %v679
        %v747 = vpop.f32.mrf.mxu0
        %v748 = vadd.f32 0.0, %v747
        %v749 = vpop.f32.mrf.mxu0
        %750 = vdwg.mxu0
        %v751 = vmul.f32 %v674, %v748
        %v753 = vsel %vm604, %v751, 0
        %755 = vmatprep.subr.mxu0 0.0
        %756 = vmatpush1.msra.mxu0 0.0
        %757 = vmatprep.subr.mxu0 0.0
        %758 = vmatpush1.msra.mxu0 0.0
        %759 = vmatprep.subr.mxu0 0.0
        %760 = vmatpush1.msra.mxu0 0.0
        %761 = vmatprep.subr.mxu0 0.0
        %762 = vmatpush1.msra.mxu0 0.0
        %763 = vmatprep.subr.mxu0 0.0
        %764 = vmatpush1.msra.mxu0 0.0
        %765 = vmatprep.subr.mxu0 0.0
        %766 = vmatpush1.msra.mxu0 0.0
        %767 = vmatprep.subr.mxu0 0.0
        %768 = vmatpush1.msra.mxu0 0.0
        %769 = vmatprep.subr.mxu0 0.0
        %770 = vmatpush1.msra.mxu0 0.0
        %771 = vmatprep.subr.mxu0 0.0
        %772 = vmatpush1.msra.mxu0 0.0
        %773 = vmatprep.subr.mxu0 0.0
        %774 = vmatpush1.msra.mxu0 0.0
        %775 = vmatprep.subr.mxu0 0.0
        %776 = vmatpush1.msra.mxu0 0.0
        %777 = vmatprep.subr.mxu0 0.0
        %778 = vmatpush1.msra.mxu0 0.0
        %779 = vmatprep.subr.mxu0 0.0
        %780 = vmatpush1.msra.mxu0 %v595
        %781 = vmatprep.subr.mxu0 0.0
        %782 = vmatpush1.msra.mxu0 %v594
        %783 = vmatprep.subr.mxu0 0.0
        %784 = vmatpush1.msra.mxu0 %v593
        %785 = vmatprep.subr.mxu0 0.0
        %786 = vmatpush1.msra.mxu0 %v592
        %787 = vmatprep.subr.mxu0 0.0
        %788 = vmatpush2.msra.mxu0 0.0
        %789 = vmatprep.subr.mxu0 0.0
        %790 = vmatpush2.msra.mxu0 0.0
        %791 = vmatprep.subr.mxu0 0.0
        %792 = vmatpush2.msra.mxu0 0.0
        %793 = vmatprep.subr.mxu0 0.0
        %794 = vmatpush2.msra.mxu0 0.0
        %795 = vmatprep.subr.mxu0 0.0
        %796 = vmatpush2.msra.mxu0 0.0
        %797 = vmatprep.subr.mxu0 0.0
        %798 = vmatpush2.msra.mxu0 0.0
        %799 = vmatprep.subr.mxu0 0.0
        %800 = vmatpush2.msra.mxu0 0.0
        %801 = vmatprep.subr.mxu0 0.0
        %802 = vmatpush2.msra.mxu0 0.0
        %803 = vmatprep.subr.mxu0 0.0
        %804 = vmatpush2.msra.mxu0 0.0
        %805 = vmatprep.subr.mxu0 0.0
        %806 = vmatpush2.msra.mxu0 0.0
        %807 = vmatprep.subr.mxu0 0.0
        %808 = vmatpush2.msra.mxu0 0.0
        %809 = vmatprep.subr.mxu0 0.0
        %810 = vmatpush2.msra.mxu0 0.0
        %811 = vmatprep.subr.mxu0 0.0
        %812 = vmatpush2.msra.mxu0 0.0
        %813 = vmatprep.subr.mxu0 0.0
        %814 = vmatpush2.msra.mxu0 0.0
        %815 = vmatprep.subr.mxu0 0.0
        %816 = vmatpush2.msra.mxu0 0.0
        %817 = vmatprep.subr.mxu0 0.0
        %818 = vmatpush2.msra.mxu0 0.0
        %819 = vmatprep.mubr.f32.mxu0 0.0
        %820 = vmatmul.mubr.f32.gmra.mxu0 %v753
        %v821 = vpop.f32.mrf.mxu0
        %v822 = vadd.f32 0.0, %v821
        %v823 = vpop.f32.mrf.mxu0
        %824 = vdwg.mxu0
        %826 = vrot.lane.b32.xlu0 %v822, 32
        %v827 = vpop.permute.xlu0 %826
        %v829 = vadd.f32 %v674, %v827
        %v830 = vadd.f32 %v676, %v827
        %v832 = vlaneseq
        %v833 = vshrl.u32 %v832, 7
        %v834 = vsub.s32 0, %v833
        %v835 = vrot.slane %v596, %v834
        %836 = vrot.lane.b32.xlu0 %v835, 32
        %v837 = vpop.permute.xlu0 %836
        %v839 = vadd.f32 %v829, %v837
        %v840 = vadd.f32 %v830, %v837
        %v841 = vxor.u32 %v839, 2147483648
        %v842 = vmul.f32 %v841, 1.442695
        %v843 = vpow.pop %v842
        %v844 = vadd.f32 %v843, 1.0
        %v845 = vrcp.pop %v844
        %v846 = vmul.f32 1.0, %v845
        %v847 = vtanh.pop %v840
        %849 = vrot.lane.b32.xlu0 %v598, 64
        %v850 = vpop.permute.xlu0 %849
        %v852 = vmul.f32 %v846, %v850
        %854 = vrot.lane.b32.xlu0 %v847, 32
        %v855 = vpop.permute.xlu0 %854
        %v857 = vmul.f32 %v846, %v855
        %859 = vrot.lane.b32.xlu0 %v857, 32
        %v860 = vpop.permute.xlu0 %859
        %v862 = vadd.f32 %v852, %v860
        %v863 = vtanh.pop %v862
        %865 = vrot.lane.b32.xlu0 %v863, 32
        %v866 = vpop.permute.xlu0 %865
        %v868 = vmul.f32 %v846, %v866
        %869 = vrot.lane.b32.xlu0 %v597, 96
        %v870 = vpop.permute.xlu0 %869
        %v872 = vsub.f32 %v868, %v870
        %874 = vset.pattern.permute.xlu0 0
        %875 = vperm.xlu0 %874, %v578
        %v876 = vpop.permute.xlu0 %875
        %879 = vset.pattern.permute.xlu0 0
        %880 = vperm.xlu0 %879, %v579
        %v881 = vpop.permute.xlu0 %880
        %v884 = vrot.slane %v872, 1
        %885 = vrot.lane.b32.xlu0 %v872, 32
        %v886 = vpop.permute.xlu0 %885
        %887 = vrot.lane.b32.xlu0 %v884, 32
        %v888 = vpop.permute.xlu0 %887
        %v891 = vmul.f32 %v876, %v886
        %v892 = vmul.f32 %v881, %v888
        %v895 = vrot.slane %v892, 7
        %v896 = vsel %vm602, %v895, %v891
        %v898 = vadd.f32 %v597, %v896
        %v899 = vsub.f32 %v862, %v850
        %v901 = vrot.slane %v899, 1
        %902 = vrot.lane.b32.xlu0 %v899, 64
        %v903 = vpop.permute.xlu0 %902
        %904 = vrot.lane.b32.xlu0 %v901, 64
        %v905 = vpop.permute.xlu0 %904
        %v908 = vmul.f32 %v876, %v903
        %v909 = vmul.f32 %v881, %v905
        %v912 = vrot.slane %v909, 7
        %v913 = vsel %vm602, %v912, %v908
        %v915 = vadd.f32 %v598, %v913
        %v918 = vunpack.c.l.s4 1966171168
        %v919 = vunpack.c.0.s8 %v918
        %v920 = vlaneseq
        %v921 = vshrl.u32 %v920, 7
        %v922 = vsub.s32 %v919, %v921
        %v923 = vrot.slane %v898, %v922
        %v924 = vcombine.high %v923, %v923
        %v926 = vunpack.c.l.s4 1966171168
        %v927 = vunpack.c.0.s8 %v926
        %v928 = vlaneseq
        %v929 = vshrl.u32 %v928, 7
        %v930 = vsub.s32 %v927, %v929
        %v931 = vrot.slane %v923, %v930
        %v933 = vunpack.c.l.s4 1966171168
        %v934 = vunpack.c.0.s8 %v933
        %v935 = vlaneseq
        %v936 = vshrl.u32 %v935, 7
        %v937 = vsub.s32 %v934, %v936
        %v938 = vrot.slane %v924, %v937
        %vm941 = vcmask 253952
        %942 = vst.msk [vmem:[%s551] sm:$0x1] %vm941, %v931
        %943 = vst.msk [vmem:[%s551 + $0x8] sm:$0x1] %vm941, %v938
        %v944 = vrot.slane %v576, 1
        %v945 = vsel %vm602, %v577, %v944
        %v946 = vsel %vm604, %v945, 0
        %948 = vmatprep.subr.mxu0 0.0
        %949 = vmatpush1.msra.mxu0 0.0
        %950 = vmatprep.subr.mxu0 0.0
        %951 = vmatpush1.msra.mxu0 0.0
        %952 = vmatprep.subr.mxu0 0.0
        %953 = vmatpush1.msra.mxu0 0.0
        %954 = vmatprep.subr.mxu0 0.0
        %955 = vmatpush1.msra.mxu0 0.0
        %956 = vmatprep.subr.mxu0 0.0
        %957 = vmatpush1.msra.mxu0 0.0
        %958 = vmatprep.subr.mxu0 0.0
        %959 = vmatpush1.msra.mxu0 0.0
        %960 = vmatprep.subr.mxu0 0.0
        %961 = vmatpush1.msra.mxu0 0.0
        %962 = vmatprep.subr.mxu0 0.0
        %963 = vmatpush1.msra.mxu0 0.0
        %964 = vmatprep.subr.mxu0 0.0
        %965 = vmatpush1.msra.mxu0 0.0
        %966 = vmatprep.subr.mxu0 0.0
        %967 = vmatpush1.msra.mxu0 0.0
        %968 = vmatprep.subr.mxu0 0.0
        %969 = vmatpush1.msra.mxu0 0.0
        %970 = vmatprep.subr.mxu0 0.0
        %971 = vmatpush1.msra.mxu0 0.0
        %972 = vmatprep.subr.mxu0 %v587
        %973 = vmatpush1.msra.mxu0 %v586
        %974 = vmatprep.subr.mxu0 %v585
        %975 = vmatpush1.msra.mxu0 %v584
        %976 = vmatprep.subr.mxu0 %v583
        %977 = vmatpush1.msra.mxu0 %v582
        %978 = vmatprep.subr.mxu0 %v581
        %979 = vmatpush1.msra.mxu0 %v580
        %980 = vmatprep.subr.mxu0 0.0
        %981 = vmatpush2.msra.mxu0 0.0
        %982 = vmatprep.subr.mxu0 0.0
        %983 = vmatpush2.msra.mxu0 0.0
        %984 = vmatprep.subr.mxu0 0.0
        %985 = vmatpush2.msra.mxu0 0.0
        %986 = vmatprep.subr.mxu0 0.0
        %987 = vmatpush2.msra.mxu0 0.0
        %988 = vmatprep.subr.mxu0 0.0
        %989 = vmatpush2.msra.mxu0 0.0
        %990 = vmatprep.subr.mxu0 0.0
        %991 = vmatpush2.msra.mxu0 0.0
        %992 = vmatprep.subr.mxu0 0.0
        %993 = vmatpush2.msra.mxu0 0.0
        %994 = vmatprep.subr.mxu0 0.0
        %995 = vmatpush2.msra.mxu0 0.0
        %996 = vmatprep.subr.mxu0 0.0
        %997 = vmatpush2.msra.mxu0 0.0
        %998 = vmatprep.subr.mxu0 0.0
        %999 = vmatpush2.msra.mxu0 0.0
        %1000 = vmatprep.subr.mxu0 0.0
        %1001 = vmatpush2.msra.mxu0 0.0
        %1002 = vmatprep.subr.mxu0 0.0
        %1003 = vmatpush2.msra.mxu0 0.0
        %1004 = vmatprep.subr.mxu0 0.0
        %1005 = vmatpush2.msra.mxu0 0.0
        %1006 = vmatprep.subr.mxu0 0.0
        %1007 = vmatpush2.msra.mxu0 0.0
        %1008 = vmatprep.subr.mxu0 0.0
        %1009 = vmatpush2.msra.mxu0 0.0
        %1010 = vmatprep.subr.mxu0 0.0
        %1011 = vmatpush2.msra.mxu0 0.0
        %1012 = vmatprep.mubr.f32.mxu0 0.0
        %1013 = vmatmul.mubr.f32.gmra.mxu0 %v946
        %v1014 = vpop.f32.mrf.mxu0
        %v1015 = vadd.f32 0.0, %v1014
        %v1016 = vpop.f32.mrf.mxu0
        %v1017 = vadd.f32 0.0, %v1016
        %1018 = vdwg.mxu0
        %v1019 = vsel %vm604, %v898, 0
        %1021 = vmatprep.subr.mxu0 0.0
        %1022 = vmatpush1.msra.mxu0 0.0
        %1023 = vmatprep.subr.mxu0 0.0
        %1024 = vmatpush1.msra.mxu0 0.0
        %1025 = vmatprep.subr.mxu0 0.0
        %1026 = vmatpush1.msra.mxu0 0.0
        %1027 = vmatprep.subr.mxu0 0.0
        %1028 = vmatpush1.msra.mxu0 0.0
        %1029 = vmatprep.subr.mxu0 0.0
        %1030 = vmatpush1.msra.mxu0 0.0
        %1031 = vmatprep.subr.mxu0 0.0
        %1032 = vmatpush1.msra.mxu0 0.0
        %1033 = vmatprep.subr.mxu0 0.0
        %1034 = vmatpush1.msra.mxu0 0.0
        %1035 = vmatprep.subr.mxu0 0.0
        %1036 = vmatpush1.msra.mxu0 0.0
        %1037 = vmatprep.subr.mxu0 0.0
        %1038 = vmatpush1.msra.mxu0 0.0
        %1039 = vmatprep.subr.mxu0 0.0
        %1040 = vmatpush1.msra.mxu0 0.0
        %1041 = vmatprep.subr.mxu0 0.0
        %1042 = vmatpush1.msra.mxu0 0.0
        %1043 = vmatprep.subr.mxu0 0.0
        %1044 = vmatpush1.msra.mxu0 0.0
        %1045 = vmatprep.subr.mxu0 0.0
        %1046 = vmatpush1.msra.mxu0 %v591
        %1047 = vmatprep.subr.mxu0 0.0
        %1048 = vmatpush1.msra.mxu0 %v590
        %1049 = vmatprep.subr.mxu0 0.0
        %1050 = vmatpush1.msra.mxu0 %v589
        %1051 = vmatprep.subr.mxu0 0.0
        %1052 = vmatpush1.msra.mxu0 %v588
        %1053 = vmatprep.subr.mxu0 0.0
        %1054 = vmatpush2.msra.mxu0 0.0
        %1055 = vmatprep.subr.mxu0 0.0
        %1056 = vmatpush2.msra.mxu0 0.0
        %1057 = vmatprep.subr.mxu0 0.0
        %1058 = vmatpush2.msra.mxu0 0.0
        %1059 = vmatprep.subr.mxu0 0.0
        %1060 = vmatpush2.msra.mxu0 0.0
        %1061 = vmatprep.subr.mxu0 0.0
        %1062 = vmatpush2.msra.mxu0 0.0
        %1063 = vmatprep.subr.mxu0 0.0
        %1064 = vmatpush2.msra.mxu0 0.0
        %1065 = vmatprep.subr.mxu0 0.0
        %1066 = vmatpush2.msra.mxu0 0.0
        %1067 = vmatprep.subr.mxu0 0.0
        %1068 = vmatpush2.msra.mxu0 0.0
        %1069 = vmatprep.subr.mxu0 0.0
        %1070 = vmatpush2.msra.mxu0 0.0
        %1071 = vmatprep.subr.mxu0 0.0
        %1072 = vmatpush2.msra.mxu0 0.0
        %1073 = vmatprep.subr.mxu0 0.0
        %1074 = vmatpush2.msra.mxu0 0.0
        %1075 = vmatprep.subr.mxu0 0.0
        %1076 = vmatpush2.msra.mxu0 0.0
        %1077 = vmatprep.subr.mxu0 0.0
        %1078 = vmatpush2.msra.mxu0 0.0
        %1079 = vmatprep.subr.mxu0 0.0
        %1080 = vmatpush2.msra.mxu0 0.0
        %1081 = vmatprep.subr.mxu0 0.0
        %1082 = vmatpush2.msra.mxu0 0.0
        %1083 = vmatprep.subr.mxu0 0.0
        %1084 = vmatpush2.msra.mxu0 0.0
        %1085 = vmatprep.mubr.f32.mxu0 0.0
        %1086 = vmatmul.mubr.f32.gmra.mxu0 %v1019
        %v1087 = vpop.f32.mrf.mxu0
        %v1088 = vadd.f32 0.0, %v1087
        %v1089 = vpop.f32.mrf.mxu0
        %1090 = vdwg.mxu0
        %v1091 = vmul.f32 %v1015, %v1088
        %v1093 = vsel %vm604, %v1091, 0
        %1095 = vmatprep.subr.mxu0 0.0
        %1096 = vmatpush1.msra.mxu0 0.0
        %1097 = vmatprep.subr.mxu0 0.0
        %1098 = vmatpush1.msra.mxu0 0.0
        %1099 = vmatprep.subr.mxu0 0.0
        %1100 = vmatpush1.msra.mxu0 0.0
        %1101 = vmatprep.subr.mxu0 0.0
        %1102 = vmatpush1.msra.mxu0 0.0
        %1103 = vmatprep.subr.mxu0 0.0
        %1104 = vmatpush1.msra.mxu0 0.0
        %1105 = vmatprep.subr.mxu0 0.0
        %1106 = vmatpush1.msra.mxu0 0.0
        %1107 = vmatprep.subr.mxu0 0.0
        %1108 = vmatpush1.msra.mxu0 0.0
        %1109 = vmatprep.subr.mxu0 0.0
        %1110 = vmatpush1.msra.mxu0 0.0
        %1111 = vmatprep.subr.mxu0 0.0
        %1112 = vmatpush1.msra.mxu0 0.0
        %1113 = vmatprep.subr.mxu0 0.0
        %1114 = vmatpush1.msra.mxu0 0.0
        %1115 = vmatprep.subr.mxu0 0.0
        %1116 = vmatpush1.msra.mxu0 0.0
        %1117 = vmatprep.subr.mxu0 0.0
        %1118 = vmatpush1.msra.mxu0 0.0
        %1119 = vmatprep.subr.mxu0 0.0
        %1120 = vmatpush1.msra.mxu0 %v595
        %1121 = vmatprep.subr.mxu0 0.0
        %1122 = vmatpush1.msra.mxu0 %v594
        %1123 = vmatprep.subr.mxu0 0.0
        %1124 = vmatpush1.msra.mxu0 %v593
        %1125 = vmatprep.subr.mxu0 0.0
        %1126 = vmatpush1.msra.mxu0 %v592
        %1127 = vmatprep.subr.mxu0 0.0
        %1128 = vmatpush2.msra.mxu0 0.0
        %1129 = vmatprep.subr.mxu0 0.0
        %1130 = vmatpush2.msra.mxu0 0.0
        %1131 = vmatprep.subr.mxu0 0.0
        %1132 = vmatpush2.msra.mxu0 0.0
        %1133 = vmatprep.subr.mxu0 0.0
        %1134 = vmatpush2.msra.mxu0 0.0
        %1135 = vmatprep.subr.mxu0 0.0
        %1136 = vmatpush2.msra.mxu0 0.0
        %1137 = vmatprep.subr.mxu0 0.0
        %1138 = vmatpush2.msra.mxu0 0.0
        %1139 = vmatprep.subr.mxu0 0.0
        %1140 = vmatpush2.msra.mxu0 0.0
        %1141 = vmatprep.subr.mxu0 0.0
        %1142 = vmatpush2.msra.mxu0 0.0
        %1143 = vmatprep.subr.mxu0 0.0
        %1144 = vmatpush2.msra.mxu0 0.0
        %1145 = vmatprep.subr.mxu0 0.0
        %1146 = vmatpush2.msra.mxu0 0.0
        %1147 = vmatprep.subr.mxu0 0.0
        %1148 = vmatpush2.msra.mxu0 0.0
        %1149 = vmatprep.subr.mxu0 0.0
        %1150 = vmatpush2.msra.mxu0 0.0
        %1151 = vmatprep.subr.mxu0 0.0
        %1152 = vmatpush2.msra.mxu0 0.0
        %1153 = vmatprep.subr.mxu0 0.0
        %1154 = vmatpush2.msra.mxu0 0.0
        %1155 = vmatprep.subr.mxu0 0.0
        %1156 = vmatpush2.msra.mxu0 0.0
        %1157 = vmatprep.subr.mxu0 0.0
        %1158 = vmatpush2.msra.mxu0 0.0
        %1159 = vmatprep.mubr.f32.mxu0 0.0
        %1160 = vmatmul.mubr.f32.gmra.mxu0 %v1093
        %v1161 = vpop.f32.mrf.mxu0
        %v1162 = vadd.f32 0.0, %v1161
        %v1163 = vpop.f32.mrf.mxu0
        %1164 = vdwg.mxu0
        %1166 = vrot.lane.b32.xlu0 %v1162, 32
        %v1167 = vpop.permute.xlu0 %1166
        %v1169 = vadd.f32 %v1015, %v1167
        %v1170 = vadd.f32 %v1017, %v1167
        %v1171 = vadd.f32 %v1169, %v837
        %v1172 = vadd.f32 %v1170, %v837
        %v1173 = vxor.u32 %v1171, 2147483648
        %v1174 = vmul.f32 %v1173, 1.442695
        %v1175 = vpow.pop %v1174
        %v1176 = vadd.f32 %v1175, 1.0
        %v1177 = vrcp.pop %v1176
        %v1178 = vmul.f32 1.0, %v1177
        %v1179 = vtanh.pop %v1172
        %1181 = vrot.lane.b32.xlu0 %v915, 64
        %v1182 = vpop.permute.xlu0 %1181
        %v1184 = vmul.f32 %v1178, %v1182
        %1186 = vrot.lane.b32.xlu0 %v1179, 32
        %v1187 = vpop.permute.xlu0 %1186
        %v1189 = vmul.f32 %v1178, %v1187
        %1191 = vrot.lane.b32.xlu0 %v1189, 32
        %v1192 = vpop.permute.xlu0 %1191
        %v1194 = vadd.f32 %v1184, %v1192
        %v1195 = vtanh.pop %v1194
        %1197 = vrot.lane.b32.xlu0 %v1195, 32
        %v1198 = vpop.permute.xlu0 %1197
        %v1200 = vmul.f32 %v1178, %v1198
        %1201 = vrot.lane.b32.xlu0 %v898, 96
        %v1202 = vpop.permute.xlu0 %1201
        %v1204 = vsub.f32 %v1200, %v1202
        %v1206 = vrot.slane %v1204, 7
        %1207 = vrot.lane.b32.xlu0 %v1206, 32
        %v1208 = vpop.permute.xlu0 %1207
        %1209 = vrot.lane.b32.xlu0 %v1204, 32
        %v1210 = vpop.permute.xlu0 %1209
        %v1213 = vmul.f32 %v876, %v1208
        %v1214 = vmul.f32 %v881, %v1210
        %v1217 = vrot.slane %v1213, 1
        %v1218 = vsel %vm602, %v1214, %v1217
        %v1220 = vadd.f32 %v898, %v1218
        %v1221 = vsub.f32 %v1194, %v1182
        %v1223 = vrot.slane %v1221, 7
        %1224 = vrot.lane.b32.xlu0 %v1223, 64
        %v1225 = vpop.permute.xlu0 %1224
        %1226 = vrot.lane.b32.xlu0 %v1221, 64
        %v1227 = vpop.permute.xlu0 %1226
        %v1230 = vmul.f32 %v876, %v1225
        %v1231 = vmul.f32 %v881, %v1227
        %v1234 = vrot.slane %v1230, 1
        %v1235 = vsel %vm602, %v1231, %v1234
        %v1237 = vadd.f32 %v915, %v1235
        %v1240 = vunpack.c.l.s4 1966171168
        %v1241 = vunpack.c.0.s8 %v1240
        %v1242 = vlaneseq
        %v1243 = vshrl.u32 %v1242, 7
        %v1244 = vsub.s32 %v1241, %v1243
        %v1245 = vrot.slane %v1220, %v1244
        %v1246 = vcombine.high %v1245, %v1245
        %v1248 = vunpack.c.l.s4 1966171168
        %v1249 = vunpack.c.0.s8 %v1248
        %v1250 = vlaneseq
        %v1251 = vshrl.u32 %v1250, 7
        %v1252 = vsub.s32 %v1249, %v1251
        %v1253 = vrot.slane %v1245, %v1252
        %v1255 = vunpack.c.l.s4 1966171168
        %v1256 = vunpack.c.0.s8 %v1255
        %v1257 = vlaneseq
        %v1258 = vshrl.u32 %v1257, 7
        %v1259 = vsub.s32 %v1256, %v1258
        %v1260 = vrot.slane %v1246, %v1259
        %1263 = vst.msk [vmem:[%s551 + $0x1] sm:$0x1] %vm941, %v1253
        %1264 = vst.msk [vmem:[%s551 + $0x9] sm:$0x1] %vm941, %v1260
        %v1265 = vrot.slane %v576, 2
        %v1266 = vrot.slane %v577, 1
        %v1267 = vsel %vm602, %v1266, %v1265
        %v1268 = vsel %vm604, %v1267, 0
        %1270 = vmatprep.subr.mxu0 0.0
        %1271 = vmatpush1.msra.mxu0 0.0
        %1272 = vmatprep.subr.mxu0 0.0
        %1273 = vmatpush1.msra.mxu0 0.0
        %1274 = vmatprep.subr.mxu0 0.0
        %1275 = vmatpush1.msra.mxu0 0.0
        %1276 = vmatprep.subr.mxu0 0.0
        %1277 = vmatpush1.msra.mxu0 0.0
        %1278 = vmatprep.subr.mxu0 0.0
        %1279 = vmatpush1.msra.mxu0 0.0
        %1280 = vmatprep.subr.mxu0 0.0
        %1281 = vmatpush1.msra.mxu0 0.0
        %1282 = vmatprep.subr.mxu0 0.0
        %1283 = vmatpush1.msra.mxu0 0.0
        %1284 = vmatprep.subr.mxu0 0.0
        %1285 = vmatpush1.msra.mxu0 0.0
        %1286 = vmatprep.subr.mxu0 0.0
        %1287 = vmatpush1.msra.mxu0 0.0
        %1288 = vmatprep.subr.mxu0 0.0
        %1289 = vmatpush1.msra.mxu0 0.0
        %1290 = vmatprep.subr.mxu0 0.0
        %1291 = vmatpush1.msra.mxu0 0.0
        %1292 = vmatprep.subr.mxu0 0.0
        %1293 = vmatpush1.msra.mxu0 0.0
        %1294 = vmatprep.subr.mxu0 %v587
        %1295 = vmatpush1.msra.mxu0 %v586
        %1296 = vmatprep.subr.mxu0 %v585
        %1297 = vmatpush1.msra.mxu0 %v584
        %1298 = vmatprep.subr.mxu0 %v583
        %1299 = vmatpush1.msra.mxu0 %v582
        %1300 = vmatprep.subr.mxu0 %v581
        %1301 = vmatpush1.msra.mxu0 %v580
        %1302 = vmatprep.subr.mxu0 0.0
        %1303 = vmatpush2.msra.mxu0 0.0
        %1304 = vmatprep.subr.mxu0 0.0
        %1305 = vmatpush2.msra.mxu0 0.0
        %1306 = vmatprep.subr.mxu0 0.0
        %1307 = vmatpush2.msra.mxu0 0.0
        %1308 = vmatprep.subr.mxu0 0.0
        %1309 = vmatpush2.msra.mxu0 0.0
        %1310 = vmatprep.subr.mxu0 0.0
        %1311 = vmatpush2.msra.mxu0 0.0
        %1312 = vmatprep.subr.mxu0 0.0
        %1313 = vmatpush2.msra.mxu0 0.0
        %1314 = vmatprep.subr.mxu0 0.0
        %1315 = vmatpush2.msra.mxu0 0.0
        %1316 = vmatprep.subr.mxu0 0.0
        %1317 = vmatpush2.msra.mxu0 0.0
        %1318 = vmatprep.subr.mxu0 0.0
        %1319 = vmatpush2.msra.mxu0 0.0
        %1320 = vmatprep.subr.mxu0 0.0
        %1321 = vmatpush2.msra.mxu0 0.0
        %1322 = vmatprep.subr.mxu0 0.0
        %1323 = vmatpush2.msra.mxu0 0.0
        %1324 = vmatprep.subr.mxu0 0.0
        %1325 = vmatpush2.msra.mxu0 0.0
        %1326 = vmatprep.subr.mxu0 0.0
        %1327 = vmatpush2.msra.mxu0 0.0
        %1328 = vmatprep.subr.mxu0 0.0
        %1329 = vmatpush2.msra.mxu0 0.0
        %1330 = vmatprep.subr.mxu0 0.0
        %1331 = vmatpush2.msra.mxu0 0.0
        %1332 = vmatprep.subr.mxu0 0.0
        %1333 = vmatpush2.msra.mxu0 0.0
        %1334 = vmatprep.mubr.f32.mxu0 0.0
        %1335 = vmatmul.mubr.f32.gmra.mxu0 %v1268
        %v1336 = vpop.f32.mrf.mxu0
        %v1337 = vadd.f32 0.0, %v1336
        %v1338 = vpop.f32.mrf.mxu0
        %v1339 = vadd.f32 0.0, %v1338
        %1340 = vdwg.mxu0
        %v1341 = vsel %vm604, %v1220, 0
        %1343 = vmatprep.subr.mxu0 0.0
        %1344 = vmatpush1.msra.mxu0 0.0
        %1345 = vmatprep.subr.mxu0 0.0
        %1346 = vmatpush1.msra.mxu0 0.0
        %1347 = vmatprep.subr.mxu0 0.0
        %1348 = vmatpush1.msra.mxu0 0.0
        %1349 = vmatprep.subr.mxu0 0.0
        %1350 = vmatpush1.msra.mxu0 0.0
        %1351 = vmatprep.subr.mxu0 0.0
        %1352 = vmatpush1.msra.mxu0 0.0
        %1353 = vmatprep.subr.mxu0 0.0
        %1354 = vmatpush1.msra.mxu0 0.0
        %1355 = vmatprep.subr.mxu0 0.0
        %1356 = vmatpush1.msra.mxu0 0.0
        %1357 = vmatprep.subr.mxu0 0.0
        %1358 = vmatpush1.msra.mxu0 0.0
        %1359 = vmatprep.subr.mxu0 0.0
        %1360 = vmatpush1.msra.mxu0 0.0
        %1361 = vmatprep.subr.mxu0 0.0
        %1362 = vmatpush1.msra.mxu0 0.0
        %1363 = vmatprep.subr.mxu0 0.0
        %1364 = vmatpush1.msra.mxu0 0.0
        %1365 = vmatprep.subr.mxu0 0.0
        %1366 = vmatpush1.msra.mxu0 0.0
        %1367 = vmatprep.subr.mxu0 0.0
        %1368 = vmatpush1.msra.mxu0 %v591
        %1369 = vmatprep.subr.mxu0 0.0
        %1370 = vmatpush1.msra.mxu0 %v590
        %1371 = vmatprep.subr.mxu0 0.0
        %1372 = vmatpush1.msra.mxu0 %v589
        %1373 = vmatprep.subr.mxu0 0.0
        %1374 = vmatpush1.msra.mxu0 %v588
        %1375 = vmatprep.subr.mxu0 0.0
        %1376 = vmatpush2.msra.mxu0 0.0
        %1377 = vmatprep.subr.mxu0 0.0
        %1378 = vmatpush2.msra.mxu0 0.0
        %1379 = vmatprep.subr.mxu0 0.0
        %1380 = vmatpush2.msra.mxu0 0.0
        %1381 = vmatprep.subr.mxu0 0.0
        %1382 = vmatpush2.msra.mxu0 0.0
        %1383 = vmatprep.subr.mxu0 0.0
        %1384 = vmatpush2.msra.mxu0 0.0
        %1385 = vmatprep.subr.mxu0 0.0
        %1386 = vmatpush2.msra.mxu0 0.0
        %1387 = vmatprep.subr.mxu0 0.0
        %1388 = vmatpush2.msra.mxu0 0.0
        %1389 = vmatprep.subr.mxu0 0.0
        %1390 = vmatpush2.msra.mxu0 0.0
        %1391 = vmatprep.subr.mxu0 0.0
        %1392 = vmatpush2.msra.mxu0 0.0
        %1393 = vmatprep.subr.mxu0 0.0
        %1394 = vmatpush2.msra.mxu0 0.0
        %1395 = vmatprep.subr.mxu0 0.0
        %1396 = vmatpush2.msra.mxu0 0.0
        %1397 = vmatprep.subr.mxu0 0.0
        %1398 = vmatpush2.msra.mxu0 0.0
        %1399 = vmatprep.subr.mxu0 0.0
        %1400 = vmatpush2.msra.mxu0 0.0
        %1401 = vmatprep.subr.mxu0 0.0
        %1402 = vmatpush2.msra.mxu0 0.0
        %1403 = vmatprep.subr.mxu0 0.0
        %1404 = vmatpush2.msra.mxu0 0.0
        %1405 = vmatprep.subr.mxu0 0.0
        %1406 = vmatpush2.msra.mxu0 0.0
        %1407 = vmatprep.mubr.f32.mxu0 0.0
        %1408 = vmatmul.mubr.f32.gmra.mxu0 %v1341
        %v1409 = vpop.f32.mrf.mxu0
        %v1410 = vadd.f32 0.0, %v1409
        %v1411 = vpop.f32.mrf.mxu0
        %1412 = vdwg.mxu0
        %v1413 = vmul.f32 %v1337, %v1410
        %v1415 = vsel %vm604, %v1413, 0
        %1417 = vmatprep.subr.mxu0 0.0
        %1418 = vmatpush1.msra.mxu0 0.0
        %1419 = vmatprep.subr.mxu0 0.0
        %1420 = vmatpush1.msra.mxu0 0.0
        %1421 = vmatprep.subr.mxu0 0.0
        %1422 = vmatpush1.msra.mxu0 0.0
        %1423 = vmatprep.subr.mxu0 0.0
        %1424 = vmatpush1.msra.mxu0 0.0
        %1425 = vmatprep.subr.mxu0 0.0
        %1426 = vmatpush1.msra.mxu0 0.0
        %1427 = vmatprep.subr.mxu0 0.0
        %1428 = vmatpush1.msra.mxu0 0.0
        %1429 = vmatprep.subr.mxu0 0.0
        %1430 = vmatpush1.msra.mxu0 0.0
        %1431 = vmatprep.subr.mxu0 0.0
        %1432 = vmatpush1.msra.mxu0 0.0
        %1433 = vmatprep.subr.mxu0 0.0
        %1434 = vmatpush1.msra.mxu0 0.0
        %1435 = vmatprep.subr.mxu0 0.0
        %1436 = vmatpush1.msra.mxu0 0.0
        %1437 = vmatprep.subr.mxu0 0.0
        %1438 = vmatpush1.msra.mxu0 0.0
        %1439 = vmatprep.subr.mxu0 0.0
        %1440 = vmatpush1.msra.mxu0 0.0
        %1441 = vmatprep.subr.mxu0 0.0
        %1442 = vmatpush1.msra.mxu0 %v595
        %1443 = vmatprep.subr.mxu0 0.0
        %1444 = vmatpush1.msra.mxu0 %v594
        %1445 = vmatprep.subr.mxu0 0.0
        %1446 = vmatpush1.msra.mxu0 %v593
        %1447 = vmatprep.subr.mxu0 0.0
        %1448 = vmatpush1.msra.mxu0 %v592
        %1449 = vmatprep.subr.mxu0 0.0
        %1450 = vmatpush2.msra.mxu0 0.0
        %1451 = vmatprep.subr.mxu0 0.0
        %1452 = vmatpush2.msra.mxu0 0.0
        %1453 = vmatprep.subr.mxu0 0.0
        %1454 = vmatpush2.msra.mxu0 0.0
        %1455 = vmatprep.subr.mxu0 0.0
        %1456 = vmatpush2.msra.mxu0 0.0
        %1457 = vmatprep.subr.mxu0 0.0
        %1458 = vmatpush2.msra.mxu0 0.0
        %1459 = vmatprep.subr.mxu0 0.0
        %1460 = vmatpush2.msra.mxu0 0.0
        %1461 = vmatprep.subr.mxu0 0.0
        %1462 = vmatpush2.msra.mxu0 0.0
        %1463 = vmatprep.subr.mxu0 0.0
        %1464 = vmatpush2.msra.mxu0 0.0
        %1465 = vmatprep.subr.mxu0 0.0
        %1466 = vmatpush2.msra.mxu0 0.0
        %1467 = vmatprep.subr.mxu0 0.0
        %1468 = vmatpush2.msra.mxu0 0.0
        %1469 = vmatprep.subr.mxu0 0.0
        %1470 = vmatpush2.msra.mxu0 0.0
        %1471 = vmatprep.subr.mxu0 0.0
        %1472 = vmatpush2.msra.mxu0 0.0
        %1473 = vmatprep.subr.mxu0 0.0
        %1474 = vmatpush2.msra.mxu0 0.0
        %1475 = vmatprep.subr.mxu0 0.0
        %1476 = vmatpush2.msra.mxu0 0.0
        %1477 = vmatprep.subr.mxu0 0.0
        %1478 = vmatpush2.msra.mxu0 0.0
        %1479 = vmatprep.subr.mxu0 0.0
        %1480 = vmatpush2.msra.mxu0 0.0
        %1481 = vmatprep.mubr.f32.mxu0 0.0
        %1482 = vmatmul.mubr.f32.gmra.mxu0 %v1415
        %v1483 = vpop.f32.mrf.mxu0
        %v1484 = vadd.f32 0.0, %v1483
        %v1485 = vpop.f32.mrf.mxu0
        %1486 = vdwg.mxu0
        %1488 = vrot.lane.b32.xlu0 %v1484, 32
        %v1489 = vpop.permute.xlu0 %1488
        %v1491 = vadd.f32 %v1337, %v1489
        %v1492 = vadd.f32 %v1339, %v1489
        %v1493 = vadd.f32 %v1491, %v837
        %v1494 = vadd.f32 %v1492, %v837
        %v1495 = vxor.u32 %v1493, 2147483648
        %v1496 = vmul.f32 %v1495, 1.442695
        %v1497 = vpow.pop %v1496
        %v1498 = vadd.f32 %v1497, 1.0
        %v1499 = vrcp.pop %v1498
        %v1500 = vmul.f32 1.0, %v1499
        %v1501 = vtanh.pop %v1494
        %1503 = vrot.lane.b32.xlu0 %v1237, 64
        %v1504 = vpop.permute.xlu0 %1503
        %v1506 = vmul.f32 %v1500, %v1504
        %1508 = vrot.lane.b32.xlu0 %v1501, 32
        %v1509 = vpop.permute.xlu0 %1508
        %v1511 = vmul.f32 %v1500, %v1509
        %1513 = vrot.lane.b32.xlu0 %v1511, 32
        %v1514 = vpop.permute.xlu0 %1513
        %v1516 = vadd.f32 %v1506, %v1514
        %v1517 = vtanh.pop %v1516
        %1519 = vrot.lane.b32.xlu0 %v1517, 32
        %v1520 = vpop.permute.xlu0 %1519
        %v1522 = vmul.f32 %v1500, %v1520
        %1523 = vrot.lane.b32.xlu0 %v1220, 96
        %v1524 = vpop.permute.xlu0 %1523
        %v1526 = vsub.f32 %v1522, %v1524
        %v1528 = vrot.slane %v1526, 6
        %v1529 = vrot.slane %v1526, 7
        %1530 = vrot.lane.b32.xlu0 %v1528, 32
        %v1531 = vpop.permute.xlu0 %1530
        %1532 = vrot.lane.b32.xlu0 %v1529, 32
        %v1533 = vpop.permute.xlu0 %1532
        %v1536 = vmul.f32 %v876, %v1531
        %v1537 = vmul.f32 %v881, %v1533
        %v1540 = vrot.slane %v1536, 2
        %v1541 = vrot.slane %v1537, 1
        %v1542 = vsel %vm602, %v1541, %v1540
        %v1544 = vadd.f32 %v1220, %v1542
        %v1545 = vsub.f32 %v1516, %v1504
        %v1547 = vrot.slane %v1545, 6
        %v1548 = vrot.slane %v1545, 7
        %1549 = vrot.lane.b32.xlu0 %v1547, 64
        %v1550 = vpop.permute.xlu0 %1549
        %1551 = vrot.lane.b32.xlu0 %v1548, 64
        %v1552 = vpop.permute.xlu0 %1551
        %v1555 = vmul.f32 %v876, %v1550
        %v1556 = vmul.f32 %v881, %v1552
        %v1559 = vrot.slane %v1555, 2
        %v1560 = vrot.slane %v1556, 1
        %v1561 = vsel %vm602, %v1560, %v1559
        %v1563 = vadd.f32 %v1237, %v1561
        %v1566 = vunpack.c.l.s4 1966171168
        %v1567 = vunpack.c.0.s8 %v1566
        %v1568 = vlaneseq
        %v1569 = vshrl.u32 %v1568, 7
        %v1570 = vsub.s32 %v1567, %v1569
        %v1571 = vrot.slane %v1544, %v1570
        %v1572 = vcombine.high %v1571, %v1571
        %v1574 = vunpack.c.l.s4 1966171168
        %v1575 = vunpack.c.0.s8 %v1574
        %v1576 = vlaneseq
        %v1577 = vshrl.u32 %v1576, 7
        %v1578 = vsub.s32 %v1575, %v1577
        %v1579 = vrot.slane %v1571, %v1578
        %v1581 = vunpack.c.l.s4 1966171168
        %v1582 = vunpack.c.0.s8 %v1581
        %v1583 = vlaneseq
        %v1584 = vshrl.u32 %v1583, 7
        %v1585 = vsub.s32 %v1582, %v1584
        %v1586 = vrot.slane %v1572, %v1585
        %1589 = vst.msk [vmem:[%s551 + $0x2] sm:$0x1] %vm941, %v1579
        %1590 = vst.msk [vmem:[%s551 + $0xa] sm:$0x1] %vm941, %v1586
        %v1591 = vrot.slane %v576, 3
        %v1592 = vrot.slane %v577, 2
        %v1593 = vsel %vm602, %v1592, %v1591
        %v1594 = vsel %vm604, %v1593, 0
        %1596 = vmatprep.subr.mxu0 0.0
        %1597 = vmatpush1.msra.mxu0 0.0
        %1598 = vmatprep.subr.mxu0 0.0
        %1599 = vmatpush1.msra.mxu0 0.0
        %1600 = vmatprep.subr.mxu0 0.0
        %1601 = vmatpush1.msra.mxu0 0.0
        %1602 = vmatprep.subr.mxu0 0.0
        %1603 = vmatpush1.msra.mxu0 0.0
        %1604 = vmatprep.subr.mxu0 0.0
        %1605 = vmatpush1.msra.mxu0 0.0
        %1606 = vmatprep.subr.mxu0 0.0
        %1607 = vmatpush1.msra.mxu0 0.0
        %1608 = vmatprep.subr.mxu0 0.0
        %1609 = vmatpush1.msra.mxu0 0.0
        %1610 = vmatprep.subr.mxu0 0.0
        %1611 = vmatpush1.msra.mxu0 0.0
        %1612 = vmatprep.subr.mxu0 0.0
        %1613 = vmatpush1.msra.mxu0 0.0
        %1614 = vmatprep.subr.mxu0 0.0
        %1615 = vmatpush1.msra.mxu0 0.0
        %1616 = vmatprep.subr.mxu0 0.0
        %1617 = vmatpush1.msra.mxu0 0.0
        %1618 = vmatprep.subr.mxu0 0.0
        %1619 = vmatpush1.msra.mxu0 0.0
        %1620 = vmatprep.subr.mxu0 %v587
        %1621 = vmatpush1.msra.mxu0 %v586
        %1622 = vmatprep.subr.mxu0 %v585
        %1623 = vmatpush1.msra.mxu0 %v584
        %1624 = vmatprep.subr.mxu0 %v583
        %1625 = vmatpush1.msra.mxu0 %v582
        %1626 = vmatprep.subr.mxu0 %v581
        %1627 = vmatpush1.msra.mxu0 %v580
        %1628 = vmatprep.subr.mxu0 0.0
        %1629 = vmatpush2.msra.mxu0 0.0
        %1630 = vmatprep.subr.mxu0 0.0
        %1631 = vmatpush2.msra.mxu0 0.0
        %1632 = vmatprep.subr.mxu0 0.0
        %1633 = vmatpush2.msra.mxu0 0.0
        %1634 = vmatprep.subr.mxu0 0.0
        %1635 = vmatpush2.msra.mxu0 0.0
        %1636 = vmatprep.subr.mxu0 0.0
        %1637 = vmatpush2.msra.mxu0 0.0
        %1638 = vmatprep.subr.mxu0 0.0
        %1639 = vmatpush2.msra.mxu0 0.0
        %1640 = vmatprep.subr.mxu0 0.0
        %1641 = vmatpush2.msra.mxu0 0.0
        %1642 = vmatprep.subr.mxu0 0.0
        %1643 = vmatpush2.msra.mxu0 0.0
        %1644 = vmatprep.subr.mxu0 0.0
        %1645 = vmatpush2.msra.mxu0 0.0
        %1646 = vmatprep.subr.mxu0 0.0
        %1647 = vmatpush2.msra.mxu0 0.0
        %1648 = vmatprep.subr.mxu0 0.0
        %1649 = vmatpush2.msra.mxu0 0.0
        %1650 = vmatprep.subr.mxu0 0.0
        %1651 = vmatpush2.msra.mxu0 0.0
        %1652 = vmatprep.subr.mxu0 0.0
        %1653 = vmatpush2.msra.mxu0 0.0
        %1654 = vmatprep.subr.mxu0 0.0
        %1655 = vmatpush2.msra.mxu0 0.0
        %1656 = vmatprep.subr.mxu0 0.0
        %1657 = vmatpush2.msra.mxu0 0.0
        %1658 = vmatprep.subr.mxu0 0.0
        %1659 = vmatpush2.msra.mxu0 0.0
        %1660 = vmatprep.mubr.f32.mxu0 0.0
        %1661 = vmatmul.mubr.f32.gmra.mxu0 %v1594
        %v1662 = vpop.f32.mrf.mxu0
        %v1663 = vadd.f32 0.0, %v1662
        %v1664 = vpop.f32.mrf.mxu0
        %v1665 = vadd.f32 0.0, %v1664
        %1666 = vdwg.mxu0
        %v1667 = vsel %vm604, %v1544, 0
        %1669 = vmatprep.subr.mxu0 0.0
        %1670 = vmatpush1.msra.mxu0 0.0
        %1671 = vmatprep.subr.mxu0 0.0
        %1672 = vmatpush1.msra.mxu0 0.0
        %1673 = vmatprep.subr.mxu0 0.0
        %1674 = vmatpush1.msra.mxu0 0.0
        %1675 = vmatprep.subr.mxu0 0.0
        %1676 = vmatpush1.msra.mxu0 0.0
        %1677 = vmatprep.subr.mxu0 0.0
        %1678 = vmatpush1.msra.mxu0 0.0
        %1679 = vmatprep.subr.mxu0 0.0
        %1680 = vmatpush1.msra.mxu0 0.0
        %1681 = vmatprep.subr.mxu0 0.0
        %1682 = vmatpush1.msra.mxu0 0.0
        %1683 = vmatprep.subr.mxu0 0.0
        %1684 = vmatpush1.msra.mxu0 0.0
        %1685 = vmatprep.subr.mxu0 0.0
        %1686 = vmatpush1.msra.mxu0 0.0
        %1687 = vmatprep.subr.mxu0 0.0
        %1688 = vmatpush1.msra.mxu0 0.0
        %1689 = vmatprep.subr.mxu0 0.0
        %1690 = vmatpush1.msra.mxu0 0.0
        %1691 = vmatprep.subr.mxu0 0.0
        %1692 = vmatpush1.msra.mxu0 0.0
        %1693 = vmatprep.subr.mxu0 0.0
        %1694 = vmatpush1.msra.mxu0 %v591
        %1695 = vmatprep.subr.mxu0 0.0
        %1696 = vmatpush1.msra.mxu0 %v590
        %1697 = vmatprep.subr.mxu0 0.0
        %1698 = vmatpush1.msra.mxu0 %v589
        %1699 = vmatprep.subr.mxu0 0.0
        %1700 = vmatpush1.msra.mxu0 %v588
        %1701 = vmatprep.subr.mxu0 0.0
        %1702 = vmatpush2.msra.mxu0 0.0
        %1703 = vmatprep.subr.mxu0 0.0
        %1704 = vmatpush2.msra.mxu0 0.0
        %1705 = vmatprep.subr.mxu0 0.0
        %1706 = vmatpush2.msra.mxu0 0.0
        %1707 = vmatprep.subr.mxu0 0.0
        %1708 = vmatpush2.msra.mxu0 0.0
        %1709 = vmatprep.subr.mxu0 0.0
        %1710 = vmatpush2.msra.mxu0 0.0
        %1711 = vmatprep.subr.mxu0 0.0
        %1712 = vmatpush2.msra.mxu0 0.0
        %1713 = vmatprep.subr.mxu0 0.0
        %1714 = vmatpush2.msra.mxu0 0.0
        %1715 = vmatprep.subr.mxu0 0.0
        %1716 = vmatpush2.msra.mxu0 0.0
        %1717 = vmatprep.subr.mxu0 0.0
        %1718 = vmatpush2.msra.mxu0 0.0
        %1719 = vmatprep.subr.mxu0 0.0
        %1720 = vmatpush2.msra.mxu0 0.0
        %1721 = vmatprep.subr.mxu0 0.0
        %1722 = vmatpush2.msra.mxu0 0.0
        %1723 = vmatprep.subr.mxu0 0.0
        %1724 = vmatpush2.msra.mxu0 0.0
        %1725 = vmatprep.subr.mxu0 0.0
        %1726 = vmatpush2.msra.mxu0 0.0
        %1727 = vmatprep.subr.mxu0 0.0
        %1728 = vmatpush2.msra.mxu0 0.0
        %1729 = vmatprep.subr.mxu0 0.0
        %1730 = vmatpush2.msra.mxu0 0.0
        %1731 = vmatprep.subr.mxu0 0.0
        %1732 = vmatpush2.msra.mxu0 0.0
        %1733 = vmatprep.mubr.f32.mxu0 0.0
        %1734 = vmatmul.mubr.f32.gmra.mxu0 %v1667
        %v1735 = vpop.f32.mrf.mxu0
        %v1736 = vadd.f32 0.0, %v1735
        %v1737 = vpop.f32.mrf.mxu0
        %1738 = vdwg.mxu0
        %v1739 = vmul.f32 %v1663, %v1736
        %v1741 = vsel %vm604, %v1739, 0
        %1743 = vmatprep.subr.mxu0 0.0
        %1744 = vmatpush1.msra.mxu0 0.0
        %1745 = vmatprep.subr.mxu0 0.0
        %1746 = vmatpush1.msra.mxu0 0.0
        %1747 = vmatprep.subr.mxu0 0.0
        %1748 = vmatpush1.msra.mxu0 0.0
        %1749 = vmatprep.subr.mxu0 0.0
        %1750 = vmatpush1.msra.mxu0 0.0
        %1751 = vmatprep.subr.mxu0 0.0
        %1752 = vmatpush1.msra.mxu0 0.0
        %1753 = vmatprep.subr.mxu0 0.0
        %1754 = vmatpush1.msra.mxu0 0.0
        %1755 = vmatprep.subr.mxu0 0.0
        %1756 = vmatpush1.msra.mxu0 0.0
        %1757 = vmatprep.subr.mxu0 0.0
        %1758 = vmatpush1.msra.mxu0 0.0
        %1759 = vmatprep.subr.mxu0 0.0
        %1760 = vmatpush1.msra.mxu0 0.0
        %1761 = vmatprep.subr.mxu0 0.0
        %1762 = vmatpush1.msra.mxu0 0.0
        %1763 = vmatprep.subr.mxu0 0.0
        %1764 = vmatpush1.msra.mxu0 0.0
        %1765 = vmatprep.subr.mxu0 0.0
        %1766 = vmatpush1.msra.mxu0 0.0
        %1767 = vmatprep.subr.mxu0 0.0
        %1768 = vmatpush1.msra.mxu0 %v595
        %1769 = vmatprep.subr.mxu0 0.0
        %1770 = vmatpush1.msra.mxu0 %v594
        %1771 = vmatprep.subr.mxu0 0.0
        %1772 = vmatpush1.msra.mxu0 %v593
        %1773 = vmatprep.subr.mxu0 0.0
        %1774 = vmatpush1.msra.mxu0 %v592
        %1775 = vmatprep.subr.mxu0 0.0
        %1776 = vmatpush2.msra.mxu0 0.0
        %1777 = vmatprep.subr.mxu0 0.0
        %1778 = vmatpush2.msra.mxu0 0.0
        %1779 = vmatprep.subr.mxu0 0.0
        %1780 = vmatpush2.msra.mxu0 0.0
        %1781 = vmatprep.subr.mxu0 0.0
        %1782 = vmatpush2.msra.mxu0 0.0
        %1783 = vmatprep.subr.mxu0 0.0
        %1784 = vmatpush2.msra.mxu0 0.0
        %1785 = vmatprep.subr.mxu0 0.0
        %1786 = vmatpush2.msra.mxu0 0.0
        %1787 = vmatprep.subr.mxu0 0.0
        %1788 = vmatpush2.msra.mxu0 0.0
        %1789 = vmatprep.subr.mxu0 0.0
        %1790 = vmatpush2.msra.mxu0 0.0
        %1791 = vmatprep.subr.mxu0 0.0
        %1792 = vmatpush2.msra.mxu0 0.0
        %1793 = vmatprep.subr.mxu0 0.0
        %1794 = vmatpush2.msra.mxu0 0.0
        %1795 = vmatprep.subr.mxu0 0.0
        %1796 = vmatpush2.msra.mxu0 0.0
        %1797 = vmatprep.subr.mxu0 0.0
        %1798 = vmatpush2.msra.mxu0 0.0
        %1799 = vmatprep.subr.mxu0 0.0
        %1800 = vmatpush2.msra.mxu0 0.0
        %1801 = vmatprep.subr.mxu0 0.0
        %1802 = vmatpush2.msra.mxu0 0.0
        %1803 = vmatprep.subr.mxu0 0.0
        %1804 = vmatpush2.msra.mxu0 0.0
        %1805 = vmatprep.subr.mxu0 0.0
        %1806 = vmatpush2.msra.mxu0 0.0
        %1807 = vmatprep.mubr.f32.mxu0 0.0
        %1808 = vmatmul.mubr.f32.gmra.mxu0 %v1741
        %v1809 = vpop.f32.mrf.mxu0
        %v1810 = vadd.f32 0.0, %v1809
        %v1811 = vpop.f32.mrf.mxu0
        %1812 = vdwg.mxu0
        %1814 = vrot.lane.b32.xlu0 %v1810, 32
        %v1815 = vpop.permute.xlu0 %1814
        %v1817 = vadd.f32 %v1663, %v1815
        %v1818 = vadd.f32 %v1665, %v1815
        %v1819 = vadd.f32 %v1817, %v837
        %v1820 = vadd.f32 %v1818, %v837
        %v1821 = vxor.u32 %v1819, 2147483648
        %v1822 = vmul.f32 %v1821, 1.442695
        %v1823 = vpow.pop %v1822
        %v1824 = vadd.f32 %v1823, 1.0
        %v1825 = vrcp.pop %v1824
        %v1826 = vmul.f32 1.0, %v1825
        %v1827 = vtanh.pop %v1820
        %1829 = vrot.lane.b32.xlu0 %v1563, 64
        %v1830 = vpop.permute.xlu0 %1829
        %v1832 = vmul.f32 %v1826, %v1830
        %1834 = vrot.lane.b32.xlu0 %v1827, 32
        %v1835 = vpop.permute.xlu0 %1834
        %v1837 = vmul.f32 %v1826, %v1835
        %1839 = vrot.lane.b32.xlu0 %v1837, 32
        %v1840 = vpop.permute.xlu0 %1839
        %v1842 = vadd.f32 %v1832, %v1840
        %v1843 = vtanh.pop %v1842
        %1845 = vrot.lane.b32.xlu0 %v1843, 32
        %v1846 = vpop.permute.xlu0 %1845
        %v1848 = vmul.f32 %v1826, %v1846
        %1849 = vrot.lane.b32.xlu0 %v1544, 96
        %v1850 = vpop.permute.xlu0 %1849
        %v1852 = vsub.f32 %v1848, %v1850
        %v1854 = vrot.slane %v1852, 5
        %v1855 = vrot.slane %v1852, 6
        %1856 = vrot.lane.b32.xlu0 %v1854, 32
        %v1857 = vpop.permute.xlu0 %1856
        %1858 = vrot.lane.b32.xlu0 %v1855, 32
        %v1859 = vpop.permute.xlu0 %1858
        %v1862 = vmul.f32 %v876, %v1857
        %v1863 = vmul.f32 %v881, %v1859
        %v1866 = vrot.slane %v1862, 3
        %v1867 = vrot.slane %v1863, 2
        %v1868 = vsel %vm602, %v1867, %v1866
        %v1870 = vadd.f32 %v1544, %v1868
        %v1871 = vsub.f32 %v1842, %v1830
        %v1873 = vrot.slane %v1871, 5
        %v1874 = vrot.slane %v1871, 6
        %1875 = vrot.lane.b32.xlu0 %v1873, 64
        %v1876 = vpop.permute.xlu0 %1875
        %1877 = vrot.lane.b32.xlu0 %v1874, 64
        %v1878 = vpop.permute.xlu0 %1877
        %v1881 = vmul.f32 %v876, %v1876
        %v1882 = vmul.f32 %v881, %v1878
        %v1885 = vrot.slane %v1881, 3
        %v1886 = vrot.slane %v1882, 2
        %v1887 = vsel %vm602, %v1886, %v1885
        %v1889 = vadd.f32 %v1563, %v1887
        %v1892 = vunpack.c.l.s4 1966171168
        %v1893 = vunpack.c.0.s8 %v1892
        %v1894 = vlaneseq
        %v1895 = vshrl.u32 %v1894, 7
        %v1896 = vsub.s32 %v1893, %v1895
        %v1897 = vrot.slane %v1870, %v1896
        %v1898 = vcombine.high %v1897, %v1897
        %v1900 = vunpack.c.l.s4 1966171168
        %v1901 = vunpack.c.0.s8 %v1900
        %v1902 = vlaneseq
        %v1903 = vshrl.u32 %v1902, 7
        %v1904 = vsub.s32 %v1901, %v1903
        %v1905 = vrot.slane %v1897, %v1904
        %v1907 = vunpack.c.l.s4 1966171168
        %v1908 = vunpack.c.0.s8 %v1907
        %v1909 = vlaneseq
        %v1910 = vshrl.u32 %v1909, 7
        %v1911 = vsub.s32 %v1908, %v1910
        %v1912 = vrot.slane %v1898, %v1911
        %1915 = vst.msk [vmem:[%s551 + $0x3] sm:$0x1] %vm941, %v1905
        %1916 = vst.msk [vmem:[%s551 + $0xb] sm:$0x1] %vm941, %v1912
        %v1917 = vrot.slane %v576, 4
        %v1918 = vrot.slane %v577, 3
        %v1919 = vsel %vm602, %v1918, %v1917
        %v1920 = vsel %vm604, %v1919, 0
        %1922 = vmatprep.subr.mxu0 0.0
        %1923 = vmatpush1.msra.mxu0 0.0
        %1924 = vmatprep.subr.mxu0 0.0
        %1925 = vmatpush1.msra.mxu0 0.0
        %1926 = vmatprep.subr.mxu0 0.0
        %1927 = vmatpush1.msra.mxu0 0.0
        %1928 = vmatprep.subr.mxu0 0.0
        %1929 = vmatpush1.msra.mxu0 0.0
        %1930 = vmatprep.subr.mxu0 0.0
        %1931 = vmatpush1.msra.mxu0 0.0
        %1932 = vmatprep.subr.mxu0 0.0
        %1933 = vmatpush1.msra.mxu0 0.0
        %1934 = vmatprep.subr.mxu0 0.0
        %1935 = vmatpush1.msra.mxu0 0.0
        %1936 = vmatprep.subr.mxu0 0.0
        %1937 = vmatpush1.msra.mxu0 0.0
        %1938 = vmatprep.subr.mxu0 0.0
        %1939 = vmatpush1.msra.mxu0 0.0
        %1940 = vmatprep.subr.mxu0 0.0
        %1941 = vmatpush1.msra.mxu0 0.0
        %1942 = vmatprep.subr.mxu0 0.0
        %1943 = vmatpush1.msra.mxu0 0.0
        %1944 = vmatprep.subr.mxu0 0.0
        %1945 = vmatpush1.msra.mxu0 0.0
        %1946 = vmatprep.subr.mxu0 %v587
        %1947 = vmatpush1.msra.mxu0 %v586
        %1948 = vmatprep.subr.mxu0 %v585
        %1949 = vmatpush1.msra.mxu0 %v584
        %1950 = vmatprep.subr.mxu0 %v583
        %1951 = vmatpush1.msra.mxu0 %v582
        %1952 = vmatprep.subr.mxu0 %v581
        %1953 = vmatpush1.msra.mxu0 %v580
        %1954 = vmatprep.subr.mxu0 0.0
        %1955 = vmatpush2.msra.mxu0 0.0
        %1956 = vmatprep.subr.mxu0 0.0
        %1957 = vmatpush2.msra.mxu0 0.0
        %1958 = vmatprep.subr.mxu0 0.0
        %1959 = vmatpush2.msra.mxu0 0.0
        %1960 = vmatprep.subr.mxu0 0.0
        %1961 = vmatpush2.msra.mxu0 0.0
        %1962 = vmatprep.subr.mxu0 0.0
        %1963 = vmatpush2.msra.mxu0 0.0
        %1964 = vmatprep.subr.mxu0 0.0
        %1965 = vmatpush2.msra.mxu0 0.0
        %1966 = vmatprep.subr.mxu0 0.0
        %1967 = vmatpush2.msra.mxu0 0.0
        %1968 = vmatprep.subr.mxu0 0.0
        %1969 = vmatpush2.msra.mxu0 0.0
        %1970 = vmatprep.subr.mxu0 0.0
        %1971 = vmatpush2.msra.mxu0 0.0
        %1972 = vmatprep.subr.mxu0 0.0
        %1973 = vmatpush2.msra.mxu0 0.0
        %1974 = vmatprep.subr.mxu0 0.0
        %1975 = vmatpush2.msra.mxu0 0.0
        %1976 = vmatprep.subr.mxu0 0.0
        %1977 = vmatpush2.msra.mxu0 0.0
        %1978 = vmatprep.subr.mxu0 0.0
        %1979 = vmatpush2.msra.mxu0 0.0
        %1980 = vmatprep.subr.mxu0 0.0
        %1981 = vmatpush2.msra.mxu0 0.0
        %1982 = vmatprep.subr.mxu0 0.0
        %1983 = vmatpush2.msra.mxu0 0.0
        %1984 = vmatprep.subr.mxu0 0.0
        %1985 = vmatpush2.msra.mxu0 0.0
        %1986 = vmatprep.mubr.f32.mxu0 0.0
        %1987 = vmatmul.mubr.f32.gmra.mxu0 %v1920
        %v1988 = vpop.f32.mrf.mxu0
        %v1989 = vadd.f32 0.0, %v1988
        %v1990 = vpop.f32.mrf.mxu0
        %v1991 = vadd.f32 0.0, %v1990
        %1992 = vdwg.mxu0
        %v1993 = vsel %vm604, %v1870, 0
        %1995 = vmatprep.subr.mxu0 0.0
        %1996 = vmatpush1.msra.mxu0 0.0
        %1997 = vmatprep.subr.mxu0 0.0
        %1998 = vmatpush1.msra.mxu0 0.0
        %1999 = vmatprep.subr.mxu0 0.0
        %2000 = vmatpush1.msra.mxu0 0.0
        %2001 = vmatprep.subr.mxu0 0.0
        %2002 = vmatpush1.msra.mxu0 0.0
        %2003 = vmatprep.subr.mxu0 0.0
        %2004 = vmatpush1.msra.mxu0 0.0
        %2005 = vmatprep.subr.mxu0 0.0
        %2006 = vmatpush1.msra.mxu0 0.0
        %2007 = vmatprep.subr.mxu0 0.0
        %2008 = vmatpush1.msra.mxu0 0.0
        %2009 = vmatprep.subr.mxu0 0.0
        %2010 = vmatpush1.msra.mxu0 0.0
        %2011 = vmatprep.subr.mxu0 0.0
        %2012 = vmatpush1.msra.mxu0 0.0
        %2013 = vmatprep.subr.mxu0 0.0
        %2014 = vmatpush1.msra.mxu0 0.0
        %2015 = vmatprep.subr.mxu0 0.0
        %2016 = vmatpush1.msra.mxu0 0.0
        %2017 = vmatprep.subr.mxu0 0.0
        %2018 = vmatpush1.msra.mxu0 0.0
        %2019 = vmatprep.subr.mxu0 0.0
        %2020 = vmatpush1.msra.mxu0 %v591
        %2021 = vmatprep.subr.mxu0 0.0
        %2022 = vmatpush1.msra.mxu0 %v590
        %2023 = vmatprep.subr.mxu0 0.0
        %2024 = vmatpush1.msra.mxu0 %v589
        %2025 = vmatprep.subr.mxu0 0.0
        %2026 = vmatpush1.msra.mxu0 %v588
        %2027 = vmatprep.subr.mxu0 0.0
        %2028 = vmatpush2.msra.mxu0 0.0
        %2029 = vmatprep.subr.mxu0 0.0
        %2030 = vmatpush2.msra.mxu0 0.0
        %2031 = vmatprep.subr.mxu0 0.0
        %2032 = vmatpush2.msra.mxu0 0.0
        %2033 = vmatprep.subr.mxu0 0.0
        %2034 = vmatpush2.msra.mxu0 0.0
        %2035 = vmatprep.subr.mxu0 0.0
        %2036 = vmatpush2.msra.mxu0 0.0
        %2037 = vmatprep.subr.mxu0 0.0
        %2038 = vmatpush2.msra.mxu0 0.0
        %2039 = vmatprep.subr.mxu0 0.0
        %2040 = vmatpush2.msra.mxu0 0.0
        %2041 = vmatprep.subr.mxu0 0.0
        %2042 = vmatpush2.msra.mxu0 0.0
        %2043 = vmatprep.subr.mxu0 0.0
        %2044 = vmatpush2.msra.mxu0 0.0
        %2045 = vmatprep.subr.mxu0 0.0
        %2046 = vmatpush2.msra.mxu0 0.0
        %2047 = vmatprep.subr.mxu0 0.0
        %2048 = vmatpush2.msra.mxu0 0.0
        %2049 = vmatprep.subr.mxu0 0.0
        %2050 = vmatpush2.msra.mxu0 0.0
        %2051 = vmatprep.subr.mxu0 0.0
        %2052 = vmatpush2.msra.mxu0 0.0
        %2053 = vmatprep.subr.mxu0 0.0
        %2054 = vmatpush2.msra.mxu0 0.0
        %2055 = vmatprep.subr.mxu0 0.0
        %2056 = vmatpush2.msra.mxu0 0.0
        %2057 = vmatprep.subr.mxu0 0.0
        %2058 = vmatpush2.msra.mxu0 0.0
        %2059 = vmatprep.mubr.f32.mxu0 0.0
        %2060 = vmatmul.mubr.f32.gmra.mxu0 %v1993
        %v2061 = vpop.f32.mrf.mxu0
        %v2062 = vadd.f32 0.0, %v2061
        %v2063 = vpop.f32.mrf.mxu0
        %2064 = vdwg.mxu0
        %v2065 = vmul.f32 %v1989, %v2062
        %v2067 = vsel %vm604, %v2065, 0
        %2069 = vmatprep.subr.mxu0 0.0
        %2070 = vmatpush1.msra.mxu0 0.0
        %2071 = vmatprep.subr.mxu0 0.0
        %2072 = vmatpush1.msra.mxu0 0.0
        %2073 = vmatprep.subr.mxu0 0.0
        %2074 = vmatpush1.msra.mxu0 0.0
        %2075 = vmatprep.subr.mxu0 0.0
        %2076 = vmatpush1.msra.mxu0 0.0
        %2077 = vmatprep.subr.mxu0 0.0
        %2078 = vmatpush1.msra.mxu0 0.0
        %2079 = vmatprep.subr.mxu0 0.0
        %2080 = vmatpush1.msra.mxu0 0.0
        %2081 = vmatprep.subr.mxu0 0.0
        %2082 = vmatpush1.msra.mxu0 0.0
        %2083 = vmatprep.subr.mxu0 0.0
        %2084 = vmatpush1.msra.mxu0 0.0
        %2085 = vmatprep.subr.mxu0 0.0
        %2086 = vmatpush1.msra.mxu0 0.0
        %2087 = vmatprep.subr.mxu0 0.0
        %2088 = vmatpush1.msra.mxu0 0.0
        %2089 = vmatprep.subr.mxu0 0.0
        %2090 = vmatpush1.msra.mxu0 0.0
        %2091 = vmatprep.subr.mxu0 0.0
        %2092 = vmatpush1.msra.mxu0 0.0
        %2093 = vmatprep.subr.mxu0 0.0
        %2094 = vmatpush1.msra.mxu0 %v595
        %2095 = vmatprep.subr.mxu0 0.0
        %2096 = vmatpush1.msra.mxu0 %v594
        %2097 = vmatprep.subr.mxu0 0.0
        %2098 = vmatpush1.msra.mxu0 %v593
        %2099 = vmatprep.subr.mxu0 0.0
        %2100 = vmatpush1.msra.mxu0 %v592
        %2101 = vmatprep.subr.mxu0 0.0
        %2102 = vmatpush2.msra.mxu0 0.0
        %2103 = vmatprep.subr.mxu0 0.0
        %2104 = vmatpush2.msra.mxu0 0.0
        %2105 = vmatprep.subr.mxu0 0.0
        %2106 = vmatpush2.msra.mxu0 0.0
        %2107 = vmatprep.subr.mxu0 0.0
        %2108 = vmatpush2.msra.mxu0 0.0
        %2109 = vmatprep.subr.mxu0 0.0
        %2110 = vmatpush2.msra.mxu0 0.0
        %2111 = vmatprep.subr.mxu0 0.0
        %2112 = vmatpush2.msra.mxu0 0.0
        %2113 = vmatprep.subr.mxu0 0.0
        %2114 = vmatpush2.msra.mxu0 0.0
        %2115 = vmatprep.subr.mxu0 0.0
        %2116 = vmatpush2.msra.mxu0 0.0
        %2117 = vmatprep.subr.mxu0 0.0
        %2118 = vmatpush2.msra.mxu0 0.0
        %2119 = vmatprep.subr.mxu0 0.0
        %2120 = vmatpush2.msra.mxu0 0.0
        %2121 = vmatprep.subr.mxu0 0.0
        %2122 = vmatpush2.msra.mxu0 0.0
        %2123 = vmatprep.subr.mxu0 0.0
        %2124 = vmatpush2.msra.mxu0 0.0
        %2125 = vmatprep.subr.mxu0 0.0
        %2126 = vmatpush2.msra.mxu0 0.0
        %2127 = vmatprep.subr.mxu0 0.0
        %2128 = vmatpush2.msra.mxu0 0.0
        %2129 = vmatprep.subr.mxu0 0.0
        %2130 = vmatpush2.msra.mxu0 0.0
        %2131 = vmatprep.subr.mxu0 0.0
        %2132 = vmatpush2.msra.mxu0 0.0
        %2133 = vmatprep.mubr.f32.mxu0 0.0
        %2134 = vmatmul.mubr.f32.gmra.mxu0 %v2067
        %v2135 = vpop.f32.mrf.mxu0
        %v2136 = vadd.f32 0.0, %v2135
        %v2137 = vpop.f32.mrf.mxu0
        %2138 = vdwg.mxu0
        %2140 = vrot.lane.b32.xlu0 %v2136, 32
        %v2141 = vpop.permute.xlu0 %2140
        %v2143 = vadd.f32 %v1989, %v2141
        %v2144 = vadd.f32 %v1991, %v2141
        %v2145 = vadd.f32 %v2143, %v837
        %v2146 = vadd.f32 %v2144, %v837
        %v2147 = vxor.u32 %v2145, 2147483648
        %v2148 = vmul.f32 %v2147, 1.442695
        %v2149 = vpow.pop %v2148
        %v2150 = vadd.f32 %v2149, 1.0
        %v2151 = vrcp.pop %v2150
        %v2152 = vmul.f32 1.0, %v2151
        %v2153 = vtanh.pop %v2146
        %2155 = vrot.lane.b32.xlu0 %v1889, 64
        %v2156 = vpop.permute.xlu0 %2155
        %v2158 = vmul.f32 %v2152, %v2156
        %2160 = vrot.lane.b32.xlu0 %v2153, 32
        %v2161 = vpop.permute.xlu0 %2160
        %v2163 = vmul.f32 %v2152, %v2161
        %2165 = vrot.lane.b32.xlu0 %v2163, 32
        %v2166 = vpop.permute.xlu0 %2165
        %v2168 = vadd.f32 %v2158, %v2166
        %v2169 = vtanh.pop %v2168
        %2171 = vrot.lane.b32.xlu0 %v2169, 32
        %v2172 = vpop.permute.xlu0 %2171
        %v2174 = vmul.f32 %v2152, %v2172
        %2175 = vrot.lane.b32.xlu0 %v1870, 96
        %v2176 = vpop.permute.xlu0 %2175
        %v2178 = vsub.f32 %v2174, %v2176
        %v2180 = vrot.slane %v2178, 4
        %v2181 = vrot.slane %v2178, 5
        %2182 = vrot.lane.b32.xlu0 %v2180, 32
        %v2183 = vpop.permute.xlu0 %2182
        %2184 = vrot.lane.b32.xlu0 %v2181, 32
        %v2185 = vpop.permute.xlu0 %2184
        %v2188 = vmul.f32 %v876, %v2183
        %v2189 = vmul.f32 %v881, %v2185
        %v2192 = vrot.slane %v2188, 4
        %v2193 = vrot.slane %v2189, 3
        %v2194 = vsel %vm602, %v2193, %v2192
        %v2196 = vadd.f32 %v1870, %v2194
        %v2197 = vsub.f32 %v2168, %v2156
        %v2199 = vrot.slane %v2197, 4
        %v2200 = vrot.slane %v2197, 5
        %2201 = vrot.lane.b32.xlu0 %v2199, 64
        %v2202 = vpop.permute.xlu0 %2201
        %2203 = vrot.lane.b32.xlu0 %v2200, 64
        %v2204 = vpop.permute.xlu0 %2203
        %v2207 = vmul.f32 %v876, %v2202
        %v2208 = vmul.f32 %v881, %v2204
        %v2211 = vrot.slane %v2207, 4
        %v2212 = vrot.slane %v2208, 3
        %v2213 = vsel %vm602, %v2212, %v2211
        %v2215 = vadd.f32 %v1889, %v2213
        %v2218 = vunpack.c.l.s4 1966171168
        %v2219 = vunpack.c.0.s8 %v2218
        %v2220 = vlaneseq
        %v2221 = vshrl.u32 %v2220, 7
        %v2222 = vsub.s32 %v2219, %v2221
        %v2223 = vrot.slane %v2196, %v2222
        %v2224 = vcombine.high %v2223, %v2223
        %v2226 = vunpack.c.l.s4 1966171168
        %v2227 = vunpack.c.0.s8 %v2226
        %v2228 = vlaneseq
        %v2229 = vshrl.u32 %v2228, 7
        %v2230 = vsub.s32 %v2227, %v2229
        %v2231 = vrot.slane %v2223, %v2230
        %v2233 = vunpack.c.l.s4 1966171168
        %v2234 = vunpack.c.0.s8 %v2233
        %v2235 = vlaneseq
        %v2236 = vshrl.u32 %v2235, 7
        %v2237 = vsub.s32 %v2234, %v2236
        %v2238 = vrot.slane %v2224, %v2237
        %2241 = vst.msk [vmem:[%s551 + $0x4] sm:$0x1] %vm941, %v2231
        %2242 = vst.msk [vmem:[%s551 + $0xc] sm:$0x1] %vm941, %v2238
        %v2243 = vrot.slane %v576, 5
        %v2244 = vrot.slane %v577, 4
        %v2245 = vsel %vm602, %v2244, %v2243
        %v2246 = vsel %vm604, %v2245, 0
        %2248 = vmatprep.subr.mxu0 0.0
        %2249 = vmatpush1.msra.mxu0 0.0
        %2250 = vmatprep.subr.mxu0 0.0
        %2251 = vmatpush1.msra.mxu0 0.0
        %2252 = vmatprep.subr.mxu0 0.0
        %2253 = vmatpush1.msra.mxu0 0.0
        %2254 = vmatprep.subr.mxu0 0.0
        %2255 = vmatpush1.msra.mxu0 0.0
        %2256 = vmatprep.subr.mxu0 0.0
        %2257 = vmatpush1.msra.mxu0 0.0
        %2258 = vmatprep.subr.mxu0 0.0
        %2259 = vmatpush1.msra.mxu0 0.0
        %2260 = vmatprep.subr.mxu0 0.0
        %2261 = vmatpush1.msra.mxu0 0.0
        %2262 = vmatprep.subr.mxu0 0.0
        %2263 = vmatpush1.msra.mxu0 0.0
        %2264 = vmatprep.subr.mxu0 0.0
        %2265 = vmatpush1.msra.mxu0 0.0
        %2266 = vmatprep.subr.mxu0 0.0
        %2267 = vmatpush1.msra.mxu0 0.0
        %2268 = vmatprep.subr.mxu0 0.0
        %2269 = vmatpush1.msra.mxu0 0.0
        %2270 = vmatprep.subr.mxu0 0.0
        %2271 = vmatpush1.msra.mxu0 0.0
        %2272 = vmatprep.subr.mxu0 %v587
        %2273 = vmatpush1.msra.mxu0 %v586
        %2274 = vmatprep.subr.mxu0 %v585
        %2275 = vmatpush1.msra.mxu0 %v584
        %2276 = vmatprep.subr.mxu0 %v583
        %2277 = vmatpush1.msra.mxu0 %v582
        %2278 = vmatprep.subr.mxu0 %v581
        %2279 = vmatpush1.msra.mxu0 %v580
        %2280 = vmatprep.subr.mxu0 0.0
        %2281 = vmatpush2.msra.mxu0 0.0
        %2282 = vmatprep.subr.mxu0 0.0
        %2283 = vmatpush2.msra.mxu0 0.0
        %2284 = vmatprep.subr.mxu0 0.0
        %2285 = vmatpush2.msra.mxu0 0.0
        %2286 = vmatprep.subr.mxu0 0.0
        %2287 = vmatpush2.msra.mxu0 0.0
        %2288 = vmatprep.subr.mxu0 0.0
        %2289 = vmatpush2.msra.mxu0 0.0
        %2290 = vmatprep.subr.mxu0 0.0
        %2291 = vmatpush2.msra.mxu0 0.0
        %2292 = vmatprep.subr.mxu0 0.0
        %2293 = vmatpush2.msra.mxu0 0.0
        %2294 = vmatprep.subr.mxu0 0.0
        %2295 = vmatpush2.msra.mxu0 0.0
        %2296 = vmatprep.subr.mxu0 0.0
        %2297 = vmatpush2.msra.mxu0 0.0
        %2298 = vmatprep.subr.mxu0 0.0
        %2299 = vmatpush2.msra.mxu0 0.0
        %2300 = vmatprep.subr.mxu0 0.0
        %2301 = vmatpush2.msra.mxu0 0.0
        %2302 = vmatprep.subr.mxu0 0.0
        %2303 = vmatpush2.msra.mxu0 0.0
        %2304 = vmatprep.subr.mxu0 0.0
        %2305 = vmatpush2.msra.mxu0 0.0
        %2306 = vmatprep.subr.mxu0 0.0
        %2307 = vmatpush2.msra.mxu0 0.0
        %2308 = vmatprep.subr.mxu0 0.0
        %2309 = vmatpush2.msra.mxu0 0.0
        %2310 = vmatprep.subr.mxu0 0.0
        %2311 = vmatpush2.msra.mxu0 0.0
        %2312 = vmatprep.mubr.f32.mxu0 0.0
        %2313 = vmatmul.mubr.f32.gmra.mxu0 %v2246
        %v2314 = vpop.f32.mrf.mxu0
        %v2315 = vadd.f32 0.0, %v2314
        %v2316 = vpop.f32.mrf.mxu0
        %v2317 = vadd.f32 0.0, %v2316
        %2318 = vdwg.mxu0
        %v2319 = vsel %vm604, %v2196, 0
        %2321 = vmatprep.subr.mxu0 0.0
        %2322 = vmatpush1.msra.mxu0 0.0
        %2323 = vmatprep.subr.mxu0 0.0
        %2324 = vmatpush1.msra.mxu0 0.0
        %2325 = vmatprep.subr.mxu0 0.0
        %2326 = vmatpush1.msra.mxu0 0.0
        %2327 = vmatprep.subr.mxu0 0.0
        %2328 = vmatpush1.msra.mxu0 0.0
        %2329 = vmatprep.subr.mxu0 0.0
        %2330 = vmatpush1.msra.mxu0 0.0
        %2331 = vmatprep.subr.mxu0 0.0
        %2332 = vmatpush1.msra.mxu0 0.0
        %2333 = vmatprep.subr.mxu0 0.0
        %2334 = vmatpush1.msra.mxu0 0.0
        %2335 = vmatprep.subr.mxu0 0.0
        %2336 = vmatpush1.msra.mxu0 0.0
        %2337 = vmatprep.subr.mxu0 0.0
        %2338 = vmatpush1.msra.mxu0 0.0
        %2339 = vmatprep.subr.mxu0 0.0
        %2340 = vmatpush1.msra.mxu0 0.0
        %2341 = vmatprep.subr.mxu0 0.0
        %2342 = vmatpush1.msra.mxu0 0.0
        %2343 = vmatprep.subr.mxu0 0.0
        %2344 = vmatpush1.msra.mxu0 0.0
        %2345 = vmatprep.subr.mxu0 0.0
        %2346 = vmatpush1.msra.mxu0 %v591
        %2347 = vmatprep.subr.mxu0 0.0
        %2348 = vmatpush1.msra.mxu0 %v590
        %2349 = vmatprep.subr.mxu0 0.0
        %2350 = vmatpush1.msra.mxu0 %v589
        %2351 = vmatprep.subr.mxu0 0.0
        %2352 = vmatpush1.msra.mxu0 %v588
        %2353 = vmatprep.subr.mxu0 0.0
        %2354 = vmatpush2.msra.mxu0 0.0
        %2355 = vmatprep.subr.mxu0 0.0
        %2356 = vmatpush2.msra.mxu0 0.0
        %2357 = vmatprep.subr.mxu0 0.0
        %2358 = vmatpush2.msra.mxu0 0.0
        %2359 = vmatprep.subr.mxu0 0.0
        %2360 = vmatpush2.msra.mxu0 0.0
        %2361 = vmatprep.subr.mxu0 0.0
        %2362 = vmatpush2.msra.mxu0 0.0
        %2363 = vmatprep.subr.mxu0 0.0
        %2364 = vmatpush2.msra.mxu0 0.0
        %2365 = vmatprep.subr.mxu0 0.0
        %2366 = vmatpush2.msra.mxu0 0.0
        %2367 = vmatprep.subr.mxu0 0.0
        %2368 = vmatpush2.msra.mxu0 0.0
        %2369 = vmatprep.subr.mxu0 0.0
        %2370 = vmatpush2.msra.mxu0 0.0
        %2371 = vmatprep.subr.mxu0 0.0
        %2372 = vmatpush2.msra.mxu0 0.0
        %2373 = vmatprep.subr.mxu0 0.0
        %2374 = vmatpush2.msra.mxu0 0.0
        %2375 = vmatprep.subr.mxu0 0.0
        %2376 = vmatpush2.msra.mxu0 0.0
        %2377 = vmatprep.subr.mxu0 0.0
        %2378 = vmatpush2.msra.mxu0 0.0
        %2379 = vmatprep.subr.mxu0 0.0
        %2380 = vmatpush2.msra.mxu0 0.0
        %2381 = vmatprep.subr.mxu0 0.0
        %2382 = vmatpush2.msra.mxu0 0.0
        %2383 = vmatprep.subr.mxu0 0.0
        %2384 = vmatpush2.msra.mxu0 0.0
        %2385 = vmatprep.mubr.f32.mxu0 0.0
        %2386 = vmatmul.mubr.f32.gmra.mxu0 %v2319
        %v2387 = vpop.f32.mrf.mxu0
        %v2388 = vadd.f32 0.0, %v2387
        %v2389 = vpop.f32.mrf.mxu0
        %2390 = vdwg.mxu0
        %v2391 = vmul.f32 %v2315, %v2388
        %v2393 = vsel %vm604, %v2391, 0
        %2395 = vmatprep.subr.mxu0 0.0
        %2396 = vmatpush1.msra.mxu0 0.0
        %2397 = vmatprep.subr.mxu0 0.0
        %2398 = vmatpush1.msra.mxu0 0.0
        %2399 = vmatprep.subr.mxu0 0.0
        %2400 = vmatpush1.msra.mxu0 0.0
        %2401 = vmatprep.subr.mxu0 0.0
        %2402 = vmatpush1.msra.mxu0 0.0
        %2403 = vmatprep.subr.mxu0 0.0
        %2404 = vmatpush1.msra.mxu0 0.0
        %2405 = vmatprep.subr.mxu0 0.0
        %2406 = vmatpush1.msra.mxu0 0.0
        %2407 = vmatprep.subr.mxu0 0.0
        %2408 = vmatpush1.msra.mxu0 0.0
        %2409 = vmatprep.subr.mxu0 0.0
        %2410 = vmatpush1.msra.mxu0 0.0
        %2411 = vmatprep.subr.mxu0 0.0
        %2412 = vmatpush1.msra.mxu0 0.0
        %2413 = vmatprep.subr.mxu0 0.0
        %2414 = vmatpush1.msra.mxu0 0.0
        %2415 = vmatprep.subr.mxu0 0.0
        %2416 = vmatpush1.msra.mxu0 0.0
        %2417 = vmatprep.subr.mxu0 0.0
        %2418 = vmatpush1.msra.mxu0 0.0
        %2419 = vmatprep.subr.mxu0 0.0
        %2420 = vmatpush1.msra.mxu0 %v595
        %2421 = vmatprep.subr.mxu0 0.0
        %2422 = vmatpush1.msra.mxu0 %v594
        %2423 = vmatprep.subr.mxu0 0.0
        %2424 = vmatpush1.msra.mxu0 %v593
        %2425 = vmatprep.subr.mxu0 0.0
        %2426 = vmatpush1.msra.mxu0 %v592
        %2427 = vmatprep.subr.mxu0 0.0
        %2428 = vmatpush2.msra.mxu0 0.0
        %2429 = vmatprep.subr.mxu0 0.0
        %2430 = vmatpush2.msra.mxu0 0.0
        %2431 = vmatprep.subr.mxu0 0.0
        %2432 = vmatpush2.msra.mxu0 0.0
        %2433 = vmatprep.subr.mxu0 0.0
        %2434 = vmatpush2.msra.mxu0 0.0
        %2435 = vmatprep.subr.mxu0 0.0
        %2436 = vmatpush2.msra.mxu0 0.0
        %2437 = vmatprep.subr.mxu0 0.0
        %2438 = vmatpush2.msra.mxu0 0.0
        %2439 = vmatprep.subr.mxu0 0.0
        %2440 = vmatpush2.msra.mxu0 0.0
        %2441 = vmatprep.subr.mxu0 0.0
        %2442 = vmatpush2.msra.mxu0 0.0
        %2443 = vmatprep.subr.mxu0 0.0
        %2444 = vmatpush2.msra.mxu0 0.0
        %2445 = vmatprep.subr.mxu0 0.0
        %2446 = vmatpush2.msra.mxu0 0.0
        %2447 = vmatprep.subr.mxu0 0.0
        %2448 = vmatpush2.msra.mxu0 0.0
        %2449 = vmatprep.subr.mxu0 0.0
        %2450 = vmatpush2.msra.mxu0 0.0
        %2451 = vmatprep.subr.mxu0 0.0
        %2452 = vmatpush2.msra.mxu0 0.0
        %2453 = vmatprep.subr.mxu0 0.0
        %2454 = vmatpush2.msra.mxu0 0.0
        %2455 = vmatprep.subr.mxu0 0.0
        %2456 = vmatpush2.msra.mxu0 0.0
        %2457 = vmatprep.subr.mxu0 0.0
        %2458 = vmatpush2.msra.mxu0 0.0
        %2459 = vmatprep.mubr.f32.mxu0 0.0
        %2460 = vmatmul.mubr.f32.gmra.mxu0 %v2393
        %v2461 = vpop.f32.mrf.mxu0
        %v2462 = vadd.f32 0.0, %v2461
        %v2463 = vpop.f32.mrf.mxu0
        %2464 = vdwg.mxu0
        %2466 = vrot.lane.b32.xlu0 %v2462, 32
        %v2467 = vpop.permute.xlu0 %2466
        %v2469 = vadd.f32 %v2315, %v2467
        %v2470 = vadd.f32 %v2317, %v2467
        %v2471 = vadd.f32 %v2469, %v837
        %v2472 = vadd.f32 %v2470, %v837
        %v2473 = vxor.u32 %v2471, 2147483648
        %v2474 = vmul.f32 %v2473, 1.442695
        %v2475 = vpow.pop %v2474
        %v2476 = vadd.f32 %v2475, 1.0
        %v2477 = vrcp.pop %v2476
        %v2478 = vmul.f32 1.0, %v2477
        %v2479 = vtanh.pop %v2472
        %2481 = vrot.lane.b32.xlu0 %v2215, 64
        %v2482 = vpop.permute.xlu0 %2481
        %v2484 = vmul.f32 %v2478, %v2482
        %2486 = vrot.lane.b32.xlu0 %v2479, 32
        %v2487 = vpop.permute.xlu0 %2486
        %v2489 = vmul.f32 %v2478, %v2487
        %2491 = vrot.lane.b32.xlu0 %v2489, 32
        %v2492 = vpop.permute.xlu0 %2491
        %v2494 = vadd.f32 %v2484, %v2492
        %v2495 = vtanh.pop %v2494
        %2497 = vrot.lane.b32.xlu0 %v2495, 32
        %v2498 = vpop.permute.xlu0 %2497
        %v2500 = vmul.f32 %v2478, %v2498
        %2501 = vrot.lane.b32.xlu0 %v2196, 96
        %v2502 = vpop.permute.xlu0 %2501
        %v2504 = vsub.f32 %v2500, %v2502
        %v2506 = vrot.slane %v2504, 3
        %v2507 = vrot.slane %v2504, 4
        %2508 = vrot.lane.b32.xlu0 %v2506, 32
        %v2509 = vpop.permute.xlu0 %2508
        %2510 = vrot.lane.b32.xlu0 %v2507, 32
        %v2511 = vpop.permute.xlu0 %2510
        %v2514 = vmul.f32 %v876, %v2509
        %v2515 = vmul.f32 %v881, %v2511
        %v2518 = vrot.slane %v2514, 5
        %v2519 = vrot.slane %v2515, 4
        %v2520 = vsel %vm602, %v2519, %v2518
        %v2522 = vadd.f32 %v2196, %v2520
        %v2523 = vsub.f32 %v2494, %v2482
        %v2525 = vrot.slane %v2523, 3
        %v2526 = vrot.slane %v2523, 4
        %2527 = vrot.lane.b32.xlu0 %v2525, 64
        %v2528 = vpop.permute.xlu0 %2527
        %2529 = vrot.lane.b32.xlu0 %v2526, 64
        %v2530 = vpop.permute.xlu0 %2529
        %v2533 = vmul.f32 %v876, %v2528
        %v2534 = vmul.f32 %v881, %v2530
        %v2537 = vrot.slane %v2533, 5
        %v2538 = vrot.slane %v2534, 4
        %v2539 = vsel %vm602, %v2538, %v2537
        %v2541 = vadd.f32 %v2215, %v2539
        %v2544 = vunpack.c.l.s4 1966171168
        %v2545 = vunpack.c.0.s8 %v2544
        %v2546 = vlaneseq
        %v2547 = vshrl.u32 %v2546, 7
        %v2548 = vsub.s32 %v2545, %v2547
        %v2549 = vrot.slane %v2522, %v2548
        %v2550 = vcombine.high %v2549, %v2549
        %v2552 = vunpack.c.l.s4 1966171168
        %v2553 = vunpack.c.0.s8 %v2552
        %v2554 = vlaneseq
        %v2555 = vshrl.u32 %v2554, 7
        %v2556 = vsub.s32 %v2553, %v2555
        %v2557 = vrot.slane %v2549, %v2556
        %v2559 = vunpack.c.l.s4 1966171168
        %v2560 = vunpack.c.0.s8 %v2559
        %v2561 = vlaneseq
        %v2562 = vshrl.u32 %v2561, 7
        %v2563 = vsub.s32 %v2560, %v2562
        %v2564 = vrot.slane %v2550, %v2563
        %2567 = vst.msk [vmem:[%s551 + $0x5] sm:$0x1] %vm941, %v2557
        %2568 = vst.msk [vmem:[%s551 + $0xd] sm:$0x1] %vm941, %v2564
        %v2569 = vrot.slane %v576, 6
        %v2570 = vrot.slane %v577, 5
        %v2571 = vsel %vm602, %v2570, %v2569
        %v2572 = vsel %vm604, %v2571, 0
        %2574 = vmatprep.subr.mxu0 0.0
        %2575 = vmatpush1.msra.mxu0 0.0
        %2576 = vmatprep.subr.mxu0 0.0
        %2577 = vmatpush1.msra.mxu0 0.0
        %2578 = vmatprep.subr.mxu0 0.0
        %2579 = vmatpush1.msra.mxu0 0.0
        %2580 = vmatprep.subr.mxu0 0.0
        %2581 = vmatpush1.msra.mxu0 0.0
        %2582 = vmatprep.subr.mxu0 0.0
        %2583 = vmatpush1.msra.mxu0 0.0
        %2584 = vmatprep.subr.mxu0 0.0
        %2585 = vmatpush1.msra.mxu0 0.0
        %2586 = vmatprep.subr.mxu0 0.0
        %2587 = vmatpush1.msra.mxu0 0.0
        %2588 = vmatprep.subr.mxu0 0.0
        %2589 = vmatpush1.msra.mxu0 0.0
        %2590 = vmatprep.subr.mxu0 0.0
        %2591 = vmatpush1.msra.mxu0 0.0
        %2592 = vmatprep.subr.mxu0 0.0
        %2593 = vmatpush1.msra.mxu0 0.0
        %2594 = vmatprep.subr.mxu0 0.0
        %2595 = vmatpush1.msra.mxu0 0.0
        %2596 = vmatprep.subr.mxu0 0.0
        %2597 = vmatpush1.msra.mxu0 0.0
        %2598 = vmatprep.subr.mxu0 %v587
        %2599 = vmatpush1.msra.mxu0 %v586
        %2600 = vmatprep.subr.mxu0 %v585
        %2601 = vmatpush1.msra.mxu0 %v584
        %2602 = vmatprep.subr.mxu0 %v583
        %2603 = vmatpush1.msra.mxu0 %v582
        %2604 = vmatprep.subr.mxu0 %v581
        %2605 = vmatpush1.msra.mxu0 %v580
        %2606 = vmatprep.subr.mxu0 0.0
        %2607 = vmatpush2.msra.mxu0 0.0
        %2608 = vmatprep.subr.mxu0 0.0
        %2609 = vmatpush2.msra.mxu0 0.0
        %2610 = vmatprep.subr.mxu0 0.0
        %2611 = vmatpush2.msra.mxu0 0.0
        %2612 = vmatprep.subr.mxu0 0.0
        %2613 = vmatpush2.msra.mxu0 0.0
        %2614 = vmatprep.subr.mxu0 0.0
        %2615 = vmatpush2.msra.mxu0 0.0
        %2616 = vmatprep.subr.mxu0 0.0
        %2617 = vmatpush2.msra.mxu0 0.0
        %2618 = vmatprep.subr.mxu0 0.0
        %2619 = vmatpush2.msra.mxu0 0.0
        %2620 = vmatprep.subr.mxu0 0.0
        %2621 = vmatpush2.msra.mxu0 0.0
        %2622 = vmatprep.subr.mxu0 0.0
        %2623 = vmatpush2.msra.mxu0 0.0
        %2624 = vmatprep.subr.mxu0 0.0
        %2625 = vmatpush2.msra.mxu0 0.0
        %2626 = vmatprep.subr.mxu0 0.0
        %2627 = vmatpush2.msra.mxu0 0.0
        %2628 = vmatprep.subr.mxu0 0.0
        %2629 = vmatpush2.msra.mxu0 0.0
        %2630 = vmatprep.subr.mxu0 0.0
        %2631 = vmatpush2.msra.mxu0 0.0
        %2632 = vmatprep.subr.mxu0 0.0
        %2633 = vmatpush2.msra.mxu0 0.0
        %2634 = vmatprep.subr.mxu0 0.0
        %2635 = vmatpush2.msra.mxu0 0.0
        %2636 = vmatprep.subr.mxu0 0.0
        %2637 = vmatpush2.msra.mxu0 0.0
        %2638 = vmatprep.mubr.f32.mxu0 0.0
        %2639 = vmatmul.mubr.f32.gmra.mxu0 %v2572
        %v2640 = vpop.f32.mrf.mxu0
        %v2641 = vadd.f32 0.0, %v2640
        %v2642 = vpop.f32.mrf.mxu0
        %v2643 = vadd.f32 0.0, %v2642
        %2644 = vdwg.mxu0
        %v2645 = vsel %vm604, %v2522, 0
        %2647 = vmatprep.subr.mxu0 0.0
        %2648 = vmatpush1.msra.mxu0 0.0
        %2649 = vmatprep.subr.mxu0 0.0
        %2650 = vmatpush1.msra.mxu0 0.0
        %2651 = vmatprep.subr.mxu0 0.0
        %2652 = vmatpush1.msra.mxu0 0.0
        %2653 = vmatprep.subr.mxu0 0.0
        %2654 = vmatpush1.msra.mxu0 0.0
        %2655 = vmatprep.subr.mxu0 0.0
        %2656 = vmatpush1.msra.mxu0 0.0
        %2657 = vmatprep.subr.mxu0 0.0
        %2658 = vmatpush1.msra.mxu0 0.0
        %2659 = vmatprep.subr.mxu0 0.0
        %2660 = vmatpush1.msra.mxu0 0.0
        %2661 = vmatprep.subr.mxu0 0.0
        %2662 = vmatpush1.msra.mxu0 0.0
        %2663 = vmatprep.subr.mxu0 0.0
        %2664 = vmatpush1.msra.mxu0 0.0
        %2665 = vmatprep.subr.mxu0 0.0
        %2666 = vmatpush1.msra.mxu0 0.0
        %2667 = vmatprep.subr.mxu0 0.0
        %2668 = vmatpush1.msra.mxu0 0.0
        %2669 = vmatprep.subr.mxu0 0.0
        %2670 = vmatpush1.msra.mxu0 0.0
        %2671 = vmatprep.subr.mxu0 0.0
        %2672 = vmatpush1.msra.mxu0 %v591
        %2673 = vmatprep.subr.mxu0 0.0
        %2674 = vmatpush1.msra.mxu0 %v590
        %2675 = vmatprep.subr.mxu0 0.0
        %2676 = vmatpush1.msra.mxu0 %v589
        %2677 = vmatprep.subr.mxu0 0.0
        %2678 = vmatpush1.msra.mxu0 %v588
        %2679 = vmatprep.subr.mxu0 0.0
        %2680 = vmatpush2.msra.mxu0 0.0
        %2681 = vmatprep.subr.mxu0 0.0
        %2682 = vmatpush2.msra.mxu0 0.0
        %2683 = vmatprep.subr.mxu0 0.0
        %2684 = vmatpush2.msra.mxu0 0.0
        %2685 = vmatprep.subr.mxu0 0.0
        %2686 = vmatpush2.msra.mxu0 0.0
        %2687 = vmatprep.subr.mxu0 0.0
        %2688 = vmatpush2.msra.mxu0 0.0
        %2689 = vmatprep.subr.mxu0 0.0
        %2690 = vmatpush2.msra.mxu0 0.0
        %2691 = vmatprep.subr.mxu0 0.0
        %2692 = vmatpush2.msra.mxu0 0.0
        %2693 = vmatprep.subr.mxu0 0.0
        %2694 = vmatpush2.msra.mxu0 0.0
        %2695 = vmatprep.subr.mxu0 0.0
        %2696 = vmatpush2.msra.mxu0 0.0
        %2697 = vmatprep.subr.mxu0 0.0
        %2698 = vmatpush2.msra.mxu0 0.0
        %2699 = vmatprep.subr.mxu0 0.0
        %2700 = vmatpush2.msra.mxu0 0.0
        %2701 = vmatprep.subr.mxu0 0.0
        %2702 = vmatpush2.msra.mxu0 0.0
        %2703 = vmatprep.subr.mxu0 0.0
        %2704 = vmatpush2.msra.mxu0 0.0
        %2705 = vmatprep.subr.mxu0 0.0
        %2706 = vmatpush2.msra.mxu0 0.0
        %2707 = vmatprep.subr.mxu0 0.0
        %2708 = vmatpush2.msra.mxu0 0.0
        %2709 = vmatprep.subr.mxu0 0.0
        %2710 = vmatpush2.msra.mxu0 0.0
        %2711 = vmatprep.mubr.f32.mxu0 0.0
        %2712 = vmatmul.mubr.f32.gmra.mxu0 %v2645
        %v2713 = vpop.f32.mrf.mxu0
        %v2714 = vadd.f32 0.0, %v2713
        %v2715 = vpop.f32.mrf.mxu0
        %2716 = vdwg.mxu0
        %v2717 = vmul.f32 %v2641, %v2714
        %v2719 = vsel %vm604, %v2717, 0
        %2721 = vmatprep.subr.mxu0 0.0
        %2722 = vmatpush1.msra.mxu0 0.0
        %2723 = vmatprep.subr.mxu0 0.0
        %2724 = vmatpush1.msra.mxu0 0.0
        %2725 = vmatprep.subr.mxu0 0.0
        %2726 = vmatpush1.msra.mxu0 0.0
        %2727 = vmatprep.subr.mxu0 0.0
        %2728 = vmatpush1.msra.mxu0 0.0
        %2729 = vmatprep.subr.mxu0 0.0
        %2730 = vmatpush1.msra.mxu0 0.0
        %2731 = vmatprep.subr.mxu0 0.0
        %2732 = vmatpush1.msra.mxu0 0.0
        %2733 = vmatprep.subr.mxu0 0.0
        %2734 = vmatpush1.msra.mxu0 0.0
        %2735 = vmatprep.subr.mxu0 0.0
        %2736 = vmatpush1.msra.mxu0 0.0
        %2737 = vmatprep.subr.mxu0 0.0
        %2738 = vmatpush1.msra.mxu0 0.0
        %2739 = vmatprep.subr.mxu0 0.0
        %2740 = vmatpush1.msra.mxu0 0.0
        %2741 = vmatprep.subr.mxu0 0.0
        %2742 = vmatpush1.msra.mxu0 0.0
        %2743 = vmatprep.subr.mxu0 0.0
        %2744 = vmatpush1.msra.mxu0 0.0
        %2745 = vmatprep.subr.mxu0 0.0
        %2746 = vmatpush1.msra.mxu0 %v595
        %2747 = vmatprep.subr.mxu0 0.0
        %2748 = vmatpush1.msra.mxu0 %v594
        %2749 = vmatprep.subr.mxu0 0.0
        %2750 = vmatpush1.msra.mxu0 %v593
        %2751 = vmatprep.subr.mxu0 0.0
        %2752 = vmatpush1.msra.mxu0 %v592
        %2753 = vmatprep.subr.mxu0 0.0
        %2754 = vmatpush2.msra.mxu0 0.0
        %2755 = vmatprep.subr.mxu0 0.0
        %2756 = vmatpush2.msra.mxu0 0.0
        %2757 = vmatprep.subr.mxu0 0.0
        %2758 = vmatpush2.msra.mxu0 0.0
        %2759 = vmatprep.subr.mxu0 0.0
        %2760 = vmatpush2.msra.mxu0 0.0
        %2761 = vmatprep.subr.mxu0 0.0
        %2762 = vmatpush2.msra.mxu0 0.0
        %2763 = vmatprep.subr.mxu0 0.0
        %2764 = vmatpush2.msra.mxu0 0.0
        %2765 = vmatprep.subr.mxu0 0.0
        %2766 = vmatpush2.msra.mxu0 0.0
        %2767 = vmatprep.subr.mxu0 0.0
        %2768 = vmatpush2.msra.mxu0 0.0
        %2769 = vmatprep.subr.mxu0 0.0
        %2770 = vmatpush2.msra.mxu0 0.0
        %2771 = vmatprep.subr.mxu0 0.0
        %2772 = vmatpush2.msra.mxu0 0.0
        %2773 = vmatprep.subr.mxu0 0.0
        %2774 = vmatpush2.msra.mxu0 0.0
        %2775 = vmatprep.subr.mxu0 0.0
        %2776 = vmatpush2.msra.mxu0 0.0
        %2777 = vmatprep.subr.mxu0 0.0
        %2778 = vmatpush2.msra.mxu0 0.0
        %2779 = vmatprep.subr.mxu0 0.0
        %2780 = vmatpush2.msra.mxu0 0.0
        %2781 = vmatprep.subr.mxu0 0.0
        %2782 = vmatpush2.msra.mxu0 0.0
        %2783 = vmatprep.subr.mxu0 0.0
        %2784 = vmatpush2.msra.mxu0 0.0
        %2785 = vmatprep.mubr.f32.mxu0 0.0
        %2786 = vmatmul.mubr.f32.gmra.mxu0 %v2719
        %v2787 = vpop.f32.mrf.mxu0
        %v2788 = vadd.f32 0.0, %v2787
        %v2789 = vpop.f32.mrf.mxu0
        %2790 = vdwg.mxu0
        %2792 = vrot.lane.b32.xlu0 %v2788, 32
        %v2793 = vpop.permute.xlu0 %2792
        %v2795 = vadd.f32 %v2641, %v2793
        %v2796 = vadd.f32 %v2643, %v2793
        %v2797 = vadd.f32 %v2795, %v837
        %v2798 = vadd.f32 %v2796, %v837
        %v2799 = vxor.u32 %v2797, 2147483648
        %v2800 = vmul.f32 %v2799, 1.442695
        %v2801 = vpow.pop %v2800
        %v2802 = vadd.f32 %v2801, 1.0
        %v2803 = vrcp.pop %v2802
        %v2804 = vmul.f32 1.0, %v2803
        %v2805 = vtanh.pop %v2798
        %2807 = vrot.lane.b32.xlu0 %v2541, 64
        %v2808 = vpop.permute.xlu0 %2807
        %v2810 = vmul.f32 %v2804, %v2808
        %2812 = vrot.lane.b32.xlu0 %v2805, 32
        %v2813 = vpop.permute.xlu0 %2812
        %v2815 = vmul.f32 %v2804, %v2813
        %2817 = vrot.lane.b32.xlu0 %v2815, 32
        %v2818 = vpop.permute.xlu0 %2817
        %v2820 = vadd.f32 %v2810, %v2818
        %v2821 = vtanh.pop %v2820
        %2823 = vrot.lane.b32.xlu0 %v2821, 32
        %v2824 = vpop.permute.xlu0 %2823
        %v2826 = vmul.f32 %v2804, %v2824
        %2827 = vrot.lane.b32.xlu0 %v2522, 96
        %v2828 = vpop.permute.xlu0 %2827
        %v2830 = vsub.f32 %v2826, %v2828
        %v2832 = vrot.slane %v2830, 2
        %v2833 = vrot.slane %v2830, 3
        %2834 = vrot.lane.b32.xlu0 %v2832, 32
        %v2835 = vpop.permute.xlu0 %2834
        %2836 = vrot.lane.b32.xlu0 %v2833, 32
        %v2837 = vpop.permute.xlu0 %2836
        %v2840 = vmul.f32 %v876, %v2835
        %v2841 = vmul.f32 %v881, %v2837
        %v2844 = vrot.slane %v2840, 6
        %v2845 = vrot.slane %v2841, 5
        %v2846 = vsel %vm602, %v2845, %v2844
        %v2848 = vadd.f32 %v2522, %v2846
        %v2849 = vsub.f32 %v2820, %v2808
        %v2851 = vrot.slane %v2849, 2
        %v2852 = vrot.slane %v2849, 3
        %2853 = vrot.lane.b32.xlu0 %v2851, 64
        %v2854 = vpop.permute.xlu0 %2853
        %2855 = vrot.lane.b32.xlu0 %v2852, 64
        %v2856 = vpop.permute.xlu0 %2855
        %v2859 = vmul.f32 %v876, %v2854
        %v2860 = vmul.f32 %v881, %v2856
        %v2863 = vrot.slane %v2859, 6
        %v2864 = vrot.slane %v2860, 5
        %v2865 = vsel %vm602, %v2864, %v2863
        %v2867 = vadd.f32 %v2541, %v2865
        %v2870 = vunpack.c.l.s4 1966171168
        %v2871 = vunpack.c.0.s8 %v2870
        %v2872 = vlaneseq
        %v2873 = vshrl.u32 %v2872, 7
        %v2874 = vsub.s32 %v2871, %v2873
        %v2875 = vrot.slane %v2848, %v2874
        %v2876 = vcombine.high %v2875, %v2875
        %v2878 = vunpack.c.l.s4 1966171168
        %v2879 = vunpack.c.0.s8 %v2878
        %v2880 = vlaneseq
        %v2881 = vshrl.u32 %v2880, 7
        %v2882 = vsub.s32 %v2879, %v2881
        %v2883 = vrot.slane %v2875, %v2882
        %v2885 = vunpack.c.l.s4 1966171168
        %v2886 = vunpack.c.0.s8 %v2885
        %v2887 = vlaneseq
        %v2888 = vshrl.u32 %v2887, 7
        %v2889 = vsub.s32 %v2886, %v2888
        %v2890 = vrot.slane %v2876, %v2889
        %2893 = vst.msk [vmem:[%s551 + $0x6] sm:$0x1] %vm941, %v2883
        %2894 = vst.msk [vmem:[%s551 + $0xe] sm:$0x1] %vm941, %v2890
        %v2895 = vrot.slane %v576, 7
        %v2896 = vrot.slane %v577, 6
        %v2897 = vsel %vm602, %v2896, %v2895
        %v2898 = vsel %vm604, %v2897, 0
        %2900 = vmatprep.subr.mxu0 0.0
        %2901 = vmatpush1.msra.mxu0 0.0
        %2902 = vmatprep.subr.mxu0 0.0
        %2903 = vmatpush1.msra.mxu0 0.0
        %2904 = vmatprep.subr.mxu0 0.0
        %2905 = vmatpush1.msra.mxu0 0.0
        %2906 = vmatprep.subr.mxu0 0.0
        %2907 = vmatpush1.msra.mxu0 0.0
        %2908 = vmatprep.subr.mxu0 0.0
        %2909 = vmatpush1.msra.mxu0 0.0
        %2910 = vmatprep.subr.mxu0 0.0
        %2911 = vmatpush1.msra.mxu0 0.0
        %2912 = vmatprep.subr.mxu0 0.0
        %2913 = vmatpush1.msra.mxu0 0.0
        %2914 = vmatprep.subr.mxu0 0.0
        %2915 = vmatpush1.msra.mxu0 0.0
        %2916 = vmatprep.subr.mxu0 0.0
        %2917 = vmatpush1.msra.mxu0 0.0
        %2918 = vmatprep.subr.mxu0 0.0
        %2919 = vmatpush1.msra.mxu0 0.0
        %2920 = vmatprep.subr.mxu0 0.0
        %2921 = vmatpush1.msra.mxu0 0.0
        %2922 = vmatprep.subr.mxu0 0.0
        %2923 = vmatpush1.msra.mxu0 0.0
        %2924 = vmatprep.subr.mxu0 %v587
        %2925 = vmatpush1.msra.mxu0 %v586
        %2926 = vmatprep.subr.mxu0 %v585
        %2927 = vmatpush1.msra.mxu0 %v584
        %2928 = vmatprep.subr.mxu0 %v583
        %2929 = vmatpush1.msra.mxu0 %v582
        %2930 = vmatprep.subr.mxu0 %v581
        %2931 = vmatpush1.msra.mxu0 %v580
        %2932 = vmatprep.subr.mxu0 0.0
        %2933 = vmatpush2.msra.mxu0 0.0
        %2934 = vmatprep.subr.mxu0 0.0
        %2935 = vmatpush2.msra.mxu0 0.0
        %2936 = vmatprep.subr.mxu0 0.0
        %2937 = vmatpush2.msra.mxu0 0.0
        %2938 = vmatprep.subr.mxu0 0.0
        %2939 = vmatpush2.msra.mxu0 0.0
        %2940 = vmatprep.subr.mxu0 0.0
        %2941 = vmatpush2.msra.mxu0 0.0
        %2942 = vmatprep.subr.mxu0 0.0
        %2943 = vmatpush2.msra.mxu0 0.0
        %2944 = vmatprep.subr.mxu0 0.0
        %2945 = vmatpush2.msra.mxu0 0.0
        %2946 = vmatprep.subr.mxu0 0.0
        %2947 = vmatpush2.msra.mxu0 0.0
        %2948 = vmatprep.subr.mxu0 0.0
        %2949 = vmatpush2.msra.mxu0 0.0
        %2950 = vmatprep.subr.mxu0 0.0
        %2951 = vmatpush2.msra.mxu0 0.0
        %2952 = vmatprep.subr.mxu0 0.0
        %2953 = vmatpush2.msra.mxu0 0.0
        %2954 = vmatprep.subr.mxu0 0.0
        %2955 = vmatpush2.msra.mxu0 0.0
        %2956 = vmatprep.subr.mxu0 0.0
        %2957 = vmatpush2.msra.mxu0 0.0
        %2958 = vmatprep.subr.mxu0 0.0
        %2959 = vmatpush2.msra.mxu0 0.0
        %2960 = vmatprep.subr.mxu0 0.0
        %2961 = vmatpush2.msra.mxu0 0.0
        %2962 = vmatprep.subr.mxu0 0.0
        %2963 = vmatpush2.msra.mxu0 0.0
        %2964 = vmatprep.mubr.f32.mxu0 0.0
        %2965 = vmatmul.mubr.f32.gmra.mxu0 %v2898
        %v2966 = vpop.f32.mrf.mxu0
        %v2967 = vadd.f32 0.0, %v2966
        %v2968 = vpop.f32.mrf.mxu0
        %v2969 = vadd.f32 0.0, %v2968
        %2970 = vdwg.mxu0
        %v2971 = vsel %vm604, %v2848, 0
        %2973 = vmatprep.subr.mxu0 0.0
        %2974 = vmatpush1.msra.mxu0 0.0
        %2975 = vmatprep.subr.mxu0 0.0
        %2976 = vmatpush1.msra.mxu0 0.0
        %2977 = vmatprep.subr.mxu0 0.0
        %2978 = vmatpush1.msra.mxu0 0.0
        %2979 = vmatprep.subr.mxu0 0.0
        %2980 = vmatpush1.msra.mxu0 0.0
        %2981 = vmatprep.subr.mxu0 0.0
        %2982 = vmatpush1.msra.mxu0 0.0
        %2983 = vmatprep.subr.mxu0 0.0
        %2984 = vmatpush1.msra.mxu0 0.0
        %2985 = vmatprep.subr.mxu0 0.0
        %2986 = vmatpush1.msra.mxu0 0.0
        %2987 = vmatprep.subr.mxu0 0.0
        %2988 = vmatpush1.msra.mxu0 0.0
        %2989 = vmatprep.subr.mxu0 0.0
        %2990 = vmatpush1.msra.mxu0 0.0
        %2991 = vmatprep.subr.mxu0 0.0
        %2992 = vmatpush1.msra.mxu0 0.0
        %2993 = vmatprep.subr.mxu0 0.0
        %2994 = vmatpush1.msra.mxu0 0.0
        %2995 = vmatprep.subr.mxu0 0.0
        %2996 = vmatpush1.msra.mxu0 0.0
        %2997 = vmatprep.subr.mxu0 0.0
        %2998 = vmatpush1.msra.mxu0 %v591
        %2999 = vmatprep.subr.mxu0 0.0
        %3000 = vmatpush1.msra.mxu0 %v590
        %3001 = vmatprep.subr.mxu0 0.0
        %3002 = vmatpush1.msra.mxu0 %v589
        %3003 = vmatprep.subr.mxu0 0.0
        %3004 = vmatpush1.msra.mxu0 %v588
        %3005 = vmatprep.subr.mxu0 0.0
        %3006 = vmatpush2.msra.mxu0 0.0
        %3007 = vmatprep.subr.mxu0 0.0
        %3008 = vmatpush2.msra.mxu0 0.0
        %3009 = vmatprep.subr.mxu0 0.0
        %3010 = vmatpush2.msra.mxu0 0.0
        %3011 = vmatprep.subr.mxu0 0.0
        %3012 = vmatpush2.msra.mxu0 0.0
        %3013 = vmatprep.subr.mxu0 0.0
        %3014 = vmatpush2.msra.mxu0 0.0
        %3015 = vmatprep.subr.mxu0 0.0
        %3016 = vmatpush2.msra.mxu0 0.0
        %3017 = vmatprep.subr.mxu0 0.0
        %3018 = vmatpush2.msra.mxu0 0.0
        %3019 = vmatprep.subr.mxu0 0.0
        %3020 = vmatpush2.msra.mxu0 0.0
        %3021 = vmatprep.subr.mxu0 0.0
        %3022 = vmatpush2.msra.mxu0 0.0
        %3023 = vmatprep.subr.mxu0 0.0
        %3024 = vmatpush2.msra.mxu0 0.0
        %3025 = vmatprep.subr.mxu0 0.0
        %3026 = vmatpush2.msra.mxu0 0.0
        %3027 = vmatprep.subr.mxu0 0.0
        %3028 = vmatpush2.msra.mxu0 0.0
        %3029 = vmatprep.subr.mxu0 0.0
        %3030 = vmatpush2.msra.mxu0 0.0
        %3031 = vmatprep.subr.mxu0 0.0
        %3032 = vmatpush2.msra.mxu0 0.0
        %3033 = vmatprep.subr.mxu0 0.0
        %3034 = vmatpush2.msra.mxu0 0.0
        %3035 = vmatprep.subr.mxu0 0.0
        %3036 = vmatpush2.msra.mxu0 0.0
        %3037 = vmatprep.mubr.f32.mxu0 0.0
        %3038 = vmatmul.mubr.f32.gmra.mxu0 %v2971
        %v3039 = vpop.f32.mrf.mxu0
        %v3040 = vadd.f32 0.0, %v3039
        %v3041 = vpop.f32.mrf.mxu0
        %3042 = vdwg.mxu0
        %v3043 = vmul.f32 %v2967, %v3040
        %v3045 = vsel %vm604, %v3043, 0
        %3047 = vmatprep.subr.mxu0 0.0
        %3048 = vmatpush1.msra.mxu0 0.0
        %3049 = vmatprep.subr.mxu0 0.0
        %3050 = vmatpush1.msra.mxu0 0.0
        %3051 = vmatprep.subr.mxu0 0.0
        %3052 = vmatpush1.msra.mxu0 0.0
        %3053 = vmatprep.subr.mxu0 0.0
        %3054 = vmatpush1.msra.mxu0 0.0
        %3055 = vmatprep.subr.mxu0 0.0
        %3056 = vmatpush1.msra.mxu0 0.0
        %3057 = vmatprep.subr.mxu0 0.0
        %3058 = vmatpush1.msra.mxu0 0.0
        %3059 = vmatprep.subr.mxu0 0.0
        %3060 = vmatpush1.msra.mxu0 0.0
        %3061 = vmatprep.subr.mxu0 0.0
        %3062 = vmatpush1.msra.mxu0 0.0
        %3063 = vmatprep.subr.mxu0 0.0
        %3064 = vmatpush1.msra.mxu0 0.0
        %3065 = vmatprep.subr.mxu0 0.0
        %3066 = vmatpush1.msra.mxu0 0.0
        %3067 = vmatprep.subr.mxu0 0.0
        %3068 = vmatpush1.msra.mxu0 0.0
        %3069 = vmatprep.subr.mxu0 0.0
        %3070 = vmatpush1.msra.mxu0 0.0
        %3071 = vmatprep.subr.mxu0 0.0
        %3072 = vmatpush1.msra.mxu0 %v595
        %3073 = vmatprep.subr.mxu0 0.0
        %3074 = vmatpush1.msra.mxu0 %v594
        %3075 = vmatprep.subr.mxu0 0.0
        %3076 = vmatpush1.msra.mxu0 %v593
        %3077 = vmatprep.subr.mxu0 0.0
        %3078 = vmatpush1.msra.mxu0 %v592
        %3079 = vmatprep.subr.mxu0 0.0
        %3080 = vmatpush2.msra.mxu0 0.0
        %3081 = vmatprep.subr.mxu0 0.0
        %3082 = vmatpush2.msra.mxu0 0.0
        %3083 = vmatprep.subr.mxu0 0.0
        %3084 = vmatpush2.msra.mxu0 0.0
        %3085 = vmatprep.subr.mxu0 0.0
        %3086 = vmatpush2.msra.mxu0 0.0
        %3087 = vmatprep.subr.mxu0 0.0
        %3088 = vmatpush2.msra.mxu0 0.0
        %3089 = vmatprep.subr.mxu0 0.0
        %3090 = vmatpush2.msra.mxu0 0.0
        %3091 = vmatprep.subr.mxu0 0.0
        %3092 = vmatpush2.msra.mxu0 0.0
        %3093 = vmatprep.subr.mxu0 0.0
        %3094 = vmatpush2.msra.mxu0 0.0
        %3095 = vmatprep.subr.mxu0 0.0
        %3096 = vmatpush2.msra.mxu0 0.0
        %3097 = vmatprep.subr.mxu0 0.0
        %3098 = vmatpush2.msra.mxu0 0.0
        %3099 = vmatprep.subr.mxu0 0.0
        %3100 = vmatpush2.msra.mxu0 0.0
        %3101 = vmatprep.subr.mxu0 0.0
        %3102 = vmatpush2.msra.mxu0 0.0
        %3103 = vmatprep.subr.mxu0 0.0
        %3104 = vmatpush2.msra.mxu0 0.0
        %3105 = vmatprep.subr.mxu0 0.0
        %3106 = vmatpush2.msra.mxu0 0.0
        %3107 = vmatprep.subr.mxu0 0.0
        %3108 = vmatpush2.msra.mxu0 0.0
        %3109 = vmatprep.subr.mxu0 0.0
        %3110 = vmatpush2.msra.mxu0 0.0
        %3111 = vmatprep.mubr.f32.mxu0 0.0
        %3112 = vmatmul.mubr.f32.gmra.mxu0 %v3045
        %v3113 = vpop.f32.mrf.mxu0
        %v3114 = vadd.f32 0.0, %v3113
        %v3115 = vpop.f32.mrf.mxu0
        %3116 = vdwg.mxu0
        %3118 = vrot.lane.b32.xlu0 %v3114, 32
        %v3119 = vpop.permute.xlu0 %3118
        %v3121 = vadd.f32 %v2967, %v3119
        %v3122 = vadd.f32 %v2969, %v3119
        %v3123 = vadd.f32 %v3121, %v837
        %v3124 = vadd.f32 %v3122, %v837
        %v3125 = vxor.u32 %v3123, 2147483648
        %v3126 = vmul.f32 %v3125, 1.442695
        %v3127 = vpow.pop %v3126
        %v3128 = vadd.f32 %v3127, 1.0
        %v3129 = vrcp.pop %v3128
        %v3130 = vmul.f32 1.0, %v3129
        %v3131 = vtanh.pop %v3124
        %3133 = vrot.lane.b32.xlu0 %v2867, 64
        %v3134 = vpop.permute.xlu0 %3133
        %v3136 = vmul.f32 %v3130, %v3134
        %3138 = vrot.lane.b32.xlu0 %v3131, 32
        %v3139 = vpop.permute.xlu0 %3138
        %v3141 = vmul.f32 %v3130, %v3139
        %3143 = vrot.lane.b32.xlu0 %v3141, 32
        %v3144 = vpop.permute.xlu0 %3143
        %v3146 = vadd.f32 %v3136, %v3144
        %v3147 = vtanh.pop %v3146
        %3149 = vrot.lane.b32.xlu0 %v3147, 32
        %v3150 = vpop.permute.xlu0 %3149
        %v3152 = vmul.f32 %v3130, %v3150
        %3153 = vrot.lane.b32.xlu0 %v2848, 96
        %v3154 = vpop.permute.xlu0 %3153
        %v3156 = vsub.f32 %v3152, %v3154
        %v3158 = vrot.slane %v3156, 1
        %v3159 = vrot.slane %v3156, 2
        %3160 = vrot.lane.b32.xlu0 %v3158, 32
        %v3161 = vpop.permute.xlu0 %3160
        %3162 = vrot.lane.b32.xlu0 %v3159, 32
        %v3163 = vpop.permute.xlu0 %3162
        %v3166 = vmul.f32 %v876, %v3161
        %v3167 = vmul.f32 %v881, %v3163
        %v3170 = vrot.slane %v3166, 7
        %v3171 = vrot.slane %v3167, 6
        %v3172 = vsel %vm602, %v3171, %v3170
        %v3174 = vadd.f32 %v2848, %v3172
        %v3175 = vsub.f32 %v3146, %v3134
        %v3177 = vrot.slane %v3175, 1
        %v3178 = vrot.slane %v3175, 2
        %3179 = vrot.lane.b32.xlu0 %v3177, 64
        %v3180 = vpop.permute.xlu0 %3179
        %3181 = vrot.lane.b32.xlu0 %v3178, 64
        %v3182 = vpop.permute.xlu0 %3181
        %v3185 = vmul.f32 %v876, %v3180
        %v3186 = vmul.f32 %v881, %v3182
        %v3189 = vrot.slane %v3185, 7
        %v3190 = vrot.slane %v3186, 6
        %v3191 = vsel %vm602, %v3190, %v3189
        %v3193 = vadd.f32 %v2867, %v3191
        %v3196 = vunpack.c.l.s4 1966171168
        %v3197 = vunpack.c.0.s8 %v3196
        %v3198 = vlaneseq
        %v3199 = vshrl.u32 %v3198, 7
        %v3200 = vsub.s32 %v3197, %v3199
        %v3201 = vrot.slane %v3174, %v3200
        %v3202 = vcombine.high %v3201, %v3201
        %v3204 = vunpack.c.l.s4 1966171168
        %v3205 = vunpack.c.0.s8 %v3204
        %v3206 = vlaneseq
        %v3207 = vshrl.u32 %v3206, 7
        %v3208 = vsub.s32 %v3205, %v3207
        %v3209 = vrot.slane %v3201, %v3208
        %v3211 = vunpack.c.l.s4 1966171168
        %v3212 = vunpack.c.0.s8 %v3211
        %v3213 = vlaneseq
        %v3214 = vshrl.u32 %v3213, 7
        %v3215 = vsub.s32 %v3212, %v3214
        %v3216 = vrot.slane %v3202, %v3215
        %3219 = vst.msk [vmem:[%s551 + $0x7] sm:$0x1] %vm941, %v3209
        %3220 = vst.msk [vmem:[%s551 + $0xf] sm:$0x1] %vm941, %v3216
        %vm3221 = vcmask 254976
        %3222 = vst.msk [vmem:[#allocation2] sm:$0x3] %vm3221, %v3174
        %3223 = vst.msk [vmem:[#allocation3] sm:$0x3] %vm3221, %v3193
        %p3224 = scmp.eq.s32.totalorder %s33, 2
        // Predicated region
        $region145: #{tpu_custom_call.1} parent=119 // pred_check
          %p3225 = pneg %p3224
        $region146: #{tpu_custom_call.1} parent=119 // pred_check_branch
          %3227 = sbr.rel (%p3225) target = $region148
        $region147: #{tpu_custom_call.1} parent=119 // pred_region
          %3228 = vst.msk [vmem:[#allocation13] sm:$0x3] %vm3221, %v3174
          %3229 = vst.msk [vmem:[#allocation15] sm:$0x3] %vm3221, %v3193
        $region148: #{tpu_custom_call.1} parent=119 // pred_fallthru
          _
        %s3230 = sand.u32 %s242, 1
        %s3231 = scalar_lea.sflag [#allocation8], %s3230
        %s3232 = sand.u32 %s242, 1
        %s3233 = smul.addr %s3232, 16
        %s3234 = scalar_lea.vmem [#allocation12], %s3233
        // Predicated region
        $region149: #{tpu_custom_call.1} parent=119 // pred_check
          %p3235 = pneg %p252
        $region150: #{tpu_custom_call.1} parent=119 // pred_check_branch
          %3237 = sbr.rel (%p3235) target = $region152
        $region151: #{tpu_custom_call.1} parent=119 // pred_region
          %s3238 = smul.u32 2, %s32
          %s3240 = ssub.s32 256, 256
          %3241 = vsyncadd %s3231, %s3240
          %s3242 = smul.addr %s3238, 3
          %s3243 = sadd.s32 %s33, %s3242
          %s3244 = smul.addr %s3243, 128
          %s3245 = scalar_lea.hbm %s8, %s3244
          %s3246 = sshll.u32 %s3234, 4
          %s3247 = int_to_ptr.vmem [resolvable:$true] %s3246
          %3252 = dma.vmem_to_hbm [thread:$0]  %s3247, 256, %s3245, %s3231, 128, 384, 8
        $region152: #{tpu_custom_call.1} parent=119 // pred_fallthru
          _
        // Predicated region
        $region153: #{tpu_custom_call.1} parent=119 // pred_check
          %p3253 = pneg %p278
        $region154: #{tpu_custom_call.1} parent=119 // pred_check_branch
          %3255 = sbr.rel (%p3253) target = $region156
        $region155: #{tpu_custom_call.1} parent=119 // pred_region
          %s3257 = ssub.s32 32, 32
          %3258 = vsyncadd [#allocation14], %s3257
          %s3259 = smul.addr %s32, 32
          %s3260 = scalar_lea.hbm %s9, %s3259
          %s3262 = sshll.u32 [#allocation13], 4
          %s3263 = int_to_ptr.vmem [resolvable:$true] %s3262
          %3265 = dma.vmem_to_hbm [thread:$0]  %s3263, 32, %s3260, [#allocation14]
        $region156: #{tpu_custom_call.1} parent=119 // pred_fallthru
          _
        // Predicated region
        $region157: #{tpu_custom_call.1} parent=119 // pred_check
          %p3266 = pneg %p304
        $region158: #{tpu_custom_call.1} parent=119 // pred_check_branch
          %3268 = sbr.rel (%p3266) target = $region160
        $region159: #{tpu_custom_call.1} parent=119 // pred_region
          %s3270 = ssub.s32 32, 32
          %3271 = vsyncadd [#allocation14], %s3270
          %s3272 = smul.addr %s32, 32
          %s3273 = scalar_lea.hbm %s10, %s3272
          %s3275 = sshll.u32 [#allocation15], 4
          %s3276 = int_to_ptr.vmem [resolvable:$true] %s3275
          %3278 = dma.vmem_to_hbm [thread:$0]  %s3276, 32, %s3273, [#allocation14]
        $region160: #{tpu_custom_call.1} parent=119 // pred_fallthru
          _
        // Predicated region
        $region161: #{tpu_custom_call.1} parent=119 // pred_check
          %p3279 = pneg %p278
        $region162: #{tpu_custom_call.1} parent=119 // pred_check_branch
          %3281 = sbr.rel (%p3279) target = $region164
        $region163: #{tpu_custom_call.1} parent=119 // pred_region
          %3282 = dma.done [#allocation14], 32
        $region164: #{tpu_custom_call.1} parent=119 // pred_fallthru
          _
        // Predicated region
        $region165: #{tpu_custom_call.1} parent=119 // pred_check
          %p3283 = pneg %p304
        $region166: #{tpu_custom_call.1} parent=119 // pred_check_branch
          %3285 = sbr.rel (%p3283) target = $region168
        $region167: #{tpu_custom_call.1} parent=119 // pred_region
          %3286 = dma.done [#allocation14], 32
        $region168: #{tpu_custom_call.1} parent=119 // pred_fallthru
          _
      $region120: #{tpu_custom_call.1} parent=5 // pred_fallthru
        _
      %p3287 = scmp.le.s32.totalorder 2, %s23
      // Predicated region
      $region169: #{tpu_custom_call.1} parent=5 // pred_check
        %p3288 = pneg %p3287
      $region170: #{tpu_custom_call.1} parent=5 // pred_check_branch
        %3290 = sbr.rel (%p3288) target = $region172
      $region171: #{tpu_custom_call.1} parent=5 // pred_region
        %s3291 = ssub.s32 %s23, 2
        // Predicated region
        $region173: #{tpu_custom_call.1} parent=171 // pred_check
          %p3292 = pneg %p258
        $region174: #{tpu_custom_call.1} parent=171 // pred_check_branch
          %3294 = sbr.rel (%p3292) target = $region176
        $region175: #{tpu_custom_call.1} parent=171 // pred_region
          %s3295 = sand.u32 %s243, 1
          %s3296 = scalar_lea.sflag [#allocation8], %s3295
          %s3297 = sand.u32 %s243, 1
          %s3298 = smul.addr %s3297, 16
          %s3299 = scalar_lea.vmem [#allocation12], %s3298
          %3300 = dma.done %s3296, 256
        $region176: #{tpu_custom_call.1} parent=171 // pred_fallthru
          _
      $region172: #{tpu_custom_call.1} parent=5 // pred_fallthru
        _
    $region6: #{tpu_custom_call.1} parent=1 // loop_footer
      %s27 = sadd.s32 1, %s23
    $region7: #{tpu_custom_call.1} parent=1 // loop_footer_branch
      %22 = sbr.rel target = $region3
    $region8: #{tpu_custom_call.1} parent=1 // loop_exit
      _
    %3301 = vsyncpa [#allocation7], 1
    %s3302 = scalar_lea.sflag [#allocation7], 1
    %3303 = vsyncpa %s3302, 1
    %3304 = vsyncpa [#allocation10], 1
    %3305 = vsyncpa [#allocation8], 1
    %s3306 = scalar_lea.sflag [#allocation8], 1
    %3307 = vsyncpa %s3306, 1
    %3308 = vsyncpa [#allocation14], 1

</llo_original>
